<compile_context>
chip_gen: v5e
topology: v5e:2x2
jax: 0.10.0
libtpu: 0.0.40
codegen_flags: <defaults>
</compile_context>

<pallas_src>
import functools
import math

import jax
import jax.numpy as jnp
from jax import lax
from jax.experimental import pallas as pl
from jax.experimental.pallas import tpu as pltpu


_OFF2 = 8  # sublane-aligned interior column offset inside the conv2 scratch


# ------------------------------ fused kernel --------------------------------

def _make_blaze_kernel(*, stride, k, H, W, oup1, cout, b_tile, use_double):
    p = (k - 1) // 2
    Ho, Wo = H // stride, W // stride
    M = b_tile * Ho * Wo
    n_x = 1 if stride == 1 else 4
    off2 = _OFF2
    assert off2 >= p

    def kernel(*args):
        x_refs = args[:n_x]
        idx = n_x
        w1_ref, b1_ref = args[idx], args[idx + 1]
        idx += 2
        if use_double:
            w2_ref, b2_ref = args[idx], args[idx + 1]
            idx += 2
        o_ref = args[idx]
        hpad_ref = args[idx + 1] if use_double else None

        # ---- conv1: depthwise kxk (stride) + BN -> 1x1 + BN, as k*k MXU matmuls ----
        def tap1(di, dj):
            if stride == 1:
                t = x_refs[0][:, di:di + Ho, dj:dj + Wo, :]
            else:
                # polyphase plane ph holds xpad[a::2, b::2]; padded row 2i+di lives in
                # plane (di%2) at within-plane row i + di//2.
                ph = (di % 2) * 2 + (dj % 2)
                u, v = di // 2, dj // 2
                t = x_refs[ph][:, u:u + Ho, v:v + Wo, :]
            return t.reshape(M, cout)

        h = None
        for di in range(k):
            for dj in range(k):
                part = jnp.dot(tap1(di, dj), w1_ref[di * k + dj],
                               preferred_element_type=jnp.float32)
                h = part if h is None else h + part
        h = h + b1_ref[...]

        if use_double:
            # ---- conv2: ReLU -> depthwise kxk (stride 1) + BN -> 1x1 + BN -----------
            wp2 = off2 + Wo + p
            # Zero only the halo, every step (megacore-safe; interior rewritten below).
            hpad_ref[:, 0:p, :, :] = jnp.zeros((b_tile, p, wp2, oup1), jnp.float32)
            hpad_ref[:, p + Ho:Ho + 2 * p, :, :] = jnp.zeros(
                (b_tile, p, wp2, oup1), jnp.float32)
            hpad_ref[:, p:p + Ho, off2 - p:off2, :] = jnp.zeros(
                (b_tile, Ho, p, oup1), jnp.float32)
            hpad_ref[:, p:p + Ho, off2 + Wo:off2 + Wo + p, :] = jnp.zeros(
                (b_tile, Ho, p, oup1), jnp.float32)
            # interior stored at sublane offset 8 -> unmasked, dense store
            hpad_ref[:, p:p + Ho, off2:off2 + Wo, :] = (
                jnp.maximum(h, 0.0).reshape(b_tile, Ho, Wo, oup1))

            h = None
            for di in range(k):
                for dj in range(k):
                    c0 = off2 - p + dj
                    lhs = hpad_ref[:, di:di + Ho, c0:c0 + Wo, :].reshape(M, oup1)
                    part = jnp.dot(lhs, w2_ref[di * k + dj],
                                   preferred_element_type=jnp.float32)
                    h = part if h is None else h + part
            h = h + b2_ref[...]

        # ---- skip path: 2x2 max-pool (if strided); channels pre-padded in HBM -------
        if stride == 1:
            skip = x_refs[0][:, p:p + H, p:p + W, :].reshape(M, cout)
        else:
            skip = None
            for a in range(2):
                for b in range(2):
                    # unpadded index 2*i + a maps to padded index 2*i + a + p
                    pa, ua = (a + p) % 2, (a + p) // 2
                    pb, ub = (b + p) % 2, (b + p) // 2
                    v = x_refs[pa * 2 + pb][:, ua:ua + Ho, ub:ub + Wo, :]
                    v = v.reshape(M, cout)
                    skip = v if skip is None else jnp.maximum(skip, v)

        out = jnp.maximum(h + skip.astype(jnp.float32), 0.0)
        o_ref[...] = out.reshape(b_tile, Ho, Wo, cout).astype(o_ref.dtype)

    return kernel


# ------------------------------ pallas wrapper -------------------------------

def _pick_b_tile(n, m_img, per_image_bytes, vmem_budget=24 << 20):
    """Largest batch fold that keeps >=2 grid steps when possible (megacore), stays
    inside the VMEM budget, and stops once the matmul row dim reaches 256."""
    best = 1
    for d in range(1, n + 1):
        if n % d:
            continue
        if n >= 2 and n // d < 2:
            break
        if d * per_image_bytes > vmem_budget:
            break
        best = d
        if d * m_img >= 256:
            break
    return best


def _full_spec(shape):
    nd = len(shape)
    return pl.BlockSpec(tuple(shape), lambda n, _nd=nd: (0,) * _nd)


def _nbytes(shape, dtype):
    return math.prod(shape) * jnp.dtype(dtype).itemsize


def blaze_block_pallas(x_nhwc, params, *, stride, kernel_size,
                       operand_dtype=jnp.bfloat16, b_tile=None):
    """Fused BlazeBlock forward.  x_nhwc: [N, H, W, Cin] f32; params from fold_params.

    NHWC in / NHWC out so consecutive blocks can chain without HBM transposes."""
    N, H, W, cin = x_nhwc.shape
    k = kernel_size
    assert k % 2 == 1, "even kernel_size (asymmetric padding) unsupported"
    p = (k - 1) // 2
    use_double = "w2_taps" in params
    oup1 = params["w1_taps"].shape[-1]
    cout = params["w2_taps"].shape[-1] if use_double else oup1
    cpad = cout - cin
    assert stride in (1, 2)
    assert cpad >= 0
    if stride == 2:
        assert H % 2 == 0 and W % 2 == 0
    Ho, Wo = H // stride, W // stride

    # Residual channel zero-pad done once in HBM so the in-kernel skip needs no lane concat.
    x = x_nhwc
    if cpad > 0:
        x = jnp.pad(x, ((0, 0), (0, 0), (0, 0), (0, cpad)))
    xpad = jnp.pad(x, ((0, 0), (p, p), (p, p), (0, 0))).astype(operand_dtype)
    Hp, Wp = H + 2 * p, W + 2 * p

    if stride == 1:
        x_inputs = [xpad]
        x_block = (Hp, Wp, cout)
    else:
        Hq, Wq = Hp // 2, Wp // 2
        # polyphase planes: plane[2a+b] = xpad[:, a::2, b::2, :]
        x_inputs = [xpad[:, a::2, b::2, :] for a in range(2) for b in range(2)]
        x_block = (Hq, Wq, cout)

    # ---- batch folding --------------------------------------------------------------
    per_image_bytes = 2 * (len(x_inputs) * _nbytes(x_block, operand_dtype)
                           + _nbytes((Ho, Wo, cout), jnp.float32))  # double-buffered
    if use_double:
        per_image_bytes += _nbytes((Ho + 2 * p, _OFF2 + Wo + p, oup1), jnp.float32)
    if b_tile is None:
        b_tile = _pick_b_tile(N, Ho * Wo, per_image_bytes)
    assert N % b_tile == 0

    # ---- weights: per-tap folded (dw x 1x1 x BN) matrices; conv1 operands in bf16 ----
    w1 = params["w1_taps"]
    if cpad > 0:
        w1 = jnp.pad(w1, ((0, 0), (0, cpad), (0, 0)))  # zero rows for padded channels
    weight_args = [w1.astype(operand_dtype),
                   params["b1"].reshape(1, -1).astype(jnp.float32)]
    if use_double:
        weight_args += [params["w2_taps"].astype(jnp.float32),
                        params["b2"].reshape(1, -1).astype(jnp.float32)]

    kernel = _make_blaze_kernel(stride=stride, k=k, H=H, W=W, oup1=oup1,
                                cout=cout, b_tile=b_tile, use_double=use_double)

    in_specs = [pl.BlockSpec((b_tile,) + x_block, lambda n: (n, 0, 0, 0))
                for _ in x_inputs]
    in_specs += [_full_spec(a.shape) for a in weight_args]
    out_spec = pl.BlockSpec((b_tile, Ho, Wo, cout), lambda n: (n, 0, 0, 0))

    scratch_shapes = []
    if use_double:
        scratch_shapes = [pltpu.VMEM((b_tile, Ho + 2 * p, _OFF2 + Wo + p, oup1),
                                     jnp.float32)]

    vmem_est = (b_tile * per_image_bytes
                + sum(_nbytes(a.shape, a.dtype) for a in weight_args))
    vmem_limit = int(min(64 << 20, max(16 << 20, 4 * vmem_est)))

    out = pl.pallas_call(
        kernel,
        out_shape=jax.ShapeDtypeStruct((N, Ho, Wo, cout), jnp.float32),
        grid=(N // b_tile,),
        in_specs=in_specs,
        out_specs=out_spec,
        scratch_shapes=scratch_shapes,
        compiler_params=pltpu.CompilerParams(
            dimension_semantics=("parallel",),
            vmem_limit_bytes=vmem_limit),
    )(*x_inputs, *weight_args)
    return out


def blaze_block_forward(x_nchw, params, *, stride, kernel_size,
                        operand_dtype=jnp.bfloat16):
    """Module-level API: NCHW in, NCHW out (matching the PyTorch BlazeBlock).
    Prefer chaining blaze_block_pallas (NHWC) directly between blocks."""
    x = jnp.transpose(x_nchw, (0, 2, 3, 1))
    y = blaze_block_pallas(x, params, stride=stride, kernel_size=kernel_size,
                           operand_dtype=operand_dtype)
    return jnp.transpose(y, (0, 3, 1, 2))


# -------------------------- params: init & folding ---------------------------

def init_raw_params(key, inp, oup1, oup2=None, kernel_size=5):
    k = kernel_size
    keys = iter(jax.random.split(key, 64))

    def bn(c):
        return {"gamma": jax.random.uniform(next(keys), (c,), jnp.float32, 0.5, 1.5),
                "beta": 0.1 * jax.random.normal(next(keys), (c,), jnp.float32),
                "mean": 0.1 * jax.random.normal(next(keys), (c,), jnp.float32),
                "var": jax.random.uniform(next(keys), (c,), jnp.float32, 0.5, 1.5),
                "eps": 1e-5}

    def conv1x1(ci, co):
        w = jax.random.normal(next(keys), (1, 1, ci, co), jnp.float32) / math.sqrt(ci)
        b = 0.1 * jax.random.normal(next(keys), (co,), jnp.float32)
        return w, b

    def convdw(c):
        w = jax.random.normal(next(keys), (k, k, 1, c), jnp.float32) / float(k)
        b = 0.1 * jax.random.normal(next(keys), (c,), jnp.float32)
        return w, b

    raw = {}
    dw_w, dw_b = convdw(inp)
    pw_w, pw_b = conv1x1(inp, oup1)
    raw["conv1"] = {"dw_w": dw_w, "dw_b": dw_b, "bn_dw": bn(inp),
                    "pw_w": pw_w, "pw_b": pw_b, "bn_pw": bn(oup1)}
    if oup2 is not None:
        dw_w, dw_b = convdw(oup1)
        pw_w, pw_b = conv1x1(oup1, oup2)
        raw["conv2"] = {"dw_w": dw_w, "dw_b": dw_b, "bn_dw": bn(oup1),
                        "pw_w": pw_w, "pw_b": pw_b, "bn_pw": bn(oup2)}
    return raw


def fold_params(raw, kernel_size):
    """Fold eval-mode BN into the convs, then fold each depthwise conv into its
    following 1x1 conv as k*k per-tap matrices: W_t = diag(w_dw[t]) @ W_pw and
    b = b_dw @ W_pw + b_pw, so the in-kernel dw stage becomes k*k accumulated MXU matmuls."""
    k = kernel_size

    def fold_bn(w, b, bn):
        s = bn["gamma"] / jnp.sqrt(bn["var"] + bn["eps"])
        return w * s, (b - bn["mean"]) * s + bn["beta"]

    def fold_stage(stage):
        wd, bd = fold_bn(stage["dw_w"], stage["dw_b"], stage["bn_dw"])   # (k,k,1,ci)
        wp, bp = fold_bn(stage["pw_w"], stage["pw_b"], stage["bn_pw"])   # (1,1,ci,co)
        ci, co = wp.shape[2], wp.shape[3]
        wd = wd.reshape(k * k, ci)                       # [tap, c]
        wp = wp.reshape(ci, co)                          # [c, o]
        w_taps = wd[:, :, None] * wp[None, :, :]         # [tap, c, o]
        b = bd @ wp + bp                                 # [o]
        return w_taps, b

    w1, b1 = fold_stage(raw["conv1"])
    params = {"w1_taps": w1, "b1": b1}
    if "conv2" in raw:
        w2, b2 = fold_stage(raw["conv2"])
        params["w2_taps"] = w2
        params["b2"] = b2
    return params


# ------------------------ pure-JAX reference (for check) ---------------------

def blaze_block_reference(x_nchw, raw, *, stride, kernel_size):
    """Straight port of BlazeBlock.forward (BatchNorm in eval mode), NCHW in/out."""
    k = kernel_size
    p = (k - 1) // 2
    x = jnp.transpose(x_nchw, (0, 2, 3, 1))          # NCHW -> NHWC
    cin = x.shape[-1]
    dn = ("NHWC", "HWIO", "NHWC")

    def bn(y, b):
        s = b["gamma"] / jnp.sqrt(b["var"] + b["eps"])
        return (y - b["mean"]) * s + b["beta"]

    def dw_conv(z, w, bias, s):
        y = lax.conv_general_dilated(z, w, (s, s), [(p, p), (p, p)],
                                     dimension_numbers=dn,
                                     feature_group_count=z.shape[-1])
        return y + bias

    def pw_conv(z, w, bias):
        y = lax.conv_general_dilated(z, w, (1, 1), [(0, 0), (0, 0)],
                                     dimension_numbers=dn)
        return y + bias

    c1 = raw["conv1"]
    h = bn(dw_conv(x, c1["dw_w"], c1["dw_b"], stride), c1["bn_dw"])
    h = bn(pw_conv(h, c1["pw_w"], c1["pw_b"]), c1["bn_pw"])
    if "conv2" in raw:
        c2 = raw["conv2"]
        h = jnp.maximum(h, 0.0)
        h = bn(dw_conv(h, c2["dw_w"], c2["dw_b"], 1), c2["bn_dw"])
        h = bn(pw_conv(h, c2["pw_w"], c2["pw_b"]), c2["bn_pw"])
    if stride != 1:
        x = lax.reduce_window(x, -jnp.inf, lax.max,
                              (1, stride, stride, 1), (1, stride, stride, 1), "VALID")
    cpad = h.shape[-1] - cin
    if cpad > 0:
        x = jnp.pad(x, ((0, 0), (0, 0), (0, 0), (0, cpad)))
    out = jnp.maximum(h + x, 0.0)
    return jnp.transpose(out, (0, 3, 1, 2))          # NHWC -> NCHW


# ---------------------------------- main -------------------------------------

if __name__ == "__main__":
    key = jax.random.PRNGKey(0)
    kernel_size = 5
    N, H, W = 4, 16, 16

    # covers: double-block + pooling + channel-pad, single-block stride-1 (no pad),
    #         single-block + pooling + channel-pad; exercises b_tile=2 and b_tile=1.
    configs = [
        dict(inp=24, oup1=24, oup2=48, stride=2),
        dict(inp=24, oup1=24, oup2=None, stride=1),
        dict(inp=24, oup1=48, oup2=None, stride=2),
    ]

    for i, cfg in enumerate(configs):
        kx, kp = jax.random.split(jax.random.fold_in(key, i))
        x = jax.random.normal(kx, (N, cfg["inp"], H, W), jnp.float32)
        raw = init_raw_params(kp, cfg["inp"], cfg["oup1"], cfg["oup2"], kernel_size)
        folded = fold_params(raw, kernel_size)

        run = jax.jit(functools.partial(blaze_block_forward,
                                        stride=cfg["stride"],
                                        kernel_size=kernel_size))
        out = jax.block_until_ready(run(x, folded))
        ref = jax.block_until_ready(
            blaze_block_reference(x, raw, stride=cfg["stride"],
                                  kernel_size=kernel_size))

        assert out.shape == ref.shape, (out.shape, ref.shape)
        assert bool(jnp.all(jnp.isfinite(out)))
        err = float(jnp.max(jnp.abs(out - ref)))
        tol = 1e-3 + 1e-2 * float(jnp.max(jnp.abs(ref)))
        assert err < tol, f"config {i}: max abs err {err} (tol {tol})"

    print("KERNEL_OK")
</pallas_src>

<mosaic_0001>
module attributes {stable_mosaic.version = 11 : i64} {
  func.func @kernel(%arg0: i32, %arg1: memref<2x10x10x48xbf16, #tpu.memory_space<vmem>>, %arg2: memref<2x10x10x48xbf16, #tpu.memory_space<vmem>>, %arg3: memref<2x10x10x48xbf16, #tpu.memory_space<vmem>>, %arg4: memref<2x10x10x48xbf16, #tpu.memory_space<vmem>>, %arg5: memref<25x48x24xbf16, #tpu.memory_space<vmem>>, %arg6: memref<1x24xf32, #tpu.memory_space<vmem>>, %arg7: memref<25x24x48xf32, #tpu.memory_space<vmem>>, %arg8: memref<1x48xf32, #tpu.memory_space<vmem>>, %arg9: memref<2x8x8x48xf32, #tpu.memory_space<vmem>>, %arg10: memref<2x12x18x24xf32, #tpu.memory_space<vmem>>) attributes {dimension_semantics = [#tpu.dimension_semantics<parallel>], iteration_bounds = array<i64: 2>, scalar_prefetch = 0 : i64, scratch_operands = 1 : i64, tpu.core_type = #tpu.core_type<tc>, window_params = [{transform_indices = @transform_0, window_bounds = array<i64: 2, 10, 10, 48>}, {transform_indices = @transform_1, window_bounds = array<i64: 2, 10, 10, 48>}, {transform_indices = @transform_2, window_bounds = array<i64: 2, 10, 10, 48>}, {transform_indices = @transform_3, window_bounds = array<i64: 2, 10, 10, 48>}, {pipeline_mode = #tpu.pipeline_mode<synchronous>, transform_indices = @transform_4, window_bounds = array<i64: 25, 48, 24>}, {pipeline_mode = #tpu.pipeline_mode<synchronous>, transform_indices = @transform_5, window_bounds = array<i64: 1, 24>}, {pipeline_mode = #tpu.pipeline_mode<synchronous>, transform_indices = @transform_6, window_bounds = array<i64: 25, 24, 48>}, {pipeline_mode = #tpu.pipeline_mode<synchronous>, transform_indices = @transform_7, window_bounds = array<i64: 1, 48>}, {transform_indices = @transform_8, window_bounds = array<i64: 2, 8, 8, 48>}]} {
    %c0 = arith.constant 0 : index
    %c0_0 = arith.constant 0 : index
    %c0_1 = arith.constant 0 : index
    %c0_2 = arith.constant 0 : index
    %0 = vector.load %arg1[%c0, %c0_0, %c0_1, %c0_2] : memref<2x10x10x48xbf16, #tpu.memory_space<vmem>>, vector<2x8x8x48xbf16>
    %1 = vector.shape_cast %0 : vector<2x8x8x48xbf16> to vector<128x48xbf16>
    %c0_3 = arith.constant 0 : index
    %c0_4 = arith.constant 0 : index
    %c0_5 = arith.constant 0 : index
    %2 = vector.load %arg5[%c0_3, %c0_4, %c0_5] : memref<25x48x24xbf16, #tpu.memory_space<vmem>>, vector<1x48x24xbf16>
    %3 = vector.shape_cast %2 : vector<1x48x24xbf16> to vector<48x24xbf16>
    %cst = arith.constant dense<0.000000e+00> : vector<128x24xf32>
    %4 = tpu.matmul %1, %3, %cst {dimension_numbers = #tpu.dot_dimension_numbers<[1], [0], [0], [1], [0, 0, 1, 1], [], []>} : vector<128x48xbf16>, vector<48x24xbf16>, vector<128x24xf32> -> vector<128x24xf32>
    %c0_6 = arith.constant 0 : index
    %c0_7 = arith.constant 0 : index
    %c0_8 = arith.constant 0 : index
    %c0_9 = arith.constant 0 : index
    %5 = vector.load %arg2[%c0_6, %c0_7, %c0_8, %c0_9] : memref<2x10x10x48xbf16, #tpu.memory_space<vmem>>, vector<2x8x8x48xbf16>
    %6 = vector.shape_cast %5 : vector<2x8x8x48xbf16> to vector<128x48xbf16>
    %c1 = arith.constant 1 : index
    %c0_10 = arith.constant 0 : index
    %c0_11 = arith.constant 0 : index
    %7 = vector.load %arg5[%c1, %c0_10, %c0_11] : memref<25x48x24xbf16, #tpu.memory_space<vmem>>, vector<1x48x24xbf16>
    %8 = vector.shape_cast %7 : vector<1x48x24xbf16> to vector<48x24xbf16>
    %cst_12 = arith.constant dense<0.000000e+00> : vector<128x24xf32>
    %9 = tpu.matmul %6, %8, %cst_12 {dimension_numbers = #tpu.dot_dimension_numbers<[1], [0], [0], [1], [0, 0, 1, 1], [], []>} : vector<128x48xbf16>, vector<48x24xbf16>, vector<128x24xf32> -> vector<128x24xf32>
    %10 = arith.addf %4, %9 : vector<128x24xf32>
    %c0_13 = arith.constant 0 : index
    %c0_14 = arith.constant 0 : index
    %c1_15 = arith.constant 1 : index
    %c0_16 = arith.constant 0 : index
    %11 = vector.load %arg1[%c0_13, %c0_14, %c1_15, %c0_16] : memref<2x10x10x48xbf16, #tpu.memory_space<vmem>>, vector<2x8x8x48xbf16>
    %12 = vector.shape_cast %11 : vector<2x8x8x48xbf16> to vector<128x48xbf16>
    %c2 = arith.constant 2 : index
    %c0_17 = arith.constant 0 : index
    %c0_18 = arith.constant 0 : index
    %13 = vector.load %arg5[%c2, %c0_17, %c0_18] : memref<25x48x24xbf16, #tpu.memory_space<vmem>>, vector<1x48x24xbf16>
    %14 = vector.shape_cast %13 : vector<1x48x24xbf16> to vector<48x24xbf16>
    %cst_19 = arith.constant dense<0.000000e+00> : vector<128x24xf32>
    %15 = tpu.matmul %12, %14, %cst_19 {dimension_numbers = #tpu.dot_dimension_numbers<[1], [0], [0], [1], [0, 0, 1, 1], [], []>} : vector<128x48xbf16>, vector<48x24xbf16>, vector<128x24xf32> -> vector<128x24xf32>
    %16 = arith.addf %10, %15 : vector<128x24xf32>
    %c0_20 = arith.constant 0 : index
    %c0_21 = arith.constant 0 : index
    %c1_22 = arith.constant 1 : index
    %c0_23 = arith.constant 0 : index
    %17 = vector.load %arg2[%c0_20, %c0_21, %c1_22, %c0_23] : memref<2x10x10x48xbf16, #tpu.memory_space<vmem>>, vector<2x8x8x48xbf16>
    %18 = vector.shape_cast %17 : vector<2x8x8x48xbf16> to vector<128x48xbf16>
    %c3 = arith.constant 3 : index
    %c0_24 = arith.constant 0 : index
    %c0_25 = arith.constant 0 : index
    %19 = vector.load %arg5[%c3, %c0_24, %c0_25] : memref<25x48x24xbf16, #tpu.memory_space<vmem>>, vector<1x48x24xbf16>
    %20 = vector.shape_cast %19 : vector<1x48x24xbf16> to vector<48x24xbf16>
    %cst_26 = arith.constant dense<0.000000e+00> : vector<128x24xf32>
    %21 = tpu.matmul %18, %20, %cst_26 {dimension_numbers = #tpu.dot_dimension_numbers<[1], [0], [0], [1], [0, 0, 1, 1], [], []>} : vector<128x48xbf16>, vector<48x24xbf16>, vector<128x24xf32> -> vector<128x24xf32>
    %22 = arith.addf %16, %21 : vector<128x24xf32>
    %c0_27 = arith.constant 0 : index
    %c0_28 = arith.constant 0 : index
    %c2_29 = arith.constant 2 : index
    %c0_30 = arith.constant 0 : index
    %23 = vector.load %arg1[%c0_27, %c0_28, %c2_29, %c0_30] : memref<2x10x10x48xbf16, #tpu.memory_space<vmem>>, vector<2x8x8x48xbf16>
    %24 = vector.shape_cast %23 : vector<2x8x8x48xbf16> to vector<128x48xbf16>
    %c4 = arith.constant 4 : index
    %c0_31 = arith.constant 0 : index
    %c0_32 = arith.constant 0 : index
    %25 = vector.load %arg5[%c4, %c0_31, %c0_32] : memref<25x48x24xbf16, #tpu.memory_space<vmem>>, vector<1x48x24xbf16>
    %26 = vector.shape_cast %25 : vector<1x48x24xbf16> to vector<48x24xbf16>
    %cst_33 = arith.constant dense<0.000000e+00> : vector<128x24xf32>
    %27 = tpu.matmul %24, %26, %cst_33 {dimension_numbers = #tpu.dot_dimension_numbers<[1], [0], [0], [1], [0, 0, 1, 1], [], []>} : vector<128x48xbf16>, vector<48x24xbf16>, vector<128x24xf32> -> vector<128x24xf32>
    %28 = arith.addf %22, %27 : vector<128x24xf32>
    %c0_34 = arith.constant 0 : index
    %c0_35 = arith.constant 0 : index
    %c0_36 = arith.constant 0 : index
    %c0_37 = arith.constant 0 : index
    %29 = vector.load %arg3[%c0_34, %c0_35, %c0_36, %c0_37] : memref<2x10x10x48xbf16, #tpu.memory_space<vmem>>, vector<2x8x8x48xbf16>
    %30 = vector.shape_cast %29 : vector<2x8x8x48xbf16> to vector<128x48xbf16>
    %c5 = arith.constant 5 : index
    %c0_38 = arith.constant 0 : index
    %c0_39 = arith.constant 0 : index
    %31 = vector.load %arg5[%c5, %c0_38, %c0_39] : memref<25x48x24xbf16, #tpu.memory_space<vmem>>, vector<1x48x24xbf16>
    %32 = vector.shape_cast %31 : vector<1x48x24xbf16> to vector<48x24xbf16>
    %cst_40 = arith.constant dense<0.000000e+00> : vector<128x24xf32>
    %33 = tpu.matmul %30, %32, %cst_40 {dimension_numbers = #tpu.dot_dimension_numbers<[1], [0], [0], [1], [0, 0, 1, 1], [], []>} : vector<128x48xbf16>, vector<48x24xbf16>, vector<128x24xf32> -> vector<128x24xf32>
    %34 = arith.addf %28, %33 : vector<128x24xf32>
    %c0_41 = arith.constant 0 : index
    %c0_42 = arith.constant 0 : index
    %c0_43 = arith.constant 0 : index
    %c0_44 = arith.constant 0 : index
    %35 = vector.load %arg4[%c0_41, %c0_42, %c0_43, %c0_44] : memref<2x10x10x48xbf16, #tpu.memory_space<vmem>>, vector<2x8x8x48xbf16>
    %36 = vector.shape_cast %35 : vector<2x8x8x48xbf16> to vector<128x48xbf16>
    %c6 = arith.constant 6 : index
    %c0_45 = arith.constant 0 : index
    %c0_46 = arith.constant 0 : index
    %37 = vector.load %arg5[%c6, %c0_45, %c0_46] : memref<25x48x24xbf16, #tpu.memory_space<vmem>>, vector<1x48x24xbf16>
    %38 = vector.shape_cast %37 : vector<1x48x24xbf16> to vector<48x24xbf16>
    %cst_47 = arith.constant dense<0.000000e+00> : vector<128x24xf32>
    %39 = tpu.matmul %36, %38, %cst_47 {dimension_numbers = #tpu.dot_dimension_numbers<[1], [0], [0], [1], [0, 0, 1, 1], [], []>} : vector<128x48xbf16>, vector<48x24xbf16>, vector<128x24xf32> -> vector<128x24xf32>
    %40 = arith.addf %34, %39 : vector<128x24xf32>
    %c0_48 = arith.constant 0 : index
    %c0_49 = arith.constant 0 : index
    %c1_50 = arith.constant 1 : index
    %c0_51 = arith.constant 0 : index
    %41 = vector.load %arg3[%c0_48, %c0_49, %c1_50, %c0_51] : memref<2x10x10x48xbf16, #tpu.memory_space<vmem>>, vector<2x8x8x48xbf16>
    %42 = vector.shape_cast %41 : vector<2x8x8x48xbf16> to vector<128x48xbf16>
    %c7 = arith.constant 7 : index
    %c0_52 = arith.constant 0 : index
    %c0_53 = arith.constant 0 : index
    %43 = vector.load %arg5[%c7, %c0_52, %c0_53] : memref<25x48x24xbf16, #tpu.memory_space<vmem>>, vector<1x48x24xbf16>
    %44 = vector.shape_cast %43 : vector<1x48x24xbf16> to vector<48x24xbf16>
    %cst_54 = arith.constant dense<0.000000e+00> : vector<128x24xf32>
    %45 = tpu.matmul %42, %44, %cst_54 {dimension_numbers = #tpu.dot_dimension_numbers<[1], [0], [0], [1], [0, 0, 1, 1], [], []>} : vector<128x48xbf16>, vector<48x24xbf16>, vector<128x24xf32> -> vector<128x24xf32>
    %46 = arith.addf %40, %45 : vector<128x24xf32>
    %c0_55 = arith.constant 0 : index
    %c0_56 = arith.constant 0 : index
    %c1_57 = arith.constant 1 : index
    %c0_58 = arith.constant 0 : index
    %47 = vector.load %arg4[%c0_55, %c0_56, %c1_57, %c0_58] : memref<2x10x10x48xbf16, #tpu.memory_space<vmem>>, vector<2x8x8x48xbf16>
    %48 = vector.shape_cast %47 : vector<2x8x8x48xbf16> to vector<128x48xbf16>
    %c8 = arith.constant 8 : index
    %c0_59 = arith.constant 0 : index
    %c0_60 = arith.constant 0 : index
    %49 = vector.load %arg5[%c8, %c0_59, %c0_60] : memref<25x48x24xbf16, #tpu.memory_space<vmem>>, vector<1x48x24xbf16>
    %50 = vector.shape_cast %49 : vector<1x48x24xbf16> to vector<48x24xbf16>
    %cst_61 = arith.constant dense<0.000000e+00> : vector<128x24xf32>
    %51 = tpu.matmul %48, %50, %cst_61 {dimension_numbers = #tpu.dot_dimension_numbers<[1], [0], [0], [1], [0, 0, 1, 1], [], []>} : vector<128x48xbf16>, vector<48x24xbf16>, vector<128x24xf32> -> vector<128x24xf32>
    %52 = arith.addf %46, %51 : vector<128x24xf32>
    %c0_62 = arith.constant 0 : index
    %c0_63 = arith.constant 0 : index
    %c2_64 = arith.constant 2 : index
    %c0_65 = arith.constant 0 : index
    %53 = vector.load %arg3[%c0_62, %c0_63, %c2_64, %c0_65] : memref<2x10x10x48xbf16, #tpu.memory_space<vmem>>, vector<2x8x8x48xbf16>
    %54 = vector.shape_cast %53 : vector<2x8x8x48xbf16> to vector<128x48xbf16>
    %c9 = arith.constant 9 : index
    %c0_66 = arith.constant 0 : index
    %c0_67 = arith.constant 0 : index
    %55 = vector.load %arg5[%c9, %c0_66, %c0_67] : memref<25x48x24xbf16, #tpu.memory_space<vmem>>, vector<1x48x24xbf16>
    %56 = vector.shape_cast %55 : vector<1x48x24xbf16> to vector<48x24xbf16>
    %cst_68 = arith.constant dense<0.000000e+00> : vector<128x24xf32>
    %57 = tpu.matmul %54, %56, %cst_68 {dimension_numbers = #tpu.dot_dimension_numbers<[1], [0], [0], [1], [0, 0, 1, 1], [], []>} : vector<128x48xbf16>, vector<48x24xbf16>, vector<128x24xf32> -> vector<128x24xf32>
    %58 = arith.addf %52, %57 : vector<128x24xf32>
    %c0_69 = arith.constant 0 : index
    %c1_70 = arith.constant 1 : index
    %c0_71 = arith.constant 0 : index
    %c0_72 = arith.constant 0 : index
    %59 = vector.load %arg1[%c0_69, %c1_70, %c0_71, %c0_72] : memref<2x10x10x48xbf16, #tpu.memory_space<vmem>>, vector<2x8x8x48xbf16>
    %60 = vector.shape_cast %59 : vector<2x8x8x48xbf16> to vector<128x48xbf16>
    %c10 = arith.constant 10 : index
    %c0_73 = arith.constant 0 : index
    %c0_74 = arith.constant 0 : index
    %61 = vector.load %arg5[%c10, %c0_73, %c0_74] : memref<25x48x24xbf16, #tpu.memory_space<vmem>>, vector<1x48x24xbf16>
    %62 = vector.shape_cast %61 : vector<1x48x24xbf16> to vector<48x24xbf16>
    %cst_75 = arith.constant dense<0.000000e+00> : vector<128x24xf32>
    %63 = tpu.matmul %60, %62, %cst_75 {dimension_numbers = #tpu.dot_dimension_numbers<[1], [0], [0], [1], [0, 0, 1, 1], [], []>} : vector<128x48xbf16>, vector<48x24xbf16>, vector<128x24xf32> -> vector<128x24xf32>
    %64 = arith.addf %58, %63 : vector<128x24xf32>
    %c0_76 = arith.constant 0 : index
    %c1_77 = arith.constant 1 : index
    %c0_78 = arith.constant 0 : index
    %c0_79 = arith.constant 0 : index
    %65 = vector.load %arg2[%c0_76, %c1_77, %c0_78, %c0_79] : memref<2x10x10x48xbf16, #tpu.memory_space<vmem>>, vector<2x8x8x48xbf16>
    %66 = vector.shape_cast %65 : vector<2x8x8x48xbf16> to vector<128x48xbf16>
    %c11 = arith.constant 11 : index
    %c0_80 = arith.constant 0 : index
    %c0_81 = arith.constant 0 : index
    %67 = vector.load %arg5[%c11, %c0_80, %c0_81] : memref<25x48x24xbf16, #tpu.memory_space<vmem>>, vector<1x48x24xbf16>
    %68 = vector.shape_cast %67 : vector<1x48x24xbf16> to vector<48x24xbf16>
    %cst_82 = arith.constant dense<0.000000e+00> : vector<128x24xf32>
    %69 = tpu.matmul %66, %68, %cst_82 {dimension_numbers = #tpu.dot_dimension_numbers<[1], [0], [0], [1], [0, 0, 1, 1], [], []>} : vector<128x48xbf16>, vector<48x24xbf16>, vector<128x24xf32> -> vector<128x24xf32>
    %70 = arith.addf %64, %69 : vector<128x24xf32>
    %c0_83 = arith.constant 0 : index
    %c1_84 = arith.constant 1 : index
    %c1_85 = arith.constant 1 : index
    %c0_86 = arith.constant 0 : index
    %71 = vector.load %arg1[%c0_83, %c1_84, %c1_85, %c0_86] : memref<2x10x10x48xbf16, #tpu.memory_space<vmem>>, vector<2x8x8x48xbf16>
    %72 = vector.shape_cast %71 : vector<2x8x8x48xbf16> to vector<128x48xbf16>
    %c12 = arith.constant 12 : index
    %c0_87 = arith.constant 0 : index
    %c0_88 = arith.constant 0 : index
    %73 = vector.load %arg5[%c12, %c0_87, %c0_88] : memref<25x48x24xbf16, #tpu.memory_space<vmem>>, vector<1x48x24xbf16>
    %74 = vector.shape_cast %73 : vector<1x48x24xbf16> to vector<48x24xbf16>
    %cst_89 = arith.constant dense<0.000000e+00> : vector<128x24xf32>
    %75 = tpu.matmul %72, %74, %cst_89 {dimension_numbers = #tpu.dot_dimension_numbers<[1], [0], [0], [1], [0, 0, 1, 1], [], []>} : vector<128x48xbf16>, vector<48x24xbf16>, vector<128x24xf32> -> vector<128x24xf32>
    %76 = arith.addf %70, %75 : vector<128x24xf32>
    %c0_90 = arith.constant 0 : index
    %c1_91 = arith.constant 1 : index
    %c1_92 = arith.constant 1 : index
    %c0_93 = arith.constant 0 : index
    %77 = vector.load %arg2[%c0_90, %c1_91, %c1_92, %c0_93] : memref<2x10x10x48xbf16, #tpu.memory_space<vmem>>, vector<2x8x8x48xbf16>
    %78 = vector.shape_cast %77 : vector<2x8x8x48xbf16> to vector<128x48xbf16>
    %c13 = arith.constant 13 : index
    %c0_94 = arith.constant 0 : index
    %c0_95 = arith.constant 0 : index
    %79 = vector.load %arg5[%c13, %c0_94, %c0_95] : memref<25x48x24xbf16, #tpu.memory_space<vmem>>, vector<1x48x24xbf16>
    %80 = vector.shape_cast %79 : vector<1x48x24xbf16> to vector<48x24xbf16>
    %cst_96 = arith.constant dense<0.000000e+00> : vector<128x24xf32>
    %81 = tpu.matmul %78, %80, %cst_96 {dimension_numbers = #tpu.dot_dimension_numbers<[1], [0], [0], [1], [0, 0, 1, 1], [], []>} : vector<128x48xbf16>, vector<48x24xbf16>, vector<128x24xf32> -> vector<128x24xf32>
    %82 = arith.addf %76, %81 : vector<128x24xf32>
    %c0_97 = arith.constant 0 : index
    %c1_98 = arith.constant 1 : index
    %c2_99 = arith.constant 2 : index
    %c0_100 = arith.constant 0 : index
    %83 = vector.load %arg1[%c0_97, %c1_98, %c2_99, %c0_100] : memref<2x10x10x48xbf16, #tpu.memory_space<vmem>>, vector<2x8x8x48xbf16>
    %84 = vector.shape_cast %83 : vector<2x8x8x48xbf16> to vector<128x48xbf16>
    %c14 = arith.constant 14 : index
    %c0_101 = arith.constant 0 : index
    %c0_102 = arith.constant 0 : index
    %85 = vector.load %arg5[%c14, %c0_101, %c0_102] : memref<25x48x24xbf16, #tpu.memory_space<vmem>>, vector<1x48x24xbf16>
    %86 = vector.shape_cast %85 : vector<1x48x24xbf16> to vector<48x24xbf16>
    %cst_103 = arith.constant dense<0.000000e+00> : vector<128x24xf32>
    %87 = tpu.matmul %84, %86, %cst_103 {dimension_numbers = #tpu.dot_dimension_numbers<[1], [0], [0], [1], [0, 0, 1, 1], [], []>} : vector<128x48xbf16>, vector<48x24xbf16>, vector<128x24xf32> -> vector<128x24xf32>
    %88 = arith.addf %82, %87 : vector<128x24xf32>
    %c0_104 = arith.constant 0 : index
    %c1_105 = arith.constant 1 : index
    %c0_106 = arith.constant 0 : index
    %c0_107 = arith.constant 0 : index
    %89 = vector.load %arg3[%c0_104, %c1_105, %c0_106, %c0_107] : memref<2x10x10x48xbf16, #tpu.memory_space<vmem>>, vector<2x8x8x48xbf16>
    %90 = vector.shape_cast %89 : vector<2x8x8x48xbf16> to vector<128x48xbf16>
    %c15 = arith.constant 15 : index
    %c0_108 = arith.constant 0 : index
    %c0_109 = arith.constant 0 : index
    %91 = vector.load %arg5[%c15, %c0_108, %c0_109] : memref<25x48x24xbf16, #tpu.memory_space<vmem>>, vector<1x48x24xbf16>
    %92 = vector.shape_cast %91 : vector<1x48x24xbf16> to vector<48x24xbf16>
    %cst_110 = arith.constant dense<0.000000e+00> : vector<128x24xf32>
    %93 = tpu.matmul %90, %92, %cst_110 {dimension_numbers = #tpu.dot_dimension_numbers<[1], [0], [0], [1], [0, 0, 1, 1], [], []>} : vector<128x48xbf16>, vector<48x24xbf16>, vector<128x24xf32> -> vector<128x24xf32>
    %94 = arith.addf %88, %93 : vector<128x24xf32>
    %c0_111 = arith.constant 0 : index
    %c1_112 = arith.constant 1 : index
    %c0_113 = arith.constant 0 : index
    %c0_114 = arith.constant 0 : index
    %95 = vector.load %arg4[%c0_111, %c1_112, %c0_113, %c0_114] : memref<2x10x10x48xbf16, #tpu.memory_space<vmem>>, vector<2x8x8x48xbf16>
    %96 = vector.shape_cast %95 : vector<2x8x8x48xbf16> to vector<128x48xbf16>
    %c16 = arith.constant 16 : index
    %c0_115 = arith.constant 0 : index
    %c0_116 = arith.constant 0 : index
    %97 = vector.load %arg5[%c16, %c0_115, %c0_116] : memref<25x48x24xbf16, #tpu.memory_space<vmem>>, vector<1x48x24xbf16>
    %98 = vector.shape_cast %97 : vector<1x48x24xbf16> to vector<48x24xbf16>
    %cst_117 = arith.constant dense<0.000000e+00> : vector<128x24xf32>
    %99 = tpu.matmul %96, %98, %cst_117 {dimension_numbers = #tpu.dot_dimension_numbers<[1], [0], [0], [1], [0, 0, 1, 1], [], []>} : vector<128x48xbf16>, vector<48x24xbf16>, vector<128x24xf32> -> vector<128x24xf32>
    %100 = arith.addf %94, %99 : vector<128x24xf32>
    %c0_118 = arith.constant 0 : index
    %c1_119 = arith.constant 1 : index
    %c1_120 = arith.constant 1 : index
    %c0_121 = arith.constant 0 : index
    %101 = vector.load %arg3[%c0_118, %c1_119, %c1_120, %c0_121] : memref<2x10x10x48xbf16, #tpu.memory_space<vmem>>, vector<2x8x8x48xbf16>
    %102 = vector.shape_cast %101 : vector<2x8x8x48xbf16> to vector<128x48xbf16>
    %c17 = arith.constant 17 : index
    %c0_122 = arith.constant 0 : index
    %c0_123 = arith.constant 0 : index
    %103 = vector.load %arg5[%c17, %c0_122, %c0_123] : memref<25x48x24xbf16, #tpu.memory_space<vmem>>, vector<1x48x24xbf16>
    %104 = vector.shape_cast %103 : vector<1x48x24xbf16> to vector<48x24xbf16>
    %cst_124 = arith.constant dense<0.000000e+00> : vector<128x24xf32>
    %105 = tpu.matmul %102, %104, %cst_124 {dimension_numbers = #tpu.dot_dimension_numbers<[1], [0], [0], [1], [0, 0, 1, 1], [], []>} : vector<128x48xbf16>, vector<48x24xbf16>, vector<128x24xf32> -> vector<128x24xf32>
    %106 = arith.addf %100, %105 : vector<128x24xf32>
    %c0_125 = arith.constant 0 : index
    %c1_126 = arith.constant 1 : index
    %c1_127 = arith.constant 1 : index
    %c0_128 = arith.constant 0 : index
    %107 = vector.load %arg4[%c0_125, %c1_126, %c1_127, %c0_128] : memref<2x10x10x48xbf16, #tpu.memory_space<vmem>>, vector<2x8x8x48xbf16>
    %108 = vector.shape_cast %107 : vector<2x8x8x48xbf16> to vector<128x48xbf16>
    %c18 = arith.constant 18 : index
    %c0_129 = arith.constant 0 : index
    %c0_130 = arith.constant 0 : index
    %109 = vector.load %arg5[%c18, %c0_129, %c0_130] : memref<25x48x24xbf16, #tpu.memory_space<vmem>>, vector<1x48x24xbf16>
    %110 = vector.shape_cast %109 : vector<1x48x24xbf16> to vector<48x24xbf16>
    %cst_131 = arith.constant dense<0.000000e+00> : vector<128x24xf32>
    %111 = tpu.matmul %108, %110, %cst_131 {dimension_numbers = #tpu.dot_dimension_numbers<[1], [0], [0], [1], [0, 0, 1, 1], [], []>} : vector<128x48xbf16>, vector<48x24xbf16>, vector<128x24xf32> -> vector<128x24xf32>
    %112 = arith.addf %106, %111 : vector<128x24xf32>
    %c0_132 = arith.constant 0 : index
    %c1_133 = arith.constant 1 : index
    %c2_134 = arith.constant 2 : index
    %c0_135 = arith.constant 0 : index
    %113 = vector.load %arg3[%c0_132, %c1_133, %c2_134, %c0_135] : memref<2x10x10x48xbf16, #tpu.memory_space<vmem>>, vector<2x8x8x48xbf16>
    %114 = vector.shape_cast %113 : vector<2x8x8x48xbf16> to vector<128x48xbf16>
    %c19 = arith.constant 19 : index
    %c0_136 = arith.constant 0 : index
    %c0_137 = arith.constant 0 : index
    %115 = vector.load %arg5[%c19, %c0_136, %c0_137] : memref<25x48x24xbf16, #tpu.memory_space<vmem>>, vector<1x48x24xbf16>
    %116 = vector.shape_cast %115 : vector<1x48x24xbf16> to vector<48x24xbf16>
    %cst_138 = arith.constant dense<0.000000e+00> : vector<128x24xf32>
    %117 = tpu.matmul %114, %116, %cst_138 {dimension_numbers = #tpu.dot_dimension_numbers<[1], [0], [0], [1], [0, 0, 1, 1], [], []>} : vector<128x48xbf16>, vector<48x24xbf16>, vector<128x24xf32> -> vector<128x24xf32>
    %118 = arith.addf %112, %117 : vector<128x24xf32>
    %c0_139 = arith.constant 0 : index
    %c2_140 = arith.constant 2 : index
    %c0_141 = arith.constant 0 : index
    %c0_142 = arith.constant 0 : index
    %119 = vector.load %arg1[%c0_139, %c2_140, %c0_141, %c0_142] : memref<2x10x10x48xbf16, #tpu.memory_space<vmem>>, vector<2x8x8x48xbf16>
    %120 = vector.shape_cast %119 : vector<2x8x8x48xbf16> to vector<128x48xbf16>
    %c20 = arith.constant 20 : index
    %c0_143 = arith.constant 0 : index
    %c0_144 = arith.constant 0 : index
    %121 = vector.load %arg5[%c20, %c0_143, %c0_144] : memref<25x48x24xbf16, #tpu.memory_space<vmem>>, vector<1x48x24xbf16>
    %122 = vector.shape_cast %121 : vector<1x48x24xbf16> to vector<48x24xbf16>
    %cst_145 = arith.constant dense<0.000000e+00> : vector<128x24xf32>
    %123 = tpu.matmul %120, %122, %cst_145 {dimension_numbers = #tpu.dot_dimension_numbers<[1], [0], [0], [1], [0, 0, 1, 1], [], []>} : vector<128x48xbf16>, vector<48x24xbf16>, vector<128x24xf32> -> vector<128x24xf32>
    %124 = arith.addf %118, %123 : vector<128x24xf32>
    %c0_146 = arith.constant 0 : index
    %c2_147 = arith.constant 2 : index
    %c0_148 = arith.constant 0 : index
    %c0_149 = arith.constant 0 : index
    %125 = vector.load %arg2[%c0_146, %c2_147, %c0_148, %c0_149] : memref<2x10x10x48xbf16, #tpu.memory_space<vmem>>, vector<2x8x8x48xbf16>
    %126 = vector.shape_cast %125 : vector<2x8x8x48xbf16> to vector<128x48xbf16>
    %c21 = arith.constant 21 : index
    %c0_150 = arith.constant 0 : index
    %c0_151 = arith.constant 0 : index
    %127 = vector.load %arg5[%c21, %c0_150, %c0_151] : memref<25x48x24xbf16, #tpu.memory_space<vmem>>, vector<1x48x24xbf16>
    %128 = vector.shape_cast %127 : vector<1x48x24xbf16> to vector<48x24xbf16>
    %cst_152 = arith.constant dense<0.000000e+00> : vector<128x24xf32>
    %129 = tpu.matmul %126, %128, %cst_152 {dimension_numbers = #tpu.dot_dimension_numbers<[1], [0], [0], [1], [0, 0, 1, 1], [], []>} : vector<128x48xbf16>, vector<48x24xbf16>, vector<128x24xf32> -> vector<128x24xf32>
    %130 = arith.addf %124, %129 : vector<128x24xf32>
    %c0_153 = arith.constant 0 : index
    %c2_154 = arith.constant 2 : index
    %c1_155 = arith.constant 1 : index
    %c0_156 = arith.constant 0 : index
    %131 = vector.load %arg1[%c0_153, %c2_154, %c1_155, %c0_156] : memref<2x10x10x48xbf16, #tpu.memory_space<vmem>>, vector<2x8x8x48xbf16>
    %132 = vector.shape_cast %131 : vector<2x8x8x48xbf16> to vector<128x48xbf16>
    %c22 = arith.constant 22 : index
    %c0_157 = arith.constant 0 : index
    %c0_158 = arith.constant 0 : index
    %133 = vector.load %arg5[%c22, %c0_157, %c0_158] : memref<25x48x24xbf16, #tpu.memory_space<vmem>>, vector<1x48x24xbf16>
    %134 = vector.shape_cast %133 : vector<1x48x24xbf16> to vector<48x24xbf16>
    %cst_159 = arith.constant dense<0.000000e+00> : vector<128x24xf32>
    %135 = tpu.matmul %132, %134, %cst_159 {dimension_numbers = #tpu.dot_dimension_numbers<[1], [0], [0], [1], [0, 0, 1, 1], [], []>} : vector<128x48xbf16>, vector<48x24xbf16>, vector<128x24xf32> -> vector<128x24xf32>
    %136 = arith.addf %130, %135 : vector<128x24xf32>
    %c0_160 = arith.constant 0 : index
    %c2_161 = arith.constant 2 : index
    %c1_162 = arith.constant 1 : index
    %c0_163 = arith.constant 0 : index
    %137 = vector.load %arg2[%c0_160, %c2_161, %c1_162, %c0_163] : memref<2x10x10x48xbf16, #tpu.memory_space<vmem>>, vector<2x8x8x48xbf16>
    %138 = vector.shape_cast %137 : vector<2x8x8x48xbf16> to vector<128x48xbf16>
    %c23 = arith.constant 23 : index
    %c0_164 = arith.constant 0 : index
    %c0_165 = arith.constant 0 : index
    %139 = vector.load %arg5[%c23, %c0_164, %c0_165] : memref<25x48x24xbf16, #tpu.memory_space<vmem>>, vector<1x48x24xbf16>
    %140 = vector.shape_cast %139 : vector<1x48x24xbf16> to vector<48x24xbf16>
    %cst_166 = arith.constant dense<0.000000e+00> : vector<128x24xf32>
    %141 = tpu.matmul %138, %140, %cst_166 {dimension_numbers = #tpu.dot_dimension_numbers<[1], [0], [0], [1], [0, 0, 1, 1], [], []>} : vector<128x48xbf16>, vector<48x24xbf16>, vector<128x24xf32> -> vector<128x24xf32>
    %142 = arith.addf %136, %141 : vector<128x24xf32>
    %c0_167 = arith.constant 0 : index
    %c2_168 = arith.constant 2 : index
    %c2_169 = arith.constant 2 : index
    %c0_170 = arith.constant 0 : index
    %143 = vector.load %arg1[%c0_167, %c2_168, %c2_169, %c0_170] : memref<2x10x10x48xbf16, #tpu.memory_space<vmem>>, vector<2x8x8x48xbf16>
    %144 = vector.shape_cast %143 : vector<2x8x8x48xbf16> to vector<128x48xbf16>
    %c24 = arith.constant 24 : index
    %c0_171 = arith.constant 0 : index
    %c0_172 = arith.constant 0 : index
    %145 = vector.load %arg5[%c24, %c0_171, %c0_172] : memref<25x48x24xbf16, #tpu.memory_space<vmem>>, vector<1x48x24xbf16>
    %146 = vector.shape_cast %145 : vector<1x48x24xbf16> to vector<48x24xbf16>
    %cst_173 = arith.constant dense<0.000000e+00> : vector<128x24xf32>
    %147 = tpu.matmul %144, %146, %cst_173 {dimension_numbers = #tpu.dot_dimension_numbers<[1], [0], [0], [1], [0, 0, 1, 1], [], []>} : vector<128x48xbf16>, vector<48x24xbf16>, vector<128x24xf32> -> vector<128x24xf32>
    %148 = arith.addf %142, %147 : vector<128x24xf32>
    %c0_174 = arith.constant 0 : index
    %c0_175 = arith.constant 0 : index
    %149 = vector.load %arg6[%c0_174, %c0_175] : memref<1x24xf32, #tpu.memory_space<vmem>>, vector<1x24xf32>
    %150 = vector.broadcast %149 : vector<1x24xf32> to vector<128x24xf32>
    %151 = arith.addf %148, %150 : vector<128x24xf32>
    %cst_176 = arith.constant 0.000000e+00 : f32
    %152 = vector.broadcast %cst_176 : f32 to vector<2x2x18x24xf32>
    %c0_177 = arith.constant 0 : index
    %c0_178 = arith.constant 0 : index
    %c0_179 = arith.constant 0 : index
    %c0_180 = arith.constant 0 : index
    %153 = vector.load %arg10[%c0_177, %c0_178, %c0_179, %c0_180] : memref<2x12x18x24xf32, #tpu.memory_space<vmem>>, vector<2x2x18x24xf32>
    tpu.vector_store %arg10[%c0_177, %c0_178, %c0_179, %c0_180], %152 {strides = array<i32>} : memref<2x12x18x24xf32, #tpu.memory_space<vmem>>, vector<2x2x18x24xf32>,
    %cst_181 = arith.constant 0.000000e+00 : f32
    %154 = vector.broadcast %cst_181 : f32 to vector<2x2x18x24xf32>
    %c0_182 = arith.constant 0 : index
    %c10_183 = arith.constant 10 : index
    %c0_184 = arith.constant 0 : index
    %c0_185 = arith.constant 0 : index
    %155 = vector.load %arg10[%c0_182, %c10_183, %c0_184, %c0_185] : memref<2x12x18x24xf32, #tpu.memory_space<vmem>>, vector<2x2x18x24xf32>
    tpu.vector_store %arg10[%c0_182, %c10_183, %c0_184, %c0_185], %154 {strides = array<i32>} : memref<2x12x18x24xf32, #tpu.memory_space<vmem>>, vector<2x2x18x24xf32>,
    %cst_186 = arith.constant 0.000000e+00 : f32
    %156 = vector.broadcast %cst_186 : f32 to vector<2x8x2x24xf32>
    %c0_187 = arith.constant 0 : index
    %c2_188 = arith.constant 2 : index
    %c6_189 = arith.constant 6 : index
    %c0_190 = arith.constant 0 : index
    %157 = vector.load %arg10[%c0_187, %c2_188, %c6_189, %c0_190] : memref<2x12x18x24xf32, #tpu.memory_space<vmem>>, vector<2x8x2x24xf32>
    tpu.vector_store %arg10[%c0_187, %c2_188, %c6_189, %c0_190], %156 {strides = array<i32>} : memref<2x12x18x24xf32, #tpu.memory_space<vmem>>, vector<2x8x2x24xf32>,
    %cst_191 = arith.constant 0.000000e+00 : f32
    %158 = vector.broadcast %cst_191 : f32 to vector<2x8x2x24xf32>
    %c0_192 = arith.constant 0 : index
    %c2_193 = arith.constant 2 : index
    %c16_194 = arith.constant 16 : index
    %c0_195 = arith.constant 0 : index
    %159 = vector.load %arg10[%c0_192, %c2_193, %c16_194, %c0_195] : memref<2x12x18x24xf32, #tpu.memory_space<vmem>>, vector<2x8x2x24xf32>
    tpu.vector_store %arg10[%c0_192, %c2_193, %c16_194, %c0_195], %158 {strides = array<i32>} : memref<2x12x18x24xf32, #tpu.memory_space<vmem>>, vector<2x8x2x24xf32>,
    %cst_196 = arith.constant 0.000000e+00 : f32
    %160 = vector.broadcast %cst_196 : f32 to vector<128x24xf32>
    %161 = arith.maximumf %151, %160 : vector<128x24xf32>
    %162 = vector.shape_cast %161 : vector<128x24xf32> to vector<2x8x8x24xf32>
    %c0_197 = arith.constant 0 : index
    %c2_198 = arith.constant 2 : index
    %c8_199 = arith.constant 8 : index
    %c0_200 = arith.constant 0 : index
    %163 = vector.load %arg10[%c0_197, %c2_198, %c8_199, %c0_200] : memref<2x12x18x24xf32, #tpu.memory_space<vmem>>, vector<2x8x8x24xf32>
    tpu.vector_store %arg10[%c0_197, %c2_198, %c8_199, %c0_200], %162 {strides = array<i32>} : memref<2x12x18x24xf32, #tpu.memory_space<vmem>>, vector<2x8x8x24xf32>,
    %c0_201 = arith.constant 0 : index
    %c0_202 = arith.constant 0 : index
    %c6_203 = arith.constant 6 : index
    %c0_204 = arith.constant 0 : index
    %164 = vector.load %arg10[%c0_201, %c0_202, %c6_203, %c0_204] : memref<2x12x18x24xf32, #tpu.memory_space<vmem>>, vector<2x8x8x24xf32>
    %165 = vector.shape_cast %164 : vector<2x8x8x24xf32> to vector<128x24xf32>
    %c0_205 = arith.constant 0 : index
    %c0_206 = arith.constant 0 : index
    %c0_207 = arith.constant 0 : index
    %166 = vector.load %arg7[%c0_205, %c0_206, %c0_207] : memref<25x24x48xf32, #tpu.memory_space<vmem>>, vector<1x24x48xf32>
    %167 = vector.shape_cast %166 : vector<1x24x48xf32> to vector<24x48xf32>
    %cst_208 = arith.constant dense<0.000000e+00> : vector<128x48xf32>
    %168 = tpu.matmul %165, %167, %cst_208 {dimension_numbers = #tpu.dot_dimension_numbers<[1], [0], [0], [1], [0, 0, 1, 1], [], []>} : vector<128x24xf32>, vector<24x48xf32>, vector<128x48xf32> -> vector<128x48xf32>
    %c0_209 = arith.constant 0 : index
    %c0_210 = arith.constant 0 : index
    %c7_211 = arith.constant 7 : index
    %c0_212 = arith.constant 0 : index
    %169 = vector.load %arg10[%c0_209, %c0_210, %c7_211, %c0_212] : memref<2x12x18x24xf32, #tpu.memory_space<vmem>>, vector<2x8x8x24xf32>
    %170 = vector.shape_cast %169 : vector<2x8x8x24xf32> to vector<128x24xf32>
    %c1_213 = arith.constant 1 : index
    %c0_214 = arith.constant 0 : index
    %c0_215 = arith.constant 0 : index
    %171 = vector.load %arg7[%c1_213, %c0_214, %c0_215] : memref<25x24x48xf32, #tpu.memory_space<vmem>>, vector<1x24x48xf32>
    %172 = vector.shape_cast %171 : vector<1x24x48xf32> to vector<24x48xf32>
    %cst_216 = arith.constant dense<0.000000e+00> : vector<128x48xf32>
    %173 = tpu.matmul %170, %172, %cst_216 {dimension_numbers = #tpu.dot_dimension_numbers<[1], [0], [0], [1], [0, 0, 1, 1], [], []>} : vector<128x24xf32>, vector<24x48xf32>, vector<128x48xf32> -> vector<128x48xf32>
    %174 = arith.addf %168, %173 : vector<128x48xf32>
    %c0_217 = arith.constant 0 : index
    %c0_218 = arith.constant 0 : index
    %c8_219 = arith.constant 8 : index
    %c0_220 = arith.constant 0 : index
    %175 = vector.load %arg10[%c0_217, %c0_218, %c8_219, %c0_220] : memref<2x12x18x24xf32, #tpu.memory_space<vmem>>, vector<2x8x8x24xf32>
    %176 = vector.shape_cast %175 : vector<2x8x8x24xf32> to vector<128x24xf32>
    %c2_221 = arith.constant 2 : index
    %c0_222 = arith.constant 0 : index
    %c0_223 = arith.constant 0 : index
    %177 = vector.load %arg7[%c2_221, %c0_222, %c0_223] : memref<25x24x48xf32, #tpu.memory_space<vmem>>, vector<1x24x48xf32>
    %178 = vector.shape_cast %177 : vector<1x24x48xf32> to vector<24x48xf32>
    %cst_224 = arith.constant dense<0.000000e+00> : vector<128x48xf32>
    %179 = tpu.matmul %176, %178, %cst_224 {dimension_numbers = #tpu.dot_dimension_numbers<[1], [0], [0], [1], [0, 0, 1, 1], [], []>} : vector<128x24xf32>, vector<24x48xf32>, vector<128x48xf32> -> vector<128x48xf32>
    %180 = arith.addf %174, %179 : vector<128x48xf32>
    %c0_225 = arith.constant 0 : index
    %c0_226 = arith.constant 0 : index
    %c9_227 = arith.constant 9 : index
    %c0_228 = arith.constant 0 : index
    %181 = vector.load %arg10[%c0_225, %c0_226, %c9_227, %c0_228] : memref<2x12x18x24xf32, #tpu.memory_space<vmem>>, vector<2x8x8x24xf32>
    %182 = vector.shape_cast %181 : vector<2x8x8x24xf32> to vector<128x24xf32>
    %c3_229 = arith.constant 3 : index
    %c0_230 = arith.constant 0 : index
    %c0_231 = arith.constant 0 : index
    %183 = vector.load %arg7[%c3_229, %c0_230, %c0_231] : memref<25x24x48xf32, #tpu.memory_space<vmem>>, vector<1x24x48xf32>
    %184 = vector.shape_cast %183 : vector<1x24x48xf32> to vector<24x48xf32>
    %cst_232 = arith.constant dense<0.000000e+00> : vector<128x48xf32>
    %185 = tpu.matmul %182, %184, %cst_232 {dimension_numbers = #tpu.dot_dimension_numbers<[1], [0], [0], [1], [0, 0, 1, 1], [], []>} : vector<128x24xf32>, vector<24x48xf32>, vector<128x48xf32> -> vector<128x48xf32>
    %186 = arith.addf %180, %185 : vector<128x48xf32>
    %c0_233 = arith.constant 0 : index
    %c0_234 = arith.constant 0 : index
    %c10_235 = arith.constant 10 : index
    %c0_236 = arith.constant 0 : index
    %187 = vector.load %arg10[%c0_233, %c0_234, %c10_235, %c0_236] : memref<2x12x18x24xf32, #tpu.memory_space<vmem>>, vector<2x8x8x24xf32>
    %188 = vector.shape_cast %187 : vector<2x8x8x24xf32> to vector<128x24xf32>
    %c4_237 = arith.constant 4 : index
    %c0_238 = arith.constant 0 : index
    %c0_239 = arith.constant 0 : index
    %189 = vector.load %arg7[%c4_237, %c0_238, %c0_239] : memref<25x24x48xf32, #tpu.memory_space<vmem>>, vector<1x24x48xf32>
    %190 = vector.shape_cast %189 : vector<1x24x48xf32> to vector<24x48xf32>
    %cst_240 = arith.constant dense<0.000000e+00> : vector<128x48xf32>
    %191 = tpu.matmul %188, %190, %cst_240 {dimension_numbers = #tpu.dot_dimension_numbers<[1], [0], [0], [1], [0, 0, 1, 1], [], []>} : vector<128x24xf32>, vector<24x48xf32>, vector<128x48xf32> -> vector<128x48xf32>
    %192 = arith.addf %186, %191 : vector<128x48xf32>
    %c0_241 = arith.constant 0 : index
    %c1_242 = arith.constant 1 : index
    %c6_243 = arith.constant 6 : index
    %c0_244 = arith.constant 0 : index
    %193 = vector.load %arg10[%c0_241, %c1_242, %c6_243, %c0_244] : memref<2x12x18x24xf32, #tpu.memory_space<vmem>>, vector<2x8x8x24xf32>
    %194 = vector.shape_cast %193 : vector<2x8x8x24xf32> to vector<128x24xf32>
    %c5_245 = arith.constant 5 : index
    %c0_246 = arith.constant 0 : index
    %c0_247 = arith.constant 0 : index
    %195 = vector.load %arg7[%c5_245, %c0_246, %c0_247] : memref<25x24x48xf32, #tpu.memory_space<vmem>>, vector<1x24x48xf32>
    %196 = vector.shape_cast %195 : vector<1x24x48xf32> to vector<24x48xf32>
    %cst_248 = arith.constant dense<0.000000e+00> : vector<128x48xf32>
    %197 = tpu.matmul %194, %196, %cst_248 {dimension_numbers = #tpu.dot_dimension_numbers<[1], [0], [0], [1], [0, 0, 1, 1], [], []>} : vector<128x24xf32>, vector<24x48xf32>, vector<128x48xf32> -> vector<128x48xf32>
    %198 = arith.addf %192, %197 : vector<128x48xf32>
    %c0_249 = arith.constant 0 : index
    %c1_250 = arith.constant 1 : index
    %c7_251 = arith.constant 7 : index
    %c0_252 = arith.constant 0 : index
    %199 = vector.load %arg10[%c0_249, %c1_250, %c7_251, %c0_252] : memref<2x12x18x24xf32, #tpu.memory_space<vmem>>, vector<2x8x8x24xf32>
    %200 = vector.shape_cast %199 : vector<2x8x8x24xf32> to vector<128x24xf32>
    %c6_253 = arith.constant 6 : index
    %c0_254 = arith.constant 0 : index
    %c0_255 = arith.constant 0 : index
    %201 = vector.load %arg7[%c6_253, %c0_254, %c0_255] : memref<25x24x48xf32, #tpu.memory_space<vmem>>, vector<1x24x48xf32>
    %202 = vector.shape_cast %201 : vector<1x24x48xf32> to vector<24x48xf32>
    %cst_256 = arith.constant dense<0.000000e+00> : vector<128x48xf32>
    %203 = tpu.matmul %200, %202, %cst_256 {dimension_numbers = #tpu.dot_dimension_numbers<[1], [0], [0], [1], [0, 0, 1, 1], [], []>} : vector<128x24xf32>, vector<24x48xf32>, vector<128x48xf32> -> vector<128x48xf32>
    %204 = arith.addf %198, %203 : vector<128x48xf32>
    %c0_257 = arith.constant 0 : index
    %c1_258 = arith.constant 1 : index
    %c8_259 = arith.constant 8 : index
    %c0_260 = arith.constant 0 : index
    %205 = vector.load %arg10[%c0_257, %c1_258, %c8_259, %c0_260] : memref<2x12x18x24xf32, #tpu.memory_space<vmem>>, vector<2x8x8x24xf32>
    %206 = vector.shape_cast %205 : vector<2x8x8x24xf32> to vector<128x24xf32>
    %c7_261 = arith.constant 7 : index
    %c0_262 = arith.constant 0 : index
    %c0_263 = arith.constant 0 : index
    %207 = vector.load %arg7[%c7_261, %c0_262, %c0_263] : memref<25x24x48xf32, #tpu.memory_space<vmem>>, vector<1x24x48xf32>
    %208 = vector.shape_cast %207 : vector<1x24x48xf32> to vector<24x48xf32>
    %cst_264 = arith.constant dense<0.000000e+00> : vector<128x48xf32>
    %209 = tpu.matmul %206, %208, %cst_264 {dimension_numbers = #tpu.dot_dimension_numbers<[1], [0], [0], [1], [0, 0, 1, 1], [], []>} : vector<128x24xf32>, vector<24x48xf32>, vector<128x48xf32> -> vector<128x48xf32>
    %210 = arith.addf %204, %209 : vector<128x48xf32>
    %c0_265 = arith.constant 0 : index
    %c1_266 = arith.constant 1 : index
    %c9_267 = arith.constant 9 : index
    %c0_268 = arith.constant 0 : index
    %211 = vector.load %arg10[%c0_265, %c1_266, %c9_267, %c0_268] : memref<2x12x18x24xf32, #tpu.memory_space<vmem>>, vector<2x8x8x24xf32>
    %212 = vector.shape_cast %211 : vector<2x8x8x24xf32> to vector<128x24xf32>
    %c8_269 = arith.constant 8 : index
    %c0_270 = arith.constant 0 : index
    %c0_271 = arith.constant 0 : index
    %213 = vector.load %arg7[%c8_269, %c0_270, %c0_271] : memref<25x24x48xf32, #tpu.memory_space<vmem>>, vector<1x24x48xf32>
    %214 = vector.shape_cast %213 : vector<1x24x48xf32> to vector<24x48xf32>
    %cst_272 = arith.constant dense<0.000000e+00> : vector<128x48xf32>
    %215 = tpu.matmul %212, %214, %cst_272 {dimension_numbers = #tpu.dot_dimension_numbers<[1], [0], [0], [1], [0, 0, 1, 1], [], []>} : vector<128x24xf32>, vector<24x48xf32>, vector<128x48xf32> -> vector<128x48xf32>
    %216 = arith.addf %210, %215 : vector<128x48xf32>
    %c0_273 = arith.constant 0 : index
    %c1_274 = arith.constant 1 : index
    %c10_275 = arith.constant 10 : index
    %c0_276 = arith.constant 0 : index
    %217 = vector.load %arg10[%c0_273, %c1_274, %c10_275, %c0_276] : memref<2x12x18x24xf32, #tpu.memory_space<vmem>>, vector<2x8x8x24xf32>
    %218 = vector.shape_cast %217 : vector<2x8x8x24xf32> to vector<128x24xf32>
    %c9_277 = arith.constant 9 : index
    %c0_278 = arith.constant 0 : index
    %c0_279 = arith.constant 0 : index
    %219 = vector.load %arg7[%c9_277, %c0_278, %c0_279] : memref<25x24x48xf32, #tpu.memory_space<vmem>>, vector<1x24x48xf32>
    %220 = vector.shape_cast %219 : vector<1x24x48xf32> to vector<24x48xf32>
    %cst_280 = arith.constant dense<0.000000e+00> : vector<128x48xf32>
    %221 = tpu.matmul %218, %220, %cst_280 {dimension_numbers = #tpu.dot_dimension_numbers<[1], [0], [0], [1], [0, 0, 1, 1], [], []>} : vector<128x24xf32>, vector<24x48xf32>, vector<128x48xf32> -> vector<128x48xf32>
    %222 = arith.addf %216, %221 : vector<128x48xf32>
    %c0_281 = arith.constant 0 : index
    %c2_282 = arith.constant 2 : index
    %c6_283 = arith.constant 6 : index
    %c0_284 = arith.constant 0 : index
    %223 = vector.load %arg10[%c0_281, %c2_282, %c6_283, %c0_284] : memref<2x12x18x24xf32, #tpu.memory_space<vmem>>, vector<2x8x8x24xf32>
    %224 = vector.shape_cast %223 : vector<2x8x8x24xf32> to vector<128x24xf32>
    %c10_285 = arith.constant 10 : index
    %c0_286 = arith.constant 0 : index
    %c0_287 = arith.constant 0 : index
    %225 = vector.load %arg7[%c10_285, %c0_286, %c0_287] : memref<25x24x48xf32, #tpu.memory_space<vmem>>, vector<1x24x48xf32>
    %226 = vector.shape_cast %225 : vector<1x24x48xf32> to vector<24x48xf32>
    %cst_288 = arith.constant dense<0.000000e+00> : vector<128x48xf32>
    %227 = tpu.matmul %224, %226, %cst_288 {dimension_numbers = #tpu.dot_dimension_numbers<[1], [0], [0], [1], [0, 0, 1, 1], [], []>} : vector<128x24xf32>, vector<24x48xf32>, vector<128x48xf32> -> vector<128x48xf32>
    %228 = arith.addf %222, %227 : vector<128x48xf32>
    %c0_289 = arith.constant 0 : index
    %c2_290 = arith.constant 2 : index
    %c7_291 = arith.constant 7 : index
    %c0_292 = arith.constant 0 : index
    %229 = vector.load %arg10[%c0_289, %c2_290, %c7_291, %c0_292] : memref<2x12x18x24xf32, #tpu.memory_space<vmem>>, vector<2x8x8x24xf32>
    %230 = vector.shape_cast %229 : vector<2x8x8x24xf32> to vector<128x24xf32>
    %c11_293 = arith.constant 11 : index
    %c0_294 = arith.constant 0 : index
    %c0_295 = arith.constant 0 : index
    %231 = vector.load %arg7[%c11_293, %c0_294, %c0_295] : memref<25x24x48xf32, #tpu.memory_space<vmem>>, vector<1x24x48xf32>
    %232 = vector.shape_cast %231 : vector<1x24x48xf32> to vector<24x48xf32>
    %cst_296 = arith.constant dense<0.000000e+00> : vector<128x48xf32>
    %233 = tpu.matmul %230, %232, %cst_296 {dimension_numbers = #tpu.dot_dimension_numbers<[1], [0], [0], [1], [0, 0, 1, 1], [], []>} : vector<128x24xf32>, vector<24x48xf32>, vector<128x48xf32> -> vector<128x48xf32>
    %234 = arith.addf %228, %233 : vector<128x48xf32>
    %c0_297 = arith.constant 0 : index
    %c2_298 = arith.constant 2 : index
    %c8_299 = arith.constant 8 : index
    %c0_300 = arith.constant 0 : index
    %235 = vector.load %arg10[%c0_297, %c2_298, %c8_299, %c0_300] : memref<2x12x18x24xf32, #tpu.memory_space<vmem>>, vector<2x8x8x24xf32>
    %236 = vector.shape_cast %235 : vector<2x8x8x24xf32> to vector<128x24xf32>
    %c12_301 = arith.constant 12 : index
    %c0_302 = arith.constant 0 : index
    %c0_303 = arith.constant 0 : index
    %237 = vector.load %arg7[%c12_301, %c0_302, %c0_303] : memref<25x24x48xf32, #tpu.memory_space<vmem>>, vector<1x24x48xf32>
    %238 = vector.shape_cast %237 : vector<1x24x48xf32> to vector<24x48xf32>
    %cst_304 = arith.constant dense<0.000000e+00> : vector<128x48xf32>
    %239 = tpu.matmul %236, %238, %cst_304 {dimension_numbers = #tpu.dot_dimension_numbers<[1], [0], [0], [1], [0, 0, 1, 1], [], []>} : vector<128x24xf32>, vector<24x48xf32>, vector<128x48xf32> -> vector<128x48xf32>
    %240 = arith.addf %234, %239 : vector<128x48xf32>
    %c0_305 = arith.constant 0 : index
    %c2_306 = arith.constant 2 : index
    %c9_307 = arith.constant 9 : index
    %c0_308 = arith.constant 0 : index
    %241 = vector.load %arg10[%c0_305, %c2_306, %c9_307, %c0_308] : memref<2x12x18x24xf32, #tpu.memory_space<vmem>>, vector<2x8x8x24xf32>
    %242 = vector.shape_cast %241 : vector<2x8x8x24xf32> to vector<128x24xf32>
    %c13_309 = arith.constant 13 : index
    %c0_310 = arith.constant 0 : index
    %c0_311 = arith.constant 0 : index
    %243 = vector.load %arg7[%c13_309, %c0_310, %c0_311] : memref<25x24x48xf32, #tpu.memory_space<vmem>>, vector<1x24x48xf32>
    %244 = vector.shape_cast %243 : vector<1x24x48xf32> to vector<24x48xf32>
    %cst_312 = arith.constant dense<0.000000e+00> : vector<128x48xf32>
    %245 = tpu.matmul %242, %244, %cst_312 {dimension_numbers = #tpu.dot_dimension_numbers<[1], [0], [0], [1], [0, 0, 1, 1], [], []>} : vector<128x24xf32>, vector<24x48xf32>, vector<128x48xf32> -> vector<128x48xf32>
    %246 = arith.addf %240, %245 : vector<128x48xf32>
    %c0_313 = arith.constant 0 : index
    %c2_314 = arith.constant 2 : index
    %c10_315 = arith.constant 10 : index
    %c0_316 = arith.constant 0 : index
    %247 = vector.load %arg10[%c0_313, %c2_314, %c10_315, %c0_316] : memref<2x12x18x24xf32, #tpu.memory_space<vmem>>, vector<2x8x8x24xf32>
    %248 = vector.shape_cast %247 : vector<2x8x8x24xf32> to vector<128x24xf32>
    %c14_317 = arith.constant 14 : index
    %c0_318 = arith.constant 0 : index
    %c0_319 = arith.constant 0 : index
    %249 = vector.load %arg7[%c14_317, %c0_318, %c0_319] : memref<25x24x48xf32, #tpu.memory_space<vmem>>, vector<1x24x48xf32>
    %250 = vector.shape_cast %249 : vector<1x24x48xf32> to vector<24x48xf32>
    %cst_320 = arith.constant dense<0.000000e+00> : vector<128x48xf32>
    %251 = tpu.matmul %248, %250, %cst_320 {dimension_numbers = #tpu.dot_dimension_numbers<[1], [0], [0], [1], [0, 0, 1, 1], [], []>} : vector<128x24xf32>, vector<24x48xf32>, vector<128x48xf32> -> vector<128x48xf32>
    %252 = arith.addf %246, %251 : vector<128x48xf32>
    %c0_321 = arith.constant 0 : index
    %c3_322 = arith.constant 3 : index
    %c6_323 = arith.constant 6 : index
    %c0_324 = arith.constant 0 : index
    %253 = vector.load %arg10[%c0_321, %c3_322, %c6_323, %c0_324] : memref<2x12x18x24xf32, #tpu.memory_space<vmem>>, vector<2x8x8x24xf32>
    %254 = vector.shape_cast %253 : vector<2x8x8x24xf32> to vector<128x24xf32>
    %c15_325 = arith.constant 15 : index
    %c0_326 = arith.constant 0 : index
    %c0_327 = arith.constant 0 : index
    %255 = vector.load %arg7[%c15_325, %c0_326, %c0_327] : memref<25x24x48xf32, #tpu.memory_space<vmem>>, vector<1x24x48xf32>
    %256 = vector.shape_cast %255 : vector<1x24x48xf32> to vector<24x48xf32>
    %cst_328 = arith.constant dense<0.000000e+00> : vector<128x48xf32>
    %257 = tpu.matmul %254, %256, %cst_328 {dimension_numbers = #tpu.dot_dimension_numbers<[1], [0], [0], [1], [0, 0, 1, 1], [], []>} : vector<128x24xf32>, vector<24x48xf32>, vector<128x48xf32> -> vector<128x48xf32>
    %258 = arith.addf %252, %257 : vector<128x48xf32>
    %c0_329 = arith.constant 0 : index
    %c3_330 = arith.constant 3 : index
    %c7_331 = arith.constant 7 : index
    %c0_332 = arith.constant 0 : index
    %259 = vector.load %arg10[%c0_329, %c3_330, %c7_331, %c0_332] : memref<2x12x18x24xf32, #tpu.memory_space<vmem>>, vector<2x8x8x24xf32>
    %260 = vector.shape_cast %259 : vector<2x8x8x24xf32> to vector<128x24xf32>
    %c16_333 = arith.constant 16 : index
    %c0_334 = arith.constant 0 : index
    %c0_335 = arith.constant 0 : index
    %261 = vector.load %arg7[%c16_333, %c0_334, %c0_335] : memref<25x24x48xf32, #tpu.memory_space<vmem>>, vector<1x24x48xf32>
    %262 = vector.shape_cast %261 : vector<1x24x48xf32> to vector<24x48xf32>
    %cst_336 = arith.constant dense<0.000000e+00> : vector<128x48xf32>
    %263 = tpu.matmul %260, %262, %cst_336 {dimension_numbers = #tpu.dot_dimension_numbers<[1], [0], [0], [1], [0, 0, 1, 1], [], []>} : vector<128x24xf32>, vector<24x48xf32>, vector<128x48xf32> -> vector<128x48xf32>
    %264 = arith.addf %258, %263 : vector<128x48xf32>
    %c0_337 = arith.constant 0 : index
    %c3_338 = arith.constant 3 : index
    %c8_339 = arith.constant 8 : index
    %c0_340 = arith.constant 0 : index
    %265 = vector.load %arg10[%c0_337, %c3_338, %c8_339, %c0_340] : memref<2x12x18x24xf32, #tpu.memory_space<vmem>>, vector<2x8x8x24xf32>
    %266 = vector.shape_cast %265 : vector<2x8x8x24xf32> to vector<128x24xf32>
    %c17_341 = arith.constant 17 : index
    %c0_342 = arith.constant 0 : index
    %c0_343 = arith.constant 0 : index
    %267 = vector.load %arg7[%c17_341, %c0_342, %c0_343] : memref<25x24x48xf32, #tpu.memory_space<vmem>>, vector<1x24x48xf32>
    %268 = vector.shape_cast %267 : vector<1x24x48xf32> to vector<24x48xf32>
    %cst_344 = arith.constant dense<0.000000e+00> : vector<128x48xf32>
    %269 = tpu.matmul %266, %268, %cst_344 {dimension_numbers = #tpu.dot_dimension_numbers<[1], [0], [0], [1], [0, 0, 1, 1], [], []>} : vector<128x24xf32>, vector<24x48xf32>, vector<128x48xf32> -> vector<128x48xf32>
    %270 = arith.addf %264, %269 : vector<128x48xf32>
    %c0_345 = arith.constant 0 : index
    %c3_346 = arith.constant 3 : index
    %c9_347 = arith.constant 9 : index
    %c0_348 = arith.constant 0 : index
    %271 = vector.load %arg10[%c0_345, %c3_346, %c9_347, %c0_348] : memref<2x12x18x24xf32, #tpu.memory_space<vmem>>, vector<2x8x8x24xf32>
    %272 = vector.shape_cast %271 : vector<2x8x8x24xf32> to vector<128x24xf32>
    %c18_349 = arith.constant 18 : index
    %c0_350 = arith.constant 0 : index
    %c0_351 = arith.constant 0 : index
    %273 = vector.load %arg7[%c18_349, %c0_350, %c0_351] : memref<25x24x48xf32, #tpu.memory_space<vmem>>, vector<1x24x48xf32>
    %274 = vector.shape_cast %273 : vector<1x24x48xf32> to vector<24x48xf32>
    %cst_352 = arith.constant dense<0.000000e+00> : vector<128x48xf32>
    %275 = tpu.matmul %272, %274, %cst_352 {dimension_numbers = #tpu.dot_dimension_numbers<[1], [0], [0], [1], [0, 0, 1, 1], [], []>} : vector<128x24xf32>, vector<24x48xf32>, vector<128x48xf32> -> vector<128x48xf32>
    %276 = arith.addf %270, %275 : vector<128x48xf32>
    %c0_353 = arith.constant 0 : index
    %c3_354 = arith.constant 3 : index
    %c10_355 = arith.constant 10 : index
    %c0_356 = arith.constant 0 : index
    %277 = vector.load %arg10[%c0_353, %c3_354, %c10_355, %c0_356] : memref<2x12x18x24xf32, #tpu.memory_space<vmem>>, vector<2x8x8x24xf32>
    %278 = vector.shape_cast %277 : vector<2x8x8x24xf32> to vector<128x24xf32>
    %c19_357 = arith.constant 19 : index
    %c0_358 = arith.constant 0 : index
    %c0_359 = arith.constant 0 : index
    %279 = vector.load %arg7[%c19_357, %c0_358, %c0_359] : memref<25x24x48xf32, #tpu.memory_space<vmem>>, vector<1x24x48xf32>
    %280 = vector.shape_cast %279 : vector<1x24x48xf32> to vector<24x48xf32>
    %cst_360 = arith.constant dense<0.000000e+00> : vector<128x48xf32>
    %281 = tpu.matmul %278, %280, %cst_360 {dimension_numbers = #tpu.dot_dimension_numbers<[1], [0], [0], [1], [0, 0, 1, 1], [], []>} : vector<128x24xf32>, vector<24x48xf32>, vector<128x48xf32> -> vector<128x48xf32>
    %282 = arith.addf %276, %281 : vector<128x48xf32>
    %c0_361 = arith.constant 0 : index
    %c4_362 = arith.constant 4 : index
    %c6_363 = arith.constant 6 : index
    %c0_364 = arith.constant 0 : index
    %283 = vector.load %arg10[%c0_361, %c4_362, %c6_363, %c0_364] : memref<2x12x18x24xf32, #tpu.memory_space<vmem>>, vector<2x8x8x24xf32>
    %284 = vector.shape_cast %283 : vector<2x8x8x24xf32> to vector<128x24xf32>
    %c20_365 = arith.constant 20 : index
    %c0_366 = arith.constant 0 : index
    %c0_367 = arith.constant 0 : index
    %285 = vector.load %arg7[%c20_365, %c0_366, %c0_367] : memref<25x24x48xf32, #tpu.memory_space<vmem>>, vector<1x24x48xf32>
    %286 = vector.shape_cast %285 : vector<1x24x48xf32> to vector<24x48xf32>
    %cst_368 = arith.constant dense<0.000000e+00> : vector<128x48xf32>
    %287 = tpu.matmul %284, %286, %cst_368 {dimension_numbers = #tpu.dot_dimension_numbers<[1], [0], [0], [1], [0, 0, 1, 1], [], []>} : vector<128x24xf32>, vector<24x48xf32>, vector<128x48xf32> -> vector<128x48xf32>
    %288 = arith.addf %282, %287 : vector<128x48xf32>
    %c0_369 = arith.constant 0 : index
    %c4_370 = arith.constant 4 : index
    %c7_371 = arith.constant 7 : index
    %c0_372 = arith.constant 0 : index
    %289 = vector.load %arg10[%c0_369, %c4_370, %c7_371, %c0_372] : memref<2x12x18x24xf32, #tpu.memory_space<vmem>>, vector<2x8x8x24xf32>
    %290 = vector.shape_cast %289 : vector<2x8x8x24xf32> to vector<128x24xf32>
    %c21_373 = arith.constant 21 : index
    %c0_374 = arith.constant 0 : index
    %c0_375 = arith.constant 0 : index
    %291 = vector.load %arg7[%c21_373, %c0_374, %c0_375] : memref<25x24x48xf32, #tpu.memory_space<vmem>>, vector<1x24x48xf32>
    %292 = vector.shape_cast %291 : vector<1x24x48xf32> to vector<24x48xf32>
    %cst_376 = arith.constant dense<0.000000e+00> : vector<128x48xf32>
    %293 = tpu.matmul %290, %292, %cst_376 {dimension_numbers = #tpu.dot_dimension_numbers<[1], [0], [0], [1], [0, 0, 1, 1], [], []>} : vector<128x24xf32>, vector<24x48xf32>, vector<128x48xf32> -> vector<128x48xf32>
    %294 = arith.addf %288, %293 : vector<128x48xf32>
    %c0_377 = arith.constant 0 : index
    %c4_378 = arith.constant 4 : index
    %c8_379 = arith.constant 8 : index
    %c0_380 = arith.constant 0 : index
    %295 = vector.load %arg10[%c0_377, %c4_378, %c8_379, %c0_380] : memref<2x12x18x24xf32, #tpu.memory_space<vmem>>, vector<2x8x8x24xf32>
    %296 = vector.shape_cast %295 : vector<2x8x8x24xf32> to vector<128x24xf32>
    %c22_381 = arith.constant 22 : index
    %c0_382 = arith.constant 0 : index
    %c0_383 = arith.constant 0 : index
    %297 = vector.load %arg7[%c22_381, %c0_382, %c0_383] : memref<25x24x48xf32, #tpu.memory_space<vmem>>, vector<1x24x48xf32>
    %298 = vector.shape_cast %297 : vector<1x24x48xf32> to vector<24x48xf32>
    %cst_384 = arith.constant dense<0.000000e+00> : vector<128x48xf32>
    %299 = tpu.matmul %296, %298, %cst_384 {dimension_numbers = #tpu.dot_dimension_numbers<[1], [0], [0], [1], [0, 0, 1, 1], [], []>} : vector<128x24xf32>, vector<24x48xf32>, vector<128x48xf32> -> vector<128x48xf32>
    %300 = arith.addf %294, %299 : vector<128x48xf32>
    %c0_385 = arith.constant 0 : index
    %c4_386 = arith.constant 4 : index
    %c9_387 = arith.constant 9 : index
    %c0_388 = arith.constant 0 : index
    %301 = vector.load %arg10[%c0_385, %c4_386, %c9_387, %c0_388] : memref<2x12x18x24xf32, #tpu.memory_space<vmem>>, vector<2x8x8x24xf32>
    %302 = vector.shape_cast %301 : vector<2x8x8x24xf32> to vector<128x24xf32>
    %c23_389 = arith.constant 23 : index
    %c0_390 = arith.constant 0 : index
    %c0_391 = arith.constant 0 : index
    %303 = vector.load %arg7[%c23_389, %c0_390, %c0_391] : memref<25x24x48xf32, #tpu.memory_space<vmem>>, vector<1x24x48xf32>
    %304 = vector.shape_cast %303 : vector<1x24x48xf32> to vector<24x48xf32>
    %cst_392 = arith.constant dense<0.000000e+00> : vector<128x48xf32>
    %305 = tpu.matmul %302, %304, %cst_392 {dimension_numbers = #tpu.dot_dimension_numbers<[1], [0], [0], [1], [0, 0, 1, 1], [], []>} : vector<128x24xf32>, vector<24x48xf32>, vector<128x48xf32> -> vector<128x48xf32>
    %306 = arith.addf %300, %305 : vector<128x48xf32>
    %c0_393 = arith.constant 0 : index
    %c4_394 = arith.constant 4 : index
    %c10_395 = arith.constant 10 : index
    %c0_396 = arith.constant 0 : index
    %307 = vector.load %arg10[%c0_393, %c4_394, %c10_395, %c0_396] : memref<2x12x18x24xf32, #tpu.memory_space<vmem>>, vector<2x8x8x24xf32>
    %308 = vector.shape_cast %307 : vector<2x8x8x24xf32> to vector<128x24xf32>
    %c24_397 = arith.constant 24 : index
    %c0_398 = arith.constant 0 : index
    %c0_399 = arith.constant 0 : index
    %309 = vector.load %arg7[%c24_397, %c0_398, %c0_399] : memref<25x24x48xf32, #tpu.memory_space<vmem>>, vector<1x24x48xf32>
    %310 = vector.shape_cast %309 : vector<1x24x48xf32> to vector<24x48xf32>
    %cst_400 = arith.constant dense<0.000000e+00> : vector<128x48xf32>
    %311 = tpu.matmul %308, %310, %cst_400 {dimension_numbers = #tpu.dot_dimension_numbers<[1], [0], [0], [1], [0, 0, 1, 1], [], []>} : vector<128x24xf32>, vector<24x48xf32>, vector<128x48xf32> -> vector<128x48xf32>
    %312 = arith.addf %306, %311 : vector<128x48xf32>
    %c0_401 = arith.constant 0 : index
    %c0_402 = arith.constant 0 : index
    %313 = vector.load %arg8[%c0_401, %c0_402] : memref<1x48xf32, #tpu.memory_space<vmem>>, vector<1x48xf32>
    %314 = vector.broadcast %313 : vector<1x48xf32> to vector<128x48xf32>
    %315 = arith.addf %312, %314 : vector<128x48xf32>
    %c0_403 = arith.constant 0 : index
    %c1_404 = arith.constant 1 : index
    %c1_405 = arith.constant 1 : index
    %c0_406 = arith.constant 0 : index
    %316 = vector.load %arg1[%c0_403, %c1_404, %c1_405, %c0_406] : memref<2x10x10x48xbf16, #tpu.memory_space<vmem>>, vector<2x8x8x48xbf16>
    %317 = vector.shape_cast %316 : vector<2x8x8x48xbf16> to vector<128x48xbf16>
    %c0_407 = arith.constant 0 : index
    %c1_408 = arith.constant 1 : index
    %c1_409 = arith.constant 1 : index
    %c0_410 = arith.constant 0 : index
    %318 = vector.load %arg2[%c0_407, %c1_408, %c1_409, %c0_410] : memref<2x10x10x48xbf16, #tpu.memory_space<vmem>>, vector<2x8x8x48xbf16>
    %319 = vector.shape_cast %318 : vector<2x8x8x48xbf16> to vector<128x48xbf16>
    %320 = arith.maximumf %317, %319 : vector<128x48xbf16>
    %c0_411 = arith.constant 0 : index
    %c1_412 = arith.constant 1 : index
    %c1_413 = arith.constant 1 : index
    %c0_414 = arith.constant 0 : index
    %321 = vector.load %arg3[%c0_411, %c1_412, %c1_413, %c0_414] : memref<2x10x10x48xbf16, #tpu.memory_space<vmem>>, vector<2x8x8x48xbf16>
    %322 = vector.shape_cast %321 : vector<2x8x8x48xbf16> to vector<128x48xbf16>
    %323 = arith.maximumf %320, %322 : vector<128x48xbf16>
    %c0_415 = arith.constant 0 : index
    %c1_416 = arith.constant 1 : index
    %c1_417 = arith.constant 1 : index
    %c0_418 = arith.constant 0 : index
    %324 = vector.load %arg4[%c0_415, %c1_416, %c1_417, %c0_418] : memref<2x10x10x48xbf16, #tpu.memory_space<vmem>>, vector<2x8x8x48xbf16>
    %325 = vector.shape_cast %324 : vector<2x8x8x48xbf16> to vector<128x48xbf16>
    %326 = arith.maximumf %323, %325 : vector<128x48xbf16>
    %327 = arith.extf %326 : vector<128x48xbf16> to vector<128x48xf32>
    %328 = arith.addf %315, %327 : vector<128x48xf32>
    %cst_419 = arith.constant 0.000000e+00 : f32
    %329 = vector.broadcast %cst_419 : f32 to vector<128x48xf32>
    %330 = arith.maximumf %328, %329 : vector<128x48xf32>
    %331 = vector.shape_cast %330 : vector<128x48xf32> to vector<2x8x8x48xf32>
    %c0_420 = arith.constant 0 : index
    %c0_421 = arith.constant 0 : index
    %c0_422 = arith.constant 0 : index
    %c0_423 = arith.constant 0 : index
    %332 = vector.load %arg9[%c0_420, %c0_421, %c0_422, %c0_423] : memref<2x8x8x48xf32, #tpu.memory_space<vmem>>, vector<2x8x8x48xf32>
    tpu.vector_store %arg9[%c0_420, %c0_421, %c0_422, %c0_423], %331 {strides = array<i32>} : memref<2x8x8x48xf32, #tpu.memory_space<vmem>>, vector<2x8x8x48xf32>,
    return
  }
  func.func @transform_0(%arg0: i32) -> (i32, i32, i32, i32) {
    %c0_i32 = arith.constant 0 : i32
    %c0_i32_0 = arith.constant 0 : i32
    %c0_i32_1 = arith.constant 0 : i32
    %c0_i32_2 = arith.constant 0 : i32
    return %arg0, %c0_i32, %c0_i32_0, %c0_i32_1 : i32, i32, i32, i32
  }
  func.func @transform_1(%arg0: i32) -> (i32, i32, i32, i32) {
    %c0_i32 = arith.constant 0 : i32
    %c0_i32_0 = arith.constant 0 : i32
    %c0_i32_1 = arith.constant 0 : i32
    %c0_i32_2 = arith.constant 0 : i32
    return %arg0, %c0_i32, %c0_i32_0, %c0_i32_1 : i32, i32, i32, i32
  }
  func.func @transform_2(%arg0: i32) -> (i32, i32, i32, i32) {
    %c0_i32 = arith.constant 0 : i32
    %c0_i32_0 = arith.constant 0 : i32
    %c0_i32_1 = arith.constant 0 : i32
    %c0_i32_2 = arith.constant 0 : i32
    return %arg0, %c0_i32, %c0_i32_0, %c0_i32_1 : i32, i32, i32, i32
  }
  func.func @transform_3(%arg0: i32) -> (i32, i32, i32, i32) {
    %c0_i32 = arith.constant 0 : i32
    %c0_i32_0 = arith.constant 0 : i32
    %c0_i32_1 = arith.constant 0 : i32
    %c0_i32_2 = arith.constant 0 : i32
    return %arg0, %c0_i32, %c0_i32_0, %c0_i32_1 : i32, i32, i32, i32
  }
  func.func @transform_4(%arg0: i32) -> (i32, i32, i32) {
    %c0_i32 = arith.constant 0 : i32
    %c0_i32_0 = arith.constant 0 : i32
    %c0_i32_1 = arith.constant 0 : i32
    %c0_i32_2 = arith.constant 0 : i32
    return %c0_i32, %c0_i32_0, %c0_i32_1 : i32, i32, i32
  }
  func.func @transform_5(%arg0: i32) -> (i32, i32) {
    %c0_i32 = arith.constant 0 : i32
    %c0_i32_0 = arith.constant 0 : i32
    %c0_i32_1 = arith.constant 0 : i32
    return %c0_i32, %c0_i32_0 : i32, i32
  }
  func.func @transform_6(%arg0: i32) -> (i32, i32, i32) {
    %c0_i32 = arith.constant 0 : i32
    %c0_i32_0 = arith.constant 0 : i32
    %c0_i32_1 = arith.constant 0 : i32
    %c0_i32_2 = arith.constant 0 : i32
    return %c0_i32, %c0_i32_0, %c0_i32_1 : i32, i32, i32
  }
  func.func @transform_7(%arg0: i32) -> (i32, i32) {
    %c0_i32 = arith.constant 0 : i32
    %c0_i32_0 = arith.constant 0 : i32
    %c0_i32_1 = arith.constant 0 : i32
    return %c0_i32, %c0_i32_0 : i32, i32
  }
  func.func @transform_8(%arg0: i32) -> (i32, i32, i32, i32) {
    %c0_i32 = arith.constant 0 : i32
    %c0_i32_0 = arith.constant 0 : i32
    %c0_i32_1 = arith.constant 0 : i32
    %c0_i32_2 = arith.constant 0 : i32
    return %arg0, %c0_i32, %c0_i32_0, %c0_i32_1 : i32, i32, i32, i32
  }
}

</mosaic_0001>

<llo_original>
// kernel: blaze_block_forward.1
$region0: #{blaze_block_forward.1}
  #allocation0 [shape = 'u32[]', space=smem, size = 0x4, offset = 0x4, fixed_abs, tag = 'smem constant byte address 0x4 - core index']
  #allocation1 [shape = 'u32[72,128]{1,0:T(1,128)}', space=vmem, size = 0x9000, scoped, tag = 'internal scratch']
  #allocation2 [shape = 'f32[2,12,18,24]{3,2,1,0:T(8,128)}', space=vmem, size = 0x48000, scoped, tag = 'scratch operand']
  %s0 = inlined_call_operand.vmem [shape: bf16[4,10,10,48], index: 0, kind: input, shape index: {}]
  %s1 = inlined_call_operand.vmem [shape: bf16[4,10,10,48], index: 1, kind: input, shape index: {}]
  %s2 = inlined_call_operand.vmem [shape: bf16[4,10,10,48], index: 2, kind: input, shape index: {}]
  %s3 = inlined_call_operand.vmem [shape: bf16[4,10,10,48], index: 3, kind: input, shape index: {}]
  %s4 = inlined_call_operand.vmem [shape: bf16[25,48,24], index: 4, kind: input, shape index: {}]
  %s5 = inlined_call_operand.vmem [shape: f32[1,24], index: 5, kind: input, shape index: {}]
  %s6 = inlined_call_operand.vmem [shape: f32[25,24,48], index: 6, kind: input, shape index: {}]
  %s7 = inlined_call_operand.vmem [shape: f32[1,48], index: 7, kind: input, shape index: {}]
  %s8 = inlined_call_operand.hbm [shape: f32[4,8,8,48], index: 8, kind: output, shape index: {}]
  %s9 = sld [smem:[#allocation0]]
  $region65: #{blaze_block_forward.1} parent=0
    _
  %s11 = ssub.s32 1, %s9
  %s12 = scalar_select 0, %s11, %s9
  $region1: #{blaze_block_forward.1} parent=0
    #allocation3 [shape = 'u8[131072]{0}', space=vmem, size = 0x20000, scoped, tag = 'output window, operand 0']
    #allocation4 [shape = 's32[2]{0}', space=sflag, size = 0x8, scoped, tag = 'scoped memory for blaze_block_forward.1']
    %13 = vsyncpa [#allocation4], 0
    %s14 = scalar_lea.sflag [#allocation4], 1
    %15 = vsyncpa %s14, 0
    loop: start=0, step=1, limit=4
    $region2: #{blaze_block_forward.1} parent=1 // loop_pre_header
      _
    $region3: #{blaze_block_forward.1} parent=1 // loop_header
      %s17 = sphi 0, %s21
      %p18 = scmp.ge.s32.totalorder %s17, 4
      %s27 = sphi 0, %s29
      %s30 = sphi 0, %s27
      %s31 = sphi 0, %s30
      %s47 = sphi 0, %s31
      %s53 = sphi 0, %s55
      %s56 = sphi 0, %s53
      %s57 = sphi 0, %s56
      %s73 = sphi 0, %s57
      %s79 = sphi 0, %s81
      %s82 = sphi 0, %s79
      %s83 = sphi 0, %s82
      %s99 = sphi 0, %s83
      %s105 = sphi 0, %s107
      %s108 = sphi 0, %s105
      %s109 = sphi 0, %s108
      %s125 = sphi 0, %s109
      %s129 = sphi 0, %s129
      %s131 = sphi 0, %s129
      %s132 = sphi 0, %s131
      %s146 = sphi 0, %s132
      %s150 = sphi 0, %s150
      %s152 = sphi 0, %s150
      %s153 = sphi 0, %s152
      %s167 = sphi 0, %s153
      %s171 = sphi 0, %s171
      %s173 = sphi 0, %s171
      %s174 = sphi 0, %s173
      %s188 = sphi 0, %s174
      %s192 = sphi 0, %s192
      %s194 = sphi 0, %s192
      %s195 = sphi 0, %s194
      %s209 = sphi 0, %s195
      %s215 = sphi 0, %s217
      %s218 = sphi 0, %s215
      %s219 = sphi 0, %s218
      %s235 = sphi 0, %s219
    $region4: #{blaze_block_forward.1} parent=1 // loop_header_branch
      %20 = sbr.rel (%p18) target = $region8
    $region5: #{blaze_block_forward.1} parent=1 // loop_body
      %s22 = ssub.s32 %s17, 1
      %s23 = ssub.s32 %s17, 2
      %s24 = sadd.s32 %s17, 1
      %s25 = ssub.s32 %s17, %s24
      %p26 = scmp.eq.s32.totalorder %s25, 0
      %s28 = sadd.s32 %s27, 1
      %s29 = scalar_select %p26, %s27, %s28
      %p32 = pneg %p26
      %p33 = scmp.eq.s32.totalorder %s17, 1
      %p34 = por %p32, %p33
      %p35 = scmp.ne.s32.totalorder %s27, %s30
      %p36 = scmp.eq.s32.totalorder %s17, 0
      %p37 = por %p35, %p36
      %p38 = scmp.ne.s32.totalorder %s27, %s30
      %p39 = scmp.eq.s32.totalorder %s22, 1
      %p40 = por %p38, %p39
      %p41 = scmp.ne.s32.totalorder %s30, %s31
      %p42 = scmp.eq.s32.totalorder %s22, 0
      %p43 = por %p41, %p42
      %p44 = scmp.ne.s32.totalorder %s30, %s31
      %p45 = scmp.eq.s32.totalorder %s23, 1
      %p46 = por %p44, %p45
      %p48 = scmp.ne.s32.totalorder %s31, %s47
      %p49 = scmp.eq.s32.totalorder %s23, 0
      %p50 = por %p48, %p49
      %s51 = ssub.s32 %s17, %s24
      %p52 = scmp.eq.s32.totalorder %s51, 0
      %s54 = sadd.s32 %s53, 1
      %s55 = scalar_select %p52, %s53, %s54
      %p58 = pneg %p52
      %p59 = scmp.eq.s32.totalorder %s17, 1
      %p60 = por %p58, %p59
      %p61 = scmp.ne.s32.totalorder %s53, %s56
      %p62 = scmp.eq.s32.totalorder %s17, 0
      %p63 = por %p61, %p62
      %p64 = scmp.ne.s32.totalorder %s53, %s56
      %p65 = scmp.eq.s32.totalorder %s22, 1
      %p66 = por %p64, %p65
      %p67 = scmp.ne.s32.totalorder %s56, %s57
      %p68 = scmp.eq.s32.totalorder %s22, 0
      %p69 = por %p67, %p68
      %p70 = scmp.ne.s32.totalorder %s56, %s57
      %p71 = scmp.eq.s32.totalorder %s23, 1
      %p72 = por %p70, %p71
      %p74 = scmp.ne.s32.totalorder %s57, %s73
      %p75 = scmp.eq.s32.totalorder %s23, 0
      %p76 = por %p74, %p75
      %s77 = ssub.s32 %s17, %s24
      %p78 = scmp.eq.s32.totalorder %s77, 0
      %s80 = sadd.s32 %s79, 1
      %s81 = scalar_select %p78, %s79, %s80
      %p84 = pneg %p78
      %p85 = scmp.eq.s32.totalorder %s17, 1
      %p86 = por %p84, %p85
      %p87 = scmp.ne.s32.totalorder %s79, %s82
      %p88 = scmp.eq.s32.totalorder %s17, 0
      %p89 = por %p87, %p88
      %p90 = scmp.ne.s32.totalorder %s79, %s82
      %p91 = scmp.eq.s32.totalorder %s22, 1
      %p92 = por %p90, %p91
      %p93 = scmp.ne.s32.totalorder %s82, %s83
      %p94 = scmp.eq.s32.totalorder %s22, 0
      %p95 = por %p93, %p94
      %p96 = scmp.ne.s32.totalorder %s82, %s83
      %p97 = scmp.eq.s32.totalorder %s23, 1
      %p98 = por %p96, %p97
      %p100 = scmp.ne.s32.totalorder %s83, %s99
      %p101 = scmp.eq.s32.totalorder %s23, 0
      %p102 = por %p100, %p101
      %s103 = ssub.s32 %s17, %s24
      %p104 = scmp.eq.s32.totalorder %s103, 0
      %s106 = sadd.s32 %s105, 1
      %s107 = scalar_select %p104, %s105, %s106
      %p110 = pneg %p104
      %p111 = scmp.eq.s32.totalorder %s17, 1
      %p112 = por %p110, %p111
      %p113 = scmp.ne.s32.totalorder %s105, %s108
      %p114 = scmp.eq.s32.totalorder %s17, 0
      %p115 = por %p113, %p114
      %p116 = scmp.ne.s32.totalorder %s105, %s108
      %p117 = scmp.eq.s32.totalorder %s22, 1
      %p118 = por %p116, %p117
      %p119 = scmp.ne.s32.totalorder %s108, %s109
      %p120 = scmp.eq.s32.totalorder %s22, 0
      %p121 = por %p119, %p120
      %p122 = scmp.ne.s32.totalorder %s108, %s109
      %p123 = scmp.eq.s32.totalorder %s23, 1
      %p124 = por %p122, %p123
      %p126 = scmp.ne.s32.totalorder %s109, %s125
      %p127 = scmp.eq.s32.totalorder %s23, 0
      %p128 = por %p126, %p127
      %s130 = sadd.s32 %s129, 1
      %p133 = scmp.eq.s32.totalorder %s17, 1
      %p134 = scmp.ne.s32.totalorder %s129, %s131
      %p135 = scmp.eq.s32.totalorder %s17, 0
      %p136 = por %p134, %p135
      %p137 = scmp.ne.s32.totalorder %s129, %s131
      %p138 = scmp.eq.s32.totalorder %s22, 1
      %p139 = por %p137, %p138
      %p140 = scmp.ne.s32.totalorder %s131, %s132
      %p141 = scmp.eq.s32.totalorder %s22, 0
      %p142 = por %p140, %p141
      %p143 = scmp.ne.s32.totalorder %s131, %s132
      %p144 = scmp.eq.s32.totalorder %s23, 1
      %p145 = por %p143, %p144
      %p147 = scmp.ne.s32.totalorder %s132, %s146
      %p148 = scmp.eq.s32.totalorder %s23, 0
      %p149 = por %p147, %p148
      %s151 = sadd.s32 %s150, 1
      %p154 = scmp.eq.s32.totalorder %s17, 1
      %p155 = scmp.ne.s32.totalorder %s150, %s152
      %p156 = scmp.eq.s32.totalorder %s17, 0
      %p157 = por %p155, %p156
      %p158 = scmp.ne.s32.totalorder %s150, %s152
      %p159 = scmp.eq.s32.totalorder %s22, 1
      %p160 = por %p158, %p159
      %p161 = scmp.ne.s32.totalorder %s152, %s153
      %p162 = scmp.eq.s32.totalorder %s22, 0
      %p163 = por %p161, %p162
      %p164 = scmp.ne.s32.totalorder %s152, %s153
      %p165 = scmp.eq.s32.totalorder %s23, 1
      %p166 = por %p164, %p165
      %p168 = scmp.ne.s32.totalorder %s153, %s167
      %p169 = scmp.eq.s32.totalorder %s23, 0
      %p170 = por %p168, %p169
      %s172 = sadd.s32 %s171, 1
      %p175 = scmp.eq.s32.totalorder %s17, 1
      %p176 = scmp.ne.s32.totalorder %s171, %s173
      %p177 = scmp.eq.s32.totalorder %s17, 0
      %p178 = por %p176, %p177
      %p179 = scmp.ne.s32.totalorder %s171, %s173
      %p180 = scmp.eq.s32.totalorder %s22, 1
      %p181 = por %p179, %p180
      %p182 = scmp.ne.s32.totalorder %s173, %s174
      %p183 = scmp.eq.s32.totalorder %s22, 0
      %p184 = por %p182, %p183
      %p185 = scmp.ne.s32.totalorder %s173, %s174
      %p186 = scmp.eq.s32.totalorder %s23, 1
      %p187 = por %p185, %p186
      %p189 = scmp.ne.s32.totalorder %s174, %s188
      %p190 = scmp.eq.s32.totalorder %s23, 0
      %p191 = por %p189, %p190
      %s193 = sadd.s32 %s192, 1
      %p196 = scmp.eq.s32.totalorder %s17, 1
      %p197 = scmp.ne.s32.totalorder %s192, %s194
      %p198 = scmp.eq.s32.totalorder %s17, 0
      %p199 = por %p197, %p198
      %p200 = scmp.ne.s32.totalorder %s192, %s194
      %p201 = scmp.eq.s32.totalorder %s22, 1
      %p202 = por %p200, %p201
      %p203 = scmp.ne.s32.totalorder %s194, %s195
      %p204 = scmp.eq.s32.totalorder %s22, 0
      %p205 = por %p203, %p204
      %p206 = scmp.ne.s32.totalorder %s194, %s195
      %p207 = scmp.eq.s32.totalorder %s23, 1
      %p208 = por %p206, %p207
      %p210 = scmp.ne.s32.totalorder %s195, %s209
      %p211 = scmp.eq.s32.totalorder %s23, 0
      %p212 = por %p210, %p211
      %s213 = ssub.s32 %s17, %s24
      %p214 = scmp.eq.s32.totalorder %s213, 0
      %s216 = sadd.s32 %s215, 1
      %s217 = scalar_select %p214, %s215, %s216
      %p220 = pneg %p214
      %p221 = scmp.eq.s32.totalorder %s17, 1
      %p222 = por %p220, %p221
      %p223 = scmp.ne.s32.totalorder %s215, %s218
      %p224 = scmp.eq.s32.totalorder %s17, 0
      %p225 = por %p223, %p224
      %p226 = scmp.ne.s32.totalorder %s215, %s218
      %p227 = scmp.eq.s32.totalorder %s22, 1
      %p228 = por %p226, %p227
      %p229 = scmp.ne.s32.totalorder %s218, %s219
      %p230 = scmp.eq.s32.totalorder %s22, 0
      %p231 = por %p229, %p230
      %p232 = scmp.ne.s32.totalorder %s218, %s219
      %p233 = scmp.eq.s32.totalorder %s23, 1
      %p234 = por %p232, %p233
      %p236 = scmp.ne.s32.totalorder %s219, %s235
      %p237 = scmp.eq.s32.totalorder %s23, 0
      %p238 = por %p236, %p237
      %p239 = scmp.le.s32.totalorder 1, %s17
      %p240 = scmp.lt.s32.totalorder %s17, 3
      %p241 = pnand %p239, %p240
      %p242 = pneg %p241
      // Predicated region
      $region9: #{blaze_block_forward.1} parent=5 // pred_check
        _
      $region10: #{blaze_block_forward.1} parent=5 // pred_check_branch
        %244 = sbr.rel (%p241) target = $region12
      $region11: #{blaze_block_forward.1} parent=5 // pred_region
        %s245 = ssub.s32 %s17, 1
        // Predicated region
        $region13: #{blaze_block_forward.1} parent=11 // pred_check
          %p246 = pneg %p142
        $region14: #{blaze_block_forward.1} parent=11 // pred_check_branch
          %248 = sbr.rel (%p246) target = $region16
        $region15: #{blaze_block_forward.1} parent=11 // pred_region
          _
        $region16: #{blaze_block_forward.1} parent=11 // pred_fallthru
          _
        // Predicated region
        $region17: #{blaze_block_forward.1} parent=11 // pred_check
          %p249 = pneg %p163
        $region18: #{blaze_block_forward.1} parent=11 // pred_check_branch
          %251 = sbr.rel (%p249) target = $region20
        $region19: #{blaze_block_forward.1} parent=11 // pred_region
          _
        $region20: #{blaze_block_forward.1} parent=11 // pred_fallthru
          _
        // Predicated region
        $region21: #{blaze_block_forward.1} parent=11 // pred_check
          %p252 = pneg %p184
        $region22: #{blaze_block_forward.1} parent=11 // pred_check_branch
          %254 = sbr.rel (%p252) target = $region24
        $region23: #{blaze_block_forward.1} parent=11 // pred_region
          _
        $region24: #{blaze_block_forward.1} parent=11 // pred_fallthru
          _
        // Predicated region
        $region25: #{blaze_block_forward.1} parent=11 // pred_check
          %p255 = pneg %p205
        $region26: #{blaze_block_forward.1} parent=11 // pred_check_branch
          %257 = sbr.rel (%p255) target = $region28
        $region27: #{blaze_block_forward.1} parent=11 // pred_region
          _
        $region28: #{blaze_block_forward.1} parent=11 // pred_fallthru
          _
      $region12: #{blaze_block_forward.1} parent=5 // pred_fallthru
        _
      %p258 = scmp.lt.s32.totalorder %s17, 2
      // Predicated region
      $region29: #{blaze_block_forward.1} parent=5 // pred_check
        %p259 = pneg %p258
      $region30: #{blaze_block_forward.1} parent=5 // pred_check_branch
        %261 = sbr.rel (%p259) target = $region32
      $region31: #{blaze_block_forward.1} parent=5 // pred_region
        // Predicated region
        $region33: #{blaze_block_forward.1} parent=31 // pred_check
          %p262 = pneg %p37
        $region34: #{blaze_block_forward.1} parent=31 // pred_check_branch
          %264 = sbr.rel (%p262) target = $region36
        $region35: #{blaze_block_forward.1} parent=31 // pred_region
          %s265 = smul.u32 2, %s17
          %p266 = scmp.lt.s32.totalorder %s265, 3
          %s267 = scalar_select %p266, %s265, 3
          %s268 = smul.addr %s267, 20
          %s269 = smul.addr %s268, 4
          %s270 = scalar_lea.vmem %s0, %s269
          %s271 = smul.u32 2, %s17
        $region36: #{blaze_block_forward.1} parent=31 // pred_fallthru
          _
        // Predicated region
        $region37: #{blaze_block_forward.1} parent=31 // pred_check
          %p272 = pneg %p63
        $region38: #{blaze_block_forward.1} parent=31 // pred_check_branch
          %274 = sbr.rel (%p272) target = $region40
        $region39: #{blaze_block_forward.1} parent=31 // pred_region
          %s275 = smul.u32 2, %s17
          %p276 = scmp.lt.s32.totalorder %s275, 3
          %s277 = scalar_select %p276, %s275, 3
          %s278 = smul.addr %s277, 20
          %s279 = smul.addr %s278, 4
          %s280 = scalar_lea.vmem %s1, %s279
          %s281 = smul.u32 2, %s17
        $region40: #{blaze_block_forward.1} parent=31 // pred_fallthru
          _
        // Predicated region
        $region41: #{blaze_block_forward.1} parent=31 // pred_check
          %p282 = pneg %p89
        $region42: #{blaze_block_forward.1} parent=31 // pred_check_branch
          %284 = sbr.rel (%p282) target = $region44
        $region43: #{blaze_block_forward.1} parent=31 // pred_region
          %s285 = smul.u32 2, %s17
          %p286 = scmp.lt.s32.totalorder %s285, 3
          %s287 = scalar_select %p286, %s285, 3
          %s288 = smul.addr %s287, 20
          %s289 = smul.addr %s288, 4
          %s290 = scalar_lea.vmem %s2, %s289
          %s291 = smul.u32 2, %s17
        $region44: #{blaze_block_forward.1} parent=31 // pred_fallthru
          _
        // Predicated region
        $region45: #{blaze_block_forward.1} parent=31 // pred_check
          %p292 = pneg %p115
        $region46: #{blaze_block_forward.1} parent=31 // pred_check_branch
          %294 = sbr.rel (%p292) target = $region48
        $region47: #{blaze_block_forward.1} parent=31 // pred_region
          %s295 = smul.u32 2, %s17
          %p296 = scmp.lt.s32.totalorder %s295, 3
          %s297 = scalar_select %p296, %s295, 3
          %s298 = smul.addr %s297, 20
          %s299 = smul.addr %s298, 4
          %s300 = scalar_lea.vmem %s3, %s299
          %s301 = smul.u32 2, %s17
        $region48: #{blaze_block_forward.1} parent=31 // pred_fallthru
          _
      $region32: #{blaze_block_forward.1} parent=5 // pred_fallthru
        _
      %p302 = scmp.le.s32.totalorder 1, %s17
      %p303 = scmp.lt.s32.totalorder %s17, 3
      %p304 = pnand %p302, %p303
      %p305 = pneg %p304
      // Predicated region
      $region49: #{blaze_block_forward.1} parent=5 // pred_check
        _
      $region50: #{blaze_block_forward.1} parent=5 // pred_check_branch
        %307 = sbr.rel (%p304) target = $region52
      $region51: #{blaze_block_forward.1} parent=5 // pred_region
        %s308 = ssub.s32 %s17, 1
        %s309 = smul.u32 2, %s22
        %p310 = scmp.lt.s32.totalorder %s309, 3
        %s311 = scalar_select %p310, %s309, 3
        %s312 = smul.addr %s311, 20
        %s313 = smul.addr %s312, 4
        %s314 = scalar_lea.vmem %s0, %s313
        %p315 = pneg %p43
        %p316 = pneg %p40
        %s317 = smul.u32 2, %s22
        %p318 = scmp.lt.s32.totalorder %s317, 3
        %s319 = scalar_select %p318, %s317, 3
        %s320 = smul.addr %s319, 20
        %s321 = smul.addr %s320, 4
        %s322 = scalar_lea.vmem %s1, %s321
        %p323 = pneg %p69
        %p324 = pneg %p66
        %s325 = smul.u32 2, %s22
        %p326 = scmp.lt.s32.totalorder %s325, 3
        %s327 = scalar_select %p326, %s325, 3
        %s328 = smul.addr %s327, 20
        %s329 = smul.addr %s328, 4
        %s330 = scalar_lea.vmem %s2, %s329
        %p331 = pneg %p95
        %p332 = pneg %p92
        %s333 = smul.u32 2, %s22
        %p334 = scmp.lt.s32.totalorder %s333, 3
        %s335 = scalar_select %p334, %s333, 3
        %s336 = smul.addr %s335, 20
        %s337 = smul.addr %s336, 4
        %s338 = scalar_lea.vmem %s3, %s337
        %p339 = pneg %p121
        %p340 = pneg %p118
        %p341 = pneg %p142
        %p342 = pneg %p139
        %p343 = pneg %p163
        %p344 = pneg %p160
        %p345 = pneg %p184
        %p346 = pneg %p181
        %p347 = pneg %p205
        %p348 = pneg %p202
        %p349 = pneg %p231
        %p350 = pneg %p228
        %s351 = sand.u32 %s218, 1
        %s352 = scalar_lea.sflag [#allocation4], %s351
        %s353 = sand.u32 %s218, 1
        %s354 = smul.addr %s353, 128
        %s355 = scalar_lea.vmem [#allocation3], %s354
        %s356 = smul.u32 2, %s22
        %p357 = scmp.lt.s32.totalorder %s356, 3
        %s358 = scalar_select %p357, %s356, 3
        %s359 = smul.addr %s358, 20
        %s360 = smul.addr %s359, 4
        %s361 = scalar_lea.vmem %s0, %s360
        %s362 = smul.u32 2, %s22
        %s363 = smul.u32 2, %s22
        %p364 = scmp.lt.s32.totalorder %s363, 3
        %s365 = scalar_select %p364, %s363, 3
        %s366 = smul.addr %s365, 20
        %s367 = smul.addr %s366, 4
        %s368 = scalar_lea.vmem %s1, %s367
        %s369 = smul.u32 2, %s22
        %s370 = smul.u32 2, %s22
        %p371 = scmp.lt.s32.totalorder %s370, 3
        %s372 = scalar_select %p371, %s370, 3
        %s373 = smul.addr %s372, 20
        %s374 = smul.addr %s373, 4
        %s375 = scalar_lea.vmem %s2, %s374
        %s376 = smul.u32 2, %s22
        %s377 = smul.u32 2, %s22
        %p378 = scmp.lt.s32.totalorder %s377, 3
        %s379 = scalar_select %p378, %s377, 3
        %s380 = smul.addr %s379, 20
        %s381 = smul.addr %s380, 4
        %s382 = scalar_lea.vmem %s3, %s381
        %s383 = smul.u32 2, %s22
        %s384 = smul.u32 2, %s22
        %v386 = vld [vmem:[%s361] sm:$0xf]
        %v387 = vld [vmem:[%s361 + $0x8] sm:$0xf]
        %v388 = vld [vmem:[%s361 + $0x10] sm:$0xf]
        %v389 = vld [vmem:[%s361 + $0x18] sm:$0xf]
        %v390 = vld [vmem:[%s361 + $0x20] sm:$0xf]
        %v391 = vld [vmem:[%s361 + $0x28] sm:$0xf]
        %v392 = vld [vmem:[%s361 + $0x30] sm:$0xf]
        %v393 = vld [vmem:[%s361 + $0x38] sm:$0xf]
        %v394 = vld [vmem:[%s361 + $0x50] sm:$0xf]
        %v395 = vld [vmem:[%s361 + $0x58] sm:$0xf]
        %v396 = vld [vmem:[%s361 + $0x60] sm:$0xf]
        %v397 = vld [vmem:[%s361 + $0x68] sm:$0xf]
        %v398 = vld [vmem:[%s361 + $0x70] sm:$0xf]
        %v399 = vld [vmem:[%s361 + $0x78] sm:$0xf]
        %v400 = vld [vmem:[%s361 + $0x80] sm:$0xf]
        %v401 = vld [vmem:[%s361 + $0x88] sm:$0xf]
        %v402 = vld [vmem:[%s4] sm:$0xf]
        %v403 = vld [vmem:[%s4 + $0x4] sm:$0xf]
        %v404 = vld [vmem:[%s4 + $0x8] sm:$0xf]
        %v405 = vld [vmem:[%s4 + $0xc] sm:$0xf]
        %v406 = vld [vmem:[%s4 + $0x10] sm:$0xf]
        %v407 = vld [vmem:[%s4 + $0x14] sm:$0xf]
        %v408 = vld [vmem:[%s368] sm:$0xf]
        %v409 = vld [vmem:[%s368 + $0x8] sm:$0xf]
        %v410 = vld [vmem:[%s368 + $0x10] sm:$0xf]
        %v411 = vld [vmem:[%s368 + $0x18] sm:$0xf]
        %v412 = vld [vmem:[%s368 + $0x20] sm:$0xf]
        %v413 = vld [vmem:[%s368 + $0x28] sm:$0xf]
        %v414 = vld [vmem:[%s368 + $0x30] sm:$0xf]
        %v415 = vld [vmem:[%s368 + $0x38] sm:$0xf]
        %v416 = vld [vmem:[%s368 + $0x50] sm:$0xf]
        %v417 = vld [vmem:[%s368 + $0x58] sm:$0xf]
        %v418 = vld [vmem:[%s368 + $0x60] sm:$0xf]
        %v419 = vld [vmem:[%s368 + $0x68] sm:$0xf]
        %v420 = vld [vmem:[%s368 + $0x70] sm:$0xf]
        %v421 = vld [vmem:[%s368 + $0x78] sm:$0xf]
        %v422 = vld [vmem:[%s368 + $0x80] sm:$0xf]
        %v423 = vld [vmem:[%s368 + $0x88] sm:$0xf]
        %s424 = scalar_lea.vmem %s4, 24
        %v425 = vld [vmem:[%s424] sm:$0xf]
        %v426 = vld [vmem:[%s424 + $0x4] sm:$0xf]
        %v427 = vld [vmem:[%s424 + $0x8] sm:$0xf]
        %v428 = vld [vmem:[%s424 + $0xc] sm:$0xf]
        %v429 = vld [vmem:[%s424 + $0x10] sm:$0xf]
        %v430 = vld [vmem:[%s424 + $0x14] sm:$0xf]
        %v447 = vunpack.c.l.b16 %v408
        %v448 = vunpack.c.l.b16 %v409
        %v449 = vunpack.c.l.b16 %v410
        %v450 = vunpack.c.l.b16 %v411
        %v451 = vunpack.c.l.b16 %v412
        %v452 = vunpack.c.l.b16 %v413
        %v453 = vunpack.c.l.b16 %v414
        %v454 = vunpack.c.l.b16 %v415
        %v455 = vunpack.c.l.b16 %v416
        %v456 = vunpack.c.l.b16 %v417
        %v457 = vunpack.c.l.b16 %v418
        %v458 = vunpack.c.l.b16 %v419
        %v459 = vunpack.c.l.b16 %v420
        %v460 = vunpack.c.l.b16 %v421
        %v461 = vunpack.c.l.b16 %v422
        %v462 = vunpack.c.l.b16 %v423
        %v463 = vpack.c.b16 %v448, %v447
        %v464 = vpack.c.b16 %v450, %v449
        %v465 = vpack.c.b16 %v452, %v451
        %v466 = vpack.c.b16 %v454, %v453
        %v467 = vpack.c.b16 %v456, %v455
        %v468 = vpack.c.b16 %v458, %v457
        %v469 = vpack.c.b16 %v460, %v459
        %v470 = vpack.c.b16 %v462, %v461
        %v477 = vunpack.c.l.b16 %v425
        %v478 = vunpack.c.l.b16 %v426
        %v479 = vunpack.c.l.b16 %v427
        %v480 = vunpack.c.l.b16 %v428
        %v481 = vunpack.c.l.b16 %v429
        %v482 = vunpack.c.l.b16 %v430
        %v483 = vpack.c.b16 %v478, %v477
        %v484 = vpack.c.b16 %v480, %v479
        %v485 = vpack.c.b16 %v482, %v481
        %vm489 = vcmask 392192
        %v491 = vsel %vm489, %v463, 0
        %v494 = vsel %vm489, %v464, 0
        %v497 = vsel %vm489, %v465, 0
        %v500 = vsel %vm489, %v466, 0
        %v503 = vsel %vm489, %v467, 0
        %v506 = vsel %vm489, %v468, 0
        %v509 = vsel %vm489, %v469, 0
        %v512 = vsel %vm489, %v470, 0
        %514 = vmatpush.bf16.msra.mxu0 0
        %515 = vmatpush.bf16.msra.mxu0 0
        %516 = vmatpush.bf16.msra.mxu0 0
        %517 = vmatpush.bf16.msra.mxu0 0
        %518 = vmatpush.bf16.msra.mxu0 0
        %519 = vmatpush.bf16.msra.mxu0 %v485
        %520 = vmatpush.bf16.msra.mxu0 %v484
        %521 = vmatpush.bf16.msra.mxu0 %v483
        %522 = vmatmul.bf16.gmra.mxu0 %v491
        %v523 = vpop.f32.mrf.mxu0
        %v524 = vadd.f32 0.0, %v523
        %v525 = vpop.f32.mrf.mxu0
        %v526 = vadd.f32 0.0, %v525
        %527 = vmatmul.bf16.gmra.mxu0 %v494
        %v528 = vpop.f32.mrf.mxu0
        %v529 = vadd.f32 0.0, %v528
        %v530 = vpop.f32.mrf.mxu0
        %v531 = vadd.f32 0.0, %v530
        %532 = vmatmul.bf16.gmra.mxu0 %v497
        %v533 = vpop.f32.mrf.mxu0
        %v534 = vadd.f32 0.0, %v533
        %v535 = vpop.f32.mrf.mxu0
        %v536 = vadd.f32 0.0, %v535
        %537 = vmatmul.bf16.gmra.mxu0 %v500
        %v538 = vpop.f32.mrf.mxu0
        %v539 = vadd.f32 0.0, %v538
        %v540 = vpop.f32.mrf.mxu0
        %v541 = vadd.f32 0.0, %v540
        %542 = vmatmul.bf16.gmra.mxu0 %v503
        %v543 = vpop.f32.mrf.mxu0
        %v544 = vadd.f32 0.0, %v543
        %v545 = vpop.f32.mrf.mxu0
        %v546 = vadd.f32 0.0, %v545
        %547 = vmatmul.bf16.gmra.mxu0 %v506
        %v548 = vpop.f32.mrf.mxu0
        %v549 = vadd.f32 0.0, %v548
        %v550 = vpop.f32.mrf.mxu0
        %v551 = vadd.f32 0.0, %v550
        %552 = vmatmul.bf16.gmra.mxu0 %v509
        %v553 = vpop.f32.mrf.mxu0
        %v554 = vadd.f32 0.0, %v553
        %v555 = vpop.f32.mrf.mxu0
        %v556 = vadd.f32 0.0, %v555
        %557 = vmatmul.bf16.gmra.mxu0 %v512
        %v558 = vpop.f32.mrf.mxu0
        %v559 = vadd.f32 0.0, %v558
        %v560 = vpop.f32.mrf.mxu0
        %v561 = vadd.f32 0.0, %v560
        %562 = vdwg.mxu0
        %v579 = vunpack.c.l.b16 %v386
        %v580 = vunpack.c.l.b16 %v387
        %v581 = vunpack.c.l.b16 %v388
        %v582 = vunpack.c.l.b16 %v389
        %v583 = vunpack.c.l.b16 %v390
        %v584 = vunpack.c.l.b16 %v391
        %v585 = vunpack.c.l.b16 %v392
        %v586 = vunpack.c.l.b16 %v393
        %v587 = vunpack.c.l.b16 %v394
        %v588 = vunpack.c.l.b16 %v395
        %v589 = vunpack.c.l.b16 %v396
        %v590 = vunpack.c.l.b16 %v397
        %v591 = vunpack.c.l.b16 %v398
        %v592 = vunpack.c.l.b16 %v399
        %v593 = vunpack.c.l.b16 %v400
        %v594 = vunpack.c.l.b16 %v401
        %v595 = vpack.c.b16 %v580, %v579
        %v596 = vpack.c.b16 %v582, %v581
        %v597 = vpack.c.b16 %v584, %v583
        %v598 = vpack.c.b16 %v586, %v585
        %v599 = vpack.c.b16 %v588, %v587
        %v600 = vpack.c.b16 %v590, %v589
        %v601 = vpack.c.b16 %v592, %v591
        %v602 = vpack.c.b16 %v594, %v593
        %v609 = vunpack.c.l.b16 %v402
        %v610 = vunpack.c.l.b16 %v403
        %v611 = vunpack.c.l.b16 %v404
        %v612 = vunpack.c.l.b16 %v405
        %v613 = vunpack.c.l.b16 %v406
        %v614 = vunpack.c.l.b16 %v407
        %v615 = vpack.c.b16 %v610, %v609
        %v616 = vpack.c.b16 %v612, %v611
        %v617 = vpack.c.b16 %v614, %v613
        %v622 = vsel %vm489, %v595, 0
        %v625 = vsel %vm489, %v596, 0
        %v628 = vsel %vm489, %v597, 0
        %v631 = vsel %vm489, %v598, 0
        %v634 = vsel %vm489, %v599, 0
        %v637 = vsel %vm489, %v600, 0
        %v640 = vsel %vm489, %v601, 0
        %v643 = vsel %vm489, %v602, 0
        %645 = vmatpush.bf16.msra.mxu0 0
        %646 = vmatpush.bf16.msra.mxu0 0
        %647 = vmatpush.bf16.msra.mxu0 0
        %648 = vmatpush.bf16.msra.mxu0 0
        %649 = vmatpush.bf16.msra.mxu0 0
        %650 = vmatpush.bf16.msra.mxu0 %v617
        %651 = vmatpush.bf16.msra.mxu0 %v616
        %652 = vmatpush.bf16.msra.mxu0 %v615
        %653 = vmatmul.bf16.gmra.mxu0 %v622
        %v654 = vpop.f32.mrf.mxu0
        %v655 = vadd.f32 %v524, %v654
        %v656 = vpop.f32.mrf.mxu0
        %v657 = vadd.f32 %v526, %v656
        %658 = vmatmul.bf16.gmra.mxu0 %v625
        %v659 = vpop.f32.mrf.mxu0
        %v660 = vadd.f32 %v529, %v659
        %v661 = vpop.f32.mrf.mxu0
        %v662 = vadd.f32 %v531, %v661
        %663 = vmatmul.bf16.gmra.mxu0 %v628
        %v664 = vpop.f32.mrf.mxu0
        %v665 = vadd.f32 %v534, %v664
        %v666 = vpop.f32.mrf.mxu0
        %v667 = vadd.f32 %v536, %v666
        %668 = vmatmul.bf16.gmra.mxu0 %v631
        %v669 = vpop.f32.mrf.mxu0
        %v670 = vadd.f32 %v539, %v669
        %v671 = vpop.f32.mrf.mxu0
        %v672 = vadd.f32 %v541, %v671
        %673 = vmatmul.bf16.gmra.mxu0 %v634
        %v674 = vpop.f32.mrf.mxu0
        %v675 = vadd.f32 %v544, %v674
        %v676 = vpop.f32.mrf.mxu0
        %v677 = vadd.f32 %v546, %v676
        %678 = vmatmul.bf16.gmra.mxu0 %v637
        %v679 = vpop.f32.mrf.mxu0
        %v680 = vadd.f32 %v549, %v679
        %v681 = vpop.f32.mrf.mxu0
        %v682 = vadd.f32 %v551, %v681
        %683 = vmatmul.bf16.gmra.mxu0 %v640
        %v684 = vpop.f32.mrf.mxu0
        %v685 = vadd.f32 %v554, %v684
        %v686 = vpop.f32.mrf.mxu0
        %v687 = vadd.f32 %v556, %v686
        %688 = vmatmul.bf16.gmra.mxu0 %v643
        %v689 = vpop.f32.mrf.mxu0
        %v690 = vadd.f32 %v559, %v689
        %v691 = vpop.f32.mrf.mxu0
        %v692 = vadd.f32 %v561, %v691
        %693 = vdwg.mxu0
        %v694 = vld [vmem:[%s361] sm:$0xf]
        %v695 = vld [vmem:[%s361 + $0x4] sm:$0x1]
        %v696 = vld [vmem:[%s361 + $0x8] sm:$0xf]
        %v697 = vld [vmem:[%s361 + $0xc] sm:$0x1]
        %v698 = vld [vmem:[%s361 + $0x10] sm:$0xf]
        %v699 = vld [vmem:[%s361 + $0x14] sm:$0x1]
        %v700 = vld [vmem:[%s361 + $0x18] sm:$0xf]
        %v701 = vld [vmem:[%s361 + $0x1c] sm:$0x1]
        %v702 = vld [vmem:[%s361 + $0x20] sm:$0xf]
        %v703 = vld [vmem:[%s361 + $0x24] sm:$0x1]
        %v704 = vld [vmem:[%s361 + $0x28] sm:$0xf]
        %v705 = vld [vmem:[%s361 + $0x2c] sm:$0x1]
        %v706 = vld [vmem:[%s361 + $0x30] sm:$0xf]
        %v707 = vld [vmem:[%s361 + $0x34] sm:$0x1]
        %v708 = vld [vmem:[%s361 + $0x38] sm:$0xf]
        %v709 = vld [vmem:[%s361 + $0x3c] sm:$0x1]
        %v710 = vld [vmem:[%s361 + $0x50] sm:$0xf]
        %v711 = vld [vmem:[%s361 + $0x54] sm:$0x1]
        %v712 = vld [vmem:[%s361 + $0x58] sm:$0xf]
        %v713 = vld [vmem:[%s361 + $0x5c] sm:$0x1]
        %v714 = vld [vmem:[%s361 + $0x60] sm:$0xf]
        %v715 = vld [vmem:[%s361 + $0x64] sm:$0x1]
        %v716 = vld [vmem:[%s361 + $0x68] sm:$0xf]
        %v717 = vld [vmem:[%s361 + $0x6c] sm:$0x1]
        %v718 = vld [vmem:[%s361 + $0x70] sm:$0xf]
        %v719 = vld [vmem:[%s361 + $0x74] sm:$0x1]
        %v720 = vld [vmem:[%s361 + $0x78] sm:$0xf]
        %v721 = vld [vmem:[%s361 + $0x7c] sm:$0x1]
        %v722 = vld [vmem:[%s361 + $0x80] sm:$0xf]
        %v723 = vld [vmem:[%s361 + $0x84] sm:$0x1]
        %v724 = vld [vmem:[%s361 + $0x88] sm:$0xf]
        %v725 = vld [vmem:[%s361 + $0x8c] sm:$0x1]
        %vm726 = vsmask.f32 3328
        %vm727 = vsmask.f32 7440
        %vm728 = vmor %vm726, %vm727
        %v730 = vshrl.u32 %v694, 16
        %v732 = vrot.slane %v730, 4
        %v733 = vshll.u32 %v694, 16
        %v735 = vrot.slane %v733, 5
        %v736 = vor.u32 %v732, %v735
        %v737 = vrot.slane %v736, 4
        %v739 = vshll.u32 %v695, 16
        %v741 = vrot.slane %v739, 5
        %v742 = vsel %vm728, %v737, %v741
        %v744 = vshrl.u32 %v696, 16
        %v746 = vrot.slane %v744, 4
        %v747 = vshll.u32 %v696, 16
        %v749 = vrot.slane %v747, 5
        %v750 = vor.u32 %v746, %v749
        %v751 = vrot.slane %v750, 4
        %v753 = vshll.u32 %v697, 16
        %v755 = vrot.slane %v753, 5
        %v756 = vsel %vm728, %v751, %v755
        %v758 = vshrl.u32 %v698, 16
        %v760 = vrot.slane %v758, 4
        %v761 = vshll.u32 %v698, 16
        %v763 = vrot.slane %v761, 5
        %v764 = vor.u32 %v760, %v763
        %v765 = vrot.slane %v764, 4
        %v767 = vshll.u32 %v699, 16
        %v769 = vrot.slane %v767, 5
        %v770 = vsel %vm728, %v765, %v769
        %v772 = vshrl.u32 %v700, 16
        %v774 = vrot.slane %v772, 4
        %v775 = vshll.u32 %v700, 16
        %v777 = vrot.slane %v775, 5
        %v778 = vor.u32 %v774, %v777
        %v779 = vrot.slane %v778, 4
        %v781 = vshll.u32 %v701, 16
        %v783 = vrot.slane %v781, 5
        %v784 = vsel %vm728, %v779, %v783
        %v786 = vshrl.u32 %v702, 16
        %v788 = vrot.slane %v786, 4
        %v789 = vshll.u32 %v702, 16
        %v791 = vrot.slane %v789, 5
        %v792 = vor.u32 %v788, %v791
        %v793 = vrot.slane %v792, 4
        %v795 = vshll.u32 %v703, 16
        %v797 = vrot.slane %v795, 5
        %v798 = vsel %vm728, %v793, %v797
        %v800 = vshrl.u32 %v704, 16
        %v802 = vrot.slane %v800, 4
        %v803 = vshll.u32 %v704, 16
        %v805 = vrot.slane %v803, 5
        %v806 = vor.u32 %v802, %v805
        %v807 = vrot.slane %v806, 4
        %v809 = vshll.u32 %v705, 16
        %v811 = vrot.slane %v809, 5
        %v812 = vsel %vm728, %v807, %v811
        %v814 = vshrl.u32 %v706, 16
        %v816 = vrot.slane %v814, 4
        %v817 = vshll.u32 %v706, 16
        %v819 = vrot.slane %v817, 5
        %v820 = vor.u32 %v816, %v819
        %v821 = vrot.slane %v820, 4
        %v823 = vshll.u32 %v707, 16
        %v825 = vrot.slane %v823, 5
        %v826 = vsel %vm728, %v821, %v825
        %v828 = vshrl.u32 %v708, 16
        %v830 = vrot.slane %v828, 4
        %v831 = vshll.u32 %v708, 16
        %v833 = vrot.slane %v831, 5
        %v834 = vor.u32 %v830, %v833
        %v835 = vrot.slane %v834, 4
        %v837 = vshll.u32 %v709, 16
        %v839 = vrot.slane %v837, 5
        %v840 = vsel %vm728, %v835, %v839
        %v842 = vshrl.u32 %v710, 16
        %v844 = vrot.slane %v842, 4
        %v845 = vshll.u32 %v710, 16
        %v847 = vrot.slane %v845, 5
        %v848 = vor.u32 %v844, %v847
        %v849 = vrot.slane %v848, 4
        %v851 = vshll.u32 %v711, 16
        %v853 = vrot.slane %v851, 5
        %v854 = vsel %vm728, %v849, %v853
        %v856 = vshrl.u32 %v712, 16
        %v858 = vrot.slane %v856, 4
        %v859 = vshll.u32 %v712, 16
        %v861 = vrot.slane %v859, 5
        %v862 = vor.u32 %v858, %v861
        %v863 = vrot.slane %v862, 4
        %v865 = vshll.u32 %v713, 16
        %v867 = vrot.slane %v865, 5
        %v868 = vsel %vm728, %v863, %v867
        %v870 = vshrl.u32 %v714, 16
        %v872 = vrot.slane %v870, 4
        %v873 = vshll.u32 %v714, 16
        %v875 = vrot.slane %v873, 5
        %v876 = vor.u32 %v872, %v875
        %v877 = vrot.slane %v876, 4
        %v879 = vshll.u32 %v715, 16
        %v881 = vrot.slane %v879, 5
        %v882 = vsel %vm728, %v877, %v881
        %v884 = vshrl.u32 %v716, 16
        %v886 = vrot.slane %v884, 4
        %v887 = vshll.u32 %v716, 16
        %v889 = vrot.slane %v887, 5
        %v890 = vor.u32 %v886, %v889
        %v891 = vrot.slane %v890, 4
        %v893 = vshll.u32 %v717, 16
        %v895 = vrot.slane %v893, 5
        %v896 = vsel %vm728, %v891, %v895
        %v898 = vshrl.u32 %v718, 16
        %v900 = vrot.slane %v898, 4
        %v901 = vshll.u32 %v718, 16
        %v903 = vrot.slane %v901, 5
        %v904 = vor.u32 %v900, %v903
        %v905 = vrot.slane %v904, 4
        %v907 = vshll.u32 %v719, 16
        %v909 = vrot.slane %v907, 5
        %v910 = vsel %vm728, %v905, %v909
        %v912 = vshrl.u32 %v720, 16
        %v914 = vrot.slane %v912, 4
        %v915 = vshll.u32 %v720, 16
        %v917 = vrot.slane %v915, 5
        %v918 = vor.u32 %v914, %v917
        %v919 = vrot.slane %v918, 4
        %v921 = vshll.u32 %v721, 16
        %v923 = vrot.slane %v921, 5
        %v924 = vsel %vm728, %v919, %v923
        %v926 = vshrl.u32 %v722, 16
        %v928 = vrot.slane %v926, 4
        %v929 = vshll.u32 %v722, 16
        %v931 = vrot.slane %v929, 5
        %v932 = vor.u32 %v928, %v931
        %v933 = vrot.slane %v932, 4
        %v935 = vshll.u32 %v723, 16
        %v937 = vrot.slane %v935, 5
        %v938 = vsel %vm728, %v933, %v937
        %v940 = vshrl.u32 %v724, 16
        %v942 = vrot.slane %v940, 4
        %v943 = vshll.u32 %v724, 16
        %v945 = vrot.slane %v943, 5
        %v946 = vor.u32 %v942, %v945
        %v947 = vrot.slane %v946, 4
        %v949 = vshll.u32 %v725, 16
        %v951 = vrot.slane %v949, 5
        %v952 = vsel %vm728, %v947, %v951
        %s953 = scalar_lea.vmem %s4, 48
        %v954 = vld [vmem:[%s953] sm:$0xf]
        %v955 = vld [vmem:[%s953 + $0x4] sm:$0xf]
        %v956 = vld [vmem:[%s953 + $0x8] sm:$0xf]
        %v957 = vld [vmem:[%s953 + $0xc] sm:$0xf]
        %v958 = vld [vmem:[%s953 + $0x10] sm:$0xf]
        %v959 = vld [vmem:[%s953 + $0x14] sm:$0xf]
        %v960 = vunpack.c.l.b16 %v742
        %v961 = vunpack.c.l.b16 %v756
        %v962 = vunpack.c.l.b16 %v770
        %v963 = vunpack.c.l.b16 %v784
        %v964 = vunpack.c.l.b16 %v798
        %v965 = vunpack.c.l.b16 %v812
        %v966 = vunpack.c.l.b16 %v826
        %v967 = vunpack.c.l.b16 %v840
        %v968 = vunpack.c.l.b16 %v854
        %v969 = vunpack.c.l.b16 %v868
        %v970 = vunpack.c.l.b16 %v882
        %v971 = vunpack.c.l.b16 %v896
        %v972 = vunpack.c.l.b16 %v910
        %v973 = vunpack.c.l.b16 %v924
        %v974 = vunpack.c.l.b16 %v938
        %v975 = vunpack.c.l.b16 %v952
        %v976 = vpack.c.b16 %v961, %v960
        %v977 = vpack.c.b16 %v963, %v962
        %v978 = vpack.c.b16 %v965, %v964
        %v979 = vpack.c.b16 %v967, %v966
        %v980 = vpack.c.b16 %v969, %v968
        %v981 = vpack.c.b16 %v971, %v970
        %v982 = vpack.c.b16 %v973, %v972
        %v983 = vpack.c.b16 %v975, %v974
        %v990 = vunpack.c.l.b16 %v954
        %v991 = vunpack.c.l.b16 %v955
        %v992 = vunpack.c.l.b16 %v956
        %v993 = vunpack.c.l.b16 %v957
        %v994 = vunpack.c.l.b16 %v958
        %v995 = vunpack.c.l.b16 %v959
        %v996 = vpack.c.b16 %v991, %v990
        %v997 = vpack.c.b16 %v993, %v992
        %v998 = vpack.c.b16 %v995, %v994
        %v1003 = vsel %vm489, %v976, 0
        %v1006 = vsel %vm489, %v977, 0
        %v1009 = vsel %vm489, %v978, 0
        %v1012 = vsel %vm489, %v979, 0
        %v1015 = vsel %vm489, %v980, 0
        %v1018 = vsel %vm489, %v981, 0
        %v1021 = vsel %vm489, %v982, 0
        %v1024 = vsel %vm489, %v983, 0
        %1026 = vmatpush.bf16.msra.mxu0 0
        %1027 = vmatpush.bf16.msra.mxu0 0
        %1028 = vmatpush.bf16.msra.mxu0 0
        %1029 = vmatpush.bf16.msra.mxu0 0
        %1030 = vmatpush.bf16.msra.mxu0 0
        %1031 = vmatpush.bf16.msra.mxu0 %v998
        %1032 = vmatpush.bf16.msra.mxu0 %v997
        %1033 = vmatpush.bf16.msra.mxu0 %v996
        %1034 = vmatmul.bf16.gmra.mxu0 %v1003
        %v1035 = vpop.f32.mrf.mxu0
        %v1036 = vadd.f32 0.0, %v1035
        %v1037 = vpop.f32.mrf.mxu0
        %v1038 = vadd.f32 0.0, %v1037
        %1039 = vmatmul.bf16.gmra.mxu0 %v1006
        %v1040 = vpop.f32.mrf.mxu0
        %v1041 = vadd.f32 0.0, %v1040
        %v1042 = vpop.f32.mrf.mxu0
        %v1043 = vadd.f32 0.0, %v1042
        %1044 = vmatmul.bf16.gmra.mxu0 %v1009
        %v1045 = vpop.f32.mrf.mxu0
        %v1046 = vadd.f32 0.0, %v1045
        %v1047 = vpop.f32.mrf.mxu0
        %v1048 = vadd.f32 0.0, %v1047
        %1049 = vmatmul.bf16.gmra.mxu0 %v1012
        %v1050 = vpop.f32.mrf.mxu0
        %v1051 = vadd.f32 0.0, %v1050
        %v1052 = vpop.f32.mrf.mxu0
        %v1053 = vadd.f32 0.0, %v1052
        %1054 = vmatmul.bf16.gmra.mxu0 %v1015
        %v1055 = vpop.f32.mrf.mxu0
        %v1056 = vadd.f32 0.0, %v1055
        %v1057 = vpop.f32.mrf.mxu0
        %v1058 = vadd.f32 0.0, %v1057
        %1059 = vmatmul.bf16.gmra.mxu0 %v1018
        %v1060 = vpop.f32.mrf.mxu0
        %v1061 = vadd.f32 0.0, %v1060
        %v1062 = vpop.f32.mrf.mxu0
        %v1063 = vadd.f32 0.0, %v1062
        %1064 = vmatmul.bf16.gmra.mxu0 %v1021
        %v1065 = vpop.f32.mrf.mxu0
        %v1066 = vadd.f32 0.0, %v1065
        %v1067 = vpop.f32.mrf.mxu0
        %v1068 = vadd.f32 0.0, %v1067
        %1069 = vmatmul.bf16.gmra.mxu0 %v1024
        %v1070 = vpop.f32.mrf.mxu0
        %v1071 = vadd.f32 0.0, %v1070
        %v1072 = vpop.f32.mrf.mxu0
        %v1073 = vadd.f32 0.0, %v1072
        %1074 = vdwg.mxu0
        %v1075 = vadd.f32 %v655, %v1036
        %v1076 = vadd.f32 %v657, %v1038
        %v1077 = vadd.f32 %v660, %v1041
        %v1078 = vadd.f32 %v662, %v1043
        %v1079 = vadd.f32 %v665, %v1046
        %v1080 = vadd.f32 %v667, %v1048
        %v1081 = vadd.f32 %v670, %v1051
        %v1082 = vadd.f32 %v672, %v1053
        %v1083 = vadd.f32 %v675, %v1056
        %v1084 = vadd.f32 %v677, %v1058
        %v1085 = vadd.f32 %v680, %v1061
        %v1086 = vadd.f32 %v682, %v1063
        %v1087 = vadd.f32 %v685, %v1066
        %v1088 = vadd.f32 %v687, %v1068
        %v1089 = vadd.f32 %v690, %v1071
        %v1090 = vadd.f32 %v692, %v1073
        %v1091 = vld [vmem:[%s368] sm:$0xf]
        %v1092 = vld [vmem:[%s368 + $0x4] sm:$0x1]
        %v1093 = vld [vmem:[%s368 + $0x8] sm:$0xf]
        %v1094 = vld [vmem:[%s368 + $0xc] sm:$0x1]
        %v1095 = vld [vmem:[%s368 + $0x10] sm:$0xf]
        %v1096 = vld [vmem:[%s368 + $0x14] sm:$0x1]
        %v1097 = vld [vmem:[%s368 + $0x18] sm:$0xf]
        %v1098 = vld [vmem:[%s368 + $0x1c] sm:$0x1]
        %v1099 = vld [vmem:[%s368 + $0x20] sm:$0xf]
        %v1100 = vld [vmem:[%s368 + $0x24] sm:$0x1]
        %v1101 = vld [vmem:[%s368 + $0x28] sm:$0xf]
        %v1102 = vld [vmem:[%s368 + $0x2c] sm:$0x1]
        %v1103 = vld [vmem:[%s368 + $0x30] sm:$0xf]
        %v1104 = vld [vmem:[%s368 + $0x34] sm:$0x1]
        %v1105 = vld [vmem:[%s368 + $0x38] sm:$0xf]
        %v1106 = vld [vmem:[%s368 + $0x3c] sm:$0x1]
        %v1107 = vld [vmem:[%s368 + $0x50] sm:$0xf]
        %v1108 = vld [vmem:[%s368 + $0x54] sm:$0x1]
        %v1109 = vld [vmem:[%s368 + $0x58] sm:$0xf]
        %v1110 = vld [vmem:[%s368 + $0x5c] sm:$0x1]
        %v1111 = vld [vmem:[%s368 + $0x60] sm:$0xf]
        %v1112 = vld [vmem:[%s368 + $0x64] sm:$0x1]
        %v1113 = vld [vmem:[%s368 + $0x68] sm:$0xf]
        %v1114 = vld [vmem:[%s368 + $0x6c] sm:$0x1]
        %v1115 = vld [vmem:[%s368 + $0x70] sm:$0xf]
        %v1116 = vld [vmem:[%s368 + $0x74] sm:$0x1]
        %v1117 = vld [vmem:[%s368 + $0x78] sm:$0xf]
        %v1118 = vld [vmem:[%s368 + $0x7c] sm:$0x1]
        %v1119 = vld [vmem:[%s368 + $0x80] sm:$0xf]
        %v1120 = vld [vmem:[%s368 + $0x84] sm:$0x1]
        %v1121 = vld [vmem:[%s368 + $0x88] sm:$0xf]
        %v1122 = vld [vmem:[%s368 + $0x8c] sm:$0x1]
        %v1124 = vshrl.u32 %v1091, 16
        %v1126 = vrot.slane %v1124, 4
        %v1127 = vshll.u32 %v1091, 16
        %v1129 = vrot.slane %v1127, 5
        %v1130 = vor.u32 %v1126, %v1129
        %v1131 = vrot.slane %v1130, 4
        %v1133 = vshll.u32 %v1092, 16
        %v1135 = vrot.slane %v1133, 5
        %v1136 = vsel %vm728, %v1131, %v1135
        %v1138 = vshrl.u32 %v1093, 16
        %v1140 = vrot.slane %v1138, 4
        %v1141 = vshll.u32 %v1093, 16
        %v1143 = vrot.slane %v1141, 5
        %v1144 = vor.u32 %v1140, %v1143
        %v1145 = vrot.slane %v1144, 4
        %v1147 = vshll.u32 %v1094, 16
        %v1149 = vrot.slane %v1147, 5
        %v1150 = vsel %vm728, %v1145, %v1149
        %v1152 = vshrl.u32 %v1095, 16
        %v1154 = vrot.slane %v1152, 4
        %v1155 = vshll.u32 %v1095, 16
        %v1157 = vrot.slane %v1155, 5
        %v1158 = vor.u32 %v1154, %v1157
        %v1159 = vrot.slane %v1158, 4
        %v1161 = vshll.u32 %v1096, 16
        %v1163 = vrot.slane %v1161, 5
        %v1164 = vsel %vm728, %v1159, %v1163
        %v1166 = vshrl.u32 %v1097, 16
        %v1168 = vrot.slane %v1166, 4
        %v1169 = vshll.u32 %v1097, 16
        %v1171 = vrot.slane %v1169, 5
        %v1172 = vor.u32 %v1168, %v1171
        %v1173 = vrot.slane %v1172, 4
        %v1175 = vshll.u32 %v1098, 16
        %v1177 = vrot.slane %v1175, 5
        %v1178 = vsel %vm728, %v1173, %v1177
        %v1180 = vshrl.u32 %v1099, 16
        %v1182 = vrot.slane %v1180, 4
        %v1183 = vshll.u32 %v1099, 16
        %v1185 = vrot.slane %v1183, 5
        %v1186 = vor.u32 %v1182, %v1185
        %v1187 = vrot.slane %v1186, 4
        %v1189 = vshll.u32 %v1100, 16
        %v1191 = vrot.slane %v1189, 5
        %v1192 = vsel %vm728, %v1187, %v1191
        %v1194 = vshrl.u32 %v1101, 16
        %v1196 = vrot.slane %v1194, 4
        %v1197 = vshll.u32 %v1101, 16
        %v1199 = vrot.slane %v1197, 5
        %v1200 = vor.u32 %v1196, %v1199
        %v1201 = vrot.slane %v1200, 4
        %v1203 = vshll.u32 %v1102, 16
        %v1205 = vrot.slane %v1203, 5
        %v1206 = vsel %vm728, %v1201, %v1205
        %v1208 = vshrl.u32 %v1103, 16
        %v1210 = vrot.slane %v1208, 4
        %v1211 = vshll.u32 %v1103, 16
        %v1213 = vrot.slane %v1211, 5
        %v1214 = vor.u32 %v1210, %v1213
        %v1215 = vrot.slane %v1214, 4
        %v1217 = vshll.u32 %v1104, 16
        %v1219 = vrot.slane %v1217, 5
        %v1220 = vsel %vm728, %v1215, %v1219
        %v1222 = vshrl.u32 %v1105, 16
        %v1224 = vrot.slane %v1222, 4
        %v1225 = vshll.u32 %v1105, 16
        %v1227 = vrot.slane %v1225, 5
        %v1228 = vor.u32 %v1224, %v1227
        %v1229 = vrot.slane %v1228, 4
        %v1231 = vshll.u32 %v1106, 16
        %v1233 = vrot.slane %v1231, 5
        %v1234 = vsel %vm728, %v1229, %v1233
        %v1236 = vshrl.u32 %v1107, 16
        %v1238 = vrot.slane %v1236, 4
        %v1239 = vshll.u32 %v1107, 16
        %v1241 = vrot.slane %v1239, 5
        %v1242 = vor.u32 %v1238, %v1241
        %v1243 = vrot.slane %v1242, 4
        %v1245 = vshll.u32 %v1108, 16
        %v1247 = vrot.slane %v1245, 5
        %v1248 = vsel %vm728, %v1243, %v1247
        %v1250 = vshrl.u32 %v1109, 16
        %v1252 = vrot.slane %v1250, 4
        %v1253 = vshll.u32 %v1109, 16
        %v1255 = vrot.slane %v1253, 5
        %v1256 = vor.u32 %v1252, %v1255
        %v1257 = vrot.slane %v1256, 4
        %v1259 = vshll.u32 %v1110, 16
        %v1261 = vrot.slane %v1259, 5
        %v1262 = vsel %vm728, %v1257, %v1261
        %v1264 = vshrl.u32 %v1111, 16
        %v1266 = vrot.slane %v1264, 4
        %v1267 = vshll.u32 %v1111, 16
        %v1269 = vrot.slane %v1267, 5
        %v1270 = vor.u32 %v1266, %v1269
        %v1271 = vrot.slane %v1270, 4
        %v1273 = vshll.u32 %v1112, 16
        %v1275 = vrot.slane %v1273, 5
        %v1276 = vsel %vm728, %v1271, %v1275
        %v1278 = vshrl.u32 %v1113, 16
        %v1280 = vrot.slane %v1278, 4
        %v1281 = vshll.u32 %v1113, 16
        %v1283 = vrot.slane %v1281, 5
        %v1284 = vor.u32 %v1280, %v1283
        %v1285 = vrot.slane %v1284, 4
        %v1287 = vshll.u32 %v1114, 16
        %v1289 = vrot.slane %v1287, 5
        %v1290 = vsel %vm728, %v1285, %v1289
        %v1292 = vshrl.u32 %v1115, 16
        %v1294 = vrot.slane %v1292, 4
        %v1295 = vshll.u32 %v1115, 16
        %v1297 = vrot.slane %v1295, 5
        %v1298 = vor.u32 %v1294, %v1297
        %v1299 = vrot.slane %v1298, 4
        %v1301 = vshll.u32 %v1116, 16
        %v1303 = vrot.slane %v1301, 5
        %v1304 = vsel %vm728, %v1299, %v1303
        %v1306 = vshrl.u32 %v1117, 16
        %v1308 = vrot.slane %v1306, 4
        %v1309 = vshll.u32 %v1117, 16
        %v1311 = vrot.slane %v1309, 5
        %v1312 = vor.u32 %v1308, %v1311
        %v1313 = vrot.slane %v1312, 4
        %v1315 = vshll.u32 %v1118, 16
        %v1317 = vrot.slane %v1315, 5
        %v1318 = vsel %vm728, %v1313, %v1317
        %v1320 = vshrl.u32 %v1119, 16
        %v1322 = vrot.slane %v1320, 4
        %v1323 = vshll.u32 %v1119, 16
        %v1325 = vrot.slane %v1323, 5
        %v1326 = vor.u32 %v1322, %v1325
        %v1327 = vrot.slane %v1326, 4
        %v1329 = vshll.u32 %v1120, 16
        %v1331 = vrot.slane %v1329, 5
        %v1332 = vsel %vm728, %v1327, %v1331
        %v1334 = vshrl.u32 %v1121, 16
        %v1336 = vrot.slane %v1334, 4
        %v1337 = vshll.u32 %v1121, 16
        %v1339 = vrot.slane %v1337, 5
        %v1340 = vor.u32 %v1336, %v1339
        %v1341 = vrot.slane %v1340, 4
        %v1343 = vshll.u32 %v1122, 16
        %v1345 = vrot.slane %v1343, 5
        %v1346 = vsel %vm728, %v1341, %v1345
        %s1347 = scalar_lea.vmem %s4, 72
        %v1348 = vld [vmem:[%s1347] sm:$0xf]
        %v1349 = vld [vmem:[%s1347 + $0x4] sm:$0xf]
        %v1350 = vld [vmem:[%s1347 + $0x8] sm:$0xf]
        %v1351 = vld [vmem:[%s1347 + $0xc] sm:$0xf]
        %v1352 = vld [vmem:[%s1347 + $0x10] sm:$0xf]
        %v1353 = vld [vmem:[%s1347 + $0x14] sm:$0xf]
        %v1354 = vunpack.c.l.b16 %v1136
        %v1355 = vunpack.c.l.b16 %v1150
        %v1356 = vunpack.c.l.b16 %v1164
        %v1357 = vunpack.c.l.b16 %v1178
        %v1358 = vunpack.c.l.b16 %v1192
        %v1359 = vunpack.c.l.b16 %v1206
        %v1360 = vunpack.c.l.b16 %v1220
        %v1361 = vunpack.c.l.b16 %v1234
        %v1362 = vunpack.c.l.b16 %v1248
        %v1363 = vunpack.c.l.b16 %v1262
        %v1364 = vunpack.c.l.b16 %v1276
        %v1365 = vunpack.c.l.b16 %v1290
        %v1366 = vunpack.c.l.b16 %v1304
        %v1367 = vunpack.c.l.b16 %v1318
        %v1368 = vunpack.c.l.b16 %v1332
        %v1369 = vunpack.c.l.b16 %v1346
        %v1370 = vpack.c.b16 %v1355, %v1354
        %v1371 = vpack.c.b16 %v1357, %v1356
        %v1372 = vpack.c.b16 %v1359, %v1358
        %v1373 = vpack.c.b16 %v1361, %v1360
        %v1374 = vpack.c.b16 %v1363, %v1362
        %v1375 = vpack.c.b16 %v1365, %v1364
        %v1376 = vpack.c.b16 %v1367, %v1366
        %v1377 = vpack.c.b16 %v1369, %v1368
        %v1384 = vunpack.c.l.b16 %v1348
        %v1385 = vunpack.c.l.b16 %v1349
        %v1386 = vunpack.c.l.b16 %v1350
        %v1387 = vunpack.c.l.b16 %v1351
        %v1388 = vunpack.c.l.b16 %v1352
        %v1389 = vunpack.c.l.b16 %v1353
        %v1390 = vpack.c.b16 %v1385, %v1384
        %v1391 = vpack.c.b16 %v1387, %v1386
        %v1392 = vpack.c.b16 %v1389, %v1388
        %v1397 = vsel %vm489, %v1370, 0
        %v1400 = vsel %vm489, %v1371, 0
        %v1403 = vsel %vm489, %v1372, 0
        %v1406 = vsel %vm489, %v1373, 0
        %v1409 = vsel %vm489, %v1374, 0
        %v1412 = vsel %vm489, %v1375, 0
        %v1415 = vsel %vm489, %v1376, 0
        %v1418 = vsel %vm489, %v1377, 0
        %1420 = vmatpush.bf16.msra.mxu0 0
        %1421 = vmatpush.bf16.msra.mxu0 0
        %1422 = vmatpush.bf16.msra.mxu0 0
        %1423 = vmatpush.bf16.msra.mxu0 0
        %1424 = vmatpush.bf16.msra.mxu0 0
        %1425 = vmatpush.bf16.msra.mxu0 %v1392
        %1426 = vmatpush.bf16.msra.mxu0 %v1391
        %1427 = vmatpush.bf16.msra.mxu0 %v1390
        %1428 = vmatmul.bf16.gmra.mxu0 %v1397
        %v1429 = vpop.f32.mrf.mxu0
        %v1430 = vadd.f32 0.0, %v1429
        %v1431 = vpop.f32.mrf.mxu0
        %v1432 = vadd.f32 0.0, %v1431
        %1433 = vmatmul.bf16.gmra.mxu0 %v1400
        %v1434 = vpop.f32.mrf.mxu0
        %v1435 = vadd.f32 0.0, %v1434
        %v1436 = vpop.f32.mrf.mxu0
        %v1437 = vadd.f32 0.0, %v1436
        %1438 = vmatmul.bf16.gmra.mxu0 %v1403
        %v1439 = vpop.f32.mrf.mxu0
        %v1440 = vadd.f32 0.0, %v1439
        %v1441 = vpop.f32.mrf.mxu0
        %v1442 = vadd.f32 0.0, %v1441
        %1443 = vmatmul.bf16.gmra.mxu0 %v1406
        %v1444 = vpop.f32.mrf.mxu0
        %v1445 = vadd.f32 0.0, %v1444
        %v1446 = vpop.f32.mrf.mxu0
        %v1447 = vadd.f32 0.0, %v1446
        %1448 = vmatmul.bf16.gmra.mxu0 %v1409
        %v1449 = vpop.f32.mrf.mxu0
        %v1450 = vadd.f32 0.0, %v1449
        %v1451 = vpop.f32.mrf.mxu0
        %v1452 = vadd.f32 0.0, %v1451
        %1453 = vmatmul.bf16.gmra.mxu0 %v1412
        %v1454 = vpop.f32.mrf.mxu0
        %v1455 = vadd.f32 0.0, %v1454
        %v1456 = vpop.f32.mrf.mxu0
        %v1457 = vadd.f32 0.0, %v1456
        %1458 = vmatmul.bf16.gmra.mxu0 %v1415
        %v1459 = vpop.f32.mrf.mxu0
        %v1460 = vadd.f32 0.0, %v1459
        %v1461 = vpop.f32.mrf.mxu0
        %v1462 = vadd.f32 0.0, %v1461
        %1463 = vmatmul.bf16.gmra.mxu0 %v1418
        %v1464 = vpop.f32.mrf.mxu0
        %v1465 = vadd.f32 0.0, %v1464
        %v1466 = vpop.f32.mrf.mxu0
        %v1467 = vadd.f32 0.0, %v1466
        %1468 = vdwg.mxu0
        %v1469 = vadd.f32 %v1075, %v1430
        %v1470 = vadd.f32 %v1076, %v1432
        %v1471 = vadd.f32 %v1077, %v1435
        %v1472 = vadd.f32 %v1078, %v1437
        %v1473 = vadd.f32 %v1079, %v1440
        %v1474 = vadd.f32 %v1080, %v1442
        %v1475 = vadd.f32 %v1081, %v1445
        %v1476 = vadd.f32 %v1082, %v1447
        %v1477 = vadd.f32 %v1083, %v1450
        %v1478 = vadd.f32 %v1084, %v1452
        %v1479 = vadd.f32 %v1085, %v1455
        %v1480 = vadd.f32 %v1086, %v1457
        %v1481 = vadd.f32 %v1087, %v1460
        %v1482 = vadd.f32 %v1088, %v1462
        %v1483 = vadd.f32 %v1089, %v1465
        %v1484 = vadd.f32 %v1090, %v1467
        %v1485 = vld [vmem:[%s361] sm:$0xe]
        %v1486 = vld [vmem:[%s361 + $0x8] sm:$0xe]
        %v1487 = vld [vmem:[%s361 + $0x10] sm:$0xe]
        %v1488 = vld [vmem:[%s361 + $0x18] sm:$0xe]
        %v1489 = vld [vmem:[%s361 + $0x20] sm:$0xe]
        %v1490 = vld [vmem:[%s361 + $0x28] sm:$0xe]
        %v1491 = vld [vmem:[%s361 + $0x30] sm:$0xe]
        %v1492 = vld [vmem:[%s361 + $0x38] sm:$0xe]
        %v1493 = vld [vmem:[%s361 + $0x50] sm:$0xe]
        %v1494 = vld [vmem:[%s361 + $0x58] sm:$0xe]
        %v1495 = vld [vmem:[%s361 + $0x60] sm:$0xe]
        %v1496 = vld [vmem:[%s361 + $0x68] sm:$0xe]
        %v1497 = vld [vmem:[%s361 + $0x70] sm:$0xe]
        %v1498 = vld [vmem:[%s361 + $0x78] sm:$0xe]
        %v1499 = vld [vmem:[%s361 + $0x80] sm:$0xe]
        %v1500 = vld [vmem:[%s361 + $0x88] sm:$0xe]
        %vm1533 = vcmask 1042432
        %vm1534 = vcmask 1046532
        %vm1535 = vmor %vm1533, %vm1534
        %v1536 = vrot.slane %v1485, 5
        %v1537 = vrot.slane %v1536, 4
        %v1538 = vrot.slane %v695, 5
        %v1539 = vsel %vm1535, %v1537, %v1538
        %v1540 = vrot.slane %v1486, 5
        %v1541 = vrot.slane %v1540, 4
        %v1542 = vrot.slane %v697, 5
        %v1543 = vsel %vm1535, %v1541, %v1542
        %v1544 = vrot.slane %v1487, 5
        %v1545 = vrot.slane %v1544, 4
        %v1546 = vrot.slane %v699, 5
        %v1547 = vsel %vm1535, %v1545, %v1546
        %v1548 = vrot.slane %v1488, 5
        %v1549 = vrot.slane %v1548, 4
        %v1550 = vrot.slane %v701, 5
        %v1551 = vsel %vm1535, %v1549, %v1550
        %v1552 = vrot.slane %v1489, 5
        %v1553 = vrot.slane %v1552, 4
        %v1554 = vrot.slane %v703, 5
        %v1555 = vsel %vm1535, %v1553, %v1554
        %v1556 = vrot.slane %v1490, 5
        %v1557 = vrot.slane %v1556, 4
        %v1558 = vrot.slane %v705, 5
        %v1559 = vsel %vm1535, %v1557, %v1558
        %v1560 = vrot.slane %v1491, 5
        %v1561 = vrot.slane %v1560, 4
        %v1562 = vrot.slane %v707, 5
        %v1563 = vsel %vm1535, %v1561, %v1562
        %v1564 = vrot.slane %v1492, 5
        %v1565 = vrot.slane %v1564, 4
        %v1566 = vrot.slane %v709, 5
        %v1567 = vsel %vm1535, %v1565, %v1566
        %v1568 = vrot.slane %v1493, 5
        %v1569 = vrot.slane %v1568, 4
        %v1570 = vrot.slane %v711, 5
        %v1571 = vsel %vm1535, %v1569, %v1570
        %v1572 = vrot.slane %v1494, 5
        %v1573 = vrot.slane %v1572, 4
        %v1574 = vrot.slane %v713, 5
        %v1575 = vsel %vm1535, %v1573, %v1574
        %v1576 = vrot.slane %v1495, 5
        %v1577 = vrot.slane %v1576, 4
        %v1578 = vrot.slane %v715, 5
        %v1579 = vsel %vm1535, %v1577, %v1578
        %v1580 = vrot.slane %v1496, 5
        %v1581 = vrot.slane %v1580, 4
        %v1582 = vrot.slane %v717, 5
        %v1583 = vsel %vm1535, %v1581, %v1582
        %v1584 = vrot.slane %v1497, 5
        %v1585 = vrot.slane %v1584, 4
        %v1586 = vrot.slane %v719, 5
        %v1587 = vsel %vm1535, %v1585, %v1586
        %v1588 = vrot.slane %v1498, 5
        %v1589 = vrot.slane %v1588, 4
        %v1590 = vrot.slane %v721, 5
        %v1591 = vsel %vm1535, %v1589, %v1590
        %v1592 = vrot.slane %v1499, 5
        %v1593 = vrot.slane %v1592, 4
        %v1594 = vrot.slane %v723, 5
        %v1595 = vsel %vm1535, %v1593, %v1594
        %v1596 = vrot.slane %v1500, 5
        %v1597 = vrot.slane %v1596, 4
        %v1598 = vrot.slane %v725, 5
        %v1599 = vsel %vm1535, %v1597, %v1598
        %s1600 = scalar_lea.vmem %s4, 96
        %v1601 = vld [vmem:[%s1600] sm:$0xf]
        %v1602 = vld [vmem:[%s1600 + $0x4] sm:$0xf]
        %v1603 = vld [vmem:[%s1600 + $0x8] sm:$0xf]
        %v1604 = vld [vmem:[%s1600 + $0xc] sm:$0xf]
        %v1605 = vld [vmem:[%s1600 + $0x10] sm:$0xf]
        %v1606 = vld [vmem:[%s1600 + $0x14] sm:$0xf]
        %v1607 = vunpack.c.l.b16 %v1539
        %v1608 = vunpack.c.l.b16 %v1543
        %v1609 = vunpack.c.l.b16 %v1547
        %v1610 = vunpack.c.l.b16 %v1551
        %v1611 = vunpack.c.l.b16 %v1555
        %v1612 = vunpack.c.l.b16 %v1559
        %v1613 = vunpack.c.l.b16 %v1563
        %v1614 = vunpack.c.l.b16 %v1567
        %v1615 = vunpack.c.l.b16 %v1571
        %v1616 = vunpack.c.l.b16 %v1575
        %v1617 = vunpack.c.l.b16 %v1579
        %v1618 = vunpack.c.l.b16 %v1583
        %v1619 = vunpack.c.l.b16 %v1587
        %v1620 = vunpack.c.l.b16 %v1591
        %v1621 = vunpack.c.l.b16 %v1595
        %v1622 = vunpack.c.l.b16 %v1599
        %v1623 = vpack.c.b16 %v1608, %v1607
        %v1624 = vpack.c.b16 %v1610, %v1609
        %v1625 = vpack.c.b16 %v1612, %v1611
        %v1626 = vpack.c.b16 %v1614, %v1613
        %v1627 = vpack.c.b16 %v1616, %v1615
        %v1628 = vpack.c.b16 %v1618, %v1617
        %v1629 = vpack.c.b16 %v1620, %v1619
        %v1630 = vpack.c.b16 %v1622, %v1621
        %v1637 = vunpack.c.l.b16 %v1601
        %v1638 = vunpack.c.l.b16 %v1602
        %v1639 = vunpack.c.l.b16 %v1603
        %v1640 = vunpack.c.l.b16 %v1604
        %v1641 = vunpack.c.l.b16 %v1605
        %v1642 = vunpack.c.l.b16 %v1606
        %v1643 = vpack.c.b16 %v1638, %v1637
        %v1644 = vpack.c.b16 %v1640, %v1639
        %v1645 = vpack.c.b16 %v1642, %v1641
        %v1650 = vsel %vm489, %v1623, 0
        %v1653 = vsel %vm489, %v1624, 0
        %v1656 = vsel %vm489, %v1625, 0
        %v1659 = vsel %vm489, %v1626, 0
        %v1662 = vsel %vm489, %v1627, 0
        %v1665 = vsel %vm489, %v1628, 0
        %v1668 = vsel %vm489, %v1629, 0
        %v1671 = vsel %vm489, %v1630, 0
        %1673 = vmatpush.bf16.msra.mxu0 0
        %1674 = vmatpush.bf16.msra.mxu0 0
        %1675 = vmatpush.bf16.msra.mxu0 0
        %1676 = vmatpush.bf16.msra.mxu0 0
        %1677 = vmatpush.bf16.msra.mxu0 0
        %1678 = vmatpush.bf16.msra.mxu0 %v1645
        %1679 = vmatpush.bf16.msra.mxu0 %v1644
        %1680 = vmatpush.bf16.msra.mxu0 %v1643
        %1681 = vmatmul.bf16.gmra.mxu0 %v1650
        %v1682 = vpop.f32.mrf.mxu0
        %v1683 = vadd.f32 0.0, %v1682
        %v1684 = vpop.f32.mrf.mxu0
        %v1685 = vadd.f32 0.0, %v1684
        %1686 = vmatmul.bf16.gmra.mxu0 %v1653
        %v1687 = vpop.f32.mrf.mxu0
        %v1688 = vadd.f32 0.0, %v1687
        %v1689 = vpop.f32.mrf.mxu0
        %v1690 = vadd.f32 0.0, %v1689
        %1691 = vmatmul.bf16.gmra.mxu0 %v1656
        %v1692 = vpop.f32.mrf.mxu0
        %v1693 = vadd.f32 0.0, %v1692
        %v1694 = vpop.f32.mrf.mxu0
        %v1695 = vadd.f32 0.0, %v1694
        %1696 = vmatmul.bf16.gmra.mxu0 %v1659
        %v1697 = vpop.f32.mrf.mxu0
        %v1698 = vadd.f32 0.0, %v1697
        %v1699 = vpop.f32.mrf.mxu0
        %v1700 = vadd.f32 0.0, %v1699
        %1701 = vmatmul.bf16.gmra.mxu0 %v1662
        %v1702 = vpop.f32.mrf.mxu0
        %v1703 = vadd.f32 0.0, %v1702
        %v1704 = vpop.f32.mrf.mxu0
        %v1705 = vadd.f32 0.0, %v1704
        %1706 = vmatmul.bf16.gmra.mxu0 %v1665
        %v1707 = vpop.f32.mrf.mxu0
        %v1708 = vadd.f32 0.0, %v1707
        %v1709 = vpop.f32.mrf.mxu0
        %v1710 = vadd.f32 0.0, %v1709
        %1711 = vmatmul.bf16.gmra.mxu0 %v1668
        %v1712 = vpop.f32.mrf.mxu0
        %v1713 = vadd.f32 0.0, %v1712
        %v1714 = vpop.f32.mrf.mxu0
        %v1715 = vadd.f32 0.0, %v1714
        %1716 = vmatmul.bf16.gmra.mxu0 %v1671
        %v1717 = vpop.f32.mrf.mxu0
        %v1718 = vadd.f32 0.0, %v1717
        %v1719 = vpop.f32.mrf.mxu0
        %v1720 = vadd.f32 0.0, %v1719
        %1721 = vdwg.mxu0
        %v1722 = vadd.f32 %v1469, %v1683
        %v1723 = vadd.f32 %v1470, %v1685
        %v1724 = vadd.f32 %v1471, %v1688
        %v1725 = vadd.f32 %v1472, %v1690
        %v1726 = vadd.f32 %v1473, %v1693
        %v1727 = vadd.f32 %v1474, %v1695
        %v1728 = vadd.f32 %v1475, %v1698
        %v1729 = vadd.f32 %v1476, %v1700
        %v1730 = vadd.f32 %v1477, %v1703
        %v1731 = vadd.f32 %v1478, %v1705
        %v1732 = vadd.f32 %v1479, %v1708
        %v1733 = vadd.f32 %v1480, %v1710
        %v1734 = vadd.f32 %v1481, %v1713
        %v1735 = vadd.f32 %v1482, %v1715
        %v1736 = vadd.f32 %v1483, %v1718
        %v1737 = vadd.f32 %v1484, %v1720
        %v1738 = vld [vmem:[%s375] sm:$0xf]
        %v1739 = vld [vmem:[%s375 + $0x8] sm:$0xf]
        %v1740 = vld [vmem:[%s375 + $0x10] sm:$0xf]
        %v1741 = vld [vmem:[%s375 + $0x18] sm:$0xf]
        %v1742 = vld [vmem:[%s375 + $0x20] sm:$0xf]
        %v1743 = vld [vmem:[%s375 + $0x28] sm:$0xf]
        %v1744 = vld [vmem:[%s375 + $0x30] sm:$0xf]
        %v1745 = vld [vmem:[%s375 + $0x38] sm:$0xf]
        %v1746 = vld [vmem:[%s375 + $0x50] sm:$0xf]
        %v1747 = vld [vmem:[%s375 + $0x58] sm:$0xf]
        %v1748 = vld [vmem:[%s375 + $0x60] sm:$0xf]
        %v1749 = vld [vmem:[%s375 + $0x68] sm:$0xf]
        %v1750 = vld [vmem:[%s375 + $0x70] sm:$0xf]
        %v1751 = vld [vmem:[%s375 + $0x78] sm:$0xf]
        %v1752 = vld [vmem:[%s375 + $0x80] sm:$0xf]
        %v1753 = vld [vmem:[%s375 + $0x88] sm:$0xf]
        %s1754 = scalar_lea.vmem %s4, 120
        %v1755 = vld [vmem:[%s1754] sm:$0xf]
        %v1756 = vld [vmem:[%s1754 + $0x4] sm:$0xf]
        %v1757 = vld [vmem:[%s1754 + $0x8] sm:$0xf]
        %v1758 = vld [vmem:[%s1754 + $0xc] sm:$0xf]
        %v1759 = vld [vmem:[%s1754 + $0x10] sm:$0xf]
        %v1760 = vld [vmem:[%s1754 + $0x14] sm:$0xf]
        %v1777 = vunpack.c.l.b16 %v1738
        %v1778 = vunpack.c.l.b16 %v1739
        %v1779 = vunpack.c.l.b16 %v1740
        %v1780 = vunpack.c.l.b16 %v1741
        %v1781 = vunpack.c.l.b16 %v1742
        %v1782 = vunpack.c.l.b16 %v1743
        %v1783 = vunpack.c.l.b16 %v1744
        %v1784 = vunpack.c.l.b16 %v1745
        %v1785 = vunpack.c.l.b16 %v1746
        %v1786 = vunpack.c.l.b16 %v1747
        %v1787 = vunpack.c.l.b16 %v1748
        %v1788 = vunpack.c.l.b16 %v1749
        %v1789 = vunpack.c.l.b16 %v1750
        %v1790 = vunpack.c.l.b16 %v1751
        %v1791 = vunpack.c.l.b16 %v1752
        %v1792 = vunpack.c.l.b16 %v1753
        %v1793 = vpack.c.b16 %v1778, %v1777
        %v1794 = vpack.c.b16 %v1780, %v1779
        %v1795 = vpack.c.b16 %v1782, %v1781
        %v1796 = vpack.c.b16 %v1784, %v1783
        %v1797 = vpack.c.b16 %v1786, %v1785
        %v1798 = vpack.c.b16 %v1788, %v1787
        %v1799 = vpack.c.b16 %v1790, %v1789
        %v1800 = vpack.c.b16 %v1792, %v1791
        %v1807 = vunpack.c.l.b16 %v1755
        %v1808 = vunpack.c.l.b16 %v1756
        %v1809 = vunpack.c.l.b16 %v1757
        %v1810 = vunpack.c.l.b16 %v1758
        %v1811 = vunpack.c.l.b16 %v1759
        %v1812 = vunpack.c.l.b16 %v1760
        %v1813 = vpack.c.b16 %v1808, %v1807
        %v1814 = vpack.c.b16 %v1810, %v1809
        %v1815 = vpack.c.b16 %v1812, %v1811
        %v1820 = vsel %vm489, %v1793, 0
        %v1823 = vsel %vm489, %v1794, 0
        %v1826 = vsel %vm489, %v1795, 0
        %v1829 = vsel %vm489, %v1796, 0
        %v1832 = vsel %vm489, %v1797, 0
        %v1835 = vsel %vm489, %v1798, 0
        %v1838 = vsel %vm489, %v1799, 0
        %v1841 = vsel %vm489, %v1800, 0
        %1843 = vmatpush.bf16.msra.mxu0 0
        %1844 = vmatpush.bf16.msra.mxu0 0
        %1845 = vmatpush.bf16.msra.mxu0 0
        %1846 = vmatpush.bf16.msra.mxu0 0
        %1847 = vmatpush.bf16.msra.mxu0 0
        %1848 = vmatpush.bf16.msra.mxu0 %v1815
        %1849 = vmatpush.bf16.msra.mxu0 %v1814
        %1850 = vmatpush.bf16.msra.mxu0 %v1813
        %1851 = vmatmul.bf16.gmra.mxu0 %v1820
        %v1852 = vpop.f32.mrf.mxu0
        %v1853 = vadd.f32 0.0, %v1852
        %v1854 = vpop.f32.mrf.mxu0
        %v1855 = vadd.f32 0.0, %v1854
        %1856 = vmatmul.bf16.gmra.mxu0 %v1823
        %v1857 = vpop.f32.mrf.mxu0
        %v1858 = vadd.f32 0.0, %v1857
        %v1859 = vpop.f32.mrf.mxu0
        %v1860 = vadd.f32 0.0, %v1859
        %1861 = vmatmul.bf16.gmra.mxu0 %v1826
        %v1862 = vpop.f32.mrf.mxu0
        %v1863 = vadd.f32 0.0, %v1862
        %v1864 = vpop.f32.mrf.mxu0
        %v1865 = vadd.f32 0.0, %v1864
        %1866 = vmatmul.bf16.gmra.mxu0 %v1829
        %v1867 = vpop.f32.mrf.mxu0
        %v1868 = vadd.f32 0.0, %v1867
        %v1869 = vpop.f32.mrf.mxu0
        %v1870 = vadd.f32 0.0, %v1869
        %1871 = vmatmul.bf16.gmra.mxu0 %v1832
        %v1872 = vpop.f32.mrf.mxu0
        %v1873 = vadd.f32 0.0, %v1872
        %v1874 = vpop.f32.mrf.mxu0
        %v1875 = vadd.f32 0.0, %v1874
        %1876 = vmatmul.bf16.gmra.mxu0 %v1835
        %v1877 = vpop.f32.mrf.mxu0
        %v1878 = vadd.f32 0.0, %v1877
        %v1879 = vpop.f32.mrf.mxu0
        %v1880 = vadd.f32 0.0, %v1879
        %1881 = vmatmul.bf16.gmra.mxu0 %v1838
        %v1882 = vpop.f32.mrf.mxu0
        %v1883 = vadd.f32 0.0, %v1882
        %v1884 = vpop.f32.mrf.mxu0
        %v1885 = vadd.f32 0.0, %v1884
        %1886 = vmatmul.bf16.gmra.mxu0 %v1841
        %v1887 = vpop.f32.mrf.mxu0
        %v1888 = vadd.f32 0.0, %v1887
        %v1889 = vpop.f32.mrf.mxu0
        %v1890 = vadd.f32 0.0, %v1889
        %1891 = vdwg.mxu0
        %v1892 = vadd.f32 %v1722, %v1853
        %v1893 = vadd.f32 %v1723, %v1855
        %v1894 = vadd.f32 %v1724, %v1858
        %v1895 = vadd.f32 %v1725, %v1860
        %v1896 = vadd.f32 %v1726, %v1863
        %v1897 = vadd.f32 %v1727, %v1865
        %v1898 = vadd.f32 %v1728, %v1868
        %v1899 = vadd.f32 %v1729, %v1870
        %v1900 = vadd.f32 %v1730, %v1873
        %v1901 = vadd.f32 %v1731, %v1875
        %v1902 = vadd.f32 %v1732, %v1878
        %v1903 = vadd.f32 %v1733, %v1880
        %v1904 = vadd.f32 %v1734, %v1883
        %v1905 = vadd.f32 %v1735, %v1885
        %v1906 = vadd.f32 %v1736, %v1888
        %v1907 = vadd.f32 %v1737, %v1890
        %v1908 = vld [vmem:[%s382] sm:$0xf]
        %v1909 = vld [vmem:[%s382 + $0x8] sm:$0xf]
        %v1910 = vld [vmem:[%s382 + $0x10] sm:$0xf]
        %v1911 = vld [vmem:[%s382 + $0x18] sm:$0xf]
        %v1912 = vld [vmem:[%s382 + $0x20] sm:$0xf]
        %v1913 = vld [vmem:[%s382 + $0x28] sm:$0xf]
        %v1914 = vld [vmem:[%s382 + $0x30] sm:$0xf]
        %v1915 = vld [vmem:[%s382 + $0x38] sm:$0xf]
        %v1916 = vld [vmem:[%s382 + $0x50] sm:$0xf]
        %v1917 = vld [vmem:[%s382 + $0x58] sm:$0xf]
        %v1918 = vld [vmem:[%s382 + $0x60] sm:$0xf]
        %v1919 = vld [vmem:[%s382 + $0x68] sm:$0xf]
        %v1920 = vld [vmem:[%s382 + $0x70] sm:$0xf]
        %v1921 = vld [vmem:[%s382 + $0x78] sm:$0xf]
        %v1922 = vld [vmem:[%s382 + $0x80] sm:$0xf]
        %v1923 = vld [vmem:[%s382 + $0x88] sm:$0xf]
        %s1924 = scalar_lea.vmem %s4, 144
        %v1925 = vld [vmem:[%s1924] sm:$0xf]
        %v1926 = vld [vmem:[%s1924 + $0x4] sm:$0xf]
        %v1927 = vld [vmem:[%s1924 + $0x8] sm:$0xf]
        %v1928 = vld [vmem:[%s1924 + $0xc] sm:$0xf]
        %v1929 = vld [vmem:[%s1924 + $0x10] sm:$0xf]
        %v1930 = vld [vmem:[%s1924 + $0x14] sm:$0xf]
        %v1947 = vunpack.c.l.b16 %v1908
        %v1948 = vunpack.c.l.b16 %v1909
        %v1949 = vunpack.c.l.b16 %v1910
        %v1950 = vunpack.c.l.b16 %v1911
        %v1951 = vunpack.c.l.b16 %v1912
        %v1952 = vunpack.c.l.b16 %v1913
        %v1953 = vunpack.c.l.b16 %v1914
        %v1954 = vunpack.c.l.b16 %v1915
        %v1955 = vunpack.c.l.b16 %v1916
        %v1956 = vunpack.c.l.b16 %v1917
        %v1957 = vunpack.c.l.b16 %v1918
        %v1958 = vunpack.c.l.b16 %v1919
        %v1959 = vunpack.c.l.b16 %v1920
        %v1960 = vunpack.c.l.b16 %v1921
        %v1961 = vunpack.c.l.b16 %v1922
        %v1962 = vunpack.c.l.b16 %v1923
        %v1963 = vpack.c.b16 %v1948, %v1947
        %v1964 = vpack.c.b16 %v1950, %v1949
        %v1965 = vpack.c.b16 %v1952, %v1951
        %v1966 = vpack.c.b16 %v1954, %v1953
        %v1967 = vpack.c.b16 %v1956, %v1955
        %v1968 = vpack.c.b16 %v1958, %v1957
        %v1969 = vpack.c.b16 %v1960, %v1959
        %v1970 = vpack.c.b16 %v1962, %v1961
        %v1977 = vunpack.c.l.b16 %v1925
        %v1978 = vunpack.c.l.b16 %v1926
        %v1979 = vunpack.c.l.b16 %v1927
        %v1980 = vunpack.c.l.b16 %v1928
        %v1981 = vunpack.c.l.b16 %v1929
        %v1982 = vunpack.c.l.b16 %v1930
        %v1983 = vpack.c.b16 %v1978, %v1977
        %v1984 = vpack.c.b16 %v1980, %v1979
        %v1985 = vpack.c.b16 %v1982, %v1981
        %v1990 = vsel %vm489, %v1963, 0
        %v1993 = vsel %vm489, %v1964, 0
        %v1996 = vsel %vm489, %v1965, 0
        %v1999 = vsel %vm489, %v1966, 0
        %v2002 = vsel %vm489, %v1967, 0
        %v2005 = vsel %vm489, %v1968, 0
        %v2008 = vsel %vm489, %v1969, 0
        %v2011 = vsel %vm489, %v1970, 0
        %2013 = vmatpush.bf16.msra.mxu0 0
        %2014 = vmatpush.bf16.msra.mxu0 0
        %2015 = vmatpush.bf16.msra.mxu0 0
        %2016 = vmatpush.bf16.msra.mxu0 0
        %2017 = vmatpush.bf16.msra.mxu0 0
        %2018 = vmatpush.bf16.msra.mxu0 %v1985
        %2019 = vmatpush.bf16.msra.mxu0 %v1984
        %2020 = vmatpush.bf16.msra.mxu0 %v1983
        %2021 = vmatmul.bf16.gmra.mxu0 %v1990
        %v2022 = vpop.f32.mrf.mxu0
        %v2023 = vadd.f32 0.0, %v2022
        %v2024 = vpop.f32.mrf.mxu0
        %v2025 = vadd.f32 0.0, %v2024
        %2026 = vmatmul.bf16.gmra.mxu0 %v1993
        %v2027 = vpop.f32.mrf.mxu0
        %v2028 = vadd.f32 0.0, %v2027
        %v2029 = vpop.f32.mrf.mxu0
        %v2030 = vadd.f32 0.0, %v2029
        %2031 = vmatmul.bf16.gmra.mxu0 %v1996
        %v2032 = vpop.f32.mrf.mxu0
        %v2033 = vadd.f32 0.0, %v2032
        %v2034 = vpop.f32.mrf.mxu0
        %v2035 = vadd.f32 0.0, %v2034
        %2036 = vmatmul.bf16.gmra.mxu0 %v1999
        %v2037 = vpop.f32.mrf.mxu0
        %v2038 = vadd.f32 0.0, %v2037
        %v2039 = vpop.f32.mrf.mxu0
        %v2040 = vadd.f32 0.0, %v2039
        %2041 = vmatmul.bf16.gmra.mxu0 %v2002
        %v2042 = vpop.f32.mrf.mxu0
        %v2043 = vadd.f32 0.0, %v2042
        %v2044 = vpop.f32.mrf.mxu0
        %v2045 = vadd.f32 0.0, %v2044
        %2046 = vmatmul.bf16.gmra.mxu0 %v2005
        %v2047 = vpop.f32.mrf.mxu0
        %v2048 = vadd.f32 0.0, %v2047
        %v2049 = vpop.f32.mrf.mxu0
        %v2050 = vadd.f32 0.0, %v2049
        %2051 = vmatmul.bf16.gmra.mxu0 %v2008
        %v2052 = vpop.f32.mrf.mxu0
        %v2053 = vadd.f32 0.0, %v2052
        %v2054 = vpop.f32.mrf.mxu0
        %v2055 = vadd.f32 0.0, %v2054
        %2056 = vmatmul.bf16.gmra.mxu0 %v2011
        %v2057 = vpop.f32.mrf.mxu0
        %v2058 = vadd.f32 0.0, %v2057
        %v2059 = vpop.f32.mrf.mxu0
        %v2060 = vadd.f32 0.0, %v2059
        %2061 = vdwg.mxu0
        %v2062 = vadd.f32 %v1892, %v2023
        %v2063 = vadd.f32 %v1893, %v2025
        %v2064 = vadd.f32 %v1894, %v2028
        %v2065 = vadd.f32 %v1895, %v2030
        %v2066 = vadd.f32 %v1896, %v2033
        %v2067 = vadd.f32 %v1897, %v2035
        %v2068 = vadd.f32 %v1898, %v2038
        %v2069 = vadd.f32 %v1899, %v2040
        %v2070 = vadd.f32 %v1900, %v2043
        %v2071 = vadd.f32 %v1901, %v2045
        %v2072 = vadd.f32 %v1902, %v2048
        %v2073 = vadd.f32 %v1903, %v2050
        %v2074 = vadd.f32 %v1904, %v2053
        %v2075 = vadd.f32 %v1905, %v2055
        %v2076 = vadd.f32 %v1906, %v2058
        %v2077 = vadd.f32 %v1907, %v2060
        %v2078 = vld [vmem:[%s375] sm:$0xf]
        %v2079 = vld [vmem:[%s375 + $0x4] sm:$0x1]
        %v2080 = vld [vmem:[%s375 + $0x8] sm:$0xf]
        %v2081 = vld [vmem:[%s375 + $0xc] sm:$0x1]
        %v2082 = vld [vmem:[%s375 + $0x10] sm:$0xf]
        %v2083 = vld [vmem:[%s375 + $0x14] sm:$0x1]
        %v2084 = vld [vmem:[%s375 + $0x18] sm:$0xf]
        %v2085 = vld [vmem:[%s375 + $0x1c] sm:$0x1]
        %v2086 = vld [vmem:[%s375 + $0x20] sm:$0xf]
        %v2087 = vld [vmem:[%s375 + $0x24] sm:$0x1]
        %v2088 = vld [vmem:[%s375 + $0x28] sm:$0xf]
        %v2089 = vld [vmem:[%s375 + $0x2c] sm:$0x1]
        %v2090 = vld [vmem:[%s375 + $0x30] sm:$0xf]
        %v2091 = vld [vmem:[%s375 + $0x34] sm:$0x1]
        %v2092 = vld [vmem:[%s375 + $0x38] sm:$0xf]
        %v2093 = vld [vmem:[%s375 + $0x3c] sm:$0x1]
        %v2094 = vld [vmem:[%s375 + $0x50] sm:$0xf]
        %v2095 = vld [vmem:[%s375 + $0x54] sm:$0x1]
        %v2096 = vld [vmem:[%s375 + $0x58] sm:$0xf]
        %v2097 = vld [vmem:[%s375 + $0x5c] sm:$0x1]
        %v2098 = vld [vmem:[%s375 + $0x60] sm:$0xf]
        %v2099 = vld [vmem:[%s375 + $0x64] sm:$0x1]
        %v2100 = vld [vmem:[%s375 + $0x68] sm:$0xf]
        %v2101 = vld [vmem:[%s375 + $0x6c] sm:$0x1]
        %v2102 = vld [vmem:[%s375 + $0x70] sm:$0xf]
        %v2103 = vld [vmem:[%s375 + $0x74] sm:$0x1]
        %v2104 = vld [vmem:[%s375 + $0x78] sm:$0xf]
        %v2105 = vld [vmem:[%s375 + $0x7c] sm:$0x1]
        %v2106 = vld [vmem:[%s375 + $0x80] sm:$0xf]
        %v2107 = vld [vmem:[%s375 + $0x84] sm:$0x1]
        %v2108 = vld [vmem:[%s375 + $0x88] sm:$0xf]
        %v2109 = vld [vmem:[%s375 + $0x8c] sm:$0x1]
        %v2111 = vshrl.u32 %v2078, 16
        %v2113 = vrot.slane %v2111, 4
        %v2114 = vshll.u32 %v2078, 16
        %v2116 = vrot.slane %v2114, 5
        %v2117 = vor.u32 %v2113, %v2116
        %v2118 = vrot.slane %v2117, 4
        %v2120 = vshll.u32 %v2079, 16
        %v2122 = vrot.slane %v2120, 5
        %v2123 = vsel %vm728, %v2118, %v2122
        %v2125 = vshrl.u32 %v2080, 16
        %v2127 = vrot.slane %v2125, 4
        %v2128 = vshll.u32 %v2080, 16
        %v2130 = vrot.slane %v2128, 5
        %v2131 = vor.u32 %v2127, %v2130
        %v2132 = vrot.slane %v2131, 4
        %v2134 = vshll.u32 %v2081, 16
        %v2136 = vrot.slane %v2134, 5
        %v2137 = vsel %vm728, %v2132, %v2136
        %v2139 = vshrl.u32 %v2082, 16
        %v2141 = vrot.slane %v2139, 4
        %v2142 = vshll.u32 %v2082, 16
        %v2144 = vrot.slane %v2142, 5
        %v2145 = vor.u32 %v2141, %v2144
        %v2146 = vrot.slane %v2145, 4
        %v2148 = vshll.u32 %v2083, 16
        %v2150 = vrot.slane %v2148, 5
        %v2151 = vsel %vm728, %v2146, %v2150
        %v2153 = vshrl.u32 %v2084, 16
        %v2155 = vrot.slane %v2153, 4
        %v2156 = vshll.u32 %v2084, 16
        %v2158 = vrot.slane %v2156, 5
        %v2159 = vor.u32 %v2155, %v2158
        %v2160 = vrot.slane %v2159, 4
        %v2162 = vshll.u32 %v2085, 16
        %v2164 = vrot.slane %v2162, 5
        %v2165 = vsel %vm728, %v2160, %v2164
        %v2167 = vshrl.u32 %v2086, 16
        %v2169 = vrot.slane %v2167, 4
        %v2170 = vshll.u32 %v2086, 16
        %v2172 = vrot.slane %v2170, 5
        %v2173 = vor.u32 %v2169, %v2172
        %v2174 = vrot.slane %v2173, 4
        %v2176 = vshll.u32 %v2087, 16
        %v2178 = vrot.slane %v2176, 5
        %v2179 = vsel %vm728, %v2174, %v2178
        %v2181 = vshrl.u32 %v2088, 16
        %v2183 = vrot.slane %v2181, 4
        %v2184 = vshll.u32 %v2088, 16
        %v2186 = vrot.slane %v2184, 5
        %v2187 = vor.u32 %v2183, %v2186
        %v2188 = vrot.slane %v2187, 4
        %v2190 = vshll.u32 %v2089, 16
        %v2192 = vrot.slane %v2190, 5
        %v2193 = vsel %vm728, %v2188, %v2192
        %v2195 = vshrl.u32 %v2090, 16
        %v2197 = vrot.slane %v2195, 4
        %v2198 = vshll.u32 %v2090, 16
        %v2200 = vrot.slane %v2198, 5
        %v2201 = vor.u32 %v2197, %v2200
        %v2202 = vrot.slane %v2201, 4
        %v2204 = vshll.u32 %v2091, 16
        %v2206 = vrot.slane %v2204, 5
        %v2207 = vsel %vm728, %v2202, %v2206
        %v2209 = vshrl.u32 %v2092, 16
        %v2211 = vrot.slane %v2209, 4
        %v2212 = vshll.u32 %v2092, 16
        %v2214 = vrot.slane %v2212, 5
        %v2215 = vor.u32 %v2211, %v2214
        %v2216 = vrot.slane %v2215, 4
        %v2218 = vshll.u32 %v2093, 16
        %v2220 = vrot.slane %v2218, 5
        %v2221 = vsel %vm728, %v2216, %v2220
        %v2223 = vshrl.u32 %v2094, 16
        %v2225 = vrot.slane %v2223, 4
        %v2226 = vshll.u32 %v2094, 16
        %v2228 = vrot.slane %v2226, 5
        %v2229 = vor.u32 %v2225, %v2228
        %v2230 = vrot.slane %v2229, 4
        %v2232 = vshll.u32 %v2095, 16
        %v2234 = vrot.slane %v2232, 5
        %v2235 = vsel %vm728, %v2230, %v2234
        %v2237 = vshrl.u32 %v2096, 16
        %v2239 = vrot.slane %v2237, 4
        %v2240 = vshll.u32 %v2096, 16
        %v2242 = vrot.slane %v2240, 5
        %v2243 = vor.u32 %v2239, %v2242
        %v2244 = vrot.slane %v2243, 4
        %v2246 = vshll.u32 %v2097, 16
        %v2248 = vrot.slane %v2246, 5
        %v2249 = vsel %vm728, %v2244, %v2248
        %v2251 = vshrl.u32 %v2098, 16
        %v2253 = vrot.slane %v2251, 4
        %v2254 = vshll.u32 %v2098, 16
        %v2256 = vrot.slane %v2254, 5
        %v2257 = vor.u32 %v2253, %v2256
        %v2258 = vrot.slane %v2257, 4
        %v2260 = vshll.u32 %v2099, 16
        %v2262 = vrot.slane %v2260, 5
        %v2263 = vsel %vm728, %v2258, %v2262
        %v2265 = vshrl.u32 %v2100, 16
        %v2267 = vrot.slane %v2265, 4
        %v2268 = vshll.u32 %v2100, 16
        %v2270 = vrot.slane %v2268, 5
        %v2271 = vor.u32 %v2267, %v2270
        %v2272 = vrot.slane %v2271, 4
        %v2274 = vshll.u32 %v2101, 16
        %v2276 = vrot.slane %v2274, 5
        %v2277 = vsel %vm728, %v2272, %v2276
        %v2279 = vshrl.u32 %v2102, 16
        %v2281 = vrot.slane %v2279, 4
        %v2282 = vshll.u32 %v2102, 16
        %v2284 = vrot.slane %v2282, 5
        %v2285 = vor.u32 %v2281, %v2284
        %v2286 = vrot.slane %v2285, 4
        %v2288 = vshll.u32 %v2103, 16
        %v2290 = vrot.slane %v2288, 5
        %v2291 = vsel %vm728, %v2286, %v2290
        %v2293 = vshrl.u32 %v2104, 16
        %v2295 = vrot.slane %v2293, 4
        %v2296 = vshll.u32 %v2104, 16
        %v2298 = vrot.slane %v2296, 5
        %v2299 = vor.u32 %v2295, %v2298
        %v2300 = vrot.slane %v2299, 4
        %v2302 = vshll.u32 %v2105, 16
        %v2304 = vrot.slane %v2302, 5
        %v2305 = vsel %vm728, %v2300, %v2304
        %v2307 = vshrl.u32 %v2106, 16
        %v2309 = vrot.slane %v2307, 4
        %v2310 = vshll.u32 %v2106, 16
        %v2312 = vrot.slane %v2310, 5
        %v2313 = vor.u32 %v2309, %v2312
        %v2314 = vrot.slane %v2313, 4
        %v2316 = vshll.u32 %v2107, 16
        %v2318 = vrot.slane %v2316, 5
        %v2319 = vsel %vm728, %v2314, %v2318
        %v2321 = vshrl.u32 %v2108, 16
        %v2323 = vrot.slane %v2321, 4
        %v2324 = vshll.u32 %v2108, 16
        %v2326 = vrot.slane %v2324, 5
        %v2327 = vor.u32 %v2323, %v2326
        %v2328 = vrot.slane %v2327, 4
        %v2330 = vshll.u32 %v2109, 16
        %v2332 = vrot.slane %v2330, 5
        %v2333 = vsel %vm728, %v2328, %v2332
        %s2334 = scalar_lea.vmem %s4, 168
        %v2335 = vld [vmem:[%s2334] sm:$0xf]
        %v2336 = vld [vmem:[%s2334 + $0x4] sm:$0xf]
        %v2337 = vld [vmem:[%s2334 + $0x8] sm:$0xf]
        %v2338 = vld [vmem:[%s2334 + $0xc] sm:$0xf]
        %v2339 = vld [vmem:[%s2334 + $0x10] sm:$0xf]
        %v2340 = vld [vmem:[%s2334 + $0x14] sm:$0xf]
        %v2341 = vunpack.c.l.b16 %v2123
        %v2342 = vunpack.c.l.b16 %v2137
        %v2343 = vunpack.c.l.b16 %v2151
        %v2344 = vunpack.c.l.b16 %v2165
        %v2345 = vunpack.c.l.b16 %v2179
        %v2346 = vunpack.c.l.b16 %v2193
        %v2347 = vunpack.c.l.b16 %v2207
        %v2348 = vunpack.c.l.b16 %v2221
        %v2349 = vunpack.c.l.b16 %v2235
        %v2350 = vunpack.c.l.b16 %v2249
        %v2351 = vunpack.c.l.b16 %v2263
        %v2352 = vunpack.c.l.b16 %v2277
        %v2353 = vunpack.c.l.b16 %v2291
        %v2354 = vunpack.c.l.b16 %v2305
        %v2355 = vunpack.c.l.b16 %v2319
        %v2356 = vunpack.c.l.b16 %v2333
        %v2357 = vpack.c.b16 %v2342, %v2341
        %v2358 = vpack.c.b16 %v2344, %v2343
        %v2359 = vpack.c.b16 %v2346, %v2345
        %v2360 = vpack.c.b16 %v2348, %v2347
        %v2361 = vpack.c.b16 %v2350, %v2349
        %v2362 = vpack.c.b16 %v2352, %v2351
        %v2363 = vpack.c.b16 %v2354, %v2353
        %v2364 = vpack.c.b16 %v2356, %v2355
        %v2371 = vunpack.c.l.b16 %v2335
        %v2372 = vunpack.c.l.b16 %v2336
        %v2373 = vunpack.c.l.b16 %v2337
        %v2374 = vunpack.c.l.b16 %v2338
        %v2375 = vunpack.c.l.b16 %v2339
        %v2376 = vunpack.c.l.b16 %v2340
        %v2377 = vpack.c.b16 %v2372, %v2371
        %v2378 = vpack.c.b16 %v2374, %v2373
        %v2379 = vpack.c.b16 %v2376, %v2375
        %v2384 = vsel %vm489, %v2357, 0
        %v2387 = vsel %vm489, %v2358, 0
        %v2390 = vsel %vm489, %v2359, 0
        %v2393 = vsel %vm489, %v2360, 0
        %v2396 = vsel %vm489, %v2361, 0
        %v2399 = vsel %vm489, %v2362, 0
        %v2402 = vsel %vm489, %v2363, 0
        %v2405 = vsel %vm489, %v2364, 0
        %2407 = vmatpush.bf16.msra.mxu0 0
        %2408 = vmatpush.bf16.msra.mxu0 0
        %2409 = vmatpush.bf16.msra.mxu0 0
        %2410 = vmatpush.bf16.msra.mxu0 0
        %2411 = vmatpush.bf16.msra.mxu0 0
        %2412 = vmatpush.bf16.msra.mxu0 %v2379
        %2413 = vmatpush.bf16.msra.mxu0 %v2378
        %2414 = vmatpush.bf16.msra.mxu0 %v2377
        %2415 = vmatmul.bf16.gmra.mxu0 %v2384
        %v2416 = vpop.f32.mrf.mxu0
        %v2417 = vadd.f32 0.0, %v2416
        %v2418 = vpop.f32.mrf.mxu0
        %v2419 = vadd.f32 0.0, %v2418
        %2420 = vmatmul.bf16.gmra.mxu0 %v2387
        %v2421 = vpop.f32.mrf.mxu0
        %v2422 = vadd.f32 0.0, %v2421
        %v2423 = vpop.f32.mrf.mxu0
        %v2424 = vadd.f32 0.0, %v2423
        %2425 = vmatmul.bf16.gmra.mxu0 %v2390
        %v2426 = vpop.f32.mrf.mxu0
        %v2427 = vadd.f32 0.0, %v2426
        %v2428 = vpop.f32.mrf.mxu0
        %v2429 = vadd.f32 0.0, %v2428
        %2430 = vmatmul.bf16.gmra.mxu0 %v2393
        %v2431 = vpop.f32.mrf.mxu0
        %v2432 = vadd.f32 0.0, %v2431
        %v2433 = vpop.f32.mrf.mxu0
        %v2434 = vadd.f32 0.0, %v2433
        %2435 = vmatmul.bf16.gmra.mxu0 %v2396
        %v2436 = vpop.f32.mrf.mxu0
        %v2437 = vadd.f32 0.0, %v2436
        %v2438 = vpop.f32.mrf.mxu0
        %v2439 = vadd.f32 0.0, %v2438
        %2440 = vmatmul.bf16.gmra.mxu0 %v2399
        %v2441 = vpop.f32.mrf.mxu0
        %v2442 = vadd.f32 0.0, %v2441
        %v2443 = vpop.f32.mrf.mxu0
        %v2444 = vadd.f32 0.0, %v2443
        %2445 = vmatmul.bf16.gmra.mxu0 %v2402
        %v2446 = vpop.f32.mrf.mxu0
        %v2447 = vadd.f32 0.0, %v2446
        %v2448 = vpop.f32.mrf.mxu0
        %v2449 = vadd.f32 0.0, %v2448
        %2450 = vmatmul.bf16.gmra.mxu0 %v2405
        %v2451 = vpop.f32.mrf.mxu0
        %v2452 = vadd.f32 0.0, %v2451
        %v2453 = vpop.f32.mrf.mxu0
        %v2454 = vadd.f32 0.0, %v2453
        %2455 = vdwg.mxu0
        %v2456 = vadd.f32 %v2062, %v2417
        %v2457 = vadd.f32 %v2063, %v2419
        %v2458 = vadd.f32 %v2064, %v2422
        %v2459 = vadd.f32 %v2065, %v2424
        %v2460 = vadd.f32 %v2066, %v2427
        %v2461 = vadd.f32 %v2067, %v2429
        %v2462 = vadd.f32 %v2068, %v2432
        %v2463 = vadd.f32 %v2069, %v2434
        %v2464 = vadd.f32 %v2070, %v2437
        %v2465 = vadd.f32 %v2071, %v2439
        %v2466 = vadd.f32 %v2072, %v2442
        %v2467 = vadd.f32 %v2073, %v2444
        %v2468 = vadd.f32 %v2074, %v2447
        %v2469 = vadd.f32 %v2075, %v2449
        %v2470 = vadd.f32 %v2076, %v2452
        %v2471 = vadd.f32 %v2077, %v2454
        %v2472 = vld [vmem:[%s382] sm:$0xf]
        %v2473 = vld [vmem:[%s382 + $0x4] sm:$0x1]
        %v2474 = vld [vmem:[%s382 + $0x8] sm:$0xf]
        %v2475 = vld [vmem:[%s382 + $0xc] sm:$0x1]
        %v2476 = vld [vmem:[%s382 + $0x10] sm:$0xf]
        %v2477 = vld [vmem:[%s382 + $0x14] sm:$0x1]
        %v2478 = vld [vmem:[%s382 + $0x18] sm:$0xf]
        %v2479 = vld [vmem:[%s382 + $0x1c] sm:$0x1]
        %v2480 = vld [vmem:[%s382 + $0x20] sm:$0xf]
        %v2481 = vld [vmem:[%s382 + $0x24] sm:$0x1]
        %v2482 = vld [vmem:[%s382 + $0x28] sm:$0xf]
        %v2483 = vld [vmem:[%s382 + $0x2c] sm:$0x1]
        %v2484 = vld [vmem:[%s382 + $0x30] sm:$0xf]
        %v2485 = vld [vmem:[%s382 + $0x34] sm:$0x1]
        %v2486 = vld [vmem:[%s382 + $0x38] sm:$0xf]
        %v2487 = vld [vmem:[%s382 + $0x3c] sm:$0x1]
        %v2488 = vld [vmem:[%s382 + $0x50] sm:$0xf]
        %v2489 = vld [vmem:[%s382 + $0x54] sm:$0x1]
        %v2490 = vld [vmem:[%s382 + $0x58] sm:$0xf]
        %v2491 = vld [vmem:[%s382 + $0x5c] sm:$0x1]
        %v2492 = vld [vmem:[%s382 + $0x60] sm:$0xf]
        %v2493 = vld [vmem:[%s382 + $0x64] sm:$0x1]
        %v2494 = vld [vmem:[%s382 + $0x68] sm:$0xf]
        %v2495 = vld [vmem:[%s382 + $0x6c] sm:$0x1]
        %v2496 = vld [vmem:[%s382 + $0x70] sm:$0xf]
        %v2497 = vld [vmem:[%s382 + $0x74] sm:$0x1]
        %v2498 = vld [vmem:[%s382 + $0x78] sm:$0xf]
        %v2499 = vld [vmem:[%s382 + $0x7c] sm:$0x1]
        %v2500 = vld [vmem:[%s382 + $0x80] sm:$0xf]
        %v2501 = vld [vmem:[%s382 + $0x84] sm:$0x1]
        %v2502 = vld [vmem:[%s382 + $0x88] sm:$0xf]
        %v2503 = vld [vmem:[%s382 + $0x8c] sm:$0x1]
        %v2505 = vshrl.u32 %v2472, 16
        %v2507 = vrot.slane %v2505, 4
        %v2508 = vshll.u32 %v2472, 16
        %v2510 = vrot.slane %v2508, 5
        %v2511 = vor.u32 %v2507, %v2510
        %v2512 = vrot.slane %v2511, 4
        %v2514 = vshll.u32 %v2473, 16
        %v2516 = vrot.slane %v2514, 5
        %v2517 = vsel %vm728, %v2512, %v2516
        %v2519 = vshrl.u32 %v2474, 16
        %v2521 = vrot.slane %v2519, 4
        %v2522 = vshll.u32 %v2474, 16
        %v2524 = vrot.slane %v2522, 5
        %v2525 = vor.u32 %v2521, %v2524
        %v2526 = vrot.slane %v2525, 4
        %v2528 = vshll.u32 %v2475, 16
        %v2530 = vrot.slane %v2528, 5
        %v2531 = vsel %vm728, %v2526, %v2530
        %v2533 = vshrl.u32 %v2476, 16
        %v2535 = vrot.slane %v2533, 4
        %v2536 = vshll.u32 %v2476, 16
        %v2538 = vrot.slane %v2536, 5
        %v2539 = vor.u32 %v2535, %v2538
        %v2540 = vrot.slane %v2539, 4
        %v2542 = vshll.u32 %v2477, 16
        %v2544 = vrot.slane %v2542, 5
        %v2545 = vsel %vm728, %v2540, %v2544
        %v2547 = vshrl.u32 %v2478, 16
        %v2549 = vrot.slane %v2547, 4
        %v2550 = vshll.u32 %v2478, 16
        %v2552 = vrot.slane %v2550, 5
        %v2553 = vor.u32 %v2549, %v2552
        %v2554 = vrot.slane %v2553, 4
        %v2556 = vshll.u32 %v2479, 16
        %v2558 = vrot.slane %v2556, 5
        %v2559 = vsel %vm728, %v2554, %v2558
        %v2561 = vshrl.u32 %v2480, 16
        %v2563 = vrot.slane %v2561, 4
        %v2564 = vshll.u32 %v2480, 16
        %v2566 = vrot.slane %v2564, 5
        %v2567 = vor.u32 %v2563, %v2566
        %v2568 = vrot.slane %v2567, 4
        %v2570 = vshll.u32 %v2481, 16
        %v2572 = vrot.slane %v2570, 5
        %v2573 = vsel %vm728, %v2568, %v2572
        %v2575 = vshrl.u32 %v2482, 16
        %v2577 = vrot.slane %v2575, 4
        %v2578 = vshll.u32 %v2482, 16
        %v2580 = vrot.slane %v2578, 5
        %v2581 = vor.u32 %v2577, %v2580
        %v2582 = vrot.slane %v2581, 4
        %v2584 = vshll.u32 %v2483, 16
        %v2586 = vrot.slane %v2584, 5
        %v2587 = vsel %vm728, %v2582, %v2586
        %v2589 = vshrl.u32 %v2484, 16
        %v2591 = vrot.slane %v2589, 4
        %v2592 = vshll.u32 %v2484, 16
        %v2594 = vrot.slane %v2592, 5
        %v2595 = vor.u32 %v2591, %v2594
        %v2596 = vrot.slane %v2595, 4
        %v2598 = vshll.u32 %v2485, 16
        %v2600 = vrot.slane %v2598, 5
        %v2601 = vsel %vm728, %v2596, %v2600
        %v2603 = vshrl.u32 %v2486, 16
        %v2605 = vrot.slane %v2603, 4
        %v2606 = vshll.u32 %v2486, 16
        %v2608 = vrot.slane %v2606, 5
        %v2609 = vor.u32 %v2605, %v2608
        %v2610 = vrot.slane %v2609, 4
        %v2612 = vshll.u32 %v2487, 16
        %v2614 = vrot.slane %v2612, 5
        %v2615 = vsel %vm728, %v2610, %v2614
        %v2617 = vshrl.u32 %v2488, 16
        %v2619 = vrot.slane %v2617, 4
        %v2620 = vshll.u32 %v2488, 16
        %v2622 = vrot.slane %v2620, 5
        %v2623 = vor.u32 %v2619, %v2622
        %v2624 = vrot.slane %v2623, 4
        %v2626 = vshll.u32 %v2489, 16
        %v2628 = vrot.slane %v2626, 5
        %v2629 = vsel %vm728, %v2624, %v2628
        %v2631 = vshrl.u32 %v2490, 16
        %v2633 = vrot.slane %v2631, 4
        %v2634 = vshll.u32 %v2490, 16
        %v2636 = vrot.slane %v2634, 5
        %v2637 = vor.u32 %v2633, %v2636
        %v2638 = vrot.slane %v2637, 4
        %v2640 = vshll.u32 %v2491, 16
        %v2642 = vrot.slane %v2640, 5
        %v2643 = vsel %vm728, %v2638, %v2642
        %v2645 = vshrl.u32 %v2492, 16
        %v2647 = vrot.slane %v2645, 4
        %v2648 = vshll.u32 %v2492, 16
        %v2650 = vrot.slane %v2648, 5
        %v2651 = vor.u32 %v2647, %v2650
        %v2652 = vrot.slane %v2651, 4
        %v2654 = vshll.u32 %v2493, 16
        %v2656 = vrot.slane %v2654, 5
        %v2657 = vsel %vm728, %v2652, %v2656
        %v2659 = vshrl.u32 %v2494, 16
        %v2661 = vrot.slane %v2659, 4
        %v2662 = vshll.u32 %v2494, 16
        %v2664 = vrot.slane %v2662, 5
        %v2665 = vor.u32 %v2661, %v2664
        %v2666 = vrot.slane %v2665, 4
        %v2668 = vshll.u32 %v2495, 16
        %v2670 = vrot.slane %v2668, 5
        %v2671 = vsel %vm728, %v2666, %v2670
        %v2673 = vshrl.u32 %v2496, 16
        %v2675 = vrot.slane %v2673, 4
        %v2676 = vshll.u32 %v2496, 16
        %v2678 = vrot.slane %v2676, 5
        %v2679 = vor.u32 %v2675, %v2678
        %v2680 = vrot.slane %v2679, 4
        %v2682 = vshll.u32 %v2497, 16
        %v2684 = vrot.slane %v2682, 5
        %v2685 = vsel %vm728, %v2680, %v2684
        %v2687 = vshrl.u32 %v2498, 16
        %v2689 = vrot.slane %v2687, 4
        %v2690 = vshll.u32 %v2498, 16
        %v2692 = vrot.slane %v2690, 5
        %v2693 = vor.u32 %v2689, %v2692
        %v2694 = vrot.slane %v2693, 4
        %v2696 = vshll.u32 %v2499, 16
        %v2698 = vrot.slane %v2696, 5
        %v2699 = vsel %vm728, %v2694, %v2698
        %v2701 = vshrl.u32 %v2500, 16
        %v2703 = vrot.slane %v2701, 4
        %v2704 = vshll.u32 %v2500, 16
        %v2706 = vrot.slane %v2704, 5
        %v2707 = vor.u32 %v2703, %v2706
        %v2708 = vrot.slane %v2707, 4
        %v2710 = vshll.u32 %v2501, 16
        %v2712 = vrot.slane %v2710, 5
        %v2713 = vsel %vm728, %v2708, %v2712
        %v2715 = vshrl.u32 %v2502, 16
        %v2717 = vrot.slane %v2715, 4
        %v2718 = vshll.u32 %v2502, 16
        %v2720 = vrot.slane %v2718, 5
        %v2721 = vor.u32 %v2717, %v2720
        %v2722 = vrot.slane %v2721, 4
        %v2724 = vshll.u32 %v2503, 16
        %v2726 = vrot.slane %v2724, 5
        %v2727 = vsel %vm728, %v2722, %v2726
        %s2728 = scalar_lea.vmem %s4, 192
        %v2729 = vld [vmem:[%s2728] sm:$0xf]
        %v2730 = vld [vmem:[%s2728 + $0x4] sm:$0xf]
        %v2731 = vld [vmem:[%s2728 + $0x8] sm:$0xf]
        %v2732 = vld [vmem:[%s2728 + $0xc] sm:$0xf]
        %v2733 = vld [vmem:[%s2728 + $0x10] sm:$0xf]
        %v2734 = vld [vmem:[%s2728 + $0x14] sm:$0xf]
        %v2735 = vunpack.c.l.b16 %v2517
        %v2736 = vunpack.c.l.b16 %v2531
        %v2737 = vunpack.c.l.b16 %v2545
        %v2738 = vunpack.c.l.b16 %v2559
        %v2739 = vunpack.c.l.b16 %v2573
        %v2740 = vunpack.c.l.b16 %v2587
        %v2741 = vunpack.c.l.b16 %v2601
        %v2742 = vunpack.c.l.b16 %v2615
        %v2743 = vunpack.c.l.b16 %v2629
        %v2744 = vunpack.c.l.b16 %v2643
        %v2745 = vunpack.c.l.b16 %v2657
        %v2746 = vunpack.c.l.b16 %v2671
        %v2747 = vunpack.c.l.b16 %v2685
        %v2748 = vunpack.c.l.b16 %v2699
        %v2749 = vunpack.c.l.b16 %v2713
        %v2750 = vunpack.c.l.b16 %v2727
        %v2751 = vpack.c.b16 %v2736, %v2735
        %v2752 = vpack.c.b16 %v2738, %v2737
        %v2753 = vpack.c.b16 %v2740, %v2739
        %v2754 = vpack.c.b16 %v2742, %v2741
        %v2755 = vpack.c.b16 %v2744, %v2743
        %v2756 = vpack.c.b16 %v2746, %v2745
        %v2757 = vpack.c.b16 %v2748, %v2747
        %v2758 = vpack.c.b16 %v2750, %v2749
        %v2765 = vunpack.c.l.b16 %v2729
        %v2766 = vunpack.c.l.b16 %v2730
        %v2767 = vunpack.c.l.b16 %v2731
        %v2768 = vunpack.c.l.b16 %v2732
        %v2769 = vunpack.c.l.b16 %v2733
        %v2770 = vunpack.c.l.b16 %v2734
        %v2771 = vpack.c.b16 %v2766, %v2765
        %v2772 = vpack.c.b16 %v2768, %v2767
        %v2773 = vpack.c.b16 %v2770, %v2769
        %v2778 = vsel %vm489, %v2751, 0
        %v2781 = vsel %vm489, %v2752, 0
        %v2784 = vsel %vm489, %v2753, 0
        %v2787 = vsel %vm489, %v2754, 0
        %v2790 = vsel %vm489, %v2755, 0
        %v2793 = vsel %vm489, %v2756, 0
        %v2796 = vsel %vm489, %v2757, 0
        %v2799 = vsel %vm489, %v2758, 0
        %2801 = vmatpush.bf16.msra.mxu0 0
        %2802 = vmatpush.bf16.msra.mxu0 0
        %2803 = vmatpush.bf16.msra.mxu0 0
        %2804 = vmatpush.bf16.msra.mxu0 0
        %2805 = vmatpush.bf16.msra.mxu0 0
        %2806 = vmatpush.bf16.msra.mxu0 %v2773
        %2807 = vmatpush.bf16.msra.mxu0 %v2772
        %2808 = vmatpush.bf16.msra.mxu0 %v2771
        %2809 = vmatmul.bf16.gmra.mxu0 %v2778
        %v2810 = vpop.f32.mrf.mxu0
        %v2811 = vadd.f32 0.0, %v2810
        %v2812 = vpop.f32.mrf.mxu0
        %v2813 = vadd.f32 0.0, %v2812
        %2814 = vmatmul.bf16.gmra.mxu0 %v2781
        %v2815 = vpop.f32.mrf.mxu0
        %v2816 = vadd.f32 0.0, %v2815
        %v2817 = vpop.f32.mrf.mxu0
        %v2818 = vadd.f32 0.0, %v2817
        %2819 = vmatmul.bf16.gmra.mxu0 %v2784
        %v2820 = vpop.f32.mrf.mxu0
        %v2821 = vadd.f32 0.0, %v2820
        %v2822 = vpop.f32.mrf.mxu0
        %v2823 = vadd.f32 0.0, %v2822
        %2824 = vmatmul.bf16.gmra.mxu0 %v2787
        %v2825 = vpop.f32.mrf.mxu0
        %v2826 = vadd.f32 0.0, %v2825
        %v2827 = vpop.f32.mrf.mxu0
        %v2828 = vadd.f32 0.0, %v2827
        %2829 = vmatmul.bf16.gmra.mxu0 %v2790
        %v2830 = vpop.f32.mrf.mxu0
        %v2831 = vadd.f32 0.0, %v2830
        %v2832 = vpop.f32.mrf.mxu0
        %v2833 = vadd.f32 0.0, %v2832
        %2834 = vmatmul.bf16.gmra.mxu0 %v2793
        %v2835 = vpop.f32.mrf.mxu0
        %v2836 = vadd.f32 0.0, %v2835
        %v2837 = vpop.f32.mrf.mxu0
        %v2838 = vadd.f32 0.0, %v2837
        %2839 = vmatmul.bf16.gmra.mxu0 %v2796
        %v2840 = vpop.f32.mrf.mxu0
        %v2841 = vadd.f32 0.0, %v2840
        %v2842 = vpop.f32.mrf.mxu0
        %v2843 = vadd.f32 0.0, %v2842
        %2844 = vmatmul.bf16.gmra.mxu0 %v2799
        %v2845 = vpop.f32.mrf.mxu0
        %v2846 = vadd.f32 0.0, %v2845
        %v2847 = vpop.f32.mrf.mxu0
        %v2848 = vadd.f32 0.0, %v2847
        %2849 = vdwg.mxu0
        %v2850 = vadd.f32 %v2456, %v2811
        %v2851 = vadd.f32 %v2457, %v2813
        %v2852 = vadd.f32 %v2458, %v2816
        %v2853 = vadd.f32 %v2459, %v2818
        %v2854 = vadd.f32 %v2460, %v2821
        %v2855 = vadd.f32 %v2461, %v2823
        %v2856 = vadd.f32 %v2462, %v2826
        %v2857 = vadd.f32 %v2463, %v2828
        %v2858 = vadd.f32 %v2464, %v2831
        %v2859 = vadd.f32 %v2465, %v2833
        %v2860 = vadd.f32 %v2466, %v2836
        %v2861 = vadd.f32 %v2467, %v2838
        %v2862 = vadd.f32 %v2468, %v2841
        %v2863 = vadd.f32 %v2469, %v2843
        %v2864 = vadd.f32 %v2470, %v2846
        %v2865 = vadd.f32 %v2471, %v2848
        %v2866 = vld [vmem:[%s375] sm:$0xe]
        %v2867 = vld [vmem:[%s375 + $0x8] sm:$0xe]
        %v2868 = vld [vmem:[%s375 + $0x10] sm:$0xe]
        %v2869 = vld [vmem:[%s375 + $0x18] sm:$0xe]
        %v2870 = vld [vmem:[%s375 + $0x20] sm:$0xe]
        %v2871 = vld [vmem:[%s375 + $0x28] sm:$0xe]
        %v2872 = vld [vmem:[%s375 + $0x30] sm:$0xe]
        %v2873 = vld [vmem:[%s375 + $0x38] sm:$0xe]
        %v2874 = vld [vmem:[%s375 + $0x50] sm:$0xe]
        %v2875 = vld [vmem:[%s375 + $0x58] sm:$0xe]
        %v2876 = vld [vmem:[%s375 + $0x60] sm:$0xe]
        %v2877 = vld [vmem:[%s375 + $0x68] sm:$0xe]
        %v2878 = vld [vmem:[%s375 + $0x70] sm:$0xe]
        %v2879 = vld [vmem:[%s375 + $0x78] sm:$0xe]
        %v2880 = vld [vmem:[%s375 + $0x80] sm:$0xe]
        %v2881 = vld [vmem:[%s375 + $0x88] sm:$0xe]
        %v2914 = vrot.slane %v2866, 5
        %v2915 = vrot.slane %v2914, 4
        %v2916 = vrot.slane %v2079, 5
        %v2917 = vsel %vm1535, %v2915, %v2916
        %v2918 = vrot.slane %v2867, 5
        %v2919 = vrot.slane %v2918, 4
        %v2920 = vrot.slane %v2081, 5
        %v2921 = vsel %vm1535, %v2919, %v2920
        %v2922 = vrot.slane %v2868, 5
        %v2923 = vrot.slane %v2922, 4
        %v2924 = vrot.slane %v2083, 5
        %v2925 = vsel %vm1535, %v2923, %v2924
        %v2926 = vrot.slane %v2869, 5
        %v2927 = vrot.slane %v2926, 4
        %v2928 = vrot.slane %v2085, 5
        %v2929 = vsel %vm1535, %v2927, %v2928
        %v2930 = vrot.slane %v2870, 5
        %v2931 = vrot.slane %v2930, 4
        %v2932 = vrot.slane %v2087, 5
        %v2933 = vsel %vm1535, %v2931, %v2932
        %v2934 = vrot.slane %v2871, 5
        %v2935 = vrot.slane %v2934, 4
        %v2936 = vrot.slane %v2089, 5
        %v2937 = vsel %vm1535, %v2935, %v2936
        %v2938 = vrot.slane %v2872, 5
        %v2939 = vrot.slane %v2938, 4
        %v2940 = vrot.slane %v2091, 5
        %v2941 = vsel %vm1535, %v2939, %v2940
        %v2942 = vrot.slane %v2873, 5
        %v2943 = vrot.slane %v2942, 4
        %v2944 = vrot.slane %v2093, 5
        %v2945 = vsel %vm1535, %v2943, %v2944
        %v2946 = vrot.slane %v2874, 5
        %v2947 = vrot.slane %v2946, 4
        %v2948 = vrot.slane %v2095, 5
        %v2949 = vsel %vm1535, %v2947, %v2948
        %v2950 = vrot.slane %v2875, 5
        %v2951 = vrot.slane %v2950, 4
        %v2952 = vrot.slane %v2097, 5
        %v2953 = vsel %vm1535, %v2951, %v2952
        %v2954 = vrot.slane %v2876, 5
        %v2955 = vrot.slane %v2954, 4
        %v2956 = vrot.slane %v2099, 5
        %v2957 = vsel %vm1535, %v2955, %v2956
        %v2958 = vrot.slane %v2877, 5
        %v2959 = vrot.slane %v2958, 4
        %v2960 = vrot.slane %v2101, 5
        %v2961 = vsel %vm1535, %v2959, %v2960
        %v2962 = vrot.slane %v2878, 5
        %v2963 = vrot.slane %v2962, 4
        %v2964 = vrot.slane %v2103, 5
        %v2965 = vsel %vm1535, %v2963, %v2964
        %v2966 = vrot.slane %v2879, 5
        %v2967 = vrot.slane %v2966, 4
        %v2968 = vrot.slane %v2105, 5
        %v2969 = vsel %vm1535, %v2967, %v2968
        %v2970 = vrot.slane %v2880, 5
        %v2971 = vrot.slane %v2970, 4
        %v2972 = vrot.slane %v2107, 5
        %v2973 = vsel %vm1535, %v2971, %v2972
        %v2974 = vrot.slane %v2881, 5
        %v2975 = vrot.slane %v2974, 4
        %v2976 = vrot.slane %v2109, 5
        %v2977 = vsel %vm1535, %v2975, %v2976
        %s2978 = scalar_lea.vmem %s4, 216
        %v2979 = vld [vmem:[%s2978] sm:$0xf]
        %v2980 = vld [vmem:[%s2978 + $0x4] sm:$0xf]
        %v2981 = vld [vmem:[%s2978 + $0x8] sm:$0xf]
        %v2982 = vld [vmem:[%s2978 + $0xc] sm:$0xf]
        %v2983 = vld [vmem:[%s2978 + $0x10] sm:$0xf]
        %v2984 = vld [vmem:[%s2978 + $0x14] sm:$0xf]
        %v2985 = vunpack.c.l.b16 %v2917
        %v2986 = vunpack.c.l.b16 %v2921
        %v2987 = vunpack.c.l.b16 %v2925
        %v2988 = vunpack.c.l.b16 %v2929
        %v2989 = vunpack.c.l.b16 %v2933
        %v2990 = vunpack.c.l.b16 %v2937
        %v2991 = vunpack.c.l.b16 %v2941
        %v2992 = vunpack.c.l.b16 %v2945
        %v2993 = vunpack.c.l.b16 %v2949
        %v2994 = vunpack.c.l.b16 %v2953
        %v2995 = vunpack.c.l.b16 %v2957
        %v2996 = vunpack.c.l.b16 %v2961
        %v2997 = vunpack.c.l.b16 %v2965
        %v2998 = vunpack.c.l.b16 %v2969
        %v2999 = vunpack.c.l.b16 %v2973
        %v3000 = vunpack.c.l.b16 %v2977
        %v3001 = vpack.c.b16 %v2986, %v2985
        %v3002 = vpack.c.b16 %v2988, %v2987
        %v3003 = vpack.c.b16 %v2990, %v2989
        %v3004 = vpack.c.b16 %v2992, %v2991
        %v3005 = vpack.c.b16 %v2994, %v2993
        %v3006 = vpack.c.b16 %v2996, %v2995
        %v3007 = vpack.c.b16 %v2998, %v2997
        %v3008 = vpack.c.b16 %v3000, %v2999
        %v3015 = vunpack.c.l.b16 %v2979
        %v3016 = vunpack.c.l.b16 %v2980
        %v3017 = vunpack.c.l.b16 %v2981
        %v3018 = vunpack.c.l.b16 %v2982
        %v3019 = vunpack.c.l.b16 %v2983
        %v3020 = vunpack.c.l.b16 %v2984
        %v3021 = vpack.c.b16 %v3016, %v3015
        %v3022 = vpack.c.b16 %v3018, %v3017
        %v3023 = vpack.c.b16 %v3020, %v3019
        %v3028 = vsel %vm489, %v3001, 0
        %v3031 = vsel %vm489, %v3002, 0
        %v3034 = vsel %vm489, %v3003, 0
        %v3037 = vsel %vm489, %v3004, 0
        %v3040 = vsel %vm489, %v3005, 0
        %v3043 = vsel %vm489, %v3006, 0
        %v3046 = vsel %vm489, %v3007, 0
        %v3049 = vsel %vm489, %v3008, 0
        %3051 = vmatpush.bf16.msra.mxu0 0
        %3052 = vmatpush.bf16.msra.mxu0 0
        %3053 = vmatpush.bf16.msra.mxu0 0
        %3054 = vmatpush.bf16.msra.mxu0 0
        %3055 = vmatpush.bf16.msra.mxu0 0
        %3056 = vmatpush.bf16.msra.mxu0 %v3023
        %3057 = vmatpush.bf16.msra.mxu0 %v3022
        %3058 = vmatpush.bf16.msra.mxu0 %v3021
        %3059 = vmatmul.bf16.gmra.mxu0 %v3028
        %v3060 = vpop.f32.mrf.mxu0
        %v3061 = vadd.f32 0.0, %v3060
        %v3062 = vpop.f32.mrf.mxu0
        %v3063 = vadd.f32 0.0, %v3062
        %3064 = vmatmul.bf16.gmra.mxu0 %v3031
        %v3065 = vpop.f32.mrf.mxu0
        %v3066 = vadd.f32 0.0, %v3065
        %v3067 = vpop.f32.mrf.mxu0
        %v3068 = vadd.f32 0.0, %v3067
        %3069 = vmatmul.bf16.gmra.mxu0 %v3034
        %v3070 = vpop.f32.mrf.mxu0
        %v3071 = vadd.f32 0.0, %v3070
        %v3072 = vpop.f32.mrf.mxu0
        %v3073 = vadd.f32 0.0, %v3072
        %3074 = vmatmul.bf16.gmra.mxu0 %v3037
        %v3075 = vpop.f32.mrf.mxu0
        %v3076 = vadd.f32 0.0, %v3075
        %v3077 = vpop.f32.mrf.mxu0
        %v3078 = vadd.f32 0.0, %v3077
        %3079 = vmatmul.bf16.gmra.mxu0 %v3040
        %v3080 = vpop.f32.mrf.mxu0
        %v3081 = vadd.f32 0.0, %v3080
        %v3082 = vpop.f32.mrf.mxu0
        %v3083 = vadd.f32 0.0, %v3082
        %3084 = vmatmul.bf16.gmra.mxu0 %v3043
        %v3085 = vpop.f32.mrf.mxu0
        %v3086 = vadd.f32 0.0, %v3085
        %v3087 = vpop.f32.mrf.mxu0
        %v3088 = vadd.f32 0.0, %v3087
        %3089 = vmatmul.bf16.gmra.mxu0 %v3046
        %v3090 = vpop.f32.mrf.mxu0
        %v3091 = vadd.f32 0.0, %v3090
        %v3092 = vpop.f32.mrf.mxu0
        %v3093 = vadd.f32 0.0, %v3092
        %3094 = vmatmul.bf16.gmra.mxu0 %v3049
        %v3095 = vpop.f32.mrf.mxu0
        %v3096 = vadd.f32 0.0, %v3095
        %v3097 = vpop.f32.mrf.mxu0
        %v3098 = vadd.f32 0.0, %v3097
        %3099 = vdwg.mxu0
        %v3100 = vadd.f32 %v2850, %v3061
        %v3101 = vadd.f32 %v2851, %v3063
        %v3102 = vadd.f32 %v2852, %v3066
        %v3103 = vadd.f32 %v2853, %v3068
        %v3104 = vadd.f32 %v2854, %v3071
        %v3105 = vadd.f32 %v2855, %v3073
        %v3106 = vadd.f32 %v2856, %v3076
        %v3107 = vadd.f32 %v2857, %v3078
        %v3108 = vadd.f32 %v2858, %v3081
        %v3109 = vadd.f32 %v2859, %v3083
        %v3110 = vadd.f32 %v2860, %v3086
        %v3111 = vadd.f32 %v2861, %v3088
        %v3112 = vadd.f32 %v2862, %v3091
        %v3113 = vadd.f32 %v2863, %v3093
        %v3114 = vadd.f32 %v2864, %v3096
        %v3115 = vadd.f32 %v2865, %v3098
        %s3116 = scalar_lea.vmem %s361, 8
        %v3117 = vld [vmem:[%s3116] sm:$0xf]
        %v3118 = vld [vmem:[%s3116 + $0x8] sm:$0xf]
        %v3119 = vld [vmem:[%s3116 + $0x10] sm:$0xf]
        %v3120 = vld [vmem:[%s3116 + $0x18] sm:$0xf]
        %v3121 = vld [vmem:[%s3116 + $0x20] sm:$0xf]
        %v3122 = vld [vmem:[%s3116 + $0x28] sm:$0xf]
        %v3123 = vld [vmem:[%s3116 + $0x30] sm:$0xf]
        %v3124 = vld [vmem:[%s3116 + $0x38] sm:$0xf]
        %v3125 = vld [vmem:[%s3116 + $0x50] sm:$0xf]
        %v3126 = vld [vmem:[%s3116 + $0x58] sm:$0xf]
        %v3127 = vld [vmem:[%s3116 + $0x60] sm:$0xf]
        %v3128 = vld [vmem:[%s3116 + $0x68] sm:$0xf]
        %v3129 = vld [vmem:[%s3116 + $0x70] sm:$0xf]
        %v3130 = vld [vmem:[%s3116 + $0x78] sm:$0xf]
        %v3131 = vld [vmem:[%s3116 + $0x80] sm:$0xf]
        %v3132 = vld [vmem:[%s3116 + $0x88] sm:$0xf]
        %s3133 = scalar_lea.vmem %s4, 240
        %v3134 = vld [vmem:[%s3133] sm:$0xf]
        %v3135 = vld [vmem:[%s3133 + $0x4] sm:$0xf]
        %v3136 = vld [vmem:[%s3133 + $0x8] sm:$0xf]
        %v3137 = vld [vmem:[%s3133 + $0xc] sm:$0xf]
        %v3138 = vld [vmem:[%s3133 + $0x10] sm:$0xf]
        %v3139 = vld [vmem:[%s3133 + $0x14] sm:$0xf]
        %v3156 = vunpack.c.l.b16 %v3117
        %v3157 = vunpack.c.l.b16 %v3118
        %v3158 = vunpack.c.l.b16 %v3119
        %v3159 = vunpack.c.l.b16 %v3120
        %v3160 = vunpack.c.l.b16 %v3121
        %v3161 = vunpack.c.l.b16 %v3122
        %v3162 = vunpack.c.l.b16 %v3123
        %v3163 = vunpack.c.l.b16 %v3124
        %v3164 = vunpack.c.l.b16 %v3125
        %v3165 = vunpack.c.l.b16 %v3126
        %v3166 = vunpack.c.l.b16 %v3127
        %v3167 = vunpack.c.l.b16 %v3128
        %v3168 = vunpack.c.l.b16 %v3129
        %v3169 = vunpack.c.l.b16 %v3130
        %v3170 = vunpack.c.l.b16 %v3131
        %v3171 = vunpack.c.l.b16 %v3132
        %v3172 = vpack.c.b16 %v3157, %v3156
        %v3173 = vpack.c.b16 %v3159, %v3158
        %v3174 = vpack.c.b16 %v3161, %v3160
        %v3175 = vpack.c.b16 %v3163, %v3162
        %v3176 = vpack.c.b16 %v3165, %v3164
        %v3177 = vpack.c.b16 %v3167, %v3166
        %v3178 = vpack.c.b16 %v3169, %v3168
        %v3179 = vpack.c.b16 %v3171, %v3170
        %v3186 = vunpack.c.l.b16 %v3134
        %v3187 = vunpack.c.l.b16 %v3135
        %v3188 = vunpack.c.l.b16 %v3136
        %v3189 = vunpack.c.l.b16 %v3137
        %v3190 = vunpack.c.l.b16 %v3138
        %v3191 = vunpack.c.l.b16 %v3139
        %v3192 = vpack.c.b16 %v3187, %v3186
        %v3193 = vpack.c.b16 %v3189, %v3188
        %v3194 = vpack.c.b16 %v3191, %v3190
        %v3199 = vsel %vm489, %v3172, 0
        %v3202 = vsel %vm489, %v3173, 0
        %v3205 = vsel %vm489, %v3174, 0
        %v3208 = vsel %vm489, %v3175, 0
        %v3211 = vsel %vm489, %v3176, 0
        %v3214 = vsel %vm489, %v3177, 0
        %v3217 = vsel %vm489, %v3178, 0
        %v3220 = vsel %vm489, %v3179, 0
        %3222 = vmatpush.bf16.msra.mxu0 0
        %3223 = vmatpush.bf16.msra.mxu0 0
        %3224 = vmatpush.bf16.msra.mxu0 0
        %3225 = vmatpush.bf16.msra.mxu0 0
        %3226 = vmatpush.bf16.msra.mxu0 0
        %3227 = vmatpush.bf16.msra.mxu0 %v3194
        %3228 = vmatpush.bf16.msra.mxu0 %v3193
        %3229 = vmatpush.bf16.msra.mxu0 %v3192
        %3230 = vmatmul.bf16.gmra.mxu0 %v3199
        %v3231 = vpop.f32.mrf.mxu0
        %v3232 = vadd.f32 0.0, %v3231
        %v3233 = vpop.f32.mrf.mxu0
        %v3234 = vadd.f32 0.0, %v3233
        %3235 = vmatmul.bf16.gmra.mxu0 %v3202
        %v3236 = vpop.f32.mrf.mxu0
        %v3237 = vadd.f32 0.0, %v3236
        %v3238 = vpop.f32.mrf.mxu0
        %v3239 = vadd.f32 0.0, %v3238
        %3240 = vmatmul.bf16.gmra.mxu0 %v3205
        %v3241 = vpop.f32.mrf.mxu0
        %v3242 = vadd.f32 0.0, %v3241
        %v3243 = vpop.f32.mrf.mxu0
        %v3244 = vadd.f32 0.0, %v3243
        %3245 = vmatmul.bf16.gmra.mxu0 %v3208
        %v3246 = vpop.f32.mrf.mxu0
        %v3247 = vadd.f32 0.0, %v3246
        %v3248 = vpop.f32.mrf.mxu0
        %v3249 = vadd.f32 0.0, %v3248
        %3250 = vmatmul.bf16.gmra.mxu0 %v3211
        %v3251 = vpop.f32.mrf.mxu0
        %v3252 = vadd.f32 0.0, %v3251
        %v3253 = vpop.f32.mrf.mxu0
        %v3254 = vadd.f32 0.0, %v3253
        %3255 = vmatmul.bf16.gmra.mxu0 %v3214
        %v3256 = vpop.f32.mrf.mxu0
        %v3257 = vadd.f32 0.0, %v3256
        %v3258 = vpop.f32.mrf.mxu0
        %v3259 = vadd.f32 0.0, %v3258
        %3260 = vmatmul.bf16.gmra.mxu0 %v3217
        %v3261 = vpop.f32.mrf.mxu0
        %v3262 = vadd.f32 0.0, %v3261
        %v3263 = vpop.f32.mrf.mxu0
        %v3264 = vadd.f32 0.0, %v3263
        %3265 = vmatmul.bf16.gmra.mxu0 %v3220
        %v3266 = vpop.f32.mrf.mxu0
        %v3267 = vadd.f32 0.0, %v3266
        %v3268 = vpop.f32.mrf.mxu0
        %v3269 = vadd.f32 0.0, %v3268
        %3270 = vdwg.mxu0
        %v3271 = vadd.f32 %v3100, %v3232
        %v3272 = vadd.f32 %v3101, %v3234
        %v3273 = vadd.f32 %v3102, %v3237
        %v3274 = vadd.f32 %v3103, %v3239
        %v3275 = vadd.f32 %v3104, %v3242
        %v3276 = vadd.f32 %v3105, %v3244
        %v3277 = vadd.f32 %v3106, %v3247
        %v3278 = vadd.f32 %v3107, %v3249
        %v3279 = vadd.f32 %v3108, %v3252
        %v3280 = vadd.f32 %v3109, %v3254
        %v3281 = vadd.f32 %v3110, %v3257
        %v3282 = vadd.f32 %v3111, %v3259
        %v3283 = vadd.f32 %v3112, %v3262
        %v3284 = vadd.f32 %v3113, %v3264
        %v3285 = vadd.f32 %v3114, %v3267
        %v3286 = vadd.f32 %v3115, %v3269
        %s3287 = scalar_lea.vmem %s368, 8
        %v3288 = vld [vmem:[%s3287] sm:$0xf]
        %v3289 = vld [vmem:[%s3287 + $0x8] sm:$0xf]
        %v3290 = vld [vmem:[%s3287 + $0x10] sm:$0xf]
        %v3291 = vld [vmem:[%s3287 + $0x18] sm:$0xf]
        %v3292 = vld [vmem:[%s3287 + $0x20] sm:$0xf]
        %v3293 = vld [vmem:[%s3287 + $0x28] sm:$0xf]
        %v3294 = vld [vmem:[%s3287 + $0x30] sm:$0xf]
        %v3295 = vld [vmem:[%s3287 + $0x38] sm:$0xf]
        %v3296 = vld [vmem:[%s3287 + $0x50] sm:$0xf]
        %v3297 = vld [vmem:[%s3287 + $0x58] sm:$0xf]
        %v3298 = vld [vmem:[%s3287 + $0x60] sm:$0xf]
        %v3299 = vld [vmem:[%s3287 + $0x68] sm:$0xf]
        %v3300 = vld [vmem:[%s3287 + $0x70] sm:$0xf]
        %v3301 = vld [vmem:[%s3287 + $0x78] sm:$0xf]
        %v3302 = vld [vmem:[%s3287 + $0x80] sm:$0xf]
        %v3303 = vld [vmem:[%s3287 + $0x88] sm:$0xf]
        %s3304 = scalar_lea.vmem %s4, 264
        %v3305 = vld [vmem:[%s3304] sm:$0xf]
        %v3306 = vld [vmem:[%s3304 + $0x4] sm:$0xf]
        %v3307 = vld [vmem:[%s3304 + $0x8] sm:$0xf]
        %v3308 = vld [vmem:[%s3304 + $0xc] sm:$0xf]
        %v3309 = vld [vmem:[%s3304 + $0x10] sm:$0xf]
        %v3310 = vld [vmem:[%s3304 + $0x14] sm:$0xf]
        %v3327 = vunpack.c.l.b16 %v3288
        %v3328 = vunpack.c.l.b16 %v3289
        %v3329 = vunpack.c.l.b16 %v3290
        %v3330 = vunpack.c.l.b16 %v3291
        %v3331 = vunpack.c.l.b16 %v3292
        %v3332 = vunpack.c.l.b16 %v3293
        %v3333 = vunpack.c.l.b16 %v3294
        %v3334 = vunpack.c.l.b16 %v3295
        %v3335 = vunpack.c.l.b16 %v3296
        %v3336 = vunpack.c.l.b16 %v3297
        %v3337 = vunpack.c.l.b16 %v3298
        %v3338 = vunpack.c.l.b16 %v3299
        %v3339 = vunpack.c.l.b16 %v3300
        %v3340 = vunpack.c.l.b16 %v3301
        %v3341 = vunpack.c.l.b16 %v3302
        %v3342 = vunpack.c.l.b16 %v3303
        %v3343 = vpack.c.b16 %v3328, %v3327
        %v3344 = vpack.c.b16 %v3330, %v3329
        %v3345 = vpack.c.b16 %v3332, %v3331
        %v3346 = vpack.c.b16 %v3334, %v3333
        %v3347 = vpack.c.b16 %v3336, %v3335
        %v3348 = vpack.c.b16 %v3338, %v3337
        %v3349 = vpack.c.b16 %v3340, %v3339
        %v3350 = vpack.c.b16 %v3342, %v3341
        %v3357 = vunpack.c.l.b16 %v3305
        %v3358 = vunpack.c.l.b16 %v3306
        %v3359 = vunpack.c.l.b16 %v3307
        %v3360 = vunpack.c.l.b16 %v3308
        %v3361 = vunpack.c.l.b16 %v3309
        %v3362 = vunpack.c.l.b16 %v3310
        %v3363 = vpack.c.b16 %v3358, %v3357
        %v3364 = vpack.c.b16 %v3360, %v3359
        %v3365 = vpack.c.b16 %v3362, %v3361
        %v3370 = vsel %vm489, %v3343, 0
        %v3373 = vsel %vm489, %v3344, 0
        %v3376 = vsel %vm489, %v3345, 0
        %v3379 = vsel %vm489, %v3346, 0
        %v3382 = vsel %vm489, %v3347, 0
        %v3385 = vsel %vm489, %v3348, 0
        %v3388 = vsel %vm489, %v3349, 0
        %v3391 = vsel %vm489, %v3350, 0
        %3393 = vmatpush.bf16.msra.mxu0 0
        %3394 = vmatpush.bf16.msra.mxu0 0
        %3395 = vmatpush.bf16.msra.mxu0 0
        %3396 = vmatpush.bf16.msra.mxu0 0
        %3397 = vmatpush.bf16.msra.mxu0 0
        %3398 = vmatpush.bf16.msra.mxu0 %v3365
        %3399 = vmatpush.bf16.msra.mxu0 %v3364
        %3400 = vmatpush.bf16.msra.mxu0 %v3363
        %3401 = vmatmul.bf16.gmra.mxu0 %v3370
        %v3402 = vpop.f32.mrf.mxu0
        %v3403 = vadd.f32 0.0, %v3402
        %v3404 = vpop.f32.mrf.mxu0
        %v3405 = vadd.f32 0.0, %v3404
        %3406 = vmatmul.bf16.gmra.mxu0 %v3373
        %v3407 = vpop.f32.mrf.mxu0
        %v3408 = vadd.f32 0.0, %v3407
        %v3409 = vpop.f32.mrf.mxu0
        %v3410 = vadd.f32 0.0, %v3409
        %3411 = vmatmul.bf16.gmra.mxu0 %v3376
        %v3412 = vpop.f32.mrf.mxu0
        %v3413 = vadd.f32 0.0, %v3412
        %v3414 = vpop.f32.mrf.mxu0
        %v3415 = vadd.f32 0.0, %v3414
        %3416 = vmatmul.bf16.gmra.mxu0 %v3379
        %v3417 = vpop.f32.mrf.mxu0
        %v3418 = vadd.f32 0.0, %v3417
        %v3419 = vpop.f32.mrf.mxu0
        %v3420 = vadd.f32 0.0, %v3419
        %3421 = vmatmul.bf16.gmra.mxu0 %v3382
        %v3422 = vpop.f32.mrf.mxu0
        %v3423 = vadd.f32 0.0, %v3422
        %v3424 = vpop.f32.mrf.mxu0
        %v3425 = vadd.f32 0.0, %v3424
        %3426 = vmatmul.bf16.gmra.mxu0 %v3385
        %v3427 = vpop.f32.mrf.mxu0
        %v3428 = vadd.f32 0.0, %v3427
        %v3429 = vpop.f32.mrf.mxu0
        %v3430 = vadd.f32 0.0, %v3429
        %3431 = vmatmul.bf16.gmra.mxu0 %v3388
        %v3432 = vpop.f32.mrf.mxu0
        %v3433 = vadd.f32 0.0, %v3432
        %v3434 = vpop.f32.mrf.mxu0
        %v3435 = vadd.f32 0.0, %v3434
        %3436 = vmatmul.bf16.gmra.mxu0 %v3391
        %v3437 = vpop.f32.mrf.mxu0
        %v3438 = vadd.f32 0.0, %v3437
        %v3439 = vpop.f32.mrf.mxu0
        %v3440 = vadd.f32 0.0, %v3439
        %3441 = vdwg.mxu0
        %v3442 = vadd.f32 %v3271, %v3403
        %v3443 = vadd.f32 %v3272, %v3405
        %v3444 = vadd.f32 %v3273, %v3408
        %v3445 = vadd.f32 %v3274, %v3410
        %v3446 = vadd.f32 %v3275, %v3413
        %v3447 = vadd.f32 %v3276, %v3415
        %v3448 = vadd.f32 %v3277, %v3418
        %v3449 = vadd.f32 %v3278, %v3420
        %v3450 = vadd.f32 %v3279, %v3423
        %v3451 = vadd.f32 %v3280, %v3425
        %v3452 = vadd.f32 %v3281, %v3428
        %v3453 = vadd.f32 %v3282, %v3430
        %v3454 = vadd.f32 %v3283, %v3433
        %v3455 = vadd.f32 %v3284, %v3435
        %v3456 = vadd.f32 %v3285, %v3438
        %v3457 = vadd.f32 %v3286, %v3440
        %v3458 = vld [vmem:[%s3116] sm:$0xf]
        %v3459 = vld [vmem:[%s3116 + $0x4] sm:$0x1]
        %v3460 = vld [vmem:[%s3116 + $0x8] sm:$0xf]
        %v3461 = vld [vmem:[%s3116 + $0xc] sm:$0x1]
        %v3462 = vld [vmem:[%s3116 + $0x10] sm:$0xf]
        %v3463 = vld [vmem:[%s3116 + $0x14] sm:$0x1]
        %v3464 = vld [vmem:[%s3116 + $0x18] sm:$0xf]
        %v3465 = vld [vmem:[%s3116 + $0x1c] sm:$0x1]
        %v3466 = vld [vmem:[%s3116 + $0x20] sm:$0xf]
        %v3467 = vld [vmem:[%s3116 + $0x24] sm:$0x1]
        %v3468 = vld [vmem:[%s3116 + $0x28] sm:$0xf]
        %v3469 = vld [vmem:[%s3116 + $0x2c] sm:$0x1]
        %v3470 = vld [vmem:[%s3116 + $0x30] sm:$0xf]
        %v3471 = vld [vmem:[%s3116 + $0x34] sm:$0x1]
        %v3472 = vld [vmem:[%s3116 + $0x38] sm:$0xf]
        %v3473 = vld [vmem:[%s3116 + $0x3c] sm:$0x1]
        %v3474 = vld [vmem:[%s3116 + $0x50] sm:$0xf]
        %v3475 = vld [vmem:[%s3116 + $0x54] sm:$0x1]
        %v3476 = vld [vmem:[%s3116 + $0x58] sm:$0xf]
        %v3477 = vld [vmem:[%s3116 + $0x5c] sm:$0x1]
        %v3478 = vld [vmem:[%s3116 + $0x60] sm:$0xf]
        %v3479 = vld [vmem:[%s3116 + $0x64] sm:$0x1]
        %v3480 = vld [vmem:[%s3116 + $0x68] sm:$0xf]
        %v3481 = vld [vmem:[%s3116 + $0x6c] sm:$0x1]
        %v3482 = vld [vmem:[%s3116 + $0x70] sm:$0xf]
        %v3483 = vld [vmem:[%s3116 + $0x74] sm:$0x1]
        %v3484 = vld [vmem:[%s3116 + $0x78] sm:$0xf]
        %v3485 = vld [vmem:[%s3116 + $0x7c] sm:$0x1]
        %v3486 = vld [vmem:[%s3116 + $0x80] sm:$0xf]
        %v3487 = vld [vmem:[%s3116 + $0x84] sm:$0x1]
        %v3488 = vld [vmem:[%s3116 + $0x88] sm:$0xf]
        %v3489 = vld [vmem:[%s3116 + $0x8c] sm:$0x1]
        %v3491 = vshrl.u32 %v3458, 16
        %v3493 = vrot.slane %v3491, 4
        %v3494 = vshll.u32 %v3458, 16
        %v3496 = vrot.slane %v3494, 5
        %v3497 = vor.u32 %v3493, %v3496
        %v3498 = vrot.slane %v3497, 4
        %v3500 = vshll.u32 %v3459, 16
        %v3502 = vrot.slane %v3500, 5
        %v3503 = vsel %vm728, %v3498, %v3502
        %v3505 = vshrl.u32 %v3460, 16
        %v3507 = vrot.slane %v3505, 4
        %v3508 = vshll.u32 %v3460, 16
        %v3510 = vrot.slane %v3508, 5
        %v3511 = vor.u32 %v3507, %v3510
        %v3512 = vrot.slane %v3511, 4
        %v3514 = vshll.u32 %v3461, 16
        %v3516 = vrot.slane %v3514, 5
        %v3517 = vsel %vm728, %v3512, %v3516
        %v3519 = vshrl.u32 %v3462, 16
        %v3521 = vrot.slane %v3519, 4
        %v3522 = vshll.u32 %v3462, 16
        %v3524 = vrot.slane %v3522, 5
        %v3525 = vor.u32 %v3521, %v3524
        %v3526 = vrot.slane %v3525, 4
        %v3528 = vshll.u32 %v3463, 16
        %v3530 = vrot.slane %v3528, 5
        %v3531 = vsel %vm728, %v3526, %v3530
        %v3533 = vshrl.u32 %v3464, 16
        %v3535 = vrot.slane %v3533, 4
        %v3536 = vshll.u32 %v3464, 16
        %v3538 = vrot.slane %v3536, 5
        %v3539 = vor.u32 %v3535, %v3538
        %v3540 = vrot.slane %v3539, 4
        %v3542 = vshll.u32 %v3465, 16
        %v3544 = vrot.slane %v3542, 5
        %v3545 = vsel %vm728, %v3540, %v3544
        %v3547 = vshrl.u32 %v3466, 16
        %v3549 = vrot.slane %v3547, 4
        %v3550 = vshll.u32 %v3466, 16
        %v3552 = vrot.slane %v3550, 5
        %v3553 = vor.u32 %v3549, %v3552
        %v3554 = vrot.slane %v3553, 4
        %v3556 = vshll.u32 %v3467, 16
        %v3558 = vrot.slane %v3556, 5
        %v3559 = vsel %vm728, %v3554, %v3558
        %v3561 = vshrl.u32 %v3468, 16
        %v3563 = vrot.slane %v3561, 4
        %v3564 = vshll.u32 %v3468, 16
        %v3566 = vrot.slane %v3564, 5
        %v3567 = vor.u32 %v3563, %v3566
        %v3568 = vrot.slane %v3567, 4
        %v3570 = vshll.u32 %v3469, 16
        %v3572 = vrot.slane %v3570, 5
        %v3573 = vsel %vm728, %v3568, %v3572
        %v3575 = vshrl.u32 %v3470, 16
        %v3577 = vrot.slane %v3575, 4
        %v3578 = vshll.u32 %v3470, 16
        %v3580 = vrot.slane %v3578, 5
        %v3581 = vor.u32 %v3577, %v3580
        %v3582 = vrot.slane %v3581, 4
        %v3584 = vshll.u32 %v3471, 16
        %v3586 = vrot.slane %v3584, 5
        %v3587 = vsel %vm728, %v3582, %v3586
        %v3589 = vshrl.u32 %v3472, 16
        %v3591 = vrot.slane %v3589, 4
        %v3592 = vshll.u32 %v3472, 16
        %v3594 = vrot.slane %v3592, 5
        %v3595 = vor.u32 %v3591, %v3594
        %v3596 = vrot.slane %v3595, 4
        %v3598 = vshll.u32 %v3473, 16
        %v3600 = vrot.slane %v3598, 5
        %v3601 = vsel %vm728, %v3596, %v3600
        %v3603 = vshrl.u32 %v3474, 16
        %v3605 = vrot.slane %v3603, 4
        %v3606 = vshll.u32 %v3474, 16
        %v3608 = vrot.slane %v3606, 5
        %v3609 = vor.u32 %v3605, %v3608
        %v3610 = vrot.slane %v3609, 4
        %v3612 = vshll.u32 %v3475, 16
        %v3614 = vrot.slane %v3612, 5
        %v3615 = vsel %vm728, %v3610, %v3614
        %v3617 = vshrl.u32 %v3476, 16
        %v3619 = vrot.slane %v3617, 4
        %v3620 = vshll.u32 %v3476, 16
        %v3622 = vrot.slane %v3620, 5
        %v3623 = vor.u32 %v3619, %v3622
        %v3624 = vrot.slane %v3623, 4
        %v3626 = vshll.u32 %v3477, 16
        %v3628 = vrot.slane %v3626, 5
        %v3629 = vsel %vm728, %v3624, %v3628
        %v3631 = vshrl.u32 %v3478, 16
        %v3633 = vrot.slane %v3631, 4
        %v3634 = vshll.u32 %v3478, 16
        %v3636 = vrot.slane %v3634, 5
        %v3637 = vor.u32 %v3633, %v3636
        %v3638 = vrot.slane %v3637, 4
        %v3640 = vshll.u32 %v3479, 16
        %v3642 = vrot.slane %v3640, 5
        %v3643 = vsel %vm728, %v3638, %v3642
        %v3645 = vshrl.u32 %v3480, 16
        %v3647 = vrot.slane %v3645, 4
        %v3648 = vshll.u32 %v3480, 16
        %v3650 = vrot.slane %v3648, 5
        %v3651 = vor.u32 %v3647, %v3650
        %v3652 = vrot.slane %v3651, 4
        %v3654 = vshll.u32 %v3481, 16
        %v3656 = vrot.slane %v3654, 5
        %v3657 = vsel %vm728, %v3652, %v3656
        %v3659 = vshrl.u32 %v3482, 16
        %v3661 = vrot.slane %v3659, 4
        %v3662 = vshll.u32 %v3482, 16
        %v3664 = vrot.slane %v3662, 5
        %v3665 = vor.u32 %v3661, %v3664
        %v3666 = vrot.slane %v3665, 4
        %v3668 = vshll.u32 %v3483, 16
        %v3670 = vrot.slane %v3668, 5
        %v3671 = vsel %vm728, %v3666, %v3670
        %v3673 = vshrl.u32 %v3484, 16
        %v3675 = vrot.slane %v3673, 4
        %v3676 = vshll.u32 %v3484, 16
        %v3678 = vrot.slane %v3676, 5
        %v3679 = vor.u32 %v3675, %v3678
        %v3680 = vrot.slane %v3679, 4
        %v3682 = vshll.u32 %v3485, 16
        %v3684 = vrot.slane %v3682, 5
        %v3685 = vsel %vm728, %v3680, %v3684
        %v3687 = vshrl.u32 %v3486, 16
        %v3689 = vrot.slane %v3687, 4
        %v3690 = vshll.u32 %v3486, 16
        %v3692 = vrot.slane %v3690, 5
        %v3693 = vor.u32 %v3689, %v3692
        %v3694 = vrot.slane %v3693, 4
        %v3696 = vshll.u32 %v3487, 16
        %v3698 = vrot.slane %v3696, 5
        %v3699 = vsel %vm728, %v3694, %v3698
        %v3701 = vshrl.u32 %v3488, 16
        %v3703 = vrot.slane %v3701, 4
        %v3704 = vshll.u32 %v3488, 16
        %v3706 = vrot.slane %v3704, 5
        %v3707 = vor.u32 %v3703, %v3706
        %v3708 = vrot.slane %v3707, 4
        %v3710 = vshll.u32 %v3489, 16
        %v3712 = vrot.slane %v3710, 5
        %v3713 = vsel %vm728, %v3708, %v3712
        %s3714 = scalar_lea.vmem %s4, 288
        %v3715 = vld [vmem:[%s3714] sm:$0xf]
        %v3716 = vld [vmem:[%s3714 + $0x4] sm:$0xf]
        %v3717 = vld [vmem:[%s3714 + $0x8] sm:$0xf]
        %v3718 = vld [vmem:[%s3714 + $0xc] sm:$0xf]
        %v3719 = vld [vmem:[%s3714 + $0x10] sm:$0xf]
        %v3720 = vld [vmem:[%s3714 + $0x14] sm:$0xf]
        %v3721 = vunpack.c.l.b16 %v3503
        %v3722 = vunpack.c.l.b16 %v3517
        %v3723 = vunpack.c.l.b16 %v3531
        %v3724 = vunpack.c.l.b16 %v3545
        %v3725 = vunpack.c.l.b16 %v3559
        %v3726 = vunpack.c.l.b16 %v3573
        %v3727 = vunpack.c.l.b16 %v3587
        %v3728 = vunpack.c.l.b16 %v3601
        %v3729 = vunpack.c.l.b16 %v3615
        %v3730 = vunpack.c.l.b16 %v3629
        %v3731 = vunpack.c.l.b16 %v3643
        %v3732 = vunpack.c.l.b16 %v3657
        %v3733 = vunpack.c.l.b16 %v3671
        %v3734 = vunpack.c.l.b16 %v3685
        %v3735 = vunpack.c.l.b16 %v3699
        %v3736 = vunpack.c.l.b16 %v3713
        %v3737 = vpack.c.b16 %v3722, %v3721
        %v3738 = vpack.c.b16 %v3724, %v3723
        %v3739 = vpack.c.b16 %v3726, %v3725
        %v3740 = vpack.c.b16 %v3728, %v3727
        %v3741 = vpack.c.b16 %v3730, %v3729
        %v3742 = vpack.c.b16 %v3732, %v3731
        %v3743 = vpack.c.b16 %v3734, %v3733
        %v3744 = vpack.c.b16 %v3736, %v3735
        %v3751 = vunpack.c.l.b16 %v3715
        %v3752 = vunpack.c.l.b16 %v3716
        %v3753 = vunpack.c.l.b16 %v3717
        %v3754 = vunpack.c.l.b16 %v3718
        %v3755 = vunpack.c.l.b16 %v3719
        %v3756 = vunpack.c.l.b16 %v3720
        %v3757 = vpack.c.b16 %v3752, %v3751
        %v3758 = vpack.c.b16 %v3754, %v3753
        %v3759 = vpack.c.b16 %v3756, %v3755
        %v3764 = vsel %vm489, %v3737, 0
        %v3767 = vsel %vm489, %v3738, 0
        %v3770 = vsel %vm489, %v3739, 0
        %v3773 = vsel %vm489, %v3740, 0
        %v3776 = vsel %vm489, %v3741, 0
        %v3779 = vsel %vm489, %v3742, 0
        %v3782 = vsel %vm489, %v3743, 0
        %v3785 = vsel %vm489, %v3744, 0
        %3787 = vmatpush.bf16.msra.mxu0 0
        %3788 = vmatpush.bf16.msra.mxu0 0
        %3789 = vmatpush.bf16.msra.mxu0 0
        %3790 = vmatpush.bf16.msra.mxu0 0
        %3791 = vmatpush.bf16.msra.mxu0 0
        %3792 = vmatpush.bf16.msra.mxu0 %v3759
        %3793 = vmatpush.bf16.msra.mxu0 %v3758
        %3794 = vmatpush.bf16.msra.mxu0 %v3757
        %3795 = vmatmul.bf16.gmra.mxu0 %v3764
        %v3796 = vpop.f32.mrf.mxu0
        %v3797 = vadd.f32 0.0, %v3796
        %v3798 = vpop.f32.mrf.mxu0
        %v3799 = vadd.f32 0.0, %v3798
        %3800 = vmatmul.bf16.gmra.mxu0 %v3767
        %v3801 = vpop.f32.mrf.mxu0
        %v3802 = vadd.f32 0.0, %v3801
        %v3803 = vpop.f32.mrf.mxu0
        %v3804 = vadd.f32 0.0, %v3803
        %3805 = vmatmul.bf16.gmra.mxu0 %v3770
        %v3806 = vpop.f32.mrf.mxu0
        %v3807 = vadd.f32 0.0, %v3806
        %v3808 = vpop.f32.mrf.mxu0
        %v3809 = vadd.f32 0.0, %v3808
        %3810 = vmatmul.bf16.gmra.mxu0 %v3773
        %v3811 = vpop.f32.mrf.mxu0
        %v3812 = vadd.f32 0.0, %v3811
        %v3813 = vpop.f32.mrf.mxu0
        %v3814 = vadd.f32 0.0, %v3813
        %3815 = vmatmul.bf16.gmra.mxu0 %v3776
        %v3816 = vpop.f32.mrf.mxu0
        %v3817 = vadd.f32 0.0, %v3816
        %v3818 = vpop.f32.mrf.mxu0
        %v3819 = vadd.f32 0.0, %v3818
        %3820 = vmatmul.bf16.gmra.mxu0 %v3779
        %v3821 = vpop.f32.mrf.mxu0
        %v3822 = vadd.f32 0.0, %v3821
        %v3823 = vpop.f32.mrf.mxu0
        %v3824 = vadd.f32 0.0, %v3823
        %3825 = vmatmul.bf16.gmra.mxu0 %v3782
        %v3826 = vpop.f32.mrf.mxu0
        %v3827 = vadd.f32 0.0, %v3826
        %v3828 = vpop.f32.mrf.mxu0
        %v3829 = vadd.f32 0.0, %v3828
        %3830 = vmatmul.bf16.gmra.mxu0 %v3785
        %v3831 = vpop.f32.mrf.mxu0
        %v3832 = vadd.f32 0.0, %v3831
        %v3833 = vpop.f32.mrf.mxu0
        %v3834 = vadd.f32 0.0, %v3833
        %3835 = vdwg.mxu0
        %v3836 = vadd.f32 %v3442, %v3797
        %v3837 = vadd.f32 %v3443, %v3799
        %v3838 = vadd.f32 %v3444, %v3802
        %v3839 = vadd.f32 %v3445, %v3804
        %v3840 = vadd.f32 %v3446, %v3807
        %v3841 = vadd.f32 %v3447, %v3809
        %v3842 = vadd.f32 %v3448, %v3812
        %v3843 = vadd.f32 %v3449, %v3814
        %v3844 = vadd.f32 %v3450, %v3817
        %v3845 = vadd.f32 %v3451, %v3819
        %v3846 = vadd.f32 %v3452, %v3822
        %v3847 = vadd.f32 %v3453, %v3824
        %v3848 = vadd.f32 %v3454, %v3827
        %v3849 = vadd.f32 %v3455, %v3829
        %v3850 = vadd.f32 %v3456, %v3832
        %v3851 = vadd.f32 %v3457, %v3834
        %v3852 = vld [vmem:[%s3287] sm:$0xf]
        %v3853 = vld [vmem:[%s3287 + $0x4] sm:$0x1]
        %v3854 = vld [vmem:[%s3287 + $0x8] sm:$0xf]
        %v3855 = vld [vmem:[%s3287 + $0xc] sm:$0x1]
        %v3856 = vld [vmem:[%s3287 + $0x10] sm:$0xf]
        %v3857 = vld [vmem:[%s3287 + $0x14] sm:$0x1]
        %v3858 = vld [vmem:[%s3287 + $0x18] sm:$0xf]
        %v3859 = vld [vmem:[%s3287 + $0x1c] sm:$0x1]
        %v3860 = vld [vmem:[%s3287 + $0x20] sm:$0xf]
        %v3861 = vld [vmem:[%s3287 + $0x24] sm:$0x1]
        %v3862 = vld [vmem:[%s3287 + $0x28] sm:$0xf]
        %v3863 = vld [vmem:[%s3287 + $0x2c] sm:$0x1]
        %v3864 = vld [vmem:[%s3287 + $0x30] sm:$0xf]
        %v3865 = vld [vmem:[%s3287 + $0x34] sm:$0x1]
        %v3866 = vld [vmem:[%s3287 + $0x38] sm:$0xf]
        %v3867 = vld [vmem:[%s3287 + $0x3c] sm:$0x1]
        %v3868 = vld [vmem:[%s3287 + $0x50] sm:$0xf]
        %v3869 = vld [vmem:[%s3287 + $0x54] sm:$0x1]
        %v3870 = vld [vmem:[%s3287 + $0x58] sm:$0xf]
        %v3871 = vld [vmem:[%s3287 + $0x5c] sm:$0x1]
        %v3872 = vld [vmem:[%s3287 + $0x60] sm:$0xf]
        %v3873 = vld [vmem:[%s3287 + $0x64] sm:$0x1]
        %v3874 = vld [vmem:[%s3287 + $0x68] sm:$0xf]
        %v3875 = vld [vmem:[%s3287 + $0x6c] sm:$0x1]
        %v3876 = vld [vmem:[%s3287 + $0x70] sm:$0xf]
        %v3877 = vld [vmem:[%s3287 + $0x74] sm:$0x1]
        %v3878 = vld [vmem:[%s3287 + $0x78] sm:$0xf]
        %v3879 = vld [vmem:[%s3287 + $0x7c] sm:$0x1]
        %v3880 = vld [vmem:[%s3287 + $0x80] sm:$0xf]
        %v3881 = vld [vmem:[%s3287 + $0x84] sm:$0x1]
        %v3882 = vld [vmem:[%s3287 + $0x88] sm:$0xf]
        %v3883 = vld [vmem:[%s3287 + $0x8c] sm:$0x1]
        %v3885 = vshrl.u32 %v3852, 16
        %v3887 = vrot.slane %v3885, 4
        %v3888 = vshll.u32 %v3852, 16
        %v3890 = vrot.slane %v3888, 5
        %v3891 = vor.u32 %v3887, %v3890
        %v3892 = vrot.slane %v3891, 4
        %v3894 = vshll.u32 %v3853, 16
        %v3896 = vrot.slane %v3894, 5
        %v3897 = vsel %vm728, %v3892, %v3896
        %v3899 = vshrl.u32 %v3854, 16
        %v3901 = vrot.slane %v3899, 4
        %v3902 = vshll.u32 %v3854, 16
        %v3904 = vrot.slane %v3902, 5
        %v3905 = vor.u32 %v3901, %v3904
        %v3906 = vrot.slane %v3905, 4
        %v3908 = vshll.u32 %v3855, 16
        %v3910 = vrot.slane %v3908, 5
        %v3911 = vsel %vm728, %v3906, %v3910
        %v3913 = vshrl.u32 %v3856, 16
        %v3915 = vrot.slane %v3913, 4
        %v3916 = vshll.u32 %v3856, 16
        %v3918 = vrot.slane %v3916, 5
        %v3919 = vor.u32 %v3915, %v3918
        %v3920 = vrot.slane %v3919, 4
        %v3922 = vshll.u32 %v3857, 16
        %v3924 = vrot.slane %v3922, 5
        %v3925 = vsel %vm728, %v3920, %v3924
        %v3927 = vshrl.u32 %v3858, 16
        %v3929 = vrot.slane %v3927, 4
        %v3930 = vshll.u32 %v3858, 16
        %v3932 = vrot.slane %v3930, 5
        %v3933 = vor.u32 %v3929, %v3932
        %v3934 = vrot.slane %v3933, 4
        %v3936 = vshll.u32 %v3859, 16
        %v3938 = vrot.slane %v3936, 5
        %v3939 = vsel %vm728, %v3934, %v3938
        %v3941 = vshrl.u32 %v3860, 16
        %v3943 = vrot.slane %v3941, 4
        %v3944 = vshll.u32 %v3860, 16
        %v3946 = vrot.slane %v3944, 5
        %v3947 = vor.u32 %v3943, %v3946
        %v3948 = vrot.slane %v3947, 4
        %v3950 = vshll.u32 %v3861, 16
        %v3952 = vrot.slane %v3950, 5
        %v3953 = vsel %vm728, %v3948, %v3952
        %v3955 = vshrl.u32 %v3862, 16
        %v3957 = vrot.slane %v3955, 4
        %v3958 = vshll.u32 %v3862, 16
        %v3960 = vrot.slane %v3958, 5
        %v3961 = vor.u32 %v3957, %v3960
        %v3962 = vrot.slane %v3961, 4
        %v3964 = vshll.u32 %v3863, 16
        %v3966 = vrot.slane %v3964, 5
        %v3967 = vsel %vm728, %v3962, %v3966
        %v3969 = vshrl.u32 %v3864, 16
        %v3971 = vrot.slane %v3969, 4
        %v3972 = vshll.u32 %v3864, 16
        %v3974 = vrot.slane %v3972, 5
        %v3975 = vor.u32 %v3971, %v3974
        %v3976 = vrot.slane %v3975, 4
        %v3978 = vshll.u32 %v3865, 16
        %v3980 = vrot.slane %v3978, 5
        %v3981 = vsel %vm728, %v3976, %v3980
        %v3983 = vshrl.u32 %v3866, 16
        %v3985 = vrot.slane %v3983, 4
        %v3986 = vshll.u32 %v3866, 16
        %v3988 = vrot.slane %v3986, 5
        %v3989 = vor.u32 %v3985, %v3988
        %v3990 = vrot.slane %v3989, 4
        %v3992 = vshll.u32 %v3867, 16
        %v3994 = vrot.slane %v3992, 5
        %v3995 = vsel %vm728, %v3990, %v3994
        %v3997 = vshrl.u32 %v3868, 16
        %v3999 = vrot.slane %v3997, 4
        %v4000 = vshll.u32 %v3868, 16
        %v4002 = vrot.slane %v4000, 5
        %v4003 = vor.u32 %v3999, %v4002
        %v4004 = vrot.slane %v4003, 4
        %v4006 = vshll.u32 %v3869, 16
        %v4008 = vrot.slane %v4006, 5
        %v4009 = vsel %vm728, %v4004, %v4008
        %v4011 = vshrl.u32 %v3870, 16
        %v4013 = vrot.slane %v4011, 4
        %v4014 = vshll.u32 %v3870, 16
        %v4016 = vrot.slane %v4014, 5
        %v4017 = vor.u32 %v4013, %v4016
        %v4018 = vrot.slane %v4017, 4
        %v4020 = vshll.u32 %v3871, 16
        %v4022 = vrot.slane %v4020, 5
        %v4023 = vsel %vm728, %v4018, %v4022
        %v4025 = vshrl.u32 %v3872, 16
        %v4027 = vrot.slane %v4025, 4
        %v4028 = vshll.u32 %v3872, 16
        %v4030 = vrot.slane %v4028, 5
        %v4031 = vor.u32 %v4027, %v4030
        %v4032 = vrot.slane %v4031, 4
        %v4034 = vshll.u32 %v3873, 16
        %v4036 = vrot.slane %v4034, 5
        %v4037 = vsel %vm728, %v4032, %v4036
        %v4039 = vshrl.u32 %v3874, 16
        %v4041 = vrot.slane %v4039, 4
        %v4042 = vshll.u32 %v3874, 16
        %v4044 = vrot.slane %v4042, 5
        %v4045 = vor.u32 %v4041, %v4044
        %v4046 = vrot.slane %v4045, 4
        %v4048 = vshll.u32 %v3875, 16
        %v4050 = vrot.slane %v4048, 5
        %v4051 = vsel %vm728, %v4046, %v4050
        %v4053 = vshrl.u32 %v3876, 16
        %v4055 = vrot.slane %v4053, 4
        %v4056 = vshll.u32 %v3876, 16
        %v4058 = vrot.slane %v4056, 5
        %v4059 = vor.u32 %v4055, %v4058
        %v4060 = vrot.slane %v4059, 4
        %v4062 = vshll.u32 %v3877, 16
        %v4064 = vrot.slane %v4062, 5
        %v4065 = vsel %vm728, %v4060, %v4064
        %v4067 = vshrl.u32 %v3878, 16
        %v4069 = vrot.slane %v4067, 4
        %v4070 = vshll.u32 %v3878, 16
        %v4072 = vrot.slane %v4070, 5
        %v4073 = vor.u32 %v4069, %v4072
        %v4074 = vrot.slane %v4073, 4
        %v4076 = vshll.u32 %v3879, 16
        %v4078 = vrot.slane %v4076, 5
        %v4079 = vsel %vm728, %v4074, %v4078
        %v4081 = vshrl.u32 %v3880, 16
        %v4083 = vrot.slane %v4081, 4
        %v4084 = vshll.u32 %v3880, 16
        %v4086 = vrot.slane %v4084, 5
        %v4087 = vor.u32 %v4083, %v4086
        %v4088 = vrot.slane %v4087, 4
        %v4090 = vshll.u32 %v3881, 16
        %v4092 = vrot.slane %v4090, 5
        %v4093 = vsel %vm728, %v4088, %v4092
        %v4095 = vshrl.u32 %v3882, 16
        %v4097 = vrot.slane %v4095, 4
        %v4098 = vshll.u32 %v3882, 16
        %v4100 = vrot.slane %v4098, 5
        %v4101 = vor.u32 %v4097, %v4100
        %v4102 = vrot.slane %v4101, 4
        %v4104 = vshll.u32 %v3883, 16
        %v4106 = vrot.slane %v4104, 5
        %v4107 = vsel %vm728, %v4102, %v4106
        %s4108 = scalar_lea.vmem %s4, 312
        %v4109 = vld [vmem:[%s4108] sm:$0xf]
        %v4110 = vld [vmem:[%s4108 + $0x4] sm:$0xf]
        %v4111 = vld [vmem:[%s4108 + $0x8] sm:$0xf]
        %v4112 = vld [vmem:[%s4108 + $0xc] sm:$0xf]
        %v4113 = vld [vmem:[%s4108 + $0x10] sm:$0xf]
        %v4114 = vld [vmem:[%s4108 + $0x14] sm:$0xf]
        %v4115 = vunpack.c.l.b16 %v3897
        %v4116 = vunpack.c.l.b16 %v3911
        %v4117 = vunpack.c.l.b16 %v3925
        %v4118 = vunpack.c.l.b16 %v3939
        %v4119 = vunpack.c.l.b16 %v3953
        %v4120 = vunpack.c.l.b16 %v3967
        %v4121 = vunpack.c.l.b16 %v3981
        %v4122 = vunpack.c.l.b16 %v3995
        %v4123 = vunpack.c.l.b16 %v4009
        %v4124 = vunpack.c.l.b16 %v4023
        %v4125 = vunpack.c.l.b16 %v4037
        %v4126 = vunpack.c.l.b16 %v4051
        %v4127 = vunpack.c.l.b16 %v4065
        %v4128 = vunpack.c.l.b16 %v4079
        %v4129 = vunpack.c.l.b16 %v4093
        %v4130 = vunpack.c.l.b16 %v4107
        %v4131 = vpack.c.b16 %v4116, %v4115
        %v4132 = vpack.c.b16 %v4118, %v4117
        %v4133 = vpack.c.b16 %v4120, %v4119
        %v4134 = vpack.c.b16 %v4122, %v4121
        %v4135 = vpack.c.b16 %v4124, %v4123
        %v4136 = vpack.c.b16 %v4126, %v4125
        %v4137 = vpack.c.b16 %v4128, %v4127
        %v4138 = vpack.c.b16 %v4130, %v4129
        %v4145 = vunpack.c.l.b16 %v4109
        %v4146 = vunpack.c.l.b16 %v4110
        %v4147 = vunpack.c.l.b16 %v4111
        %v4148 = vunpack.c.l.b16 %v4112
        %v4149 = vunpack.c.l.b16 %v4113
        %v4150 = vunpack.c.l.b16 %v4114
        %v4151 = vpack.c.b16 %v4146, %v4145
        %v4152 = vpack.c.b16 %v4148, %v4147
        %v4153 = vpack.c.b16 %v4150, %v4149
        %v4158 = vsel %vm489, %v4131, 0
        %v4161 = vsel %vm489, %v4132, 0
        %v4164 = vsel %vm489, %v4133, 0
        %v4167 = vsel %vm489, %v4134, 0
        %v4170 = vsel %vm489, %v4135, 0
        %v4173 = vsel %vm489, %v4136, 0
        %v4176 = vsel %vm489, %v4137, 0
        %v4179 = vsel %vm489, %v4138, 0
        %4181 = vmatpush.bf16.msra.mxu0 0
        %4182 = vmatpush.bf16.msra.mxu0 0
        %4183 = vmatpush.bf16.msra.mxu0 0
        %4184 = vmatpush.bf16.msra.mxu0 0
        %4185 = vmatpush.bf16.msra.mxu0 0
        %4186 = vmatpush.bf16.msra.mxu0 %v4153
        %4187 = vmatpush.bf16.msra.mxu0 %v4152
        %4188 = vmatpush.bf16.msra.mxu0 %v4151
        %4189 = vmatmul.bf16.gmra.mxu0 %v4158
        %v4190 = vpop.f32.mrf.mxu0
        %v4191 = vadd.f32 0.0, %v4190
        %v4192 = vpop.f32.mrf.mxu0
        %v4193 = vadd.f32 0.0, %v4192
        %4194 = vmatmul.bf16.gmra.mxu0 %v4161
        %v4195 = vpop.f32.mrf.mxu0
        %v4196 = vadd.f32 0.0, %v4195
        %v4197 = vpop.f32.mrf.mxu0
        %v4198 = vadd.f32 0.0, %v4197
        %4199 = vmatmul.bf16.gmra.mxu0 %v4164
        %v4200 = vpop.f32.mrf.mxu0
        %v4201 = vadd.f32 0.0, %v4200
        %v4202 = vpop.f32.mrf.mxu0
        %v4203 = vadd.f32 0.0, %v4202
        %4204 = vmatmul.bf16.gmra.mxu0 %v4167
        %v4205 = vpop.f32.mrf.mxu0
        %v4206 = vadd.f32 0.0, %v4205
        %v4207 = vpop.f32.mrf.mxu0
        %v4208 = vadd.f32 0.0, %v4207
        %4209 = vmatmul.bf16.gmra.mxu0 %v4170
        %v4210 = vpop.f32.mrf.mxu0
        %v4211 = vadd.f32 0.0, %v4210
        %v4212 = vpop.f32.mrf.mxu0
        %v4213 = vadd.f32 0.0, %v4212
        %4214 = vmatmul.bf16.gmra.mxu0 %v4173
        %v4215 = vpop.f32.mrf.mxu0
        %v4216 = vadd.f32 0.0, %v4215
        %v4217 = vpop.f32.mrf.mxu0
        %v4218 = vadd.f32 0.0, %v4217
        %4219 = vmatmul.bf16.gmra.mxu0 %v4176
        %v4220 = vpop.f32.mrf.mxu0
        %v4221 = vadd.f32 0.0, %v4220
        %v4222 = vpop.f32.mrf.mxu0
        %v4223 = vadd.f32 0.0, %v4222
        %4224 = vmatmul.bf16.gmra.mxu0 %v4179
        %v4225 = vpop.f32.mrf.mxu0
        %v4226 = vadd.f32 0.0, %v4225
        %v4227 = vpop.f32.mrf.mxu0
        %v4228 = vadd.f32 0.0, %v4227
        %4229 = vdwg.mxu0
        %v4230 = vadd.f32 %v3836, %v4191
        %v4231 = vadd.f32 %v3837, %v4193
        %v4232 = vadd.f32 %v3838, %v4196
        %v4233 = vadd.f32 %v3839, %v4198
        %v4234 = vadd.f32 %v3840, %v4201
        %v4235 = vadd.f32 %v3841, %v4203
        %v4236 = vadd.f32 %v3842, %v4206
        %v4237 = vadd.f32 %v3843, %v4208
        %v4238 = vadd.f32 %v3844, %v4211
        %v4239 = vadd.f32 %v3845, %v4213
        %v4240 = vadd.f32 %v3846, %v4216
        %v4241 = vadd.f32 %v3847, %v4218
        %v4242 = vadd.f32 %v3848, %v4221
        %v4243 = vadd.f32 %v3849, %v4223
        %v4244 = vadd.f32 %v3850, %v4226
        %v4245 = vadd.f32 %v3851, %v4228
        %v4246 = vld [vmem:[%s3116] sm:$0xe]
        %v4247 = vld [vmem:[%s3116 + $0x8] sm:$0xe]
        %v4248 = vld [vmem:[%s3116 + $0x10] sm:$0xe]
        %v4249 = vld [vmem:[%s3116 + $0x18] sm:$0xe]
        %v4250 = vld [vmem:[%s3116 + $0x20] sm:$0xe]
        %v4251 = vld [vmem:[%s3116 + $0x28] sm:$0xe]
        %v4252 = vld [vmem:[%s3116 + $0x30] sm:$0xe]
        %v4253 = vld [vmem:[%s3116 + $0x38] sm:$0xe]
        %v4254 = vld [vmem:[%s3116 + $0x50] sm:$0xe]
        %v4255 = vld [vmem:[%s3116 + $0x58] sm:$0xe]
        %v4256 = vld [vmem:[%s3116 + $0x60] sm:$0xe]
        %v4257 = vld [vmem:[%s3116 + $0x68] sm:$0xe]
        %v4258 = vld [vmem:[%s3116 + $0x70] sm:$0xe]
        %v4259 = vld [vmem:[%s3116 + $0x78] sm:$0xe]
        %v4260 = vld [vmem:[%s3116 + $0x80] sm:$0xe]
        %v4261 = vld [vmem:[%s3116 + $0x88] sm:$0xe]
        %v4294 = vrot.slane %v4246, 5
        %v4295 = vrot.slane %v4294, 4
        %v4296 = vrot.slane %v3459, 5
        %v4297 = vsel %vm1535, %v4295, %v4296
        %v4298 = vrot.slane %v4247, 5
        %v4299 = vrot.slane %v4298, 4
        %v4300 = vrot.slane %v3461, 5
        %v4301 = vsel %vm1535, %v4299, %v4300
        %v4302 = vrot.slane %v4248, 5
        %v4303 = vrot.slane %v4302, 4
        %v4304 = vrot.slane %v3463, 5
        %v4305 = vsel %vm1535, %v4303, %v4304
        %v4306 = vrot.slane %v4249, 5
        %v4307 = vrot.slane %v4306, 4
        %v4308 = vrot.slane %v3465, 5
        %v4309 = vsel %vm1535, %v4307, %v4308
        %v4310 = vrot.slane %v4250, 5
        %v4311 = vrot.slane %v4310, 4
        %v4312 = vrot.slane %v3467, 5
        %v4313 = vsel %vm1535, %v4311, %v4312
        %v4314 = vrot.slane %v4251, 5
        %v4315 = vrot.slane %v4314, 4
        %v4316 = vrot.slane %v3469, 5
        %v4317 = vsel %vm1535, %v4315, %v4316
        %v4318 = vrot.slane %v4252, 5
        %v4319 = vrot.slane %v4318, 4
        %v4320 = vrot.slane %v3471, 5
        %v4321 = vsel %vm1535, %v4319, %v4320
        %v4322 = vrot.slane %v4253, 5
        %v4323 = vrot.slane %v4322, 4
        %v4324 = vrot.slane %v3473, 5
        %v4325 = vsel %vm1535, %v4323, %v4324
        %v4326 = vrot.slane %v4254, 5
        %v4327 = vrot.slane %v4326, 4
        %v4328 = vrot.slane %v3475, 5
        %v4329 = vsel %vm1535, %v4327, %v4328
        %v4330 = vrot.slane %v4255, 5
        %v4331 = vrot.slane %v4330, 4
        %v4332 = vrot.slane %v3477, 5
        %v4333 = vsel %vm1535, %v4331, %v4332
        %v4334 = vrot.slane %v4256, 5
        %v4335 = vrot.slane %v4334, 4
        %v4336 = vrot.slane %v3479, 5
        %v4337 = vsel %vm1535, %v4335, %v4336
        %v4338 = vrot.slane %v4257, 5
        %v4339 = vrot.slane %v4338, 4
        %v4340 = vrot.slane %v3481, 5
        %v4341 = vsel %vm1535, %v4339, %v4340
        %v4342 = vrot.slane %v4258, 5
        %v4343 = vrot.slane %v4342, 4
        %v4344 = vrot.slane %v3483, 5
        %v4345 = vsel %vm1535, %v4343, %v4344
        %v4346 = vrot.slane %v4259, 5
        %v4347 = vrot.slane %v4346, 4
        %v4348 = vrot.slane %v3485, 5
        %v4349 = vsel %vm1535, %v4347, %v4348
        %v4350 = vrot.slane %v4260, 5
        %v4351 = vrot.slane %v4350, 4
        %v4352 = vrot.slane %v3487, 5
        %v4353 = vsel %vm1535, %v4351, %v4352
        %v4354 = vrot.slane %v4261, 5
        %v4355 = vrot.slane %v4354, 4
        %v4356 = vrot.slane %v3489, 5
        %v4357 = vsel %vm1535, %v4355, %v4356
        %s4358 = scalar_lea.vmem %s4, 336
        %v4359 = vld [vmem:[%s4358] sm:$0xf]
        %v4360 = vld [vmem:[%s4358 + $0x4] sm:$0xf]
        %v4361 = vld [vmem:[%s4358 + $0x8] sm:$0xf]
        %v4362 = vld [vmem:[%s4358 + $0xc] sm:$0xf]
        %v4363 = vld [vmem:[%s4358 + $0x10] sm:$0xf]
        %v4364 = vld [vmem:[%s4358 + $0x14] sm:$0xf]
        %v4365 = vunpack.c.l.b16 %v4297
        %v4366 = vunpack.c.l.b16 %v4301
        %v4367 = vunpack.c.l.b16 %v4305
        %v4368 = vunpack.c.l.b16 %v4309
        %v4369 = vunpack.c.l.b16 %v4313
        %v4370 = vunpack.c.l.b16 %v4317
        %v4371 = vunpack.c.l.b16 %v4321
        %v4372 = vunpack.c.l.b16 %v4325
        %v4373 = vunpack.c.l.b16 %v4329
        %v4374 = vunpack.c.l.b16 %v4333
        %v4375 = vunpack.c.l.b16 %v4337
        %v4376 = vunpack.c.l.b16 %v4341
        %v4377 = vunpack.c.l.b16 %v4345
        %v4378 = vunpack.c.l.b16 %v4349
        %v4379 = vunpack.c.l.b16 %v4353
        %v4380 = vunpack.c.l.b16 %v4357
        %v4381 = vpack.c.b16 %v4366, %v4365
        %v4382 = vpack.c.b16 %v4368, %v4367
        %v4383 = vpack.c.b16 %v4370, %v4369
        %v4384 = vpack.c.b16 %v4372, %v4371
        %v4385 = vpack.c.b16 %v4374, %v4373
        %v4386 = vpack.c.b16 %v4376, %v4375
        %v4387 = vpack.c.b16 %v4378, %v4377
        %v4388 = vpack.c.b16 %v4380, %v4379
        %v4395 = vunpack.c.l.b16 %v4359
        %v4396 = vunpack.c.l.b16 %v4360
        %v4397 = vunpack.c.l.b16 %v4361
        %v4398 = vunpack.c.l.b16 %v4362
        %v4399 = vunpack.c.l.b16 %v4363
        %v4400 = vunpack.c.l.b16 %v4364
        %v4401 = vpack.c.b16 %v4396, %v4395
        %v4402 = vpack.c.b16 %v4398, %v4397
        %v4403 = vpack.c.b16 %v4400, %v4399
        %v4408 = vsel %vm489, %v4381, 0
        %v4411 = vsel %vm489, %v4382, 0
        %v4414 = vsel %vm489, %v4383, 0
        %v4417 = vsel %vm489, %v4384, 0
        %v4420 = vsel %vm489, %v4385, 0
        %v4423 = vsel %vm489, %v4386, 0
        %v4426 = vsel %vm489, %v4387, 0
        %v4429 = vsel %vm489, %v4388, 0
        %4431 = vmatpush.bf16.msra.mxu0 0
        %4432 = vmatpush.bf16.msra.mxu0 0
        %4433 = vmatpush.bf16.msra.mxu0 0
        %4434 = vmatpush.bf16.msra.mxu0 0
        %4435 = vmatpush.bf16.msra.mxu0 0
        %4436 = vmatpush.bf16.msra.mxu0 %v4403
        %4437 = vmatpush.bf16.msra.mxu0 %v4402
        %4438 = vmatpush.bf16.msra.mxu0 %v4401
        %4439 = vmatmul.bf16.gmra.mxu0 %v4408
        %v4440 = vpop.f32.mrf.mxu0
        %v4441 = vadd.f32 0.0, %v4440
        %v4442 = vpop.f32.mrf.mxu0
        %v4443 = vadd.f32 0.0, %v4442
        %4444 = vmatmul.bf16.gmra.mxu0 %v4411
        %v4445 = vpop.f32.mrf.mxu0
        %v4446 = vadd.f32 0.0, %v4445
        %v4447 = vpop.f32.mrf.mxu0
        %v4448 = vadd.f32 0.0, %v4447
        %4449 = vmatmul.bf16.gmra.mxu0 %v4414
        %v4450 = vpop.f32.mrf.mxu0
        %v4451 = vadd.f32 0.0, %v4450
        %v4452 = vpop.f32.mrf.mxu0
        %v4453 = vadd.f32 0.0, %v4452
        %4454 = vmatmul.bf16.gmra.mxu0 %v4417
        %v4455 = vpop.f32.mrf.mxu0
        %v4456 = vadd.f32 0.0, %v4455
        %v4457 = vpop.f32.mrf.mxu0
        %v4458 = vadd.f32 0.0, %v4457
        %4459 = vmatmul.bf16.gmra.mxu0 %v4420
        %v4460 = vpop.f32.mrf.mxu0
        %v4461 = vadd.f32 0.0, %v4460
        %v4462 = vpop.f32.mrf.mxu0
        %v4463 = vadd.f32 0.0, %v4462
        %4464 = vmatmul.bf16.gmra.mxu0 %v4423
        %v4465 = vpop.f32.mrf.mxu0
        %v4466 = vadd.f32 0.0, %v4465
        %v4467 = vpop.f32.mrf.mxu0
        %v4468 = vadd.f32 0.0, %v4467
        %4469 = vmatmul.bf16.gmra.mxu0 %v4426
        %v4470 = vpop.f32.mrf.mxu0
        %v4471 = vadd.f32 0.0, %v4470
        %v4472 = vpop.f32.mrf.mxu0
        %v4473 = vadd.f32 0.0, %v4472
        %4474 = vmatmul.bf16.gmra.mxu0 %v4429
        %v4475 = vpop.f32.mrf.mxu0
        %v4476 = vadd.f32 0.0, %v4475
        %v4477 = vpop.f32.mrf.mxu0
        %v4478 = vadd.f32 0.0, %v4477
        %4479 = vdwg.mxu0
        %v4480 = vadd.f32 %v4230, %v4441
        %v4481 = vadd.f32 %v4231, %v4443
        %v4482 = vadd.f32 %v4232, %v4446
        %v4483 = vadd.f32 %v4233, %v4448
        %v4484 = vadd.f32 %v4234, %v4451
        %v4485 = vadd.f32 %v4235, %v4453
        %v4486 = vadd.f32 %v4236, %v4456
        %v4487 = vadd.f32 %v4237, %v4458
        %v4488 = vadd.f32 %v4238, %v4461
        %v4489 = vadd.f32 %v4239, %v4463
        %v4490 = vadd.f32 %v4240, %v4466
        %v4491 = vadd.f32 %v4241, %v4468
        %v4492 = vadd.f32 %v4242, %v4471
        %v4493 = vadd.f32 %v4243, %v4473
        %v4494 = vadd.f32 %v4244, %v4476
        %v4495 = vadd.f32 %v4245, %v4478
        %s4496 = scalar_lea.vmem %s375, 8
        %v4497 = vld [vmem:[%s4496] sm:$0xf]
        %v4498 = vld [vmem:[%s4496 + $0x8] sm:$0xf]
        %v4499 = vld [vmem:[%s4496 + $0x10] sm:$0xf]
        %v4500 = vld [vmem:[%s4496 + $0x18] sm:$0xf]
        %v4501 = vld [vmem:[%s4496 + $0x20] sm:$0xf]
        %v4502 = vld [vmem:[%s4496 + $0x28] sm:$0xf]
        %v4503 = vld [vmem:[%s4496 + $0x30] sm:$0xf]
        %v4504 = vld [vmem:[%s4496 + $0x38] sm:$0xf]
        %v4505 = vld [vmem:[%s4496 + $0x50] sm:$0xf]
        %v4506 = vld [vmem:[%s4496 + $0x58] sm:$0xf]
        %v4507 = vld [vmem:[%s4496 + $0x60] sm:$0xf]
        %v4508 = vld [vmem:[%s4496 + $0x68] sm:$0xf]
        %v4509 = vld [vmem:[%s4496 + $0x70] sm:$0xf]
        %v4510 = vld [vmem:[%s4496 + $0x78] sm:$0xf]
        %v4511 = vld [vmem:[%s4496 + $0x80] sm:$0xf]
        %v4512 = vld [vmem:[%s4496 + $0x88] sm:$0xf]
        %s4513 = scalar_lea.vmem %s4, 360
        %v4514 = vld [vmem:[%s4513] sm:$0xf]
        %v4515 = vld [vmem:[%s4513 + $0x4] sm:$0xf]
        %v4516 = vld [vmem:[%s4513 + $0x8] sm:$0xf]
        %v4517 = vld [vmem:[%s4513 + $0xc] sm:$0xf]
        %v4518 = vld [vmem:[%s4513 + $0x10] sm:$0xf]
        %v4519 = vld [vmem:[%s4513 + $0x14] sm:$0xf]
        %v4536 = vunpack.c.l.b16 %v4497
        %v4537 = vunpack.c.l.b16 %v4498
        %v4538 = vunpack.c.l.b16 %v4499
        %v4539 = vunpack.c.l.b16 %v4500
        %v4540 = vunpack.c.l.b16 %v4501
        %v4541 = vunpack.c.l.b16 %v4502
        %v4542 = vunpack.c.l.b16 %v4503
        %v4543 = vunpack.c.l.b16 %v4504
        %v4544 = vunpack.c.l.b16 %v4505
        %v4545 = vunpack.c.l.b16 %v4506
        %v4546 = vunpack.c.l.b16 %v4507
        %v4547 = vunpack.c.l.b16 %v4508
        %v4548 = vunpack.c.l.b16 %v4509
        %v4549 = vunpack.c.l.b16 %v4510
        %v4550 = vunpack.c.l.b16 %v4511
        %v4551 = vunpack.c.l.b16 %v4512
        %v4552 = vpack.c.b16 %v4537, %v4536
        %v4553 = vpack.c.b16 %v4539, %v4538
        %v4554 = vpack.c.b16 %v4541, %v4540
        %v4555 = vpack.c.b16 %v4543, %v4542
        %v4556 = vpack.c.b16 %v4545, %v4544
        %v4557 = vpack.c.b16 %v4547, %v4546
        %v4558 = vpack.c.b16 %v4549, %v4548
        %v4559 = vpack.c.b16 %v4551, %v4550
        %v4566 = vunpack.c.l.b16 %v4514
        %v4567 = vunpack.c.l.b16 %v4515
        %v4568 = vunpack.c.l.b16 %v4516
        %v4569 = vunpack.c.l.b16 %v4517
        %v4570 = vunpack.c.l.b16 %v4518
        %v4571 = vunpack.c.l.b16 %v4519
        %v4572 = vpack.c.b16 %v4567, %v4566
        %v4573 = vpack.c.b16 %v4569, %v4568
        %v4574 = vpack.c.b16 %v4571, %v4570
        %v4579 = vsel %vm489, %v4552, 0
        %v4582 = vsel %vm489, %v4553, 0
        %v4585 = vsel %vm489, %v4554, 0
        %v4588 = vsel %vm489, %v4555, 0
        %v4591 = vsel %vm489, %v4556, 0
        %v4594 = vsel %vm489, %v4557, 0
        %v4597 = vsel %vm489, %v4558, 0
        %v4600 = vsel %vm489, %v4559, 0
        %4602 = vmatpush.bf16.msra.mxu0 0
        %4603 = vmatpush.bf16.msra.mxu0 0
        %4604 = vmatpush.bf16.msra.mxu0 0
        %4605 = vmatpush.bf16.msra.mxu0 0
        %4606 = vmatpush.bf16.msra.mxu0 0
        %4607 = vmatpush.bf16.msra.mxu0 %v4574
        %4608 = vmatpush.bf16.msra.mxu0 %v4573
        %4609 = vmatpush.bf16.msra.mxu0 %v4572
        %4610 = vmatmul.bf16.gmra.mxu0 %v4579
        %v4611 = vpop.f32.mrf.mxu0
        %v4612 = vadd.f32 0.0, %v4611
        %v4613 = vpop.f32.mrf.mxu0
        %v4614 = vadd.f32 0.0, %v4613
        %4615 = vmatmul.bf16.gmra.mxu0 %v4582
        %v4616 = vpop.f32.mrf.mxu0
        %v4617 = vadd.f32 0.0, %v4616
        %v4618 = vpop.f32.mrf.mxu0
        %v4619 = vadd.f32 0.0, %v4618
        %4620 = vmatmul.bf16.gmra.mxu0 %v4585
        %v4621 = vpop.f32.mrf.mxu0
        %v4622 = vadd.f32 0.0, %v4621
        %v4623 = vpop.f32.mrf.mxu0
        %v4624 = vadd.f32 0.0, %v4623
        %4625 = vmatmul.bf16.gmra.mxu0 %v4588
        %v4626 = vpop.f32.mrf.mxu0
        %v4627 = vadd.f32 0.0, %v4626
        %v4628 = vpop.f32.mrf.mxu0
        %v4629 = vadd.f32 0.0, %v4628
        %4630 = vmatmul.bf16.gmra.mxu0 %v4591
        %v4631 = vpop.f32.mrf.mxu0
        %v4632 = vadd.f32 0.0, %v4631
        %v4633 = vpop.f32.mrf.mxu0
        %v4634 = vadd.f32 0.0, %v4633
        %4635 = vmatmul.bf16.gmra.mxu0 %v4594
        %v4636 = vpop.f32.mrf.mxu0
        %v4637 = vadd.f32 0.0, %v4636
        %v4638 = vpop.f32.mrf.mxu0
        %v4639 = vadd.f32 0.0, %v4638
        %4640 = vmatmul.bf16.gmra.mxu0 %v4597
        %v4641 = vpop.f32.mrf.mxu0
        %v4642 = vadd.f32 0.0, %v4641
        %v4643 = vpop.f32.mrf.mxu0
        %v4644 = vadd.f32 0.0, %v4643
        %4645 = vmatmul.bf16.gmra.mxu0 %v4600
        %v4646 = vpop.f32.mrf.mxu0
        %v4647 = vadd.f32 0.0, %v4646
        %v4648 = vpop.f32.mrf.mxu0
        %v4649 = vadd.f32 0.0, %v4648
        %4650 = vdwg.mxu0
        %v4651 = vadd.f32 %v4480, %v4612
        %v4652 = vadd.f32 %v4481, %v4614
        %v4653 = vadd.f32 %v4482, %v4617
        %v4654 = vadd.f32 %v4483, %v4619
        %v4655 = vadd.f32 %v4484, %v4622
        %v4656 = vadd.f32 %v4485, %v4624
        %v4657 = vadd.f32 %v4486, %v4627
        %v4658 = vadd.f32 %v4487, %v4629
        %v4659 = vadd.f32 %v4488, %v4632
        %v4660 = vadd.f32 %v4489, %v4634
        %v4661 = vadd.f32 %v4490, %v4637
        %v4662 = vadd.f32 %v4491, %v4639
        %v4663 = vadd.f32 %v4492, %v4642
        %v4664 = vadd.f32 %v4493, %v4644
        %v4665 = vadd.f32 %v4494, %v4647
        %v4666 = vadd.f32 %v4495, %v4649
        %s4667 = scalar_lea.vmem %s382, 8
        %v4668 = vld [vmem:[%s4667] sm:$0xf]
        %v4669 = vld [vmem:[%s4667 + $0x8] sm:$0xf]
        %v4670 = vld [vmem:[%s4667 + $0x10] sm:$0xf]
        %v4671 = vld [vmem:[%s4667 + $0x18] sm:$0xf]
        %v4672 = vld [vmem:[%s4667 + $0x20] sm:$0xf]
        %v4673 = vld [vmem:[%s4667 + $0x28] sm:$0xf]
        %v4674 = vld [vmem:[%s4667 + $0x30] sm:$0xf]
        %v4675 = vld [vmem:[%s4667 + $0x38] sm:$0xf]
        %v4676 = vld [vmem:[%s4667 + $0x50] sm:$0xf]
        %v4677 = vld [vmem:[%s4667 + $0x58] sm:$0xf]
        %v4678 = vld [vmem:[%s4667 + $0x60] sm:$0xf]
        %v4679 = vld [vmem:[%s4667 + $0x68] sm:$0xf]
        %v4680 = vld [vmem:[%s4667 + $0x70] sm:$0xf]
        %v4681 = vld [vmem:[%s4667 + $0x78] sm:$0xf]
        %v4682 = vld [vmem:[%s4667 + $0x80] sm:$0xf]
        %v4683 = vld [vmem:[%s4667 + $0x88] sm:$0xf]
        %s4684 = scalar_lea.vmem %s4, 384
        %v4685 = vld [vmem:[%s4684] sm:$0xf]
        %v4686 = vld [vmem:[%s4684 + $0x4] sm:$0xf]
        %v4687 = vld [vmem:[%s4684 + $0x8] sm:$0xf]
        %v4688 = vld [vmem:[%s4684 + $0xc] sm:$0xf]
        %v4689 = vld [vmem:[%s4684 + $0x10] sm:$0xf]
        %v4690 = vld [vmem:[%s4684 + $0x14] sm:$0xf]
        %v4707 = vunpack.c.l.b16 %v4668
        %v4708 = vunpack.c.l.b16 %v4669
        %v4709 = vunpack.c.l.b16 %v4670
        %v4710 = vunpack.c.l.b16 %v4671
        %v4711 = vunpack.c.l.b16 %v4672
        %v4712 = vunpack.c.l.b16 %v4673
        %v4713 = vunpack.c.l.b16 %v4674
        %v4714 = vunpack.c.l.b16 %v4675
        %v4715 = vunpack.c.l.b16 %v4676
        %v4716 = vunpack.c.l.b16 %v4677
        %v4717 = vunpack.c.l.b16 %v4678
        %v4718 = vunpack.c.l.b16 %v4679
        %v4719 = vunpack.c.l.b16 %v4680
        %v4720 = vunpack.c.l.b16 %v4681
        %v4721 = vunpack.c.l.b16 %v4682
        %v4722 = vunpack.c.l.b16 %v4683
        %v4723 = vpack.c.b16 %v4708, %v4707
        %v4724 = vpack.c.b16 %v4710, %v4709
        %v4725 = vpack.c.b16 %v4712, %v4711
        %v4726 = vpack.c.b16 %v4714, %v4713
        %v4727 = vpack.c.b16 %v4716, %v4715
        %v4728 = vpack.c.b16 %v4718, %v4717
        %v4729 = vpack.c.b16 %v4720, %v4719
        %v4730 = vpack.c.b16 %v4722, %v4721
        %v4737 = vunpack.c.l.b16 %v4685
        %v4738 = vunpack.c.l.b16 %v4686
        %v4739 = vunpack.c.l.b16 %v4687
        %v4740 = vunpack.c.l.b16 %v4688
        %v4741 = vunpack.c.l.b16 %v4689
        %v4742 = vunpack.c.l.b16 %v4690
        %v4743 = vpack.c.b16 %v4738, %v4737
        %v4744 = vpack.c.b16 %v4740, %v4739
        %v4745 = vpack.c.b16 %v4742, %v4741
        %v4750 = vsel %vm489, %v4723, 0
        %v4753 = vsel %vm489, %v4724, 0
        %v4756 = vsel %vm489, %v4725, 0
        %v4759 = vsel %vm489, %v4726, 0
        %v4762 = vsel %vm489, %v4727, 0
        %v4765 = vsel %vm489, %v4728, 0
        %v4768 = vsel %vm489, %v4729, 0
        %v4771 = vsel %vm489, %v4730, 0
        %4773 = vmatpush.bf16.msra.mxu0 0
        %4774 = vmatpush.bf16.msra.mxu0 0
        %4775 = vmatpush.bf16.msra.mxu0 0
        %4776 = vmatpush.bf16.msra.mxu0 0
        %4777 = vmatpush.bf16.msra.mxu0 0
        %4778 = vmatpush.bf16.msra.mxu0 %v4745
        %4779 = vmatpush.bf16.msra.mxu0 %v4744
        %4780 = vmatpush.bf16.msra.mxu0 %v4743
        %4781 = vmatmul.bf16.gmra.mxu0 %v4750
        %v4782 = vpop.f32.mrf.mxu0
        %v4783 = vadd.f32 0.0, %v4782
        %v4784 = vpop.f32.mrf.mxu0
        %v4785 = vadd.f32 0.0, %v4784
        %4786 = vmatmul.bf16.gmra.mxu0 %v4753
        %v4787 = vpop.f32.mrf.mxu0
        %v4788 = vadd.f32 0.0, %v4787
        %v4789 = vpop.f32.mrf.mxu0
        %v4790 = vadd.f32 0.0, %v4789
        %4791 = vmatmul.bf16.gmra.mxu0 %v4756
        %v4792 = vpop.f32.mrf.mxu0
        %v4793 = vadd.f32 0.0, %v4792
        %v4794 = vpop.f32.mrf.mxu0
        %v4795 = vadd.f32 0.0, %v4794
        %4796 = vmatmul.bf16.gmra.mxu0 %v4759
        %v4797 = vpop.f32.mrf.mxu0
        %v4798 = vadd.f32 0.0, %v4797
        %v4799 = vpop.f32.mrf.mxu0
        %v4800 = vadd.f32 0.0, %v4799
        %4801 = vmatmul.bf16.gmra.mxu0 %v4762
        %v4802 = vpop.f32.mrf.mxu0
        %v4803 = vadd.f32 0.0, %v4802
        %v4804 = vpop.f32.mrf.mxu0
        %v4805 = vadd.f32 0.0, %v4804
        %4806 = vmatmul.bf16.gmra.mxu0 %v4765
        %v4807 = vpop.f32.mrf.mxu0
        %v4808 = vadd.f32 0.0, %v4807
        %v4809 = vpop.f32.mrf.mxu0
        %v4810 = vadd.f32 0.0, %v4809
        %4811 = vmatmul.bf16.gmra.mxu0 %v4768
        %v4812 = vpop.f32.mrf.mxu0
        %v4813 = vadd.f32 0.0, %v4812
        %v4814 = vpop.f32.mrf.mxu0
        %v4815 = vadd.f32 0.0, %v4814
        %4816 = vmatmul.bf16.gmra.mxu0 %v4771
        %v4817 = vpop.f32.mrf.mxu0
        %v4818 = vadd.f32 0.0, %v4817
        %v4819 = vpop.f32.mrf.mxu0
        %v4820 = vadd.f32 0.0, %v4819
        %4821 = vdwg.mxu0
        %v4822 = vadd.f32 %v4651, %v4783
        %v4823 = vadd.f32 %v4652, %v4785
        %v4824 = vadd.f32 %v4653, %v4788
        %v4825 = vadd.f32 %v4654, %v4790
        %v4826 = vadd.f32 %v4655, %v4793
        %v4827 = vadd.f32 %v4656, %v4795
        %v4828 = vadd.f32 %v4657, %v4798
        %v4829 = vadd.f32 %v4658, %v4800
        %v4830 = vadd.f32 %v4659, %v4803
        %v4831 = vadd.f32 %v4660, %v4805
        %v4832 = vadd.f32 %v4661, %v4808
        %v4833 = vadd.f32 %v4662, %v4810
        %v4834 = vadd.f32 %v4663, %v4813
        %v4835 = vadd.f32 %v4664, %v4815
        %v4836 = vadd.f32 %v4665, %v4818
        %v4837 = vadd.f32 %v4666, %v4820
        %v4838 = vld [vmem:[%s4496] sm:$0xf]
        %v4839 = vld [vmem:[%s4496 + $0x4] sm:$0x1]
        %v4840 = vld [vmem:[%s4496 + $0x8] sm:$0xf]
        %v4841 = vld [vmem:[%s4496 + $0xc] sm:$0x1]
        %v4842 = vld [vmem:[%s4496 + $0x10] sm:$0xf]
        %v4843 = vld [vmem:[%s4496 + $0x14] sm:$0x1]
        %v4844 = vld [vmem:[%s4496 + $0x18] sm:$0xf]
        %v4845 = vld [vmem:[%s4496 + $0x1c] sm:$0x1]
        %v4846 = vld [vmem:[%s4496 + $0x20] sm:$0xf]
        %v4847 = vld [vmem:[%s4496 + $0x24] sm:$0x1]
        %v4848 = vld [vmem:[%s4496 + $0x28] sm:$0xf]
        %v4849 = vld [vmem:[%s4496 + $0x2c] sm:$0x1]
        %v4850 = vld [vmem:[%s4496 + $0x30] sm:$0xf]
        %v4851 = vld [vmem:[%s4496 + $0x34] sm:$0x1]
        %v4852 = vld [vmem:[%s4496 + $0x38] sm:$0xf]
        %v4853 = vld [vmem:[%s4496 + $0x3c] sm:$0x1]
        %v4854 = vld [vmem:[%s4496 + $0x50] sm:$0xf]
        %v4855 = vld [vmem:[%s4496 + $0x54] sm:$0x1]
        %v4856 = vld [vmem:[%s4496 + $0x58] sm:$0xf]
        %v4857 = vld [vmem:[%s4496 + $0x5c] sm:$0x1]
        %v4858 = vld [vmem:[%s4496 + $0x60] sm:$0xf]
        %v4859 = vld [vmem:[%s4496 + $0x64] sm:$0x1]
        %v4860 = vld [vmem:[%s4496 + $0x68] sm:$0xf]
        %v4861 = vld [vmem:[%s4496 + $0x6c] sm:$0x1]
        %v4862 = vld [vmem:[%s4496 + $0x70] sm:$0xf]
        %v4863 = vld [vmem:[%s4496 + $0x74] sm:$0x1]
        %v4864 = vld [vmem:[%s4496 + $0x78] sm:$0xf]
        %v4865 = vld [vmem:[%s4496 + $0x7c] sm:$0x1]
        %v4866 = vld [vmem:[%s4496 + $0x80] sm:$0xf]
        %v4867 = vld [vmem:[%s4496 + $0x84] sm:$0x1]
        %v4868 = vld [vmem:[%s4496 + $0x88] sm:$0xf]
        %v4869 = vld [vmem:[%s4496 + $0x8c] sm:$0x1]
        %v4871 = vshrl.u32 %v4838, 16
        %v4873 = vrot.slane %v4871, 4
        %v4874 = vshll.u32 %v4838, 16
        %v4876 = vrot.slane %v4874, 5
        %v4877 = vor.u32 %v4873, %v4876
        %v4878 = vrot.slane %v4877, 4
        %v4880 = vshll.u32 %v4839, 16
        %v4882 = vrot.slane %v4880, 5
        %v4883 = vsel %vm728, %v4878, %v4882
        %v4885 = vshrl.u32 %v4840, 16
        %v4887 = vrot.slane %v4885, 4
        %v4888 = vshll.u32 %v4840, 16
        %v4890 = vrot.slane %v4888, 5
        %v4891 = vor.u32 %v4887, %v4890
        %v4892 = vrot.slane %v4891, 4
        %v4894 = vshll.u32 %v4841, 16
        %v4896 = vrot.slane %v4894, 5
        %v4897 = vsel %vm728, %v4892, %v4896
        %v4899 = vshrl.u32 %v4842, 16
        %v4901 = vrot.slane %v4899, 4
        %v4902 = vshll.u32 %v4842, 16
        %v4904 = vrot.slane %v4902, 5
        %v4905 = vor.u32 %v4901, %v4904
        %v4906 = vrot.slane %v4905, 4
        %v4908 = vshll.u32 %v4843, 16
        %v4910 = vrot.slane %v4908, 5
        %v4911 = vsel %vm728, %v4906, %v4910
        %v4913 = vshrl.u32 %v4844, 16
        %v4915 = vrot.slane %v4913, 4
        %v4916 = vshll.u32 %v4844, 16
        %v4918 = vrot.slane %v4916, 5
        %v4919 = vor.u32 %v4915, %v4918
        %v4920 = vrot.slane %v4919, 4
        %v4922 = vshll.u32 %v4845, 16
        %v4924 = vrot.slane %v4922, 5
        %v4925 = vsel %vm728, %v4920, %v4924
        %v4927 = vshrl.u32 %v4846, 16
        %v4929 = vrot.slane %v4927, 4
        %v4930 = vshll.u32 %v4846, 16
        %v4932 = vrot.slane %v4930, 5
        %v4933 = vor.u32 %v4929, %v4932
        %v4934 = vrot.slane %v4933, 4
        %v4936 = vshll.u32 %v4847, 16
        %v4938 = vrot.slane %v4936, 5
        %v4939 = vsel %vm728, %v4934, %v4938
        %v4941 = vshrl.u32 %v4848, 16
        %v4943 = vrot.slane %v4941, 4
        %v4944 = vshll.u32 %v4848, 16
        %v4946 = vrot.slane %v4944, 5
        %v4947 = vor.u32 %v4943, %v4946
        %v4948 = vrot.slane %v4947, 4
        %v4950 = vshll.u32 %v4849, 16
        %v4952 = vrot.slane %v4950, 5
        %v4953 = vsel %vm728, %v4948, %v4952
        %v4955 = vshrl.u32 %v4850, 16
        %v4957 = vrot.slane %v4955, 4
        %v4958 = vshll.u32 %v4850, 16
        %v4960 = vrot.slane %v4958, 5
        %v4961 = vor.u32 %v4957, %v4960
        %v4962 = vrot.slane %v4961, 4
        %v4964 = vshll.u32 %v4851, 16
        %v4966 = vrot.slane %v4964, 5
        %v4967 = vsel %vm728, %v4962, %v4966
        %v4969 = vshrl.u32 %v4852, 16
        %v4971 = vrot.slane %v4969, 4
        %v4972 = vshll.u32 %v4852, 16
        %v4974 = vrot.slane %v4972, 5
        %v4975 = vor.u32 %v4971, %v4974
        %v4976 = vrot.slane %v4975, 4
        %v4978 = vshll.u32 %v4853, 16
        %v4980 = vrot.slane %v4978, 5
        %v4981 = vsel %vm728, %v4976, %v4980
        %v4983 = vshrl.u32 %v4854, 16
        %v4985 = vrot.slane %v4983, 4
        %v4986 = vshll.u32 %v4854, 16
        %v4988 = vrot.slane %v4986, 5
        %v4989 = vor.u32 %v4985, %v4988
        %v4990 = vrot.slane %v4989, 4
        %v4992 = vshll.u32 %v4855, 16
        %v4994 = vrot.slane %v4992, 5
        %v4995 = vsel %vm728, %v4990, %v4994
        %v4997 = vshrl.u32 %v4856, 16
        %v4999 = vrot.slane %v4997, 4
        %v5000 = vshll.u32 %v4856, 16
        %v5002 = vrot.slane %v5000, 5
        %v5003 = vor.u32 %v4999, %v5002
        %v5004 = vrot.slane %v5003, 4
        %v5006 = vshll.u32 %v4857, 16
        %v5008 = vrot.slane %v5006, 5
        %v5009 = vsel %vm728, %v5004, %v5008
        %v5011 = vshrl.u32 %v4858, 16
        %v5013 = vrot.slane %v5011, 4
        %v5014 = vshll.u32 %v4858, 16
        %v5016 = vrot.slane %v5014, 5
        %v5017 = vor.u32 %v5013, %v5016
        %v5018 = vrot.slane %v5017, 4
        %v5020 = vshll.u32 %v4859, 16
        %v5022 = vrot.slane %v5020, 5
        %v5023 = vsel %vm728, %v5018, %v5022
        %v5025 = vshrl.u32 %v4860, 16
        %v5027 = vrot.slane %v5025, 4
        %v5028 = vshll.u32 %v4860, 16
        %v5030 = vrot.slane %v5028, 5
        %v5031 = vor.u32 %v5027, %v5030
        %v5032 = vrot.slane %v5031, 4
        %v5034 = vshll.u32 %v4861, 16
        %v5036 = vrot.slane %v5034, 5
        %v5037 = vsel %vm728, %v5032, %v5036
        %v5039 = vshrl.u32 %v4862, 16
        %v5041 = vrot.slane %v5039, 4
        %v5042 = vshll.u32 %v4862, 16
        %v5044 = vrot.slane %v5042, 5
        %v5045 = vor.u32 %v5041, %v5044
        %v5046 = vrot.slane %v5045, 4
        %v5048 = vshll.u32 %v4863, 16
        %v5050 = vrot.slane %v5048, 5
        %v5051 = vsel %vm728, %v5046, %v5050
        %v5053 = vshrl.u32 %v4864, 16
        %v5055 = vrot.slane %v5053, 4
        %v5056 = vshll.u32 %v4864, 16
        %v5058 = vrot.slane %v5056, 5
        %v5059 = vor.u32 %v5055, %v5058
        %v5060 = vrot.slane %v5059, 4
        %v5062 = vshll.u32 %v4865, 16
        %v5064 = vrot.slane %v5062, 5
        %v5065 = vsel %vm728, %v5060, %v5064
        %v5067 = vshrl.u32 %v4866, 16
        %v5069 = vrot.slane %v5067, 4
        %v5070 = vshll.u32 %v4866, 16
        %v5072 = vrot.slane %v5070, 5
        %v5073 = vor.u32 %v5069, %v5072
        %v5074 = vrot.slane %v5073, 4
        %v5076 = vshll.u32 %v4867, 16
        %v5078 = vrot.slane %v5076, 5
        %v5079 = vsel %vm728, %v5074, %v5078
        %v5081 = vshrl.u32 %v4868, 16
        %v5083 = vrot.slane %v5081, 4
        %v5084 = vshll.u32 %v4868, 16
        %v5086 = vrot.slane %v5084, 5
        %v5087 = vor.u32 %v5083, %v5086
        %v5088 = vrot.slane %v5087, 4
        %v5090 = vshll.u32 %v4869, 16
        %v5092 = vrot.slane %v5090, 5
        %v5093 = vsel %vm728, %v5088, %v5092
        %s5094 = scalar_lea.vmem %s4, 408
        %v5095 = vld [vmem:[%s5094] sm:$0xf]
        %v5096 = vld [vmem:[%s5094 + $0x4] sm:$0xf]
        %v5097 = vld [vmem:[%s5094 + $0x8] sm:$0xf]
        %v5098 = vld [vmem:[%s5094 + $0xc] sm:$0xf]
        %v5099 = vld [vmem:[%s5094 + $0x10] sm:$0xf]
        %v5100 = vld [vmem:[%s5094 + $0x14] sm:$0xf]
        %v5101 = vunpack.c.l.b16 %v4883
        %v5102 = vunpack.c.l.b16 %v4897
        %v5103 = vunpack.c.l.b16 %v4911
        %v5104 = vunpack.c.l.b16 %v4925
        %v5105 = vunpack.c.l.b16 %v4939
        %v5106 = vunpack.c.l.b16 %v4953
        %v5107 = vunpack.c.l.b16 %v4967
        %v5108 = vunpack.c.l.b16 %v4981
        %v5109 = vunpack.c.l.b16 %v4995
        %v5110 = vunpack.c.l.b16 %v5009
        %v5111 = vunpack.c.l.b16 %v5023
        %v5112 = vunpack.c.l.b16 %v5037
        %v5113 = vunpack.c.l.b16 %v5051
        %v5114 = vunpack.c.l.b16 %v5065
        %v5115 = vunpack.c.l.b16 %v5079
        %v5116 = vunpack.c.l.b16 %v5093
        %v5117 = vpack.c.b16 %v5102, %v5101
        %v5118 = vpack.c.b16 %v5104, %v5103
        %v5119 = vpack.c.b16 %v5106, %v5105
        %v5120 = vpack.c.b16 %v5108, %v5107
        %v5121 = vpack.c.b16 %v5110, %v5109
        %v5122 = vpack.c.b16 %v5112, %v5111
        %v5123 = vpack.c.b16 %v5114, %v5113
        %v5124 = vpack.c.b16 %v5116, %v5115
        %v5131 = vunpack.c.l.b16 %v5095
        %v5132 = vunpack.c.l.b16 %v5096
        %v5133 = vunpack.c.l.b16 %v5097
        %v5134 = vunpack.c.l.b16 %v5098
        %v5135 = vunpack.c.l.b16 %v5099
        %v5136 = vunpack.c.l.b16 %v5100
        %v5137 = vpack.c.b16 %v5132, %v5131
        %v5138 = vpack.c.b16 %v5134, %v5133
        %v5139 = vpack.c.b16 %v5136, %v5135
        %v5144 = vsel %vm489, %v5117, 0
        %v5147 = vsel %vm489, %v5118, 0
        %v5150 = vsel %vm489, %v5119, 0
        %v5153 = vsel %vm489, %v5120, 0
        %v5156 = vsel %vm489, %v5121, 0
        %v5159 = vsel %vm489, %v5122, 0
        %v5162 = vsel %vm489, %v5123, 0
        %v5165 = vsel %vm489, %v5124, 0
        %5167 = vmatpush.bf16.msra.mxu0 0
        %5168 = vmatpush.bf16.msra.mxu0 0
        %5169 = vmatpush.bf16.msra.mxu0 0
        %5170 = vmatpush.bf16.msra.mxu0 0
        %5171 = vmatpush.bf16.msra.mxu0 0
        %5172 = vmatpush.bf16.msra.mxu0 %v5139
        %5173 = vmatpush.bf16.msra.mxu0 %v5138
        %5174 = vmatpush.bf16.msra.mxu0 %v5137
        %5175 = vmatmul.bf16.gmra.mxu0 %v5144
        %v5176 = vpop.f32.mrf.mxu0
        %v5177 = vadd.f32 0.0, %v5176
        %v5178 = vpop.f32.mrf.mxu0
        %v5179 = vadd.f32 0.0, %v5178
        %5180 = vmatmul.bf16.gmra.mxu0 %v5147
        %v5181 = vpop.f32.mrf.mxu0
        %v5182 = vadd.f32 0.0, %v5181
        %v5183 = vpop.f32.mrf.mxu0
        %v5184 = vadd.f32 0.0, %v5183
        %5185 = vmatmul.bf16.gmra.mxu0 %v5150
        %v5186 = vpop.f32.mrf.mxu0
        %v5187 = vadd.f32 0.0, %v5186
        %v5188 = vpop.f32.mrf.mxu0
        %v5189 = vadd.f32 0.0, %v5188
        %5190 = vmatmul.bf16.gmra.mxu0 %v5153
        %v5191 = vpop.f32.mrf.mxu0
        %v5192 = vadd.f32 0.0, %v5191
        %v5193 = vpop.f32.mrf.mxu0
        %v5194 = vadd.f32 0.0, %v5193
        %5195 = vmatmul.bf16.gmra.mxu0 %v5156
        %v5196 = vpop.f32.mrf.mxu0
        %v5197 = vadd.f32 0.0, %v5196
        %v5198 = vpop.f32.mrf.mxu0
        %v5199 = vadd.f32 0.0, %v5198
        %5200 = vmatmul.bf16.gmra.mxu0 %v5159
        %v5201 = vpop.f32.mrf.mxu0
        %v5202 = vadd.f32 0.0, %v5201
        %v5203 = vpop.f32.mrf.mxu0
        %v5204 = vadd.f32 0.0, %v5203
        %5205 = vmatmul.bf16.gmra.mxu0 %v5162
        %v5206 = vpop.f32.mrf.mxu0
        %v5207 = vadd.f32 0.0, %v5206
        %v5208 = vpop.f32.mrf.mxu0
        %v5209 = vadd.f32 0.0, %v5208
        %5210 = vmatmul.bf16.gmra.mxu0 %v5165
        %v5211 = vpop.f32.mrf.mxu0
        %v5212 = vadd.f32 0.0, %v5211
        %v5213 = vpop.f32.mrf.mxu0
        %v5214 = vadd.f32 0.0, %v5213
        %5215 = vdwg.mxu0
        %v5216 = vadd.f32 %v4822, %v5177
        %v5217 = vadd.f32 %v4823, %v5179
        %v5218 = vadd.f32 %v4824, %v5182
        %v5219 = vadd.f32 %v4825, %v5184
        %v5220 = vadd.f32 %v4826, %v5187
        %v5221 = vadd.f32 %v4827, %v5189
        %v5222 = vadd.f32 %v4828, %v5192
        %v5223 = vadd.f32 %v4829, %v5194
        %v5224 = vadd.f32 %v4830, %v5197
        %v5225 = vadd.f32 %v4831, %v5199
        %v5226 = vadd.f32 %v4832, %v5202
        %v5227 = vadd.f32 %v4833, %v5204
        %v5228 = vadd.f32 %v4834, %v5207
        %v5229 = vadd.f32 %v4835, %v5209
        %v5230 = vadd.f32 %v4836, %v5212
        %v5231 = vadd.f32 %v4837, %v5214
        %v5232 = vld [vmem:[%s4667] sm:$0xf]
        %v5233 = vld [vmem:[%s4667 + $0x4] sm:$0x1]
        %v5234 = vld [vmem:[%s4667 + $0x8] sm:$0xf]
        %v5235 = vld [vmem:[%s4667 + $0xc] sm:$0x1]
        %v5236 = vld [vmem:[%s4667 + $0x10] sm:$0xf]
        %v5237 = vld [vmem:[%s4667 + $0x14] sm:$0x1]
        %v5238 = vld [vmem:[%s4667 + $0x18] sm:$0xf]
        %v5239 = vld [vmem:[%s4667 + $0x1c] sm:$0x1]
        %v5240 = vld [vmem:[%s4667 + $0x20] sm:$0xf]
        %v5241 = vld [vmem:[%s4667 + $0x24] sm:$0x1]
        %v5242 = vld [vmem:[%s4667 + $0x28] sm:$0xf]
        %v5243 = vld [vmem:[%s4667 + $0x2c] sm:$0x1]
        %v5244 = vld [vmem:[%s4667 + $0x30] sm:$0xf]
        %v5245 = vld [vmem:[%s4667 + $0x34] sm:$0x1]
        %v5246 = vld [vmem:[%s4667 + $0x38] sm:$0xf]
        %v5247 = vld [vmem:[%s4667 + $0x3c] sm:$0x1]
        %v5248 = vld [vmem:[%s4667 + $0x50] sm:$0xf]
        %v5249 = vld [vmem:[%s4667 + $0x54] sm:$0x1]
        %v5250 = vld [vmem:[%s4667 + $0x58] sm:$0xf]
        %v5251 = vld [vmem:[%s4667 + $0x5c] sm:$0x1]
        %v5252 = vld [vmem:[%s4667 + $0x60] sm:$0xf]
        %v5253 = vld [vmem:[%s4667 + $0x64] sm:$0x1]
        %v5254 = vld [vmem:[%s4667 + $0x68] sm:$0xf]
        %v5255 = vld [vmem:[%s4667 + $0x6c] sm:$0x1]
        %v5256 = vld [vmem:[%s4667 + $0x70] sm:$0xf]
        %v5257 = vld [vmem:[%s4667 + $0x74] sm:$0x1]
        %v5258 = vld [vmem:[%s4667 + $0x78] sm:$0xf]
        %v5259 = vld [vmem:[%s4667 + $0x7c] sm:$0x1]
        %v5260 = vld [vmem:[%s4667 + $0x80] sm:$0xf]
        %v5261 = vld [vmem:[%s4667 + $0x84] sm:$0x1]
        %v5262 = vld [vmem:[%s4667 + $0x88] sm:$0xf]
        %v5263 = vld [vmem:[%s4667 + $0x8c] sm:$0x1]
        %v5265 = vshrl.u32 %v5232, 16
        %v5267 = vrot.slane %v5265, 4
        %v5268 = vshll.u32 %v5232, 16
        %v5270 = vrot.slane %v5268, 5
        %v5271 = vor.u32 %v5267, %v5270
        %v5272 = vrot.slane %v5271, 4
        %v5274 = vshll.u32 %v5233, 16
        %v5276 = vrot.slane %v5274, 5
        %v5277 = vsel %vm728, %v5272, %v5276
        %v5279 = vshrl.u32 %v5234, 16
        %v5281 = vrot.slane %v5279, 4
        %v5282 = vshll.u32 %v5234, 16
        %v5284 = vrot.slane %v5282, 5
        %v5285 = vor.u32 %v5281, %v5284
        %v5286 = vrot.slane %v5285, 4
        %v5288 = vshll.u32 %v5235, 16
        %v5290 = vrot.slane %v5288, 5
        %v5291 = vsel %vm728, %v5286, %v5290
        %v5293 = vshrl.u32 %v5236, 16
        %v5295 = vrot.slane %v5293, 4
        %v5296 = vshll.u32 %v5236, 16
        %v5298 = vrot.slane %v5296, 5
        %v5299 = vor.u32 %v5295, %v5298
        %v5300 = vrot.slane %v5299, 4
        %v5302 = vshll.u32 %v5237, 16
        %v5304 = vrot.slane %v5302, 5
        %v5305 = vsel %vm728, %v5300, %v5304
        %v5307 = vshrl.u32 %v5238, 16
        %v5309 = vrot.slane %v5307, 4
        %v5310 = vshll.u32 %v5238, 16
        %v5312 = vrot.slane %v5310, 5
        %v5313 = vor.u32 %v5309, %v5312
        %v5314 = vrot.slane %v5313, 4
        %v5316 = vshll.u32 %v5239, 16
        %v5318 = vrot.slane %v5316, 5
        %v5319 = vsel %vm728, %v5314, %v5318
        %v5321 = vshrl.u32 %v5240, 16
        %v5323 = vrot.slane %v5321, 4
        %v5324 = vshll.u32 %v5240, 16
        %v5326 = vrot.slane %v5324, 5
        %v5327 = vor.u32 %v5323, %v5326
        %v5328 = vrot.slane %v5327, 4
        %v5330 = vshll.u32 %v5241, 16
        %v5332 = vrot.slane %v5330, 5
        %v5333 = vsel %vm728, %v5328, %v5332
        %v5335 = vshrl.u32 %v5242, 16
        %v5337 = vrot.slane %v5335, 4
        %v5338 = vshll.u32 %v5242, 16
        %v5340 = vrot.slane %v5338, 5
        %v5341 = vor.u32 %v5337, %v5340
        %v5342 = vrot.slane %v5341, 4
        %v5344 = vshll.u32 %v5243, 16
        %v5346 = vrot.slane %v5344, 5
        %v5347 = vsel %vm728, %v5342, %v5346
        %v5349 = vshrl.u32 %v5244, 16
        %v5351 = vrot.slane %v5349, 4
        %v5352 = vshll.u32 %v5244, 16
        %v5354 = vrot.slane %v5352, 5
        %v5355 = vor.u32 %v5351, %v5354
        %v5356 = vrot.slane %v5355, 4
        %v5358 = vshll.u32 %v5245, 16
        %v5360 = vrot.slane %v5358, 5
        %v5361 = vsel %vm728, %v5356, %v5360
        %v5363 = vshrl.u32 %v5246, 16
        %v5365 = vrot.slane %v5363, 4
        %v5366 = vshll.u32 %v5246, 16
        %v5368 = vrot.slane %v5366, 5
        %v5369 = vor.u32 %v5365, %v5368
        %v5370 = vrot.slane %v5369, 4
        %v5372 = vshll.u32 %v5247, 16
        %v5374 = vrot.slane %v5372, 5
        %v5375 = vsel %vm728, %v5370, %v5374
        %v5377 = vshrl.u32 %v5248, 16
        %v5379 = vrot.slane %v5377, 4
        %v5380 = vshll.u32 %v5248, 16
        %v5382 = vrot.slane %v5380, 5
        %v5383 = vor.u32 %v5379, %v5382
        %v5384 = vrot.slane %v5383, 4
        %v5386 = vshll.u32 %v5249, 16
        %v5388 = vrot.slane %v5386, 5
        %v5389 = vsel %vm728, %v5384, %v5388
        %v5391 = vshrl.u32 %v5250, 16
        %v5393 = vrot.slane %v5391, 4
        %v5394 = vshll.u32 %v5250, 16
        %v5396 = vrot.slane %v5394, 5
        %v5397 = vor.u32 %v5393, %v5396
        %v5398 = vrot.slane %v5397, 4
        %v5400 = vshll.u32 %v5251, 16
        %v5402 = vrot.slane %v5400, 5
        %v5403 = vsel %vm728, %v5398, %v5402
        %v5405 = vshrl.u32 %v5252, 16
        %v5407 = vrot.slane %v5405, 4
        %v5408 = vshll.u32 %v5252, 16
        %v5410 = vrot.slane %v5408, 5
        %v5411 = vor.u32 %v5407, %v5410
        %v5412 = vrot.slane %v5411, 4
        %v5414 = vshll.u32 %v5253, 16
        %v5416 = vrot.slane %v5414, 5
        %v5417 = vsel %vm728, %v5412, %v5416
        %v5419 = vshrl.u32 %v5254, 16
        %v5421 = vrot.slane %v5419, 4
        %v5422 = vshll.u32 %v5254, 16
        %v5424 = vrot.slane %v5422, 5
        %v5425 = vor.u32 %v5421, %v5424
        %v5426 = vrot.slane %v5425, 4
        %v5428 = vshll.u32 %v5255, 16
        %v5430 = vrot.slane %v5428, 5
        %v5431 = vsel %vm728, %v5426, %v5430
        %v5433 = vshrl.u32 %v5256, 16
        %v5435 = vrot.slane %v5433, 4
        %v5436 = vshll.u32 %v5256, 16
        %v5438 = vrot.slane %v5436, 5
        %v5439 = vor.u32 %v5435, %v5438
        %v5440 = vrot.slane %v5439, 4
        %v5442 = vshll.u32 %v5257, 16
        %v5444 = vrot.slane %v5442, 5
        %v5445 = vsel %vm728, %v5440, %v5444
        %v5447 = vshrl.u32 %v5258, 16
        %v5449 = vrot.slane %v5447, 4
        %v5450 = vshll.u32 %v5258, 16
        %v5452 = vrot.slane %v5450, 5
        %v5453 = vor.u32 %v5449, %v5452
        %v5454 = vrot.slane %v5453, 4
        %v5456 = vshll.u32 %v5259, 16
        %v5458 = vrot.slane %v5456, 5
        %v5459 = vsel %vm728, %v5454, %v5458
        %v5461 = vshrl.u32 %v5260, 16
        %v5463 = vrot.slane %v5461, 4
        %v5464 = vshll.u32 %v5260, 16
        %v5466 = vrot.slane %v5464, 5
        %v5467 = vor.u32 %v5463, %v5466
        %v5468 = vrot.slane %v5467, 4
        %v5470 = vshll.u32 %v5261, 16
        %v5472 = vrot.slane %v5470, 5
        %v5473 = vsel %vm728, %v5468, %v5472
        %v5475 = vshrl.u32 %v5262, 16
        %v5477 = vrot.slane %v5475, 4
        %v5478 = vshll.u32 %v5262, 16
        %v5480 = vrot.slane %v5478, 5
        %v5481 = vor.u32 %v5477, %v5480
        %v5482 = vrot.slane %v5481, 4
        %v5484 = vshll.u32 %v5263, 16
        %v5486 = vrot.slane %v5484, 5
        %v5487 = vsel %vm728, %v5482, %v5486
        %s5488 = scalar_lea.vmem %s4, 432
        %v5489 = vld [vmem:[%s5488] sm:$0xf]
        %v5490 = vld [vmem:[%s5488 + $0x4] sm:$0xf]
        %v5491 = vld [vmem:[%s5488 + $0x8] sm:$0xf]
        %v5492 = vld [vmem:[%s5488 + $0xc] sm:$0xf]
        %v5493 = vld [vmem:[%s5488 + $0x10] sm:$0xf]
        %v5494 = vld [vmem:[%s5488 + $0x14] sm:$0xf]
        %v5495 = vunpack.c.l.b16 %v5277
        %v5496 = vunpack.c.l.b16 %v5291
        %v5497 = vunpack.c.l.b16 %v5305
        %v5498 = vunpack.c.l.b16 %v5319
        %v5499 = vunpack.c.l.b16 %v5333
        %v5500 = vunpack.c.l.b16 %v5347
        %v5501 = vunpack.c.l.b16 %v5361
        %v5502 = vunpack.c.l.b16 %v5375
        %v5503 = vunpack.c.l.b16 %v5389
        %v5504 = vunpack.c.l.b16 %v5403
        %v5505 = vunpack.c.l.b16 %v5417
        %v5506 = vunpack.c.l.b16 %v5431
        %v5507 = vunpack.c.l.b16 %v5445
        %v5508 = vunpack.c.l.b16 %v5459
        %v5509 = vunpack.c.l.b16 %v5473
        %v5510 = vunpack.c.l.b16 %v5487
        %v5511 = vpack.c.b16 %v5496, %v5495
        %v5512 = vpack.c.b16 %v5498, %v5497
        %v5513 = vpack.c.b16 %v5500, %v5499
        %v5514 = vpack.c.b16 %v5502, %v5501
        %v5515 = vpack.c.b16 %v5504, %v5503
        %v5516 = vpack.c.b16 %v5506, %v5505
        %v5517 = vpack.c.b16 %v5508, %v5507
        %v5518 = vpack.c.b16 %v5510, %v5509
        %v5525 = vunpack.c.l.b16 %v5489
        %v5526 = vunpack.c.l.b16 %v5490
        %v5527 = vunpack.c.l.b16 %v5491
        %v5528 = vunpack.c.l.b16 %v5492
        %v5529 = vunpack.c.l.b16 %v5493
        %v5530 = vunpack.c.l.b16 %v5494
        %v5531 = vpack.c.b16 %v5526, %v5525
        %v5532 = vpack.c.b16 %v5528, %v5527
        %v5533 = vpack.c.b16 %v5530, %v5529
        %v5538 = vsel %vm489, %v5511, 0
        %v5541 = vsel %vm489, %v5512, 0
        %v5544 = vsel %vm489, %v5513, 0
        %v5547 = vsel %vm489, %v5514, 0
        %v5550 = vsel %vm489, %v5515, 0
        %v5553 = vsel %vm489, %v5516, 0
        %v5556 = vsel %vm489, %v5517, 0
        %v5559 = vsel %vm489, %v5518, 0
        %5561 = vmatpush.bf16.msra.mxu0 0
        %5562 = vmatpush.bf16.msra.mxu0 0
        %5563 = vmatpush.bf16.msra.mxu0 0
        %5564 = vmatpush.bf16.msra.mxu0 0
        %5565 = vmatpush.bf16.msra.mxu0 0
        %5566 = vmatpush.bf16.msra.mxu0 %v5533
        %5567 = vmatpush.bf16.msra.mxu0 %v5532
        %5568 = vmatpush.bf16.msra.mxu0 %v5531
        %5569 = vmatmul.bf16.gmra.mxu0 %v5538
        %v5570 = vpop.f32.mrf.mxu0
        %v5571 = vadd.f32 0.0, %v5570
        %v5572 = vpop.f32.mrf.mxu0
        %v5573 = vadd.f32 0.0, %v5572
        %5574 = vmatmul.bf16.gmra.mxu0 %v5541
        %v5575 = vpop.f32.mrf.mxu0
        %v5576 = vadd.f32 0.0, %v5575
        %v5577 = vpop.f32.mrf.mxu0
        %v5578 = vadd.f32 0.0, %v5577
        %5579 = vmatmul.bf16.gmra.mxu0 %v5544
        %v5580 = vpop.f32.mrf.mxu0
        %v5581 = vadd.f32 0.0, %v5580
        %v5582 = vpop.f32.mrf.mxu0
        %v5583 = vadd.f32 0.0, %v5582
        %5584 = vmatmul.bf16.gmra.mxu0 %v5547
        %v5585 = vpop.f32.mrf.mxu0
        %v5586 = vadd.f32 0.0, %v5585
        %v5587 = vpop.f32.mrf.mxu0
        %v5588 = vadd.f32 0.0, %v5587
        %5589 = vmatmul.bf16.gmra.mxu0 %v5550
        %v5590 = vpop.f32.mrf.mxu0
        %v5591 = vadd.f32 0.0, %v5590
        %v5592 = vpop.f32.mrf.mxu0
        %v5593 = vadd.f32 0.0, %v5592
        %5594 = vmatmul.bf16.gmra.mxu0 %v5553
        %v5595 = vpop.f32.mrf.mxu0
        %v5596 = vadd.f32 0.0, %v5595
        %v5597 = vpop.f32.mrf.mxu0
        %v5598 = vadd.f32 0.0, %v5597
        %5599 = vmatmul.bf16.gmra.mxu0 %v5556
        %v5600 = vpop.f32.mrf.mxu0
        %v5601 = vadd.f32 0.0, %v5600
        %v5602 = vpop.f32.mrf.mxu0
        %v5603 = vadd.f32 0.0, %v5602
        %5604 = vmatmul.bf16.gmra.mxu0 %v5559
        %v5605 = vpop.f32.mrf.mxu0
        %v5606 = vadd.f32 0.0, %v5605
        %v5607 = vpop.f32.mrf.mxu0
        %v5608 = vadd.f32 0.0, %v5607
        %5609 = vdwg.mxu0
        %v5610 = vadd.f32 %v5216, %v5571
        %v5611 = vadd.f32 %v5217, %v5573
        %v5612 = vadd.f32 %v5218, %v5576
        %v5613 = vadd.f32 %v5219, %v5578
        %v5614 = vadd.f32 %v5220, %v5581
        %v5615 = vadd.f32 %v5221, %v5583
        %v5616 = vadd.f32 %v5222, %v5586
        %v5617 = vadd.f32 %v5223, %v5588
        %v5618 = vadd.f32 %v5224, %v5591
        %v5619 = vadd.f32 %v5225, %v5593
        %v5620 = vadd.f32 %v5226, %v5596
        %v5621 = vadd.f32 %v5227, %v5598
        %v5622 = vadd.f32 %v5228, %v5601
        %v5623 = vadd.f32 %v5229, %v5603
        %v5624 = vadd.f32 %v5230, %v5606
        %v5625 = vadd.f32 %v5231, %v5608
        %v5626 = vld [vmem:[%s4496] sm:$0xe]
        %v5627 = vld [vmem:[%s4496 + $0x8] sm:$0xe]
        %v5628 = vld [vmem:[%s4496 + $0x10] sm:$0xe]
        %v5629 = vld [vmem:[%s4496 + $0x18] sm:$0xe]
        %v5630 = vld [vmem:[%s4496 + $0x20] sm:$0xe]
        %v5631 = vld [vmem:[%s4496 + $0x28] sm:$0xe]
        %v5632 = vld [vmem:[%s4496 + $0x30] sm:$0xe]
        %v5633 = vld [vmem:[%s4496 + $0x38] sm:$0xe]
        %v5634 = vld [vmem:[%s4496 + $0x50] sm:$0xe]
        %v5635 = vld [vmem:[%s4496 + $0x58] sm:$0xe]
        %v5636 = vld [vmem:[%s4496 + $0x60] sm:$0xe]
        %v5637 = vld [vmem:[%s4496 + $0x68] sm:$0xe]
        %v5638 = vld [vmem:[%s4496 + $0x70] sm:$0xe]
        %v5639 = vld [vmem:[%s4496 + $0x78] sm:$0xe]
        %v5640 = vld [vmem:[%s4496 + $0x80] sm:$0xe]
        %v5641 = vld [vmem:[%s4496 + $0x88] sm:$0xe]
        %v5674 = vrot.slane %v5626, 5
        %v5675 = vrot.slane %v5674, 4
        %v5676 = vrot.slane %v4839, 5
        %v5677 = vsel %vm1535, %v5675, %v5676
        %v5678 = vrot.slane %v5627, 5
        %v5679 = vrot.slane %v5678, 4
        %v5680 = vrot.slane %v4841, 5
        %v5681 = vsel %vm1535, %v5679, %v5680
        %v5682 = vrot.slane %v5628, 5
        %v5683 = vrot.slane %v5682, 4
        %v5684 = vrot.slane %v4843, 5
        %v5685 = vsel %vm1535, %v5683, %v5684
        %v5686 = vrot.slane %v5629, 5
        %v5687 = vrot.slane %v5686, 4
        %v5688 = vrot.slane %v4845, 5
        %v5689 = vsel %vm1535, %v5687, %v5688
        %v5690 = vrot.slane %v5630, 5
        %v5691 = vrot.slane %v5690, 4
        %v5692 = vrot.slane %v4847, 5
        %v5693 = vsel %vm1535, %v5691, %v5692
        %v5694 = vrot.slane %v5631, 5
        %v5695 = vrot.slane %v5694, 4
        %v5696 = vrot.slane %v4849, 5
        %v5697 = vsel %vm1535, %v5695, %v5696
        %v5698 = vrot.slane %v5632, 5
        %v5699 = vrot.slane %v5698, 4
        %v5700 = vrot.slane %v4851, 5
        %v5701 = vsel %vm1535, %v5699, %v5700
        %v5702 = vrot.slane %v5633, 5
        %v5703 = vrot.slane %v5702, 4
        %v5704 = vrot.slane %v4853, 5
        %v5705 = vsel %vm1535, %v5703, %v5704
        %v5706 = vrot.slane %v5634, 5
        %v5707 = vrot.slane %v5706, 4
        %v5708 = vrot.slane %v4855, 5
        %v5709 = vsel %vm1535, %v5707, %v5708
        %v5710 = vrot.slane %v5635, 5
        %v5711 = vrot.slane %v5710, 4
        %v5712 = vrot.slane %v4857, 5
        %v5713 = vsel %vm1535, %v5711, %v5712
        %v5714 = vrot.slane %v5636, 5
        %v5715 = vrot.slane %v5714, 4
        %v5716 = vrot.slane %v4859, 5
        %v5717 = vsel %vm1535, %v5715, %v5716
        %v5718 = vrot.slane %v5637, 5
        %v5719 = vrot.slane %v5718, 4
        %v5720 = vrot.slane %v4861, 5
        %v5721 = vsel %vm1535, %v5719, %v5720
        %v5722 = vrot.slane %v5638, 5
        %v5723 = vrot.slane %v5722, 4
        %v5724 = vrot.slane %v4863, 5
        %v5725 = vsel %vm1535, %v5723, %v5724
        %v5726 = vrot.slane %v5639, 5
        %v5727 = vrot.slane %v5726, 4
        %v5728 = vrot.slane %v4865, 5
        %v5729 = vsel %vm1535, %v5727, %v5728
        %v5730 = vrot.slane %v5640, 5
        %v5731 = vrot.slane %v5730, 4
        %v5732 = vrot.slane %v4867, 5
        %v5733 = vsel %vm1535, %v5731, %v5732
        %v5734 = vrot.slane %v5641, 5
        %v5735 = vrot.slane %v5734, 4
        %v5736 = vrot.slane %v4869, 5
        %v5737 = vsel %vm1535, %v5735, %v5736
        %s5738 = scalar_lea.vmem %s4, 456
        %v5739 = vld [vmem:[%s5738] sm:$0xf]
        %v5740 = vld [vmem:[%s5738 + $0x4] sm:$0xf]
        %v5741 = vld [vmem:[%s5738 + $0x8] sm:$0xf]
        %v5742 = vld [vmem:[%s5738 + $0xc] sm:$0xf]
        %v5743 = vld [vmem:[%s5738 + $0x10] sm:$0xf]
        %v5744 = vld [vmem:[%s5738 + $0x14] sm:$0xf]
        %v5745 = vunpack.c.l.b16 %v5677
        %v5746 = vunpack.c.l.b16 %v5681
        %v5747 = vunpack.c.l.b16 %v5685
        %v5748 = vunpack.c.l.b16 %v5689
        %v5749 = vunpack.c.l.b16 %v5693
        %v5750 = vunpack.c.l.b16 %v5697
        %v5751 = vunpack.c.l.b16 %v5701
        %v5752 = vunpack.c.l.b16 %v5705
        %v5753 = vunpack.c.l.b16 %v5709
        %v5754 = vunpack.c.l.b16 %v5713
        %v5755 = vunpack.c.l.b16 %v5717
        %v5756 = vunpack.c.l.b16 %v5721
        %v5757 = vunpack.c.l.b16 %v5725
        %v5758 = vunpack.c.l.b16 %v5729
        %v5759 = vunpack.c.l.b16 %v5733
        %v5760 = vunpack.c.l.b16 %v5737
        %v5761 = vpack.c.b16 %v5746, %v5745
        %v5762 = vpack.c.b16 %v5748, %v5747
        %v5763 = vpack.c.b16 %v5750, %v5749
        %v5764 = vpack.c.b16 %v5752, %v5751
        %v5765 = vpack.c.b16 %v5754, %v5753
        %v5766 = vpack.c.b16 %v5756, %v5755
        %v5767 = vpack.c.b16 %v5758, %v5757
        %v5768 = vpack.c.b16 %v5760, %v5759
        %v5775 = vunpack.c.l.b16 %v5739
        %v5776 = vunpack.c.l.b16 %v5740
        %v5777 = vunpack.c.l.b16 %v5741
        %v5778 = vunpack.c.l.b16 %v5742
        %v5779 = vunpack.c.l.b16 %v5743
        %v5780 = vunpack.c.l.b16 %v5744
        %v5781 = vpack.c.b16 %v5776, %v5775
        %v5782 = vpack.c.b16 %v5778, %v5777
        %v5783 = vpack.c.b16 %v5780, %v5779
        %v5788 = vsel %vm489, %v5761, 0
        %v5791 = vsel %vm489, %v5762, 0
        %v5794 = vsel %vm489, %v5763, 0
        %v5797 = vsel %vm489, %v5764, 0
        %v5800 = vsel %vm489, %v5765, 0
        %v5803 = vsel %vm489, %v5766, 0
        %v5806 = vsel %vm489, %v5767, 0
        %v5809 = vsel %vm489, %v5768, 0
        %5811 = vmatpush.bf16.msra.mxu0 0
        %5812 = vmatpush.bf16.msra.mxu0 0
        %5813 = vmatpush.bf16.msra.mxu0 0
        %5814 = vmatpush.bf16.msra.mxu0 0
        %5815 = vmatpush.bf16.msra.mxu0 0
        %5816 = vmatpush.bf16.msra.mxu0 %v5783
        %5817 = vmatpush.bf16.msra.mxu0 %v5782
        %5818 = vmatpush.bf16.msra.mxu0 %v5781
        %5819 = vmatmul.bf16.gmra.mxu0 %v5788
        %v5820 = vpop.f32.mrf.mxu0
        %v5821 = vadd.f32 0.0, %v5820
        %v5822 = vpop.f32.mrf.mxu0
        %v5823 = vadd.f32 0.0, %v5822
        %5824 = vmatmul.bf16.gmra.mxu0 %v5791
        %v5825 = vpop.f32.mrf.mxu0
        %v5826 = vadd.f32 0.0, %v5825
        %v5827 = vpop.f32.mrf.mxu0
        %v5828 = vadd.f32 0.0, %v5827
        %5829 = vmatmul.bf16.gmra.mxu0 %v5794
        %v5830 = vpop.f32.mrf.mxu0
        %v5831 = vadd.f32 0.0, %v5830
        %v5832 = vpop.f32.mrf.mxu0
        %v5833 = vadd.f32 0.0, %v5832
        %5834 = vmatmul.bf16.gmra.mxu0 %v5797
        %v5835 = vpop.f32.mrf.mxu0
        %v5836 = vadd.f32 0.0, %v5835
        %v5837 = vpop.f32.mrf.mxu0
        %v5838 = vadd.f32 0.0, %v5837
        %5839 = vmatmul.bf16.gmra.mxu0 %v5800
        %v5840 = vpop.f32.mrf.mxu0
        %v5841 = vadd.f32 0.0, %v5840
        %v5842 = vpop.f32.mrf.mxu0
        %v5843 = vadd.f32 0.0, %v5842
        %5844 = vmatmul.bf16.gmra.mxu0 %v5803
        %v5845 = vpop.f32.mrf.mxu0
        %v5846 = vadd.f32 0.0, %v5845
        %v5847 = vpop.f32.mrf.mxu0
        %v5848 = vadd.f32 0.0, %v5847
        %5849 = vmatmul.bf16.gmra.mxu0 %v5806
        %v5850 = vpop.f32.mrf.mxu0
        %v5851 = vadd.f32 0.0, %v5850
        %v5852 = vpop.f32.mrf.mxu0
        %v5853 = vadd.f32 0.0, %v5852
        %5854 = vmatmul.bf16.gmra.mxu0 %v5809
        %v5855 = vpop.f32.mrf.mxu0
        %v5856 = vadd.f32 0.0, %v5855
        %v5857 = vpop.f32.mrf.mxu0
        %v5858 = vadd.f32 0.0, %v5857
        %5859 = vdwg.mxu0
        %v5860 = vadd.f32 %v5610, %v5821
        %v5861 = vadd.f32 %v5611, %v5823
        %v5862 = vadd.f32 %v5612, %v5826
        %v5863 = vadd.f32 %v5613, %v5828
        %v5864 = vadd.f32 %v5614, %v5831
        %v5865 = vadd.f32 %v5615, %v5833
        %v5866 = vadd.f32 %v5616, %v5836
        %v5867 = vadd.f32 %v5617, %v5838
        %v5868 = vadd.f32 %v5618, %v5841
        %v5869 = vadd.f32 %v5619, %v5843
        %v5870 = vadd.f32 %v5620, %v5846
        %v5871 = vadd.f32 %v5621, %v5848
        %v5872 = vadd.f32 %v5622, %v5851
        %v5873 = vadd.f32 %v5623, %v5853
        %v5874 = vadd.f32 %v5624, %v5856
        %v5875 = vadd.f32 %v5625, %v5858
        %s5876 = scalar_lea.vmem %s361, 16
        %v5877 = vld [vmem:[%s5876] sm:$0xf]
        %v5878 = vld [vmem:[%s5876 + $0x8] sm:$0xf]
        %v5879 = vld [vmem:[%s5876 + $0x10] sm:$0xf]
        %v5880 = vld [vmem:[%s5876 + $0x18] sm:$0xf]
        %v5881 = vld [vmem:[%s5876 + $0x20] sm:$0xf]
        %v5882 = vld [vmem:[%s5876 + $0x28] sm:$0xf]
        %v5883 = vld [vmem:[%s5876 + $0x30] sm:$0xf]
        %v5884 = vld [vmem:[%s5876 + $0x38] sm:$0xf]
        %v5885 = vld [vmem:[%s5876 + $0x50] sm:$0xf]
        %v5886 = vld [vmem:[%s5876 + $0x58] sm:$0xf]
        %v5887 = vld [vmem:[%s5876 + $0x60] sm:$0xf]
        %v5888 = vld [vmem:[%s5876 + $0x68] sm:$0xf]
        %v5889 = vld [vmem:[%s5876 + $0x70] sm:$0xf]
        %v5890 = vld [vmem:[%s5876 + $0x78] sm:$0xf]
        %v5891 = vld [vmem:[%s5876 + $0x80] sm:$0xf]
        %v5892 = vld [vmem:[%s5876 + $0x88] sm:$0xf]
        %s5893 = scalar_lea.vmem %s4, 480
        %v5894 = vld [vmem:[%s5893] sm:$0xf]
        %v5895 = vld [vmem:[%s5893 + $0x4] sm:$0xf]
        %v5896 = vld [vmem:[%s5893 + $0x8] sm:$0xf]
        %v5897 = vld [vmem:[%s5893 + $0xc] sm:$0xf]
        %v5898 = vld [vmem:[%s5893 + $0x10] sm:$0xf]
        %v5899 = vld [vmem:[%s5893 + $0x14] sm:$0xf]
        %v5916 = vunpack.c.l.b16 %v5877
        %v5917 = vunpack.c.l.b16 %v5878
        %v5918 = vunpack.c.l.b16 %v5879
        %v5919 = vunpack.c.l.b16 %v5880
        %v5920 = vunpack.c.l.b16 %v5881
        %v5921 = vunpack.c.l.b16 %v5882
        %v5922 = vunpack.c.l.b16 %v5883
        %v5923 = vunpack.c.l.b16 %v5884
        %v5924 = vunpack.c.l.b16 %v5885
        %v5925 = vunpack.c.l.b16 %v5886
        %v5926 = vunpack.c.l.b16 %v5887
        %v5927 = vunpack.c.l.b16 %v5888
        %v5928 = vunpack.c.l.b16 %v5889
        %v5929 = vunpack.c.l.b16 %v5890
        %v5930 = vunpack.c.l.b16 %v5891
        %v5931 = vunpack.c.l.b16 %v5892
        %v5932 = vpack.c.b16 %v5917, %v5916
        %v5933 = vpack.c.b16 %v5919, %v5918
        %v5934 = vpack.c.b16 %v5921, %v5920
        %v5935 = vpack.c.b16 %v5923, %v5922
        %v5936 = vpack.c.b16 %v5925, %v5924
        %v5937 = vpack.c.b16 %v5927, %v5926
        %v5938 = vpack.c.b16 %v5929, %v5928
        %v5939 = vpack.c.b16 %v5931, %v5930
        %v5946 = vunpack.c.l.b16 %v5894
        %v5947 = vunpack.c.l.b16 %v5895
        %v5948 = vunpack.c.l.b16 %v5896
        %v5949 = vunpack.c.l.b16 %v5897
        %v5950 = vunpack.c.l.b16 %v5898
        %v5951 = vunpack.c.l.b16 %v5899
        %v5952 = vpack.c.b16 %v5947, %v5946
        %v5953 = vpack.c.b16 %v5949, %v5948
        %v5954 = vpack.c.b16 %v5951, %v5950
        %v5959 = vsel %vm489, %v5932, 0
        %v5962 = vsel %vm489, %v5933, 0
        %v5965 = vsel %vm489, %v5934, 0
        %v5968 = vsel %vm489, %v5935, 0
        %v5971 = vsel %vm489, %v5936, 0
        %v5974 = vsel %vm489, %v5937, 0
        %v5977 = vsel %vm489, %v5938, 0
        %v5980 = vsel %vm489, %v5939, 0
        %5982 = vmatpush.bf16.msra.mxu0 0
        %5983 = vmatpush.bf16.msra.mxu0 0
        %5984 = vmatpush.bf16.msra.mxu0 0
        %5985 = vmatpush.bf16.msra.mxu0 0
        %5986 = vmatpush.bf16.msra.mxu0 0
        %5987 = vmatpush.bf16.msra.mxu0 %v5954
        %5988 = vmatpush.bf16.msra.mxu0 %v5953
        %5989 = vmatpush.bf16.msra.mxu0 %v5952
        %5990 = vmatmul.bf16.gmra.mxu0 %v5959
        %v5991 = vpop.f32.mrf.mxu0
        %v5992 = vadd.f32 0.0, %v5991
        %v5993 = vpop.f32.mrf.mxu0
        %v5994 = vadd.f32 0.0, %v5993
        %5995 = vmatmul.bf16.gmra.mxu0 %v5962
        %v5996 = vpop.f32.mrf.mxu0
        %v5997 = vadd.f32 0.0, %v5996
        %v5998 = vpop.f32.mrf.mxu0
        %v5999 = vadd.f32 0.0, %v5998
        %6000 = vmatmul.bf16.gmra.mxu0 %v5965
        %v6001 = vpop.f32.mrf.mxu0
        %v6002 = vadd.f32 0.0, %v6001
        %v6003 = vpop.f32.mrf.mxu0
        %v6004 = vadd.f32 0.0, %v6003
        %6005 = vmatmul.bf16.gmra.mxu0 %v5968
        %v6006 = vpop.f32.mrf.mxu0
        %v6007 = vadd.f32 0.0, %v6006
        %v6008 = vpop.f32.mrf.mxu0
        %v6009 = vadd.f32 0.0, %v6008
        %6010 = vmatmul.bf16.gmra.mxu0 %v5971
        %v6011 = vpop.f32.mrf.mxu0
        %v6012 = vadd.f32 0.0, %v6011
        %v6013 = vpop.f32.mrf.mxu0
        %v6014 = vadd.f32 0.0, %v6013
        %6015 = vmatmul.bf16.gmra.mxu0 %v5974
        %v6016 = vpop.f32.mrf.mxu0
        %v6017 = vadd.f32 0.0, %v6016
        %v6018 = vpop.f32.mrf.mxu0
        %v6019 = vadd.f32 0.0, %v6018
        %6020 = vmatmul.bf16.gmra.mxu0 %v5977
        %v6021 = vpop.f32.mrf.mxu0
        %v6022 = vadd.f32 0.0, %v6021
        %v6023 = vpop.f32.mrf.mxu0
        %v6024 = vadd.f32 0.0, %v6023
        %6025 = vmatmul.bf16.gmra.mxu0 %v5980
        %v6026 = vpop.f32.mrf.mxu0
        %v6027 = vadd.f32 0.0, %v6026
        %v6028 = vpop.f32.mrf.mxu0
        %v6029 = vadd.f32 0.0, %v6028
        %6030 = vdwg.mxu0
        %v6031 = vadd.f32 %v5860, %v5992
        %v6032 = vadd.f32 %v5861, %v5994
        %v6033 = vadd.f32 %v5862, %v5997
        %v6034 = vadd.f32 %v5863, %v5999
        %v6035 = vadd.f32 %v5864, %v6002
        %v6036 = vadd.f32 %v5865, %v6004
        %v6037 = vadd.f32 %v5866, %v6007
        %v6038 = vadd.f32 %v5867, %v6009
        %v6039 = vadd.f32 %v5868, %v6012
        %v6040 = vadd.f32 %v5869, %v6014
        %v6041 = vadd.f32 %v5870, %v6017
        %v6042 = vadd.f32 %v5871, %v6019
        %v6043 = vadd.f32 %v5872, %v6022
        %v6044 = vadd.f32 %v5873, %v6024
        %v6045 = vadd.f32 %v5874, %v6027
        %v6046 = vadd.f32 %v5875, %v6029
        %s6047 = scalar_lea.vmem %s368, 16
        %v6048 = vld [vmem:[%s6047] sm:$0xf]
        %v6049 = vld [vmem:[%s6047 + $0x8] sm:$0xf]
        %v6050 = vld [vmem:[%s6047 + $0x10] sm:$0xf]
        %v6051 = vld [vmem:[%s6047 + $0x18] sm:$0xf]
        %v6052 = vld [vmem:[%s6047 + $0x20] sm:$0xf]
        %v6053 = vld [vmem:[%s6047 + $0x28] sm:$0xf]
        %v6054 = vld [vmem:[%s6047 + $0x30] sm:$0xf]
        %v6055 = vld [vmem:[%s6047 + $0x38] sm:$0xf]
        %v6056 = vld [vmem:[%s6047 + $0x50] sm:$0xf]
        %v6057 = vld [vmem:[%s6047 + $0x58] sm:$0xf]
        %v6058 = vld [vmem:[%s6047 + $0x60] sm:$0xf]
        %v6059 = vld [vmem:[%s6047 + $0x68] sm:$0xf]
        %v6060 = vld [vmem:[%s6047 + $0x70] sm:$0xf]
        %v6061 = vld [vmem:[%s6047 + $0x78] sm:$0xf]
        %v6062 = vld [vmem:[%s6047 + $0x80] sm:$0xf]
        %v6063 = vld [vmem:[%s6047 + $0x88] sm:$0xf]
        %s6064 = scalar_lea.vmem %s4, 504
        %v6065 = vld [vmem:[%s6064] sm:$0xf]
        %v6066 = vld [vmem:[%s6064 + $0x4] sm:$0xf]
        %v6067 = vld [vmem:[%s6064 + $0x8] sm:$0xf]
        %v6068 = vld [vmem:[%s6064 + $0xc] sm:$0xf]
        %v6069 = vld [vmem:[%s6064 + $0x10] sm:$0xf]
        %v6070 = vld [vmem:[%s6064 + $0x14] sm:$0xf]
        %v6087 = vunpack.c.l.b16 %v6048
        %v6088 = vunpack.c.l.b16 %v6049
        %v6089 = vunpack.c.l.b16 %v6050
        %v6090 = vunpack.c.l.b16 %v6051
        %v6091 = vunpack.c.l.b16 %v6052
        %v6092 = vunpack.c.l.b16 %v6053
        %v6093 = vunpack.c.l.b16 %v6054
        %v6094 = vunpack.c.l.b16 %v6055
        %v6095 = vunpack.c.l.b16 %v6056
        %v6096 = vunpack.c.l.b16 %v6057
        %v6097 = vunpack.c.l.b16 %v6058
        %v6098 = vunpack.c.l.b16 %v6059
        %v6099 = vunpack.c.l.b16 %v6060
        %v6100 = vunpack.c.l.b16 %v6061
        %v6101 = vunpack.c.l.b16 %v6062
        %v6102 = vunpack.c.l.b16 %v6063
        %v6103 = vpack.c.b16 %v6088, %v6087
        %v6104 = vpack.c.b16 %v6090, %v6089
        %v6105 = vpack.c.b16 %v6092, %v6091
        %v6106 = vpack.c.b16 %v6094, %v6093
        %v6107 = vpack.c.b16 %v6096, %v6095
        %v6108 = vpack.c.b16 %v6098, %v6097
        %v6109 = vpack.c.b16 %v6100, %v6099
        %v6110 = vpack.c.b16 %v6102, %v6101
        %v6117 = vunpack.c.l.b16 %v6065
        %v6118 = vunpack.c.l.b16 %v6066
        %v6119 = vunpack.c.l.b16 %v6067
        %v6120 = vunpack.c.l.b16 %v6068
        %v6121 = vunpack.c.l.b16 %v6069
        %v6122 = vunpack.c.l.b16 %v6070
        %v6123 = vpack.c.b16 %v6118, %v6117
        %v6124 = vpack.c.b16 %v6120, %v6119
        %v6125 = vpack.c.b16 %v6122, %v6121
        %v6130 = vsel %vm489, %v6103, 0
        %v6133 = vsel %vm489, %v6104, 0
        %v6136 = vsel %vm489, %v6105, 0
        %v6139 = vsel %vm489, %v6106, 0
        %v6142 = vsel %vm489, %v6107, 0
        %v6145 = vsel %vm489, %v6108, 0
        %v6148 = vsel %vm489, %v6109, 0
        %v6151 = vsel %vm489, %v6110, 0
        %6153 = vmatpush.bf16.msra.mxu0 0
        %6154 = vmatpush.bf16.msra.mxu0 0
        %6155 = vmatpush.bf16.msra.mxu0 0
        %6156 = vmatpush.bf16.msra.mxu0 0
        %6157 = vmatpush.bf16.msra.mxu0 0
        %6158 = vmatpush.bf16.msra.mxu0 %v6125
        %6159 = vmatpush.bf16.msra.mxu0 %v6124
        %6160 = vmatpush.bf16.msra.mxu0 %v6123
        %6161 = vmatmul.bf16.gmra.mxu0 %v6130
        %v6162 = vpop.f32.mrf.mxu0
        %v6163 = vadd.f32 0.0, %v6162
        %v6164 = vpop.f32.mrf.mxu0
        %v6165 = vadd.f32 0.0, %v6164
        %6166 = vmatmul.bf16.gmra.mxu0 %v6133
        %v6167 = vpop.f32.mrf.mxu0
        %v6168 = vadd.f32 0.0, %v6167
        %v6169 = vpop.f32.mrf.mxu0
        %v6170 = vadd.f32 0.0, %v6169
        %6171 = vmatmul.bf16.gmra.mxu0 %v6136
        %v6172 = vpop.f32.mrf.mxu0
        %v6173 = vadd.f32 0.0, %v6172
        %v6174 = vpop.f32.mrf.mxu0
        %v6175 = vadd.f32 0.0, %v6174
        %6176 = vmatmul.bf16.gmra.mxu0 %v6139
        %v6177 = vpop.f32.mrf.mxu0
        %v6178 = vadd.f32 0.0, %v6177
        %v6179 = vpop.f32.mrf.mxu0
        %v6180 = vadd.f32 0.0, %v6179
        %6181 = vmatmul.bf16.gmra.mxu0 %v6142
        %v6182 = vpop.f32.mrf.mxu0
        %v6183 = vadd.f32 0.0, %v6182
        %v6184 = vpop.f32.mrf.mxu0
        %v6185 = vadd.f32 0.0, %v6184
        %6186 = vmatmul.bf16.gmra.mxu0 %v6145
        %v6187 = vpop.f32.mrf.mxu0
        %v6188 = vadd.f32 0.0, %v6187
        %v6189 = vpop.f32.mrf.mxu0
        %v6190 = vadd.f32 0.0, %v6189
        %6191 = vmatmul.bf16.gmra.mxu0 %v6148
        %v6192 = vpop.f32.mrf.mxu0
        %v6193 = vadd.f32 0.0, %v6192
        %v6194 = vpop.f32.mrf.mxu0
        %v6195 = vadd.f32 0.0, %v6194
        %6196 = vmatmul.bf16.gmra.mxu0 %v6151
        %v6197 = vpop.f32.mrf.mxu0
        %v6198 = vadd.f32 0.0, %v6197
        %v6199 = vpop.f32.mrf.mxu0
        %v6200 = vadd.f32 0.0, %v6199
        %6201 = vdwg.mxu0
        %v6202 = vadd.f32 %v6031, %v6163
        %v6203 = vadd.f32 %v6032, %v6165
        %v6204 = vadd.f32 %v6033, %v6168
        %v6205 = vadd.f32 %v6034, %v6170
        %v6206 = vadd.f32 %v6035, %v6173
        %v6207 = vadd.f32 %v6036, %v6175
        %v6208 = vadd.f32 %v6037, %v6178
        %v6209 = vadd.f32 %v6038, %v6180
        %v6210 = vadd.f32 %v6039, %v6183
        %v6211 = vadd.f32 %v6040, %v6185
        %v6212 = vadd.f32 %v6041, %v6188
        %v6213 = vadd.f32 %v6042, %v6190
        %v6214 = vadd.f32 %v6043, %v6193
        %v6215 = vadd.f32 %v6044, %v6195
        %v6216 = vadd.f32 %v6045, %v6198
        %v6217 = vadd.f32 %v6046, %v6200
        %v6218 = vld [vmem:[%s5876] sm:$0xf]
        %v6219 = vld [vmem:[%s5876 + $0x4] sm:$0x1]
        %v6220 = vld [vmem:[%s5876 + $0x8] sm:$0xf]
        %v6221 = vld [vmem:[%s5876 + $0xc] sm:$0x1]
        %v6222 = vld [vmem:[%s5876 + $0x10] sm:$0xf]
        %v6223 = vld [vmem:[%s5876 + $0x14] sm:$0x1]
        %v6224 = vld [vmem:[%s5876 + $0x18] sm:$0xf]
        %v6225 = vld [vmem:[%s5876 + $0x1c] sm:$0x1]
        %v6226 = vld [vmem:[%s5876 + $0x20] sm:$0xf]
        %v6227 = vld [vmem:[%s5876 + $0x24] sm:$0x1]
        %v6228 = vld [vmem:[%s5876 + $0x28] sm:$0xf]
        %v6229 = vld [vmem:[%s5876 + $0x2c] sm:$0x1]
        %v6230 = vld [vmem:[%s5876 + $0x30] sm:$0xf]
        %v6231 = vld [vmem:[%s5876 + $0x34] sm:$0x1]
        %v6232 = vld [vmem:[%s5876 + $0x38] sm:$0xf]
        %v6233 = vld [vmem:[%s5876 + $0x3c] sm:$0x1]
        %v6234 = vld [vmem:[%s5876 + $0x50] sm:$0xf]
        %v6235 = vld [vmem:[%s5876 + $0x54] sm:$0x1]
        %v6236 = vld [vmem:[%s5876 + $0x58] sm:$0xf]
        %v6237 = vld [vmem:[%s5876 + $0x5c] sm:$0x1]
        %v6238 = vld [vmem:[%s5876 + $0x60] sm:$0xf]
        %v6239 = vld [vmem:[%s5876 + $0x64] sm:$0x1]
        %v6240 = vld [vmem:[%s5876 + $0x68] sm:$0xf]
        %v6241 = vld [vmem:[%s5876 + $0x6c] sm:$0x1]
        %v6242 = vld [vmem:[%s5876 + $0x70] sm:$0xf]
        %v6243 = vld [vmem:[%s5876 + $0x74] sm:$0x1]
        %v6244 = vld [vmem:[%s5876 + $0x78] sm:$0xf]
        %v6245 = vld [vmem:[%s5876 + $0x7c] sm:$0x1]
        %v6246 = vld [vmem:[%s5876 + $0x80] sm:$0xf]
        %v6247 = vld [vmem:[%s5876 + $0x84] sm:$0x1]
        %v6248 = vld [vmem:[%s5876 + $0x88] sm:$0xf]
        %v6249 = vld [vmem:[%s5876 + $0x8c] sm:$0x1]
        %v6251 = vshrl.u32 %v6218, 16
        %v6253 = vrot.slane %v6251, 4
        %v6254 = vshll.u32 %v6218, 16
        %v6256 = vrot.slane %v6254, 5
        %v6257 = vor.u32 %v6253, %v6256
        %v6258 = vrot.slane %v6257, 4
        %v6260 = vshll.u32 %v6219, 16
        %v6262 = vrot.slane %v6260, 5
        %v6263 = vsel %vm728, %v6258, %v6262
        %v6265 = vshrl.u32 %v6220, 16
        %v6267 = vrot.slane %v6265, 4
        %v6268 = vshll.u32 %v6220, 16
        %v6270 = vrot.slane %v6268, 5
        %v6271 = vor.u32 %v6267, %v6270
        %v6272 = vrot.slane %v6271, 4
        %v6274 = vshll.u32 %v6221, 16
        %v6276 = vrot.slane %v6274, 5
        %v6277 = vsel %vm728, %v6272, %v6276
        %v6279 = vshrl.u32 %v6222, 16
        %v6281 = vrot.slane %v6279, 4
        %v6282 = vshll.u32 %v6222, 16
        %v6284 = vrot.slane %v6282, 5
        %v6285 = vor.u32 %v6281, %v6284
        %v6286 = vrot.slane %v6285, 4
        %v6288 = vshll.u32 %v6223, 16
        %v6290 = vrot.slane %v6288, 5
        %v6291 = vsel %vm728, %v6286, %v6290
        %v6293 = vshrl.u32 %v6224, 16
        %v6295 = vrot.slane %v6293, 4
        %v6296 = vshll.u32 %v6224, 16
        %v6298 = vrot.slane %v6296, 5
        %v6299 = vor.u32 %v6295, %v6298
        %v6300 = vrot.slane %v6299, 4
        %v6302 = vshll.u32 %v6225, 16
        %v6304 = vrot.slane %v6302, 5
        %v6305 = vsel %vm728, %v6300, %v6304
        %v6307 = vshrl.u32 %v6226, 16
        %v6309 = vrot.slane %v6307, 4
        %v6310 = vshll.u32 %v6226, 16
        %v6312 = vrot.slane %v6310, 5
        %v6313 = vor.u32 %v6309, %v6312
        %v6314 = vrot.slane %v6313, 4
        %v6316 = vshll.u32 %v6227, 16
        %v6318 = vrot.slane %v6316, 5
        %v6319 = vsel %vm728, %v6314, %v6318
        %v6321 = vshrl.u32 %v6228, 16
        %v6323 = vrot.slane %v6321, 4
        %v6324 = vshll.u32 %v6228, 16
        %v6326 = vrot.slane %v6324, 5
        %v6327 = vor.u32 %v6323, %v6326
        %v6328 = vrot.slane %v6327, 4
        %v6330 = vshll.u32 %v6229, 16
        %v6332 = vrot.slane %v6330, 5
        %v6333 = vsel %vm728, %v6328, %v6332
        %v6335 = vshrl.u32 %v6230, 16
        %v6337 = vrot.slane %v6335, 4
        %v6338 = vshll.u32 %v6230, 16
        %v6340 = vrot.slane %v6338, 5
        %v6341 = vor.u32 %v6337, %v6340
        %v6342 = vrot.slane %v6341, 4
        %v6344 = vshll.u32 %v6231, 16
        %v6346 = vrot.slane %v6344, 5
        %v6347 = vsel %vm728, %v6342, %v6346
        %v6349 = vshrl.u32 %v6232, 16
        %v6351 = vrot.slane %v6349, 4
        %v6352 = vshll.u32 %v6232, 16
        %v6354 = vrot.slane %v6352, 5
        %v6355 = vor.u32 %v6351, %v6354
        %v6356 = vrot.slane %v6355, 4
        %v6358 = vshll.u32 %v6233, 16
        %v6360 = vrot.slane %v6358, 5
        %v6361 = vsel %vm728, %v6356, %v6360
        %v6363 = vshrl.u32 %v6234, 16
        %v6365 = vrot.slane %v6363, 4
        %v6366 = vshll.u32 %v6234, 16
        %v6368 = vrot.slane %v6366, 5
        %v6369 = vor.u32 %v6365, %v6368
        %v6370 = vrot.slane %v6369, 4
        %v6372 = vshll.u32 %v6235, 16
        %v6374 = vrot.slane %v6372, 5
        %v6375 = vsel %vm728, %v6370, %v6374
        %v6377 = vshrl.u32 %v6236, 16
        %v6379 = vrot.slane %v6377, 4
        %v6380 = vshll.u32 %v6236, 16
        %v6382 = vrot.slane %v6380, 5
        %v6383 = vor.u32 %v6379, %v6382
        %v6384 = vrot.slane %v6383, 4
        %v6386 = vshll.u32 %v6237, 16
        %v6388 = vrot.slane %v6386, 5
        %v6389 = vsel %vm728, %v6384, %v6388
        %v6391 = vshrl.u32 %v6238, 16
        %v6393 = vrot.slane %v6391, 4
        %v6394 = vshll.u32 %v6238, 16
        %v6396 = vrot.slane %v6394, 5
        %v6397 = vor.u32 %v6393, %v6396
        %v6398 = vrot.slane %v6397, 4
        %v6400 = vshll.u32 %v6239, 16
        %v6402 = vrot.slane %v6400, 5
        %v6403 = vsel %vm728, %v6398, %v6402
        %v6405 = vshrl.u32 %v6240, 16
        %v6407 = vrot.slane %v6405, 4
        %v6408 = vshll.u32 %v6240, 16
        %v6410 = vrot.slane %v6408, 5
        %v6411 = vor.u32 %v6407, %v6410
        %v6412 = vrot.slane %v6411, 4
        %v6414 = vshll.u32 %v6241, 16
        %v6416 = vrot.slane %v6414, 5
        %v6417 = vsel %vm728, %v6412, %v6416
        %v6419 = vshrl.u32 %v6242, 16
        %v6421 = vrot.slane %v6419, 4
        %v6422 = vshll.u32 %v6242, 16
        %v6424 = vrot.slane %v6422, 5
        %v6425 = vor.u32 %v6421, %v6424
        %v6426 = vrot.slane %v6425, 4
        %v6428 = vshll.u32 %v6243, 16
        %v6430 = vrot.slane %v6428, 5
        %v6431 = vsel %vm728, %v6426, %v6430
        %v6433 = vshrl.u32 %v6244, 16
        %v6435 = vrot.slane %v6433, 4
        %v6436 = vshll.u32 %v6244, 16
        %v6438 = vrot.slane %v6436, 5
        %v6439 = vor.u32 %v6435, %v6438
        %v6440 = vrot.slane %v6439, 4
        %v6442 = vshll.u32 %v6245, 16
        %v6444 = vrot.slane %v6442, 5
        %v6445 = vsel %vm728, %v6440, %v6444
        %v6447 = vshrl.u32 %v6246, 16
        %v6449 = vrot.slane %v6447, 4
        %v6450 = vshll.u32 %v6246, 16
        %v6452 = vrot.slane %v6450, 5
        %v6453 = vor.u32 %v6449, %v6452
        %v6454 = vrot.slane %v6453, 4
        %v6456 = vshll.u32 %v6247, 16
        %v6458 = vrot.slane %v6456, 5
        %v6459 = vsel %vm728, %v6454, %v6458
        %v6461 = vshrl.u32 %v6248, 16
        %v6463 = vrot.slane %v6461, 4
        %v6464 = vshll.u32 %v6248, 16
        %v6466 = vrot.slane %v6464, 5
        %v6467 = vor.u32 %v6463, %v6466
        %v6468 = vrot.slane %v6467, 4
        %v6470 = vshll.u32 %v6249, 16
        %v6472 = vrot.slane %v6470, 5
        %v6473 = vsel %vm728, %v6468, %v6472
        %s6474 = scalar_lea.vmem %s4, 528
        %v6475 = vld [vmem:[%s6474] sm:$0xf]
        %v6476 = vld [vmem:[%s6474 + $0x4] sm:$0xf]
        %v6477 = vld [vmem:[%s6474 + $0x8] sm:$0xf]
        %v6478 = vld [vmem:[%s6474 + $0xc] sm:$0xf]
        %v6479 = vld [vmem:[%s6474 + $0x10] sm:$0xf]
        %v6480 = vld [vmem:[%s6474 + $0x14] sm:$0xf]
        %v6481 = vunpack.c.l.b16 %v6263
        %v6482 = vunpack.c.l.b16 %v6277
        %v6483 = vunpack.c.l.b16 %v6291
        %v6484 = vunpack.c.l.b16 %v6305
        %v6485 = vunpack.c.l.b16 %v6319
        %v6486 = vunpack.c.l.b16 %v6333
        %v6487 = vunpack.c.l.b16 %v6347
        %v6488 = vunpack.c.l.b16 %v6361
        %v6489 = vunpack.c.l.b16 %v6375
        %v6490 = vunpack.c.l.b16 %v6389
        %v6491 = vunpack.c.l.b16 %v6403
        %v6492 = vunpack.c.l.b16 %v6417
        %v6493 = vunpack.c.l.b16 %v6431
        %v6494 = vunpack.c.l.b16 %v6445
        %v6495 = vunpack.c.l.b16 %v6459
        %v6496 = vunpack.c.l.b16 %v6473
        %v6497 = vpack.c.b16 %v6482, %v6481
        %v6498 = vpack.c.b16 %v6484, %v6483
        %v6499 = vpack.c.b16 %v6486, %v6485
        %v6500 = vpack.c.b16 %v6488, %v6487
        %v6501 = vpack.c.b16 %v6490, %v6489
        %v6502 = vpack.c.b16 %v6492, %v6491
        %v6503 = vpack.c.b16 %v6494, %v6493
        %v6504 = vpack.c.b16 %v6496, %v6495
        %v6511 = vunpack.c.l.b16 %v6475
        %v6512 = vunpack.c.l.b16 %v6476
        %v6513 = vunpack.c.l.b16 %v6477
        %v6514 = vunpack.c.l.b16 %v6478
        %v6515 = vunpack.c.l.b16 %v6479
        %v6516 = vunpack.c.l.b16 %v6480
        %v6517 = vpack.c.b16 %v6512, %v6511
        %v6518 = vpack.c.b16 %v6514, %v6513
        %v6519 = vpack.c.b16 %v6516, %v6515
        %v6524 = vsel %vm489, %v6497, 0
        %v6527 = vsel %vm489, %v6498, 0
        %v6530 = vsel %vm489, %v6499, 0
        %v6533 = vsel %vm489, %v6500, 0
        %v6536 = vsel %vm489, %v6501, 0
        %v6539 = vsel %vm489, %v6502, 0
        %v6542 = vsel %vm489, %v6503, 0
        %v6545 = vsel %vm489, %v6504, 0
        %6547 = vmatpush.bf16.msra.mxu0 0
        %6548 = vmatpush.bf16.msra.mxu0 0
        %6549 = vmatpush.bf16.msra.mxu0 0
        %6550 = vmatpush.bf16.msra.mxu0 0
        %6551 = vmatpush.bf16.msra.mxu0 0
        %6552 = vmatpush.bf16.msra.mxu0 %v6519
        %6553 = vmatpush.bf16.msra.mxu0 %v6518
        %6554 = vmatpush.bf16.msra.mxu0 %v6517
        %6555 = vmatmul.bf16.gmra.mxu0 %v6524
        %v6556 = vpop.f32.mrf.mxu0
        %v6557 = vadd.f32 0.0, %v6556
        %v6558 = vpop.f32.mrf.mxu0
        %v6559 = vadd.f32 0.0, %v6558
        %6560 = vmatmul.bf16.gmra.mxu0 %v6527
        %v6561 = vpop.f32.mrf.mxu0
        %v6562 = vadd.f32 0.0, %v6561
        %v6563 = vpop.f32.mrf.mxu0
        %v6564 = vadd.f32 0.0, %v6563
        %6565 = vmatmul.bf16.gmra.mxu0 %v6530
        %v6566 = vpop.f32.mrf.mxu0
        %v6567 = vadd.f32 0.0, %v6566
        %v6568 = vpop.f32.mrf.mxu0
        %v6569 = vadd.f32 0.0, %v6568
        %6570 = vmatmul.bf16.gmra.mxu0 %v6533
        %v6571 = vpop.f32.mrf.mxu0
        %v6572 = vadd.f32 0.0, %v6571
        %v6573 = vpop.f32.mrf.mxu0
        %v6574 = vadd.f32 0.0, %v6573
        %6575 = vmatmul.bf16.gmra.mxu0 %v6536
        %v6576 = vpop.f32.mrf.mxu0
        %v6577 = vadd.f32 0.0, %v6576
        %v6578 = vpop.f32.mrf.mxu0
        %v6579 = vadd.f32 0.0, %v6578
        %6580 = vmatmul.bf16.gmra.mxu0 %v6539
        %v6581 = vpop.f32.mrf.mxu0
        %v6582 = vadd.f32 0.0, %v6581
        %v6583 = vpop.f32.mrf.mxu0
        %v6584 = vadd.f32 0.0, %v6583
        %6585 = vmatmul.bf16.gmra.mxu0 %v6542
        %v6586 = vpop.f32.mrf.mxu0
        %v6587 = vadd.f32 0.0, %v6586
        %v6588 = vpop.f32.mrf.mxu0
        %v6589 = vadd.f32 0.0, %v6588
        %6590 = vmatmul.bf16.gmra.mxu0 %v6545
        %v6591 = vpop.f32.mrf.mxu0
        %v6592 = vadd.f32 0.0, %v6591
        %v6593 = vpop.f32.mrf.mxu0
        %v6594 = vadd.f32 0.0, %v6593
        %6595 = vdwg.mxu0
        %v6596 = vadd.f32 %v6202, %v6557
        %v6597 = vadd.f32 %v6203, %v6559
        %v6598 = vadd.f32 %v6204, %v6562
        %v6599 = vadd.f32 %v6205, %v6564
        %v6600 = vadd.f32 %v6206, %v6567
        %v6601 = vadd.f32 %v6207, %v6569
        %v6602 = vadd.f32 %v6208, %v6572
        %v6603 = vadd.f32 %v6209, %v6574
        %v6604 = vadd.f32 %v6210, %v6577
        %v6605 = vadd.f32 %v6211, %v6579
        %v6606 = vadd.f32 %v6212, %v6582
        %v6607 = vadd.f32 %v6213, %v6584
        %v6608 = vadd.f32 %v6214, %v6587
        %v6609 = vadd.f32 %v6215, %v6589
        %v6610 = vadd.f32 %v6216, %v6592
        %v6611 = vadd.f32 %v6217, %v6594
        %v6612 = vld [vmem:[%s6047] sm:$0xf]
        %v6613 = vld [vmem:[%s6047 + $0x4] sm:$0x1]
        %v6614 = vld [vmem:[%s6047 + $0x8] sm:$0xf]
        %v6615 = vld [vmem:[%s6047 + $0xc] sm:$0x1]
        %v6616 = vld [vmem:[%s6047 + $0x10] sm:$0xf]
        %v6617 = vld [vmem:[%s6047 + $0x14] sm:$0x1]
        %v6618 = vld [vmem:[%s6047 + $0x18] sm:$0xf]
        %v6619 = vld [vmem:[%s6047 + $0x1c] sm:$0x1]
        %v6620 = vld [vmem:[%s6047 + $0x20] sm:$0xf]
        %v6621 = vld [vmem:[%s6047 + $0x24] sm:$0x1]
        %v6622 = vld [vmem:[%s6047 + $0x28] sm:$0xf]
        %v6623 = vld [vmem:[%s6047 + $0x2c] sm:$0x1]
        %v6624 = vld [vmem:[%s6047 + $0x30] sm:$0xf]
        %v6625 = vld [vmem:[%s6047 + $0x34] sm:$0x1]
        %v6626 = vld [vmem:[%s6047 + $0x38] sm:$0xf]
        %v6627 = vld [vmem:[%s6047 + $0x3c] sm:$0x1]
        %v6628 = vld [vmem:[%s6047 + $0x50] sm:$0xf]
        %v6629 = vld [vmem:[%s6047 + $0x54] sm:$0x1]
        %v6630 = vld [vmem:[%s6047 + $0x58] sm:$0xf]
        %v6631 = vld [vmem:[%s6047 + $0x5c] sm:$0x1]
        %v6632 = vld [vmem:[%s6047 + $0x60] sm:$0xf]
        %v6633 = vld [vmem:[%s6047 + $0x64] sm:$0x1]
        %v6634 = vld [vmem:[%s6047 + $0x68] sm:$0xf]
        %v6635 = vld [vmem:[%s6047 + $0x6c] sm:$0x1]
        %v6636 = vld [vmem:[%s6047 + $0x70] sm:$0xf]
        %v6637 = vld [vmem:[%s6047 + $0x74] sm:$0x1]
        %v6638 = vld [vmem:[%s6047 + $0x78] sm:$0xf]
        %v6639 = vld [vmem:[%s6047 + $0x7c] sm:$0x1]
        %v6640 = vld [vmem:[%s6047 + $0x80] sm:$0xf]
        %v6641 = vld [vmem:[%s6047 + $0x84] sm:$0x1]
        %v6642 = vld [vmem:[%s6047 + $0x88] sm:$0xf]
        %v6643 = vld [vmem:[%s6047 + $0x8c] sm:$0x1]
        %v6645 = vshrl.u32 %v6612, 16
        %v6647 = vrot.slane %v6645, 4
        %v6648 = vshll.u32 %v6612, 16
        %v6650 = vrot.slane %v6648, 5
        %v6651 = vor.u32 %v6647, %v6650
        %v6652 = vrot.slane %v6651, 4
        %v6654 = vshll.u32 %v6613, 16
        %v6656 = vrot.slane %v6654, 5
        %v6657 = vsel %vm728, %v6652, %v6656
        %v6659 = vshrl.u32 %v6614, 16
        %v6661 = vrot.slane %v6659, 4
        %v6662 = vshll.u32 %v6614, 16
        %v6664 = vrot.slane %v6662, 5
        %v6665 = vor.u32 %v6661, %v6664
        %v6666 = vrot.slane %v6665, 4
        %v6668 = vshll.u32 %v6615, 16
        %v6670 = vrot.slane %v6668, 5
        %v6671 = vsel %vm728, %v6666, %v6670
        %v6673 = vshrl.u32 %v6616, 16
        %v6675 = vrot.slane %v6673, 4
        %v6676 = vshll.u32 %v6616, 16
        %v6678 = vrot.slane %v6676, 5
        %v6679 = vor.u32 %v6675, %v6678
        %v6680 = vrot.slane %v6679, 4
        %v6682 = vshll.u32 %v6617, 16
        %v6684 = vrot.slane %v6682, 5
        %v6685 = vsel %vm728, %v6680, %v6684
        %v6687 = vshrl.u32 %v6618, 16
        %v6689 = vrot.slane %v6687, 4
        %v6690 = vshll.u32 %v6618, 16
        %v6692 = vrot.slane %v6690, 5
        %v6693 = vor.u32 %v6689, %v6692
        %v6694 = vrot.slane %v6693, 4
        %v6696 = vshll.u32 %v6619, 16
        %v6698 = vrot.slane %v6696, 5
        %v6699 = vsel %vm728, %v6694, %v6698
        %v6701 = vshrl.u32 %v6620, 16
        %v6703 = vrot.slane %v6701, 4
        %v6704 = vshll.u32 %v6620, 16
        %v6706 = vrot.slane %v6704, 5
        %v6707 = vor.u32 %v6703, %v6706
        %v6708 = vrot.slane %v6707, 4
        %v6710 = vshll.u32 %v6621, 16
        %v6712 = vrot.slane %v6710, 5
        %v6713 = vsel %vm728, %v6708, %v6712
        %v6715 = vshrl.u32 %v6622, 16
        %v6717 = vrot.slane %v6715, 4
        %v6718 = vshll.u32 %v6622, 16
        %v6720 = vrot.slane %v6718, 5
        %v6721 = vor.u32 %v6717, %v6720
        %v6722 = vrot.slane %v6721, 4
        %v6724 = vshll.u32 %v6623, 16
        %v6726 = vrot.slane %v6724, 5
        %v6727 = vsel %vm728, %v6722, %v6726
        %v6729 = vshrl.u32 %v6624, 16
        %v6731 = vrot.slane %v6729, 4
        %v6732 = vshll.u32 %v6624, 16
        %v6734 = vrot.slane %v6732, 5
        %v6735 = vor.u32 %v6731, %v6734
        %v6736 = vrot.slane %v6735, 4
        %v6738 = vshll.u32 %v6625, 16
        %v6740 = vrot.slane %v6738, 5
        %v6741 = vsel %vm728, %v6736, %v6740
        %v6743 = vshrl.u32 %v6626, 16
        %v6745 = vrot.slane %v6743, 4
        %v6746 = vshll.u32 %v6626, 16
        %v6748 = vrot.slane %v6746, 5
        %v6749 = vor.u32 %v6745, %v6748
        %v6750 = vrot.slane %v6749, 4
        %v6752 = vshll.u32 %v6627, 16
        %v6754 = vrot.slane %v6752, 5
        %v6755 = vsel %vm728, %v6750, %v6754
        %v6757 = vshrl.u32 %v6628, 16
        %v6759 = vrot.slane %v6757, 4
        %v6760 = vshll.u32 %v6628, 16
        %v6762 = vrot.slane %v6760, 5
        %v6763 = vor.u32 %v6759, %v6762
        %v6764 = vrot.slane %v6763, 4
        %v6766 = vshll.u32 %v6629, 16
        %v6768 = vrot.slane %v6766, 5
        %v6769 = vsel %vm728, %v6764, %v6768
        %v6771 = vshrl.u32 %v6630, 16
        %v6773 = vrot.slane %v6771, 4
        %v6774 = vshll.u32 %v6630, 16
        %v6776 = vrot.slane %v6774, 5
        %v6777 = vor.u32 %v6773, %v6776
        %v6778 = vrot.slane %v6777, 4
        %v6780 = vshll.u32 %v6631, 16
        %v6782 = vrot.slane %v6780, 5
        %v6783 = vsel %vm728, %v6778, %v6782
        %v6785 = vshrl.u32 %v6632, 16
        %v6787 = vrot.slane %v6785, 4
        %v6788 = vshll.u32 %v6632, 16
        %v6790 = vrot.slane %v6788, 5
        %v6791 = vor.u32 %v6787, %v6790
        %v6792 = vrot.slane %v6791, 4
        %v6794 = vshll.u32 %v6633, 16
        %v6796 = vrot.slane %v6794, 5
        %v6797 = vsel %vm728, %v6792, %v6796
        %v6799 = vshrl.u32 %v6634, 16
        %v6801 = vrot.slane %v6799, 4
        %v6802 = vshll.u32 %v6634, 16
        %v6804 = vrot.slane %v6802, 5
        %v6805 = vor.u32 %v6801, %v6804
        %v6806 = vrot.slane %v6805, 4
        %v6808 = vshll.u32 %v6635, 16
        %v6810 = vrot.slane %v6808, 5
        %v6811 = vsel %vm728, %v6806, %v6810
        %v6813 = vshrl.u32 %v6636, 16
        %v6815 = vrot.slane %v6813, 4
        %v6816 = vshll.u32 %v6636, 16
        %v6818 = vrot.slane %v6816, 5
        %v6819 = vor.u32 %v6815, %v6818
        %v6820 = vrot.slane %v6819, 4
        %v6822 = vshll.u32 %v6637, 16
        %v6824 = vrot.slane %v6822, 5
        %v6825 = vsel %vm728, %v6820, %v6824
        %v6827 = vshrl.u32 %v6638, 16
        %v6829 = vrot.slane %v6827, 4
        %v6830 = vshll.u32 %v6638, 16
        %v6832 = vrot.slane %v6830, 5
        %v6833 = vor.u32 %v6829, %v6832
        %v6834 = vrot.slane %v6833, 4
        %v6836 = vshll.u32 %v6639, 16
        %v6838 = vrot.slane %v6836, 5
        %v6839 = vsel %vm728, %v6834, %v6838
        %v6841 = vshrl.u32 %v6640, 16
        %v6843 = vrot.slane %v6841, 4
        %v6844 = vshll.u32 %v6640, 16
        %v6846 = vrot.slane %v6844, 5
        %v6847 = vor.u32 %v6843, %v6846
        %v6848 = vrot.slane %v6847, 4
        %v6850 = vshll.u32 %v6641, 16
        %v6852 = vrot.slane %v6850, 5
        %v6853 = vsel %vm728, %v6848, %v6852
        %v6855 = vshrl.u32 %v6642, 16
        %v6857 = vrot.slane %v6855, 4
        %v6858 = vshll.u32 %v6642, 16
        %v6860 = vrot.slane %v6858, 5
        %v6861 = vor.u32 %v6857, %v6860
        %v6862 = vrot.slane %v6861, 4
        %v6864 = vshll.u32 %v6643, 16
        %v6866 = vrot.slane %v6864, 5
        %v6867 = vsel %vm728, %v6862, %v6866
        %s6868 = scalar_lea.vmem %s4, 552
        %v6869 = vld [vmem:[%s6868] sm:$0xf]
        %v6870 = vld [vmem:[%s6868 + $0x4] sm:$0xf]
        %v6871 = vld [vmem:[%s6868 + $0x8] sm:$0xf]
        %v6872 = vld [vmem:[%s6868 + $0xc] sm:$0xf]
        %v6873 = vld [vmem:[%s6868 + $0x10] sm:$0xf]
        %v6874 = vld [vmem:[%s6868 + $0x14] sm:$0xf]
        %v6875 = vunpack.c.l.b16 %v6657
        %v6876 = vunpack.c.l.b16 %v6671
        %v6877 = vunpack.c.l.b16 %v6685
        %v6878 = vunpack.c.l.b16 %v6699
        %v6879 = vunpack.c.l.b16 %v6713
        %v6880 = vunpack.c.l.b16 %v6727
        %v6881 = vunpack.c.l.b16 %v6741
        %v6882 = vunpack.c.l.b16 %v6755
        %v6883 = vunpack.c.l.b16 %v6769
        %v6884 = vunpack.c.l.b16 %v6783
        %v6885 = vunpack.c.l.b16 %v6797
        %v6886 = vunpack.c.l.b16 %v6811
        %v6887 = vunpack.c.l.b16 %v6825
        %v6888 = vunpack.c.l.b16 %v6839
        %v6889 = vunpack.c.l.b16 %v6853
        %v6890 = vunpack.c.l.b16 %v6867
        %v6891 = vpack.c.b16 %v6876, %v6875
        %v6892 = vpack.c.b16 %v6878, %v6877
        %v6893 = vpack.c.b16 %v6880, %v6879
        %v6894 = vpack.c.b16 %v6882, %v6881
        %v6895 = vpack.c.b16 %v6884, %v6883
        %v6896 = vpack.c.b16 %v6886, %v6885
        %v6897 = vpack.c.b16 %v6888, %v6887
        %v6898 = vpack.c.b16 %v6890, %v6889
        %v6905 = vunpack.c.l.b16 %v6869
        %v6906 = vunpack.c.l.b16 %v6870
        %v6907 = vunpack.c.l.b16 %v6871
        %v6908 = vunpack.c.l.b16 %v6872
        %v6909 = vunpack.c.l.b16 %v6873
        %v6910 = vunpack.c.l.b16 %v6874
        %v6911 = vpack.c.b16 %v6906, %v6905
        %v6912 = vpack.c.b16 %v6908, %v6907
        %v6913 = vpack.c.b16 %v6910, %v6909
        %v6918 = vsel %vm489, %v6891, 0
        %v6921 = vsel %vm489, %v6892, 0
        %v6924 = vsel %vm489, %v6893, 0
        %v6927 = vsel %vm489, %v6894, 0
        %v6930 = vsel %vm489, %v6895, 0
        %v6933 = vsel %vm489, %v6896, 0
        %v6936 = vsel %vm489, %v6897, 0
        %v6939 = vsel %vm489, %v6898, 0
        %6941 = vmatpush.bf16.msra.mxu0 0
        %6942 = vmatpush.bf16.msra.mxu0 0
        %6943 = vmatpush.bf16.msra.mxu0 0
        %6944 = vmatpush.bf16.msra.mxu0 0
        %6945 = vmatpush.bf16.msra.mxu0 0
        %6946 = vmatpush.bf16.msra.mxu0 %v6913
        %6947 = vmatpush.bf16.msra.mxu0 %v6912
        %6948 = vmatpush.bf16.msra.mxu0 %v6911
        %6949 = vmatmul.bf16.gmra.mxu0 %v6918
        %v6950 = vpop.f32.mrf.mxu0
        %v6951 = vadd.f32 0.0, %v6950
        %v6952 = vpop.f32.mrf.mxu0
        %v6953 = vadd.f32 0.0, %v6952
        %6954 = vmatmul.bf16.gmra.mxu0 %v6921
        %v6955 = vpop.f32.mrf.mxu0
        %v6956 = vadd.f32 0.0, %v6955
        %v6957 = vpop.f32.mrf.mxu0
        %v6958 = vadd.f32 0.0, %v6957
        %6959 = vmatmul.bf16.gmra.mxu0 %v6924
        %v6960 = vpop.f32.mrf.mxu0
        %v6961 = vadd.f32 0.0, %v6960
        %v6962 = vpop.f32.mrf.mxu0
        %v6963 = vadd.f32 0.0, %v6962
        %6964 = vmatmul.bf16.gmra.mxu0 %v6927
        %v6965 = vpop.f32.mrf.mxu0
        %v6966 = vadd.f32 0.0, %v6965
        %v6967 = vpop.f32.mrf.mxu0
        %v6968 = vadd.f32 0.0, %v6967
        %6969 = vmatmul.bf16.gmra.mxu0 %v6930
        %v6970 = vpop.f32.mrf.mxu0
        %v6971 = vadd.f32 0.0, %v6970
        %v6972 = vpop.f32.mrf.mxu0
        %v6973 = vadd.f32 0.0, %v6972
        %6974 = vmatmul.bf16.gmra.mxu0 %v6933
        %v6975 = vpop.f32.mrf.mxu0
        %v6976 = vadd.f32 0.0, %v6975
        %v6977 = vpop.f32.mrf.mxu0
        %v6978 = vadd.f32 0.0, %v6977
        %6979 = vmatmul.bf16.gmra.mxu0 %v6936
        %v6980 = vpop.f32.mrf.mxu0
        %v6981 = vadd.f32 0.0, %v6980
        %v6982 = vpop.f32.mrf.mxu0
        %v6983 = vadd.f32 0.0, %v6982
        %6984 = vmatmul.bf16.gmra.mxu0 %v6939
        %v6985 = vpop.f32.mrf.mxu0
        %v6986 = vadd.f32 0.0, %v6985
        %v6987 = vpop.f32.mrf.mxu0
        %v6988 = vadd.f32 0.0, %v6987
        %6989 = vdwg.mxu0
        %v6990 = vadd.f32 %v6596, %v6951
        %v6991 = vadd.f32 %v6597, %v6953
        %v6992 = vadd.f32 %v6598, %v6956
        %v6993 = vadd.f32 %v6599, %v6958
        %v6994 = vadd.f32 %v6600, %v6961
        %v6995 = vadd.f32 %v6601, %v6963
        %v6996 = vadd.f32 %v6602, %v6966
        %v6997 = vadd.f32 %v6603, %v6968
        %v6998 = vadd.f32 %v6604, %v6971
        %v6999 = vadd.f32 %v6605, %v6973
        %v7000 = vadd.f32 %v6606, %v6976
        %v7001 = vadd.f32 %v6607, %v6978
        %v7002 = vadd.f32 %v6608, %v6981
        %v7003 = vadd.f32 %v6609, %v6983
        %v7004 = vadd.f32 %v6610, %v6986
        %v7005 = vadd.f32 %v6611, %v6988
        %v7006 = vld [vmem:[%s5876] sm:$0xe]
        %v7007 = vld [vmem:[%s5876 + $0x8] sm:$0xe]
        %v7008 = vld [vmem:[%s5876 + $0x10] sm:$0xe]
        %v7009 = vld [vmem:[%s5876 + $0x18] sm:$0xe]
        %v7010 = vld [vmem:[%s5876 + $0x20] sm:$0xe]
        %v7011 = vld [vmem:[%s5876 + $0x28] sm:$0xe]
        %v7012 = vld [vmem:[%s5876 + $0x30] sm:$0xe]
        %v7013 = vld [vmem:[%s5876 + $0x38] sm:$0xe]
        %v7014 = vld [vmem:[%s5876 + $0x50] sm:$0xe]
        %v7015 = vld [vmem:[%s5876 + $0x58] sm:$0xe]
        %v7016 = vld [vmem:[%s5876 + $0x60] sm:$0xe]
        %v7017 = vld [vmem:[%s5876 + $0x68] sm:$0xe]
        %v7018 = vld [vmem:[%s5876 + $0x70] sm:$0xe]
        %v7019 = vld [vmem:[%s5876 + $0x78] sm:$0xe]
        %v7020 = vld [vmem:[%s5876 + $0x80] sm:$0xe]
        %v7021 = vld [vmem:[%s5876 + $0x88] sm:$0xe]
        %v7054 = vrot.slane %v7006, 5
        %v7055 = vrot.slane %v7054, 4
        %v7056 = vrot.slane %v6219, 5
        %v7057 = vsel %vm1535, %v7055, %v7056
        %v7058 = vrot.slane %v7007, 5
        %v7059 = vrot.slane %v7058, 4
        %v7060 = vrot.slane %v6221, 5
        %v7061 = vsel %vm1535, %v7059, %v7060
        %v7062 = vrot.slane %v7008, 5
        %v7063 = vrot.slane %v7062, 4
        %v7064 = vrot.slane %v6223, 5
        %v7065 = vsel %vm1535, %v7063, %v7064
        %v7066 = vrot.slane %v7009, 5
        %v7067 = vrot.slane %v7066, 4
        %v7068 = vrot.slane %v6225, 5
        %v7069 = vsel %vm1535, %v7067, %v7068
        %v7070 = vrot.slane %v7010, 5
        %v7071 = vrot.slane %v7070, 4
        %v7072 = vrot.slane %v6227, 5
        %v7073 = vsel %vm1535, %v7071, %v7072
        %v7074 = vrot.slane %v7011, 5
        %v7075 = vrot.slane %v7074, 4
        %v7076 = vrot.slane %v6229, 5
        %v7077 = vsel %vm1535, %v7075, %v7076
        %v7078 = vrot.slane %v7012, 5
        %v7079 = vrot.slane %v7078, 4
        %v7080 = vrot.slane %v6231, 5
        %v7081 = vsel %vm1535, %v7079, %v7080
        %v7082 = vrot.slane %v7013, 5
        %v7083 = vrot.slane %v7082, 4
        %v7084 = vrot.slane %v6233, 5
        %v7085 = vsel %vm1535, %v7083, %v7084
        %v7086 = vrot.slane %v7014, 5
        %v7087 = vrot.slane %v7086, 4
        %v7088 = vrot.slane %v6235, 5
        %v7089 = vsel %vm1535, %v7087, %v7088
        %v7090 = vrot.slane %v7015, 5
        %v7091 = vrot.slane %v7090, 4
        %v7092 = vrot.slane %v6237, 5
        %v7093 = vsel %vm1535, %v7091, %v7092
        %v7094 = vrot.slane %v7016, 5
        %v7095 = vrot.slane %v7094, 4
        %v7096 = vrot.slane %v6239, 5
        %v7097 = vsel %vm1535, %v7095, %v7096
        %v7098 = vrot.slane %v7017, 5
        %v7099 = vrot.slane %v7098, 4
        %v7100 = vrot.slane %v6241, 5
        %v7101 = vsel %vm1535, %v7099, %v7100
        %v7102 = vrot.slane %v7018, 5
        %v7103 = vrot.slane %v7102, 4
        %v7104 = vrot.slane %v6243, 5
        %v7105 = vsel %vm1535, %v7103, %v7104
        %v7106 = vrot.slane %v7019, 5
        %v7107 = vrot.slane %v7106, 4
        %v7108 = vrot.slane %v6245, 5
        %v7109 = vsel %vm1535, %v7107, %v7108
        %v7110 = vrot.slane %v7020, 5
        %v7111 = vrot.slane %v7110, 4
        %v7112 = vrot.slane %v6247, 5
        %v7113 = vsel %vm1535, %v7111, %v7112
        %v7114 = vrot.slane %v7021, 5
        %v7115 = vrot.slane %v7114, 4
        %v7116 = vrot.slane %v6249, 5
        %v7117 = vsel %vm1535, %v7115, %v7116
        %s7118 = scalar_lea.vmem %s4, 576
        %v7119 = vld [vmem:[%s7118] sm:$0xf]
        %v7120 = vld [vmem:[%s7118 + $0x4] sm:$0xf]
        %v7121 = vld [vmem:[%s7118 + $0x8] sm:$0xf]
        %v7122 = vld [vmem:[%s7118 + $0xc] sm:$0xf]
        %v7123 = vld [vmem:[%s7118 + $0x10] sm:$0xf]
        %v7124 = vld [vmem:[%s7118 + $0x14] sm:$0xf]
        %v7125 = vunpack.c.l.b16 %v7057
        %v7126 = vunpack.c.l.b16 %v7061
        %v7127 = vunpack.c.l.b16 %v7065
        %v7128 = vunpack.c.l.b16 %v7069
        %v7129 = vunpack.c.l.b16 %v7073
        %v7130 = vunpack.c.l.b16 %v7077
        %v7131 = vunpack.c.l.b16 %v7081
        %v7132 = vunpack.c.l.b16 %v7085
        %v7133 = vunpack.c.l.b16 %v7089
        %v7134 = vunpack.c.l.b16 %v7093
        %v7135 = vunpack.c.l.b16 %v7097
        %v7136 = vunpack.c.l.b16 %v7101
        %v7137 = vunpack.c.l.b16 %v7105
        %v7138 = vunpack.c.l.b16 %v7109
        %v7139 = vunpack.c.l.b16 %v7113
        %v7140 = vunpack.c.l.b16 %v7117
        %v7141 = vpack.c.b16 %v7126, %v7125
        %v7142 = vpack.c.b16 %v7128, %v7127
        %v7143 = vpack.c.b16 %v7130, %v7129
        %v7144 = vpack.c.b16 %v7132, %v7131
        %v7145 = vpack.c.b16 %v7134, %v7133
        %v7146 = vpack.c.b16 %v7136, %v7135
        %v7147 = vpack.c.b16 %v7138, %v7137
        %v7148 = vpack.c.b16 %v7140, %v7139
        %v7155 = vunpack.c.l.b16 %v7119
        %v7156 = vunpack.c.l.b16 %v7120
        %v7157 = vunpack.c.l.b16 %v7121
        %v7158 = vunpack.c.l.b16 %v7122
        %v7159 = vunpack.c.l.b16 %v7123
        %v7160 = vunpack.c.l.b16 %v7124
        %v7161 = vpack.c.b16 %v7156, %v7155
        %v7162 = vpack.c.b16 %v7158, %v7157
        %v7163 = vpack.c.b16 %v7160, %v7159
        %v7168 = vsel %vm489, %v7141, 0
        %v7171 = vsel %vm489, %v7142, 0
        %v7174 = vsel %vm489, %v7143, 0
        %v7177 = vsel %vm489, %v7144, 0
        %v7180 = vsel %vm489, %v7145, 0
        %v7183 = vsel %vm489, %v7146, 0
        %v7186 = vsel %vm489, %v7147, 0
        %v7189 = vsel %vm489, %v7148, 0
        %7191 = vmatpush.bf16.msra.mxu0 0
        %7192 = vmatpush.bf16.msra.mxu0 0
        %7193 = vmatpush.bf16.msra.mxu0 0
        %7194 = vmatpush.bf16.msra.mxu0 0
        %7195 = vmatpush.bf16.msra.mxu0 0
        %7196 = vmatpush.bf16.msra.mxu0 %v7163
        %7197 = vmatpush.bf16.msra.mxu0 %v7162
        %7198 = vmatpush.bf16.msra.mxu0 %v7161
        %7199 = vmatmul.bf16.gmra.mxu0 %v7168
        %v7200 = vpop.f32.mrf.mxu0
        %v7201 = vadd.f32 0.0, %v7200
        %v7202 = vpop.f32.mrf.mxu0
        %v7203 = vadd.f32 0.0, %v7202
        %7204 = vmatmul.bf16.gmra.mxu0 %v7171
        %v7205 = vpop.f32.mrf.mxu0
        %v7206 = vadd.f32 0.0, %v7205
        %v7207 = vpop.f32.mrf.mxu0
        %v7208 = vadd.f32 0.0, %v7207
        %7209 = vmatmul.bf16.gmra.mxu0 %v7174
        %v7210 = vpop.f32.mrf.mxu0
        %v7211 = vadd.f32 0.0, %v7210
        %v7212 = vpop.f32.mrf.mxu0
        %v7213 = vadd.f32 0.0, %v7212
        %7214 = vmatmul.bf16.gmra.mxu0 %v7177
        %v7215 = vpop.f32.mrf.mxu0
        %v7216 = vadd.f32 0.0, %v7215
        %v7217 = vpop.f32.mrf.mxu0
        %v7218 = vadd.f32 0.0, %v7217
        %7219 = vmatmul.bf16.gmra.mxu0 %v7180
        %v7220 = vpop.f32.mrf.mxu0
        %v7221 = vadd.f32 0.0, %v7220
        %v7222 = vpop.f32.mrf.mxu0
        %v7223 = vadd.f32 0.0, %v7222
        %7224 = vmatmul.bf16.gmra.mxu0 %v7183
        %v7225 = vpop.f32.mrf.mxu0
        %v7226 = vadd.f32 0.0, %v7225
        %v7227 = vpop.f32.mrf.mxu0
        %v7228 = vadd.f32 0.0, %v7227
        %7229 = vmatmul.bf16.gmra.mxu0 %v7186
        %v7230 = vpop.f32.mrf.mxu0
        %v7231 = vadd.f32 0.0, %v7230
        %v7232 = vpop.f32.mrf.mxu0
        %v7233 = vadd.f32 0.0, %v7232
        %7234 = vmatmul.bf16.gmra.mxu0 %v7189
        %v7235 = vpop.f32.mrf.mxu0
        %v7236 = vadd.f32 0.0, %v7235
        %v7237 = vpop.f32.mrf.mxu0
        %v7238 = vadd.f32 0.0, %v7237
        %7239 = vdwg.mxu0
        %v7240 = vadd.f32 %v6990, %v7201
        %v7241 = vadd.f32 %v6991, %v7203
        %v7242 = vadd.f32 %v6992, %v7206
        %v7243 = vadd.f32 %v6993, %v7208
        %v7244 = vadd.f32 %v6994, %v7211
        %v7245 = vadd.f32 %v6995, %v7213
        %v7246 = vadd.f32 %v6996, %v7216
        %v7247 = vadd.f32 %v6997, %v7218
        %v7248 = vadd.f32 %v6998, %v7221
        %v7249 = vadd.f32 %v6999, %v7223
        %v7250 = vadd.f32 %v7000, %v7226
        %v7251 = vadd.f32 %v7001, %v7228
        %v7252 = vadd.f32 %v7002, %v7231
        %v7253 = vadd.f32 %v7003, %v7233
        %v7254 = vadd.f32 %v7004, %v7236
        %v7255 = vadd.f32 %v7005, %v7238
        %v7256 = vld [vmem:[%s5] sm:$0x1]
        %v7258 = vperm.slane %v7256, 0
        %v7260 = vadd.f32 %v7240, %v7258
        %v7261 = vadd.f32 %v7241, %v7258
        %v7262 = vadd.f32 %v7242, %v7258
        %v7263 = vadd.f32 %v7243, %v7258
        %v7264 = vadd.f32 %v7244, %v7258
        %v7265 = vadd.f32 %v7245, %v7258
        %v7266 = vadd.f32 %v7246, %v7258
        %v7267 = vadd.f32 %v7247, %v7258
        %v7268 = vadd.f32 %v7248, %v7258
        %v7269 = vadd.f32 %v7249, %v7258
        %v7270 = vadd.f32 %v7250, %v7258
        %v7271 = vadd.f32 %v7251, %v7258
        %v7272 = vadd.f32 %v7252, %v7258
        %v7273 = vadd.f32 %v7253, %v7258
        %v7274 = vadd.f32 %v7254, %v7258
        %v7275 = vadd.f32 %v7255, %v7258
        %vm7276 = vcmask 195584
        %7277 = vst.msk [vmem:[#allocation2] sm:$0xff] %vm7276, 0.0
        %7278 = vst.msk [vmem:[#allocation2 + $0x8] sm:$0xff] %vm7276, 0.0
        %vm7279 = vcmask 189440
        %7280 = vst.msk [vmem:[#allocation2 + $0x10] sm:$0x3] %vm7279, 0.0
        %7281 = vst.msk [vmem:[#allocation2 + $0x18] sm:$0xff] %vm7276, 0.0
        %7282 = vst.msk [vmem:[#allocation2 + $0x20] sm:$0xff] %vm7276, 0.0
        %7283 = vst.msk [vmem:[#allocation2 + $0x28] sm:$0x3] %vm7279, 0.0
        %7284 = vst.msk [vmem:[#allocation2 + $0x120] sm:$0xff] %vm7276, 0.0
        %7285 = vst.msk [vmem:[#allocation2 + $0x128] sm:$0xff] %vm7276, 0.0
        %7286 = vst.msk [vmem:[#allocation2 + $0x130] sm:$0x3] %vm7279, 0.0
        %7287 = vst.msk [vmem:[#allocation2 + $0x138] sm:$0xff] %vm7276, 0.0
        %7288 = vst.msk [vmem:[#allocation2 + $0x140] sm:$0xff] %vm7276, 0.0
        %7289 = vst.msk [vmem:[#allocation2 + $0x148] sm:$0x3] %vm7279, 0.0
        %s7290 = scalar_lea.vmem [#allocation2], 240
        %7291 = vst.msk [vmem:[%s7290] sm:$0xff] %vm7276, 0.0
        %7292 = vst.msk [vmem:[%s7290 + $0x8] sm:$0xff] %vm7276, 0.0
        %7293 = vst.msk [vmem:[%s7290 + $0x10] sm:$0x3] %vm7279, 0.0
        %7294 = vst.msk [vmem:[%s7290 + $0x18] sm:$0xff] %vm7276, 0.0
        %7295 = vst.msk [vmem:[%s7290 + $0x20] sm:$0xff] %vm7276, 0.0
        %7296 = vst.msk [vmem:[%s7290 + $0x28] sm:$0x3] %vm7279, 0.0
        %7297 = vst.msk [vmem:[%s7290 + $0x120] sm:$0xff] %vm7276, 0.0
        %7298 = vst.msk [vmem:[%s7290 + $0x128] sm:$0xff] %vm7276, 0.0
        %7299 = vst.msk [vmem:[%s7290 + $0x130] sm:$0x3] %vm7279, 0.0
        %7300 = vst.msk [vmem:[%s7290 + $0x138] sm:$0xff] %vm7276, 0.0
        %7301 = vst.msk [vmem:[%s7290 + $0x140] sm:$0xff] %vm7276, 0.0
        %7302 = vst.msk [vmem:[%s7290 + $0x148] sm:$0x3] %vm7279, 0.0
        %s7303 = scalar_lea.vmem [#allocation2], 48
        %7304 = vst.msk [vmem:[%s7303 + $0x6] sm:$0x3] %vm7279, 0.0
        %7305 = vst.msk [vmem:[%s7303 + $0x1e] sm:$0x3] %vm7279, 0.0
        %7306 = vst.msk [vmem:[%s7303 + $0x36] sm:$0x3] %vm7279, 0.0
        %7307 = vst.msk [vmem:[%s7303 + $0x4e] sm:$0x3] %vm7279, 0.0
        %7308 = vst.msk [vmem:[%s7303 + $0x66] sm:$0x3] %vm7279, 0.0
        %7309 = vst.msk [vmem:[%s7303 + $0x7e] sm:$0x3] %vm7279, 0.0
        %7310 = vst.msk [vmem:[%s7303 + $0x96] sm:$0x3] %vm7279, 0.0
        %7311 = vst.msk [vmem:[%s7303 + $0xae] sm:$0x3] %vm7279, 0.0
        %7312 = vst.msk [vmem:[%s7303 + $0x126] sm:$0x3] %vm7279, 0.0
        %7313 = vst.msk [vmem:[%s7303 + $0x13e] sm:$0x3] %vm7279, 0.0
        %7314 = vst.msk [vmem:[%s7303 + $0x156] sm:$0x3] %vm7279, 0.0
        %7315 = vst.msk [vmem:[%s7303 + $0x16e] sm:$0x3] %vm7279, 0.0
        %7316 = vst.msk [vmem:[%s7303 + $0x186] sm:$0x3] %vm7279, 0.0
        %7317 = vst.msk [vmem:[%s7303 + $0x19e] sm:$0x3] %vm7279, 0.0
        %7318 = vst.msk [vmem:[%s7303 + $0x1b6] sm:$0x3] %vm7279, 0.0
        %7319 = vst.msk [vmem:[%s7303 + $0x1ce] sm:$0x3] %vm7279, 0.0
        %7320 = vst.msk [vmem:[%s7303 + $0x10] sm:$0x3] %vm7279, 0.0
        %7321 = vst.msk [vmem:[%s7303 + $0x28] sm:$0x3] %vm7279, 0.0
        %7322 = vst.msk [vmem:[%s7303 + $0x40] sm:$0x3] %vm7279, 0.0
        %7323 = vst.msk [vmem:[%s7303 + $0x58] sm:$0x3] %vm7279, 0.0
        %7324 = vst.msk [vmem:[%s7303 + $0x70] sm:$0x3] %vm7279, 0.0
        %7325 = vst.msk [vmem:[%s7303 + $0x88] sm:$0x3] %vm7279, 0.0
        %7326 = vst.msk [vmem:[%s7303 + $0xa0] sm:$0x3] %vm7279, 0.0
        %7327 = vst.msk [vmem:[%s7303 + $0xb8] sm:$0x3] %vm7279, 0.0
        %7328 = vst.msk [vmem:[%s7303 + $0x130] sm:$0x3] %vm7279, 0.0
        %7329 = vst.msk [vmem:[%s7303 + $0x148] sm:$0x3] %vm7279, 0.0
        %7330 = vst.msk [vmem:[%s7303 + $0x160] sm:$0x3] %vm7279, 0.0
        %7331 = vst.msk [vmem:[%s7303 + $0x178] sm:$0x3] %vm7279, 0.0
        %7332 = vst.msk [vmem:[%s7303 + $0x190] sm:$0x3] %vm7279, 0.0
        %7333 = vst.msk [vmem:[%s7303 + $0x1a8] sm:$0x3] %vm7279, 0.0
        %7334 = vst.msk [vmem:[%s7303 + $0x1c0] sm:$0x3] %vm7279, 0.0
        %7335 = vst.msk [vmem:[%s7303 + $0x1d8] sm:$0x3] %vm7279, 0.0
        %v7336 = vmax.f32 %v7260, 0.0
        %v7337 = vmax.f32 %v7261, 0.0
        %v7338 = vmax.f32 %v7262, 0.0
        %v7339 = vmax.f32 %v7263, 0.0
        %v7340 = vmax.f32 %v7264, 0.0
        %v7341 = vmax.f32 %v7265, 0.0
        %v7342 = vmax.f32 %v7266, 0.0
        %v7343 = vmax.f32 %v7267, 0.0
        %v7344 = vmax.f32 %v7268, 0.0
        %v7345 = vmax.f32 %v7269, 0.0
        %v7346 = vmax.f32 %v7270, 0.0
        %v7347 = vmax.f32 %v7271, 0.0
        %v7348 = vmax.f32 %v7272, 0.0
        %v7349 = vmax.f32 %v7273, 0.0
        %v7350 = vmax.f32 %v7274, 0.0
        %v7351 = vmax.f32 %v7275, 0.0
        %7352 = vst.msk [vmem:[%s7303 + $0x8] sm:$0xff] %vm7276, %v7336
        %7353 = vst.msk [vmem:[%s7303 + $0x20] sm:$0xff] %vm7276, %v7337
        %7354 = vst.msk [vmem:[%s7303 + $0x38] sm:$0xff] %vm7276, %v7338
        %7355 = vst.msk [vmem:[%s7303 + $0x50] sm:$0xff] %vm7276, %v7339
        %7356 = vst.msk [vmem:[%s7303 + $0x68] sm:$0xff] %vm7276, %v7340
        %7357 = vst.msk [vmem:[%s7303 + $0x80] sm:$0xff] %vm7276, %v7341
        %7358 = vst.msk [vmem:[%s7303 + $0x98] sm:$0xff] %vm7276, %v7342
        %7359 = vst.msk [vmem:[%s7303 + $0xb0] sm:$0xff] %vm7276, %v7343
        %7360 = vst.msk [vmem:[%s7303 + $0x128] sm:$0xff] %vm7276, %v7344
        %7361 = vst.msk [vmem:[%s7303 + $0x140] sm:$0xff] %vm7276, %v7345
        %7362 = vst.msk [vmem:[%s7303 + $0x158] sm:$0xff] %vm7276, %v7346
        %7363 = vst.msk [vmem:[%s7303 + $0x170] sm:$0xff] %vm7276, %v7347
        %7364 = vst.msk [vmem:[%s7303 + $0x188] sm:$0xff] %vm7276, %v7348
        %7365 = vst.msk [vmem:[%s7303 + $0x1a0] sm:$0xff] %vm7276, %v7349
        %7366 = vst.msk [vmem:[%s7303 + $0x1b8] sm:$0xff] %vm7276, %v7350
        %7367 = vst.msk [vmem:[%s7303 + $0x1d0] sm:$0xff] %vm7276, %v7351
        %v7368 = vld [vmem:[#allocation2 + $0x6] sm:$0xff]
        %v7369 = vld [vmem:[#allocation2 + $0x1e] sm:$0xff]
        %v7370 = vld [vmem:[#allocation2 + $0x36] sm:$0xff]
        %v7371 = vld [vmem:[#allocation2 + $0x4e] sm:$0xff]
        %v7372 = vld [vmem:[#allocation2 + $0x66] sm:$0xff]
        %v7373 = vld [vmem:[#allocation2 + $0x7e] sm:$0xff]
        %v7374 = vld [vmem:[#allocation2 + $0x96] sm:$0xff]
        %v7375 = vld [vmem:[#allocation2 + $0xae] sm:$0xff]
        %v7376 = vld [vmem:[#allocation2 + $0x126] sm:$0xff]
        %v7377 = vld [vmem:[#allocation2 + $0x13e] sm:$0xff]
        %v7378 = vld [vmem:[#allocation2 + $0x156] sm:$0xff]
        %v7379 = vld [vmem:[#allocation2 + $0x16e] sm:$0xff]
        %v7380 = vld [vmem:[#allocation2 + $0x186] sm:$0xff]
        %v7381 = vld [vmem:[#allocation2 + $0x19e] sm:$0xff]
        %v7382 = vld [vmem:[#allocation2 + $0x1b6] sm:$0xff]
        %v7383 = vld [vmem:[#allocation2 + $0x1ce] sm:$0xff]
        %v7384 = vld [vmem:[%s6] sm:$0xff]
        %v7385 = vld [vmem:[%s6 + $0x8] sm:$0xff]
        %v7386 = vld [vmem:[%s6 + $0x10] sm:$0xff]
        %v7387 = vld [vmem:[#allocation2 + $0x7] sm:$0xff]
        %v7388 = vld [vmem:[#allocation2 + $0x1f] sm:$0xff]
        %v7389 = vld [vmem:[#allocation2 + $0x37] sm:$0xff]
        %v7390 = vld [vmem:[#allocation2 + $0x4f] sm:$0xff]
        %v7391 = vld [vmem:[#allocation2 + $0x67] sm:$0xff]
        %v7392 = vld [vmem:[#allocation2 + $0x7f] sm:$0xff]
        %v7393 = vld [vmem:[#allocation2 + $0x97] sm:$0xff]
        %v7394 = vld [vmem:[#allocation2 + $0xaf] sm:$0xff]
        %v7395 = vld [vmem:[#allocation2 + $0x127] sm:$0xff]
        %v7396 = vld [vmem:[#allocation2 + $0x13f] sm:$0xff]
        %v7397 = vld [vmem:[#allocation2 + $0x157] sm:$0xff]
        %v7398 = vld [vmem:[#allocation2 + $0x16f] sm:$0xff]
        %v7399 = vld [vmem:[#allocation2 + $0x187] sm:$0xff]
        %v7400 = vld [vmem:[#allocation2 + $0x19f] sm:$0xff]
        %v7401 = vld [vmem:[#allocation2 + $0x1b7] sm:$0xff]
        %v7402 = vld [vmem:[#allocation2 + $0x1cf] sm:$0xff]
        %s7403 = scalar_lea.vmem %s6, 24
        %v7404 = vld [vmem:[%s7403] sm:$0xff]
        %v7405 = vld [vmem:[%s7403 + $0x8] sm:$0xff]
        %v7406 = vld [vmem:[%s7403 + $0x10] sm:$0xff]
        %v7408 = vsel %vm7276, %v7387, 0
        %v7411 = vsel %vm7276, %v7388, 0
        %v7414 = vsel %vm7276, %v7389, 0
        %v7417 = vsel %vm7276, %v7390, 0
        %v7420 = vsel %vm7276, %v7391, 0
        %v7423 = vsel %vm7276, %v7392, 0
        %v7426 = vsel %vm7276, %v7393, 0
        %v7429 = vsel %vm7276, %v7394, 0
        %v7432 = vsel %vm7276, %v7395, 0
        %v7435 = vsel %vm7276, %v7396, 0
        %v7438 = vsel %vm7276, %v7397, 0
        %v7441 = vsel %vm7276, %v7398, 0
        %v7444 = vsel %vm7276, %v7399, 0
        %v7447 = vsel %vm7276, %v7400, 0
        %v7450 = vsel %vm7276, %v7401, 0
        %v7453 = vsel %vm7276, %v7402, 0
        %7455 = vmatpush.msra.mxu0 0.0
        %7456 = vmatpush.msra.mxu0 0.0
        %7457 = vmatpush.msra.mxu0 0.0
        %7458 = vmatpush.msra.mxu0 0.0
        %7459 = vmatpush.msra.mxu0 0.0
        %7460 = vmatpush.msra.mxu0 0.0
        %7461 = vmatpush.msra.mxu0 0.0
        %7462 = vmatpush.msra.mxu0 0.0
        %7463 = vmatpush.msra.mxu0 0.0
        %7464 = vmatpush.msra.mxu0 0.0
        %7465 = vmatpush.msra.mxu0 0.0
        %7466 = vmatpush.msra.mxu0 0.0
        %7467 = vmatpush.msra.mxu0 0.0
        %7468 = vmatpush.msra.mxu0 %v7406
        %7469 = vmatpush.msra.mxu0 %v7405
        %7470 = vmatpush.msra.mxu0 %v7404
        %7471 = vmatmul.f32.gmra.mxu0 %v7408
        %v7472 = vpop.f32.mrf.mxu0
        %v7473 = vadd.f32 0.0, %v7472
        %7474 = vmatmul.f32.gmra.mxu0 %v7411
        %v7475 = vpop.f32.mrf.mxu0
        %v7476 = vadd.f32 0.0, %v7475
        %7477 = vmatmul.f32.gmra.mxu0 %v7414
        %v7478 = vpop.f32.mrf.mxu0
        %v7479 = vadd.f32 0.0, %v7478
        %7480 = vmatmul.f32.gmra.mxu0 %v7417
        %v7481 = vpop.f32.mrf.mxu0
        %v7482 = vadd.f32 0.0, %v7481
        %7483 = vmatmul.f32.gmra.mxu0 %v7420
        %v7484 = vpop.f32.mrf.mxu0
        %v7485 = vadd.f32 0.0, %v7484
        %7486 = vmatmul.f32.gmra.mxu0 %v7423
        %v7487 = vpop.f32.mrf.mxu0
        %v7488 = vadd.f32 0.0, %v7487
        %7489 = vmatmul.f32.gmra.mxu0 %v7426
        %v7490 = vpop.f32.mrf.mxu0
        %v7491 = vadd.f32 0.0, %v7490
        %7492 = vmatmul.f32.gmra.mxu0 %v7429
        %v7493 = vpop.f32.mrf.mxu0
        %v7494 = vadd.f32 0.0, %v7493
        %7495 = vmatmul.f32.gmra.mxu0 %v7432
        %v7496 = vpop.f32.mrf.mxu0
        %v7497 = vadd.f32 0.0, %v7496
        %7498 = vmatmul.f32.gmra.mxu0 %v7435
        %v7499 = vpop.f32.mrf.mxu0
        %v7500 = vadd.f32 0.0, %v7499
        %7501 = vmatmul.f32.gmra.mxu0 %v7438
        %v7502 = vpop.f32.mrf.mxu0
        %v7503 = vadd.f32 0.0, %v7502
        %7504 = vmatmul.f32.gmra.mxu0 %v7441
        %v7505 = vpop.f32.mrf.mxu0
        %v7506 = vadd.f32 0.0, %v7505
        %7507 = vmatmul.f32.gmra.mxu0 %v7444
        %v7508 = vpop.f32.mrf.mxu0
        %v7509 = vadd.f32 0.0, %v7508
        %7510 = vmatmul.f32.gmra.mxu0 %v7447
        %v7511 = vpop.f32.mrf.mxu0
        %v7512 = vadd.f32 0.0, %v7511
        %7513 = vmatmul.f32.gmra.mxu0 %v7450
        %v7514 = vpop.f32.mrf.mxu0
        %v7515 = vadd.f32 0.0, %v7514
        %7516 = vmatmul.f32.gmra.mxu0 %v7453
        %v7517 = vpop.f32.mrf.mxu0
        %v7518 = vadd.f32 0.0, %v7517
        %7519 = vdwg.mxu0
        %v7521 = vsel %vm7276, %v7368, 0
        %v7524 = vsel %vm7276, %v7369, 0
        %v7527 = vsel %vm7276, %v7370, 0
        %v7530 = vsel %vm7276, %v7371, 0
        %v7533 = vsel %vm7276, %v7372, 0
        %v7536 = vsel %vm7276, %v7373, 0
        %v7539 = vsel %vm7276, %v7374, 0
        %v7542 = vsel %vm7276, %v7375, 0
        %v7545 = vsel %vm7276, %v7376, 0
        %v7548 = vsel %vm7276, %v7377, 0
        %v7551 = vsel %vm7276, %v7378, 0
        %v7554 = vsel %vm7276, %v7379, 0
        %v7557 = vsel %vm7276, %v7380, 0
        %v7560 = vsel %vm7276, %v7381, 0
        %v7563 = vsel %vm7276, %v7382, 0
        %v7566 = vsel %vm7276, %v7383, 0
        %7568 = vmatpush.msra.mxu0 0.0
        %7569 = vmatpush.msra.mxu0 0.0
        %7570 = vmatpush.msra.mxu0 0.0
        %7571 = vmatpush.msra.mxu0 0.0
        %7572 = vmatpush.msra.mxu0 0.0
        %7573 = vmatpush.msra.mxu0 0.0
        %7574 = vmatpush.msra.mxu0 0.0
        %7575 = vmatpush.msra.mxu0 0.0
        %7576 = vmatpush.msra.mxu0 0.0
        %7577 = vmatpush.msra.mxu0 0.0
        %7578 = vmatpush.msra.mxu0 0.0
        %7579 = vmatpush.msra.mxu0 0.0
        %7580 = vmatpush.msra.mxu0 0.0
        %7581 = vmatpush.msra.mxu0 %v7386
        %7582 = vmatpush.msra.mxu0 %v7385
        %7583 = vmatpush.msra.mxu0 %v7384
        %7584 = vmatmul.f32.gmra.mxu0 %v7521
        %v7585 = vpop.f32.mrf.mxu0
        %v7586 = vadd.f32 %v7473, %v7585
        %7587 = vmatmul.f32.gmra.mxu0 %v7524
        %v7588 = vpop.f32.mrf.mxu0
        %v7589 = vadd.f32 %v7476, %v7588
        %7590 = vmatmul.f32.gmra.mxu0 %v7527
        %v7591 = vpop.f32.mrf.mxu0
        %v7592 = vadd.f32 %v7479, %v7591
        %7593 = vmatmul.f32.gmra.mxu0 %v7530
        %v7594 = vpop.f32.mrf.mxu0
        %v7595 = vadd.f32 %v7482, %v7594
        %7596 = vmatmul.f32.gmra.mxu0 %v7533
        %v7597 = vpop.f32.mrf.mxu0
        %v7598 = vadd.f32 %v7485, %v7597
        %7599 = vmatmul.f32.gmra.mxu0 %v7536
        %v7600 = vpop.f32.mrf.mxu0
        %v7601 = vadd.f32 %v7488, %v7600
        %7602 = vmatmul.f32.gmra.mxu0 %v7539
        %v7603 = vpop.f32.mrf.mxu0
        %v7604 = vadd.f32 %v7491, %v7603
        %7605 = vmatmul.f32.gmra.mxu0 %v7542
        %v7606 = vpop.f32.mrf.mxu0
        %v7607 = vadd.f32 %v7494, %v7606
        %7608 = vmatmul.f32.gmra.mxu0 %v7545
        %v7609 = vpop.f32.mrf.mxu0
        %v7610 = vadd.f32 %v7497, %v7609
        %7611 = vmatmul.f32.gmra.mxu0 %v7548
        %v7612 = vpop.f32.mrf.mxu0
        %v7613 = vadd.f32 %v7500, %v7612
        %7614 = vmatmul.f32.gmra.mxu0 %v7551
        %v7615 = vpop.f32.mrf.mxu0
        %v7616 = vadd.f32 %v7503, %v7615
        %7617 = vmatmul.f32.gmra.mxu0 %v7554
        %v7618 = vpop.f32.mrf.mxu0
        %v7619 = vadd.f32 %v7506, %v7618
        %7620 = vmatmul.f32.gmra.mxu0 %v7557
        %v7621 = vpop.f32.mrf.mxu0
        %v7622 = vadd.f32 %v7509, %v7621
        %7623 = vmatmul.f32.gmra.mxu0 %v7560
        %v7624 = vpop.f32.mrf.mxu0
        %v7625 = vadd.f32 %v7512, %v7624
        %7626 = vmatmul.f32.gmra.mxu0 %v7563
        %v7627 = vpop.f32.mrf.mxu0
        %v7628 = vadd.f32 %v7515, %v7627
        %7629 = vmatmul.f32.gmra.mxu0 %v7566
        %v7630 = vpop.f32.mrf.mxu0
        %v7631 = vadd.f32 %v7518, %v7630
        %7632 = vdwg.mxu0
        %v7633 = vld [vmem:[#allocation2 + $0x8] sm:$0xff]
        %v7634 = vld [vmem:[#allocation2 + $0x20] sm:$0xff]
        %v7635 = vld [vmem:[#allocation2 + $0x38] sm:$0xff]
        %v7636 = vld [vmem:[#allocation2 + $0x50] sm:$0xff]
        %v7637 = vld [vmem:[#allocation2 + $0x68] sm:$0xff]
        %v7638 = vld [vmem:[#allocation2 + $0x80] sm:$0xff]
        %v7639 = vld [vmem:[#allocation2 + $0x98] sm:$0xff]
        %v7640 = vld [vmem:[#allocation2 + $0xb0] sm:$0xff]
        %v7641 = vld [vmem:[#allocation2 + $0x128] sm:$0xff]
        %v7642 = vld [vmem:[#allocation2 + $0x140] sm:$0xff]
        %v7643 = vld [vmem:[#allocation2 + $0x158] sm:$0xff]
        %v7644 = vld [vmem:[#allocation2 + $0x170] sm:$0xff]
        %v7645 = vld [vmem:[#allocation2 + $0x188] sm:$0xff]
        %v7646 = vld [vmem:[#allocation2 + $0x1a0] sm:$0xff]
        %v7647 = vld [vmem:[#allocation2 + $0x1b8] sm:$0xff]
        %v7648 = vld [vmem:[#allocation2 + $0x1d0] sm:$0xff]
        %s7649 = scalar_lea.vmem %s6, 48
        %v7650 = vld [vmem:[%s7649] sm:$0xff]
        %v7651 = vld [vmem:[%s7649 + $0x8] sm:$0xff]
        %v7652 = vld [vmem:[%s7649 + $0x10] sm:$0xff]
        %v7654 = vsel %vm7276, %v7633, 0
        %v7657 = vsel %vm7276, %v7634, 0
        %v7660 = vsel %vm7276, %v7635, 0
        %v7663 = vsel %vm7276, %v7636, 0
        %v7666 = vsel %vm7276, %v7637, 0
        %v7669 = vsel %vm7276, %v7638, 0
        %v7672 = vsel %vm7276, %v7639, 0
        %v7675 = vsel %vm7276, %v7640, 0
        %v7678 = vsel %vm7276, %v7641, 0
        %v7681 = vsel %vm7276, %v7642, 0
        %v7684 = vsel %vm7276, %v7643, 0
        %v7687 = vsel %vm7276, %v7644, 0
        %v7690 = vsel %vm7276, %v7645, 0
        %v7693 = vsel %vm7276, %v7646, 0
        %v7696 = vsel %vm7276, %v7647, 0
        %v7699 = vsel %vm7276, %v7648, 0
        %7701 = vmatpush.msra.mxu0 0.0
        %7702 = vmatpush.msra.mxu0 0.0
        %7703 = vmatpush.msra.mxu0 0.0
        %7704 = vmatpush.msra.mxu0 0.0
        %7705 = vmatpush.msra.mxu0 0.0
        %7706 = vmatpush.msra.mxu0 0.0
        %7707 = vmatpush.msra.mxu0 0.0
        %7708 = vmatpush.msra.mxu0 0.0
        %7709 = vmatpush.msra.mxu0 0.0
        %7710 = vmatpush.msra.mxu0 0.0
        %7711 = vmatpush.msra.mxu0 0.0
        %7712 = vmatpush.msra.mxu0 0.0
        %7713 = vmatpush.msra.mxu0 0.0
        %7714 = vmatpush.msra.mxu0 %v7652
        %7715 = vmatpush.msra.mxu0 %v7651
        %7716 = vmatpush.msra.mxu0 %v7650
        %7717 = vmatmul.f32.gmra.mxu0 %v7654
        %v7718 = vpop.f32.mrf.mxu0
        %v7719 = vadd.f32 0.0, %v7718
        %7720 = vmatmul.f32.gmra.mxu0 %v7657
        %v7721 = vpop.f32.mrf.mxu0
        %v7722 = vadd.f32 0.0, %v7721
        %7723 = vmatmul.f32.gmra.mxu0 %v7660
        %v7724 = vpop.f32.mrf.mxu0
        %v7725 = vadd.f32 0.0, %v7724
        %7726 = vmatmul.f32.gmra.mxu0 %v7663
        %v7727 = vpop.f32.mrf.mxu0
        %v7728 = vadd.f32 0.0, %v7727
        %7729 = vmatmul.f32.gmra.mxu0 %v7666
        %v7730 = vpop.f32.mrf.mxu0
        %v7731 = vadd.f32 0.0, %v7730
        %7732 = vmatmul.f32.gmra.mxu0 %v7669
        %v7733 = vpop.f32.mrf.mxu0
        %v7734 = vadd.f32 0.0, %v7733
        %7735 = vmatmul.f32.gmra.mxu0 %v7672
        %v7736 = vpop.f32.mrf.mxu0
        %v7737 = vadd.f32 0.0, %v7736
        %7738 = vmatmul.f32.gmra.mxu0 %v7675
        %v7739 = vpop.f32.mrf.mxu0
        %v7740 = vadd.f32 0.0, %v7739
        %7741 = vmatmul.f32.gmra.mxu0 %v7678
        %v7742 = vpop.f32.mrf.mxu0
        %v7743 = vadd.f32 0.0, %v7742
        %7744 = vmatmul.f32.gmra.mxu0 %v7681
        %v7745 = vpop.f32.mrf.mxu0
        %v7746 = vadd.f32 0.0, %v7745
        %7747 = vmatmul.f32.gmra.mxu0 %v7684
        %v7748 = vpop.f32.mrf.mxu0
        %v7749 = vadd.f32 0.0, %v7748
        %7750 = vmatmul.f32.gmra.mxu0 %v7687
        %v7751 = vpop.f32.mrf.mxu0
        %v7752 = vadd.f32 0.0, %v7751
        %7753 = vmatmul.f32.gmra.mxu0 %v7690
        %v7754 = vpop.f32.mrf.mxu0
        %v7755 = vadd.f32 0.0, %v7754
        %7756 = vmatmul.f32.gmra.mxu0 %v7693
        %v7757 = vpop.f32.mrf.mxu0
        %v7758 = vadd.f32 0.0, %v7757
        %7759 = vmatmul.f32.gmra.mxu0 %v7696
        %v7760 = vpop.f32.mrf.mxu0
        %v7761 = vadd.f32 0.0, %v7760
        %7762 = vmatmul.f32.gmra.mxu0 %v7699
        %v7763 = vpop.f32.mrf.mxu0
        %v7764 = vadd.f32 0.0, %v7763
        %7765 = vdwg.mxu0
        %v7766 = vadd.f32 %v7586, %v7719
        %v7767 = vadd.f32 %v7589, %v7722
        %v7768 = vadd.f32 %v7592, %v7725
        %v7769 = vadd.f32 %v7595, %v7728
        %v7770 = vadd.f32 %v7598, %v7731
        %v7771 = vadd.f32 %v7601, %v7734
        %v7772 = vadd.f32 %v7604, %v7737
        %v7773 = vadd.f32 %v7607, %v7740
        %v7774 = vadd.f32 %v7610, %v7743
        %v7775 = vadd.f32 %v7613, %v7746
        %v7776 = vadd.f32 %v7616, %v7749
        %v7777 = vadd.f32 %v7619, %v7752
        %v7778 = vadd.f32 %v7622, %v7755
        %v7779 = vadd.f32 %v7625, %v7758
        %v7780 = vadd.f32 %v7628, %v7761
        %v7781 = vadd.f32 %v7631, %v7764
        %v7782 = vld [vmem:[#allocation2 + $0x9] sm:$0xff]
        %v7783 = vld [vmem:[#allocation2 + $0x21] sm:$0xff]
        %v7784 = vld [vmem:[#allocation2 + $0x39] sm:$0xff]
        %v7785 = vld [vmem:[#allocation2 + $0x51] sm:$0xff]
        %v7786 = vld [vmem:[#allocation2 + $0x69] sm:$0xff]
        %v7787 = vld [vmem:[#allocation2 + $0x81] sm:$0xff]
        %v7788 = vld [vmem:[#allocation2 + $0x99] sm:$0xff]
        %v7789 = vld [vmem:[#allocation2 + $0xb1] sm:$0xff]
        %v7790 = vld [vmem:[#allocation2 + $0x129] sm:$0xff]
        %v7791 = vld [vmem:[#allocation2 + $0x141] sm:$0xff]
        %v7792 = vld [vmem:[#allocation2 + $0x159] sm:$0xff]
        %v7793 = vld [vmem:[#allocation2 + $0x171] sm:$0xff]
        %v7794 = vld [vmem:[#allocation2 + $0x189] sm:$0xff]
        %v7795 = vld [vmem:[#allocation2 + $0x1a1] sm:$0xff]
        %v7796 = vld [vmem:[#allocation2 + $0x1b9] sm:$0xff]
        %v7797 = vld [vmem:[#allocation2 + $0x1d1] sm:$0xff]
        %s7798 = scalar_lea.vmem %s6, 72
        %v7799 = vld [vmem:[%s7798] sm:$0xff]
        %v7800 = vld [vmem:[%s7798 + $0x8] sm:$0xff]
        %v7801 = vld [vmem:[%s7798 + $0x10] sm:$0xff]
        %v7803 = vsel %vm7276, %v7782, 0
        %v7806 = vsel %vm7276, %v7783, 0
        %v7809 = vsel %vm7276, %v7784, 0
        %v7812 = vsel %vm7276, %v7785, 0
        %v7815 = vsel %vm7276, %v7786, 0
        %v7818 = vsel %vm7276, %v7787, 0
        %v7821 = vsel %vm7276, %v7788, 0
        %v7824 = vsel %vm7276, %v7789, 0
        %v7827 = vsel %vm7276, %v7790, 0
        %v7830 = vsel %vm7276, %v7791, 0
        %v7833 = vsel %vm7276, %v7792, 0
        %v7836 = vsel %vm7276, %v7793, 0
        %v7839 = vsel %vm7276, %v7794, 0
        %v7842 = vsel %vm7276, %v7795, 0
        %v7845 = vsel %vm7276, %v7796, 0
        %v7848 = vsel %vm7276, %v7797, 0
        %7850 = vmatpush.msra.mxu0 0.0
        %7851 = vmatpush.msra.mxu0 0.0
        %7852 = vmatpush.msra.mxu0 0.0
        %7853 = vmatpush.msra.mxu0 0.0
        %7854 = vmatpush.msra.mxu0 0.0
        %7855 = vmatpush.msra.mxu0 0.0
        %7856 = vmatpush.msra.mxu0 0.0
        %7857 = vmatpush.msra.mxu0 0.0
        %7858 = vmatpush.msra.mxu0 0.0
        %7859 = vmatpush.msra.mxu0 0.0
        %7860 = vmatpush.msra.mxu0 0.0
        %7861 = vmatpush.msra.mxu0 0.0
        %7862 = vmatpush.msra.mxu0 0.0
        %7863 = vmatpush.msra.mxu0 %v7801
        %7864 = vmatpush.msra.mxu0 %v7800
        %7865 = vmatpush.msra.mxu0 %v7799
        %7866 = vmatmul.f32.gmra.mxu0 %v7803
        %v7867 = vpop.f32.mrf.mxu0
        %v7868 = vadd.f32 0.0, %v7867
        %7869 = vmatmul.f32.gmra.mxu0 %v7806
        %v7870 = vpop.f32.mrf.mxu0
        %v7871 = vadd.f32 0.0, %v7870
        %7872 = vmatmul.f32.gmra.mxu0 %v7809
        %v7873 = vpop.f32.mrf.mxu0
        %v7874 = vadd.f32 0.0, %v7873
        %7875 = vmatmul.f32.gmra.mxu0 %v7812
        %v7876 = vpop.f32.mrf.mxu0
        %v7877 = vadd.f32 0.0, %v7876
        %7878 = vmatmul.f32.gmra.mxu0 %v7815
        %v7879 = vpop.f32.mrf.mxu0
        %v7880 = vadd.f32 0.0, %v7879
        %7881 = vmatmul.f32.gmra.mxu0 %v7818
        %v7882 = vpop.f32.mrf.mxu0
        %v7883 = vadd.f32 0.0, %v7882
        %7884 = vmatmul.f32.gmra.mxu0 %v7821
        %v7885 = vpop.f32.mrf.mxu0
        %v7886 = vadd.f32 0.0, %v7885
        %7887 = vmatmul.f32.gmra.mxu0 %v7824
        %v7888 = vpop.f32.mrf.mxu0
        %v7889 = vadd.f32 0.0, %v7888
        %7890 = vmatmul.f32.gmra.mxu0 %v7827
        %v7891 = vpop.f32.mrf.mxu0
        %v7892 = vadd.f32 0.0, %v7891
        %7893 = vmatmul.f32.gmra.mxu0 %v7830
        %v7894 = vpop.f32.mrf.mxu0
        %v7895 = vadd.f32 0.0, %v7894
        %7896 = vmatmul.f32.gmra.mxu0 %v7833
        %v7897 = vpop.f32.mrf.mxu0
        %v7898 = vadd.f32 0.0, %v7897
        %7899 = vmatmul.f32.gmra.mxu0 %v7836
        %v7900 = vpop.f32.mrf.mxu0
        %v7901 = vadd.f32 0.0, %v7900
        %7902 = vmatmul.f32.gmra.mxu0 %v7839
        %v7903 = vpop.f32.mrf.mxu0
        %v7904 = vadd.f32 0.0, %v7903
        %7905 = vmatmul.f32.gmra.mxu0 %v7842
        %v7906 = vpop.f32.mrf.mxu0
        %v7907 = vadd.f32 0.0, %v7906
        %7908 = vmatmul.f32.gmra.mxu0 %v7845
        %v7909 = vpop.f32.mrf.mxu0
        %v7910 = vadd.f32 0.0, %v7909
        %7911 = vmatmul.f32.gmra.mxu0 %v7848
        %v7912 = vpop.f32.mrf.mxu0
        %v7913 = vadd.f32 0.0, %v7912
        %7914 = vdwg.mxu0
        %v7915 = vadd.f32 %v7766, %v7868
        %v7916 = vadd.f32 %v7767, %v7871
        %v7917 = vadd.f32 %v7768, %v7874
        %v7918 = vadd.f32 %v7769, %v7877
        %v7919 = vadd.f32 %v7770, %v7880
        %v7920 = vadd.f32 %v7771, %v7883
        %v7921 = vadd.f32 %v7772, %v7886
        %v7922 = vadd.f32 %v7773, %v7889
        %v7923 = vadd.f32 %v7774, %v7892
        %v7924 = vadd.f32 %v7775, %v7895
        %v7925 = vadd.f32 %v7776, %v7898
        %v7926 = vadd.f32 %v7777, %v7901
        %v7927 = vadd.f32 %v7778, %v7904
        %v7928 = vadd.f32 %v7779, %v7907
        %v7929 = vadd.f32 %v7780, %v7910
        %v7930 = vadd.f32 %v7781, %v7913
        %v7931 = vld [vmem:[#allocation2 + $0xa] sm:$0xff]
        %v7932 = vld [vmem:[#allocation2 + $0x22] sm:$0xff]
        %v7933 = vld [vmem:[#allocation2 + $0x3a] sm:$0xff]
        %v7934 = vld [vmem:[#allocation2 + $0x52] sm:$0xff]
        %v7935 = vld [vmem:[#allocation2 + $0x6a] sm:$0xff]
        %v7936 = vld [vmem:[#allocation2 + $0x82] sm:$0xff]
        %v7937 = vld [vmem:[#allocation2 + $0x9a] sm:$0xff]
        %v7938 = vld [vmem:[#allocation2 + $0xb2] sm:$0xff]
        %v7939 = vld [vmem:[#allocation2 + $0x12a] sm:$0xff]
        %v7940 = vld [vmem:[#allocation2 + $0x142] sm:$0xff]
        %v7941 = vld [vmem:[#allocation2 + $0x15a] sm:$0xff]
        %v7942 = vld [vmem:[#allocation2 + $0x172] sm:$0xff]
        %v7943 = vld [vmem:[#allocation2 + $0x18a] sm:$0xff]
        %v7944 = vld [vmem:[#allocation2 + $0x1a2] sm:$0xff]
        %v7945 = vld [vmem:[#allocation2 + $0x1ba] sm:$0xff]
        %v7946 = vld [vmem:[#allocation2 + $0x1d2] sm:$0xff]
        %s7947 = scalar_lea.vmem %s6, 96
        %v7948 = vld [vmem:[%s7947] sm:$0xff]
        %v7949 = vld [vmem:[%s7947 + $0x8] sm:$0xff]
        %v7950 = vld [vmem:[%s7947 + $0x10] sm:$0xff]
        %v7952 = vsel %vm7276, %v7931, 0
        %v7955 = vsel %vm7276, %v7932, 0
        %v7958 = vsel %vm7276, %v7933, 0
        %v7961 = vsel %vm7276, %v7934, 0
        %v7964 = vsel %vm7276, %v7935, 0
        %v7967 = vsel %vm7276, %v7936, 0
        %v7970 = vsel %vm7276, %v7937, 0
        %v7973 = vsel %vm7276, %v7938, 0
        %v7976 = vsel %vm7276, %v7939, 0
        %v7979 = vsel %vm7276, %v7940, 0
        %v7982 = vsel %vm7276, %v7941, 0
        %v7985 = vsel %vm7276, %v7942, 0
        %v7988 = vsel %vm7276, %v7943, 0
        %v7991 = vsel %vm7276, %v7944, 0
        %v7994 = vsel %vm7276, %v7945, 0
        %v7997 = vsel %vm7276, %v7946, 0
        %7999 = vmatpush.msra.mxu0 0.0
        %8000 = vmatpush.msra.mxu0 0.0
        %8001 = vmatpush.msra.mxu0 0.0
        %8002 = vmatpush.msra.mxu0 0.0
        %8003 = vmatpush.msra.mxu0 0.0
        %8004 = vmatpush.msra.mxu0 0.0
        %8005 = vmatpush.msra.mxu0 0.0
        %8006 = vmatpush.msra.mxu0 0.0
        %8007 = vmatpush.msra.mxu0 0.0
        %8008 = vmatpush.msra.mxu0 0.0
        %8009 = vmatpush.msra.mxu0 0.0
        %8010 = vmatpush.msra.mxu0 0.0
        %8011 = vmatpush.msra.mxu0 0.0
        %8012 = vmatpush.msra.mxu0 %v7950
        %8013 = vmatpush.msra.mxu0 %v7949
        %8014 = vmatpush.msra.mxu0 %v7948
        %8015 = vmatmul.f32.gmra.mxu0 %v7952
        %v8016 = vpop.f32.mrf.mxu0
        %v8017 = vadd.f32 0.0, %v8016
        %8018 = vmatmul.f32.gmra.mxu0 %v7955
        %v8019 = vpop.f32.mrf.mxu0
        %v8020 = vadd.f32 0.0, %v8019
        %8021 = vmatmul.f32.gmra.mxu0 %v7958
        %v8022 = vpop.f32.mrf.mxu0
        %v8023 = vadd.f32 0.0, %v8022
        %8024 = vmatmul.f32.gmra.mxu0 %v7961
        %v8025 = vpop.f32.mrf.mxu0
        %v8026 = vadd.f32 0.0, %v8025
        %8027 = vmatmul.f32.gmra.mxu0 %v7964
        %v8028 = vpop.f32.mrf.mxu0
        %v8029 = vadd.f32 0.0, %v8028
        %8030 = vmatmul.f32.gmra.mxu0 %v7967
        %v8031 = vpop.f32.mrf.mxu0
        %v8032 = vadd.f32 0.0, %v8031
        %8033 = vmatmul.f32.gmra.mxu0 %v7970
        %v8034 = vpop.f32.mrf.mxu0
        %v8035 = vadd.f32 0.0, %v8034
        %8036 = vmatmul.f32.gmra.mxu0 %v7973
        %v8037 = vpop.f32.mrf.mxu0
        %v8038 = vadd.f32 0.0, %v8037
        %8039 = vmatmul.f32.gmra.mxu0 %v7976
        %v8040 = vpop.f32.mrf.mxu0
        %v8041 = vadd.f32 0.0, %v8040
        %8042 = vmatmul.f32.gmra.mxu0 %v7979
        %v8043 = vpop.f32.mrf.mxu0
        %v8044 = vadd.f32 0.0, %v8043
        %8045 = vmatmul.f32.gmra.mxu0 %v7982
        %v8046 = vpop.f32.mrf.mxu0
        %v8047 = vadd.f32 0.0, %v8046
        %8048 = vmatmul.f32.gmra.mxu0 %v7985
        %v8049 = vpop.f32.mrf.mxu0
        %v8050 = vadd.f32 0.0, %v8049
        %8051 = vmatmul.f32.gmra.mxu0 %v7988
        %v8052 = vpop.f32.mrf.mxu0
        %v8053 = vadd.f32 0.0, %v8052
        %8054 = vmatmul.f32.gmra.mxu0 %v7991
        %v8055 = vpop.f32.mrf.mxu0
        %v8056 = vadd.f32 0.0, %v8055
        %8057 = vmatmul.f32.gmra.mxu0 %v7994
        %v8058 = vpop.f32.mrf.mxu0
        %v8059 = vadd.f32 0.0, %v8058
        %8060 = vmatmul.f32.gmra.mxu0 %v7997
        %v8061 = vpop.f32.mrf.mxu0
        %v8062 = vadd.f32 0.0, %v8061
        %8063 = vdwg.mxu0
        %v8064 = vadd.f32 %v7915, %v8017
        %v8065 = vadd.f32 %v7916, %v8020
        %v8066 = vadd.f32 %v7917, %v8023
        %v8067 = vadd.f32 %v7918, %v8026
        %v8068 = vadd.f32 %v7919, %v8029
        %v8069 = vadd.f32 %v7920, %v8032
        %v8070 = vadd.f32 %v7921, %v8035
        %v8071 = vadd.f32 %v7922, %v8038
        %v8072 = vadd.f32 %v7923, %v8041
        %v8073 = vadd.f32 %v7924, %v8044
        %v8074 = vadd.f32 %v7925, %v8047
        %v8075 = vadd.f32 %v7926, %v8050
        %v8076 = vadd.f32 %v7927, %v8053
        %v8077 = vadd.f32 %v7928, %v8056
        %v8078 = vadd.f32 %v7929, %v8059
        %v8079 = vadd.f32 %v7930, %v8062
        %s8080 = scalar_lea.vmem [#allocation2], 24
        %v8081 = vld [vmem:[%s8080 + $0x6] sm:$0xff]
        %v8082 = vld [vmem:[%s8080 + $0x1e] sm:$0xff]
        %v8083 = vld [vmem:[%s8080 + $0x36] sm:$0xff]
        %v8084 = vld [vmem:[%s8080 + $0x4e] sm:$0xff]
        %v8085 = vld [vmem:[%s8080 + $0x66] sm:$0xff]
        %v8086 = vld [vmem:[%s8080 + $0x7e] sm:$0xff]
        %v8087 = vld [vmem:[%s8080 + $0x96] sm:$0xff]
        %v8088 = vld [vmem:[%s8080 + $0xae] sm:$0xff]
        %v8089 = vld [vmem:[%s8080 + $0x126] sm:$0xff]
        %v8090 = vld [vmem:[%s8080 + $0x13e] sm:$0xff]
        %v8091 = vld [vmem:[%s8080 + $0x156] sm:$0xff]
        %v8092 = vld [vmem:[%s8080 + $0x16e] sm:$0xff]
        %v8093 = vld [vmem:[%s8080 + $0x186] sm:$0xff]
        %v8094 = vld [vmem:[%s8080 + $0x19e] sm:$0xff]
        %v8095 = vld [vmem:[%s8080 + $0x1b6] sm:$0xff]
        %v8096 = vld [vmem:[%s8080 + $0x1ce] sm:$0xff]
        %s8097 = scalar_lea.vmem %s6, 120
        %v8098 = vld [vmem:[%s8097] sm:$0xff]
        %v8099 = vld [vmem:[%s8097 + $0x8] sm:$0xff]
        %v8100 = vld [vmem:[%s8097 + $0x10] sm:$0xff]
        %v8102 = vsel %vm7276, %v8081, 0
        %v8105 = vsel %vm7276, %v8082, 0
        %v8108 = vsel %vm7276, %v8083, 0
        %v8111 = vsel %vm7276, %v8084, 0
        %v8114 = vsel %vm7276, %v8085, 0
        %v8117 = vsel %vm7276, %v8086, 0
        %v8120 = vsel %vm7276, %v8087, 0
        %v8123 = vsel %vm7276, %v8088, 0
        %v8126 = vsel %vm7276, %v8089, 0
        %v8129 = vsel %vm7276, %v8090, 0
        %v8132 = vsel %vm7276, %v8091, 0
        %v8135 = vsel %vm7276, %v8092, 0
        %v8138 = vsel %vm7276, %v8093, 0
        %v8141 = vsel %vm7276, %v8094, 0
        %v8144 = vsel %vm7276, %v8095, 0
        %v8147 = vsel %vm7276, %v8096, 0
        %8149 = vmatpush.msra.mxu0 0.0
        %8150 = vmatpush.msra.mxu0 0.0
        %8151 = vmatpush.msra.mxu0 0.0
        %8152 = vmatpush.msra.mxu0 0.0
        %8153 = vmatpush.msra.mxu0 0.0
        %8154 = vmatpush.msra.mxu0 0.0
        %8155 = vmatpush.msra.mxu0 0.0
        %8156 = vmatpush.msra.mxu0 0.0
        %8157 = vmatpush.msra.mxu0 0.0
        %8158 = vmatpush.msra.mxu0 0.0
        %8159 = vmatpush.msra.mxu0 0.0
        %8160 = vmatpush.msra.mxu0 0.0
        %8161 = vmatpush.msra.mxu0 0.0
        %8162 = vmatpush.msra.mxu0 %v8100
        %8163 = vmatpush.msra.mxu0 %v8099
        %8164 = vmatpush.msra.mxu0 %v8098
        %8165 = vmatmul.f32.gmra.mxu0 %v8102
        %v8166 = vpop.f32.mrf.mxu0
        %v8167 = vadd.f32 0.0, %v8166
        %8168 = vmatmul.f32.gmra.mxu0 %v8105
        %v8169 = vpop.f32.mrf.mxu0
        %v8170 = vadd.f32 0.0, %v8169
        %8171 = vmatmul.f32.gmra.mxu0 %v8108
        %v8172 = vpop.f32.mrf.mxu0
        %v8173 = vadd.f32 0.0, %v8172
        %8174 = vmatmul.f32.gmra.mxu0 %v8111
        %v8175 = vpop.f32.mrf.mxu0
        %v8176 = vadd.f32 0.0, %v8175
        %8177 = vmatmul.f32.gmra.mxu0 %v8114
        %v8178 = vpop.f32.mrf.mxu0
        %v8179 = vadd.f32 0.0, %v8178
        %8180 = vmatmul.f32.gmra.mxu0 %v8117
        %v8181 = vpop.f32.mrf.mxu0
        %v8182 = vadd.f32 0.0, %v8181
        %8183 = vmatmul.f32.gmra.mxu0 %v8120
        %v8184 = vpop.f32.mrf.mxu0
        %v8185 = vadd.f32 0.0, %v8184
        %8186 = vmatmul.f32.gmra.mxu0 %v8123
        %v8187 = vpop.f32.mrf.mxu0
        %v8188 = vadd.f32 0.0, %v8187
        %8189 = vmatmul.f32.gmra.mxu0 %v8126
        %v8190 = vpop.f32.mrf.mxu0
        %v8191 = vadd.f32 0.0, %v8190
        %8192 = vmatmul.f32.gmra.mxu0 %v8129
        %v8193 = vpop.f32.mrf.mxu0
        %v8194 = vadd.f32 0.0, %v8193
        %8195 = vmatmul.f32.gmra.mxu0 %v8132
        %v8196 = vpop.f32.mrf.mxu0
        %v8197 = vadd.f32 0.0, %v8196
        %8198 = vmatmul.f32.gmra.mxu0 %v8135
        %v8199 = vpop.f32.mrf.mxu0
        %v8200 = vadd.f32 0.0, %v8199
        %8201 = vmatmul.f32.gmra.mxu0 %v8138
        %v8202 = vpop.f32.mrf.mxu0
        %v8203 = vadd.f32 0.0, %v8202
        %8204 = vmatmul.f32.gmra.mxu0 %v8141
        %v8205 = vpop.f32.mrf.mxu0
        %v8206 = vadd.f32 0.0, %v8205
        %8207 = vmatmul.f32.gmra.mxu0 %v8144
        %v8208 = vpop.f32.mrf.mxu0
        %v8209 = vadd.f32 0.0, %v8208
        %8210 = vmatmul.f32.gmra.mxu0 %v8147
        %v8211 = vpop.f32.mrf.mxu0
        %v8212 = vadd.f32 0.0, %v8211
        %8213 = vdwg.mxu0
        %v8214 = vadd.f32 %v8064, %v8167
        %v8215 = vadd.f32 %v8065, %v8170
        %v8216 = vadd.f32 %v8066, %v8173
        %v8217 = vadd.f32 %v8067, %v8176
        %v8218 = vadd.f32 %v8068, %v8179
        %v8219 = vadd.f32 %v8069, %v8182
        %v8220 = vadd.f32 %v8070, %v8185
        %v8221 = vadd.f32 %v8071, %v8188
        %v8222 = vadd.f32 %v8072, %v8191
        %v8223 = vadd.f32 %v8073, %v8194
        %v8224 = vadd.f32 %v8074, %v8197
        %v8225 = vadd.f32 %v8075, %v8200
        %v8226 = vadd.f32 %v8076, %v8203
        %v8227 = vadd.f32 %v8077, %v8206
        %v8228 = vadd.f32 %v8078, %v8209
        %v8229 = vadd.f32 %v8079, %v8212
        %v8230 = vld [vmem:[%s8080 + $0x7] sm:$0xff]
        %v8231 = vld [vmem:[%s8080 + $0x1f] sm:$0xff]
        %v8232 = vld [vmem:[%s8080 + $0x37] sm:$0xff]
        %v8233 = vld [vmem:[%s8080 + $0x4f] sm:$0xff]
        %v8234 = vld [vmem:[%s8080 + $0x67] sm:$0xff]
        %v8235 = vld [vmem:[%s8080 + $0x7f] sm:$0xff]
        %v8236 = vld [vmem:[%s8080 + $0x97] sm:$0xff]
        %v8237 = vld [vmem:[%s8080 + $0xaf] sm:$0xff]
        %v8238 = vld [vmem:[%s8080 + $0x127] sm:$0xff]
        %v8239 = vld [vmem:[%s8080 + $0x13f] sm:$0xff]
        %v8240 = vld [vmem:[%s8080 + $0x157] sm:$0xff]
        %v8241 = vld [vmem:[%s8080 + $0x16f] sm:$0xff]
        %v8242 = vld [vmem:[%s8080 + $0x187] sm:$0xff]
        %v8243 = vld [vmem:[%s8080 + $0x19f] sm:$0xff]
        %v8244 = vld [vmem:[%s8080 + $0x1b7] sm:$0xff]
        %v8245 = vld [vmem:[%s8080 + $0x1cf] sm:$0xff]
        %s8246 = scalar_lea.vmem %s6, 144
        %v8247 = vld [vmem:[%s8246] sm:$0xff]
        %v8248 = vld [vmem:[%s8246 + $0x8] sm:$0xff]
        %v8249 = vld [vmem:[%s8246 + $0x10] sm:$0xff]
        %v8251 = vsel %vm7276, %v8230, 0
        %v8254 = vsel %vm7276, %v8231, 0
        %v8257 = vsel %vm7276, %v8232, 0
        %v8260 = vsel %vm7276, %v8233, 0
        %v8263 = vsel %vm7276, %v8234, 0
        %v8266 = vsel %vm7276, %v8235, 0
        %v8269 = vsel %vm7276, %v8236, 0
        %v8272 = vsel %vm7276, %v8237, 0
        %v8275 = vsel %vm7276, %v8238, 0
        %v8278 = vsel %vm7276, %v8239, 0
        %v8281 = vsel %vm7276, %v8240, 0
        %v8284 = vsel %vm7276, %v8241, 0
        %v8287 = vsel %vm7276, %v8242, 0
        %v8290 = vsel %vm7276, %v8243, 0
        %v8293 = vsel %vm7276, %v8244, 0
        %v8296 = vsel %vm7276, %v8245, 0
        %8298 = vmatpush.msra.mxu0 0.0
        %8299 = vmatpush.msra.mxu0 0.0
        %8300 = vmatpush.msra.mxu0 0.0
        %8301 = vmatpush.msra.mxu0 0.0
        %8302 = vmatpush.msra.mxu0 0.0
        %8303 = vmatpush.msra.mxu0 0.0
        %8304 = vmatpush.msra.mxu0 0.0
        %8305 = vmatpush.msra.mxu0 0.0
        %8306 = vmatpush.msra.mxu0 0.0
        %8307 = vmatpush.msra.mxu0 0.0
        %8308 = vmatpush.msra.mxu0 0.0
        %8309 = vmatpush.msra.mxu0 0.0
        %8310 = vmatpush.msra.mxu0 0.0
        %8311 = vmatpush.msra.mxu0 %v8249
        %8312 = vmatpush.msra.mxu0 %v8248
        %8313 = vmatpush.msra.mxu0 %v8247
        %8314 = vmatmul.f32.gmra.mxu0 %v8251
        %v8315 = vpop.f32.mrf.mxu0
        %v8316 = vadd.f32 0.0, %v8315
        %8317 = vmatmul.f32.gmra.mxu0 %v8254
        %v8318 = vpop.f32.mrf.mxu0
        %v8319 = vadd.f32 0.0, %v8318
        %8320 = vmatmul.f32.gmra.mxu0 %v8257
        %v8321 = vpop.f32.mrf.mxu0
        %v8322 = vadd.f32 0.0, %v8321
        %8323 = vmatmul.f32.gmra.mxu0 %v8260
        %v8324 = vpop.f32.mrf.mxu0
        %v8325 = vadd.f32 0.0, %v8324
        %8326 = vmatmul.f32.gmra.mxu0 %v8263
        %v8327 = vpop.f32.mrf.mxu0
        %v8328 = vadd.f32 0.0, %v8327
        %8329 = vmatmul.f32.gmra.mxu0 %v8266
        %v8330 = vpop.f32.mrf.mxu0
        %v8331 = vadd.f32 0.0, %v8330
        %8332 = vmatmul.f32.gmra.mxu0 %v8269
        %v8333 = vpop.f32.mrf.mxu0
        %v8334 = vadd.f32 0.0, %v8333
        %8335 = vmatmul.f32.gmra.mxu0 %v8272
        %v8336 = vpop.f32.mrf.mxu0
        %v8337 = vadd.f32 0.0, %v8336
        %8338 = vmatmul.f32.gmra.mxu0 %v8275
        %v8339 = vpop.f32.mrf.mxu0
        %v8340 = vadd.f32 0.0, %v8339
        %8341 = vmatmul.f32.gmra.mxu0 %v8278
        %v8342 = vpop.f32.mrf.mxu0
        %v8343 = vadd.f32 0.0, %v8342
        %8344 = vmatmul.f32.gmra.mxu0 %v8281
        %v8345 = vpop.f32.mrf.mxu0
        %v8346 = vadd.f32 0.0, %v8345
        %8347 = vmatmul.f32.gmra.mxu0 %v8284
        %v8348 = vpop.f32.mrf.mxu0
        %v8349 = vadd.f32 0.0, %v8348
        %8350 = vmatmul.f32.gmra.mxu0 %v8287
        %v8351 = vpop.f32.mrf.mxu0
        %v8352 = vadd.f32 0.0, %v8351
        %8353 = vmatmul.f32.gmra.mxu0 %v8290
        %v8354 = vpop.f32.mrf.mxu0
        %v8355 = vadd.f32 0.0, %v8354
        %8356 = vmatmul.f32.gmra.mxu0 %v8293
        %v8357 = vpop.f32.mrf.mxu0
        %v8358 = vadd.f32 0.0, %v8357
        %8359 = vmatmul.f32.gmra.mxu0 %v8296
        %v8360 = vpop.f32.mrf.mxu0
        %v8361 = vadd.f32 0.0, %v8360
        %8362 = vdwg.mxu0
        %v8363 = vadd.f32 %v8214, %v8316
        %v8364 = vadd.f32 %v8215, %v8319
        %v8365 = vadd.f32 %v8216, %v8322
        %v8366 = vadd.f32 %v8217, %v8325
        %v8367 = vadd.f32 %v8218, %v8328
        %v8368 = vadd.f32 %v8219, %v8331
        %v8369 = vadd.f32 %v8220, %v8334
        %v8370 = vadd.f32 %v8221, %v8337
        %v8371 = vadd.f32 %v8222, %v8340
        %v8372 = vadd.f32 %v8223, %v8343
        %v8373 = vadd.f32 %v8224, %v8346
        %v8374 = vadd.f32 %v8225, %v8349
        %v8375 = vadd.f32 %v8226, %v8352
        %v8376 = vadd.f32 %v8227, %v8355
        %v8377 = vadd.f32 %v8228, %v8358
        %v8378 = vadd.f32 %v8229, %v8361
        %v8379 = vld [vmem:[%s8080 + $0x8] sm:$0xff]
        %v8380 = vld [vmem:[%s8080 + $0x20] sm:$0xff]
        %v8381 = vld [vmem:[%s8080 + $0x38] sm:$0xff]
        %v8382 = vld [vmem:[%s8080 + $0x50] sm:$0xff]
        %v8383 = vld [vmem:[%s8080 + $0x68] sm:$0xff]
        %v8384 = vld [vmem:[%s8080 + $0x80] sm:$0xff]
        %v8385 = vld [vmem:[%s8080 + $0x98] sm:$0xff]
        %v8386 = vld [vmem:[%s8080 + $0xb0] sm:$0xff]
        %v8387 = vld [vmem:[%s8080 + $0x128] sm:$0xff]
        %v8388 = vld [vmem:[%s8080 + $0x140] sm:$0xff]
        %v8389 = vld [vmem:[%s8080 + $0x158] sm:$0xff]
        %v8390 = vld [vmem:[%s8080 + $0x170] sm:$0xff]
        %v8391 = vld [vmem:[%s8080 + $0x188] sm:$0xff]
        %v8392 = vld [vmem:[%s8080 + $0x1a0] sm:$0xff]
        %v8393 = vld [vmem:[%s8080 + $0x1b8] sm:$0xff]
        %v8394 = vld [vmem:[%s8080 + $0x1d0] sm:$0xff]
        %s8395 = scalar_lea.vmem %s6, 168
        %v8396 = vld [vmem:[%s8395] sm:$0xff]
        %v8397 = vld [vmem:[%s8395 + $0x8] sm:$0xff]
        %v8398 = vld [vmem:[%s8395 + $0x10] sm:$0xff]
        %v8400 = vsel %vm7276, %v8379, 0
        %v8403 = vsel %vm7276, %v8380, 0
        %v8406 = vsel %vm7276, %v8381, 0
        %v8409 = vsel %vm7276, %v8382, 0
        %v8412 = vsel %vm7276, %v8383, 0
        %v8415 = vsel %vm7276, %v8384, 0
        %v8418 = vsel %vm7276, %v8385, 0
        %v8421 = vsel %vm7276, %v8386, 0
        %v8424 = vsel %vm7276, %v8387, 0
        %v8427 = vsel %vm7276, %v8388, 0
        %v8430 = vsel %vm7276, %v8389, 0
        %v8433 = vsel %vm7276, %v8390, 0
        %v8436 = vsel %vm7276, %v8391, 0
        %v8439 = vsel %vm7276, %v8392, 0
        %v8442 = vsel %vm7276, %v8393, 0
        %v8445 = vsel %vm7276, %v8394, 0
        %8447 = vmatpush.msra.mxu0 0.0
        %8448 = vmatpush.msra.mxu0 0.0
        %8449 = vmatpush.msra.mxu0 0.0
        %8450 = vmatpush.msra.mxu0 0.0
        %8451 = vmatpush.msra.mxu0 0.0
        %8452 = vmatpush.msra.mxu0 0.0
        %8453 = vmatpush.msra.mxu0 0.0
        %8454 = vmatpush.msra.mxu0 0.0
        %8455 = vmatpush.msra.mxu0 0.0
        %8456 = vmatpush.msra.mxu0 0.0
        %8457 = vmatpush.msra.mxu0 0.0
        %8458 = vmatpush.msra.mxu0 0.0
        %8459 = vmatpush.msra.mxu0 0.0
        %8460 = vmatpush.msra.mxu0 %v8398
        %8461 = vmatpush.msra.mxu0 %v8397
        %8462 = vmatpush.msra.mxu0 %v8396
        %8463 = vmatmul.f32.gmra.mxu0 %v8400
        %v8464 = vpop.f32.mrf.mxu0
        %v8465 = vadd.f32 0.0, %v8464
        %8466 = vmatmul.f32.gmra.mxu0 %v8403
        %v8467 = vpop.f32.mrf.mxu0
        %v8468 = vadd.f32 0.0, %v8467
        %8469 = vmatmul.f32.gmra.mxu0 %v8406
        %v8470 = vpop.f32.mrf.mxu0
        %v8471 = vadd.f32 0.0, %v8470
        %8472 = vmatmul.f32.gmra.mxu0 %v8409
        %v8473 = vpop.f32.mrf.mxu0
        %v8474 = vadd.f32 0.0, %v8473
        %8475 = vmatmul.f32.gmra.mxu0 %v8412
        %v8476 = vpop.f32.mrf.mxu0
        %v8477 = vadd.f32 0.0, %v8476
        %8478 = vmatmul.f32.gmra.mxu0 %v8415
        %v8479 = vpop.f32.mrf.mxu0
        %v8480 = vadd.f32 0.0, %v8479
        %8481 = vmatmul.f32.gmra.mxu0 %v8418
        %v8482 = vpop.f32.mrf.mxu0
        %v8483 = vadd.f32 0.0, %v8482
        %8484 = vmatmul.f32.gmra.mxu0 %v8421
        %v8485 = vpop.f32.mrf.mxu0
        %v8486 = vadd.f32 0.0, %v8485
        %8487 = vmatmul.f32.gmra.mxu0 %v8424
        %v8488 = vpop.f32.mrf.mxu0
        %v8489 = vadd.f32 0.0, %v8488
        %8490 = vmatmul.f32.gmra.mxu0 %v8427
        %v8491 = vpop.f32.mrf.mxu0
        %v8492 = vadd.f32 0.0, %v8491
        %8493 = vmatmul.f32.gmra.mxu0 %v8430
        %v8494 = vpop.f32.mrf.mxu0
        %v8495 = vadd.f32 0.0, %v8494
        %8496 = vmatmul.f32.gmra.mxu0 %v8433
        %v8497 = vpop.f32.mrf.mxu0
        %v8498 = vadd.f32 0.0, %v8497
        %8499 = vmatmul.f32.gmra.mxu0 %v8436
        %v8500 = vpop.f32.mrf.mxu0
        %v8501 = vadd.f32 0.0, %v8500
        %8502 = vmatmul.f32.gmra.mxu0 %v8439
        %v8503 = vpop.f32.mrf.mxu0
        %v8504 = vadd.f32 0.0, %v8503
        %8505 = vmatmul.f32.gmra.mxu0 %v8442
        %v8506 = vpop.f32.mrf.mxu0
        %v8507 = vadd.f32 0.0, %v8506
        %8508 = vmatmul.f32.gmra.mxu0 %v8445
        %v8509 = vpop.f32.mrf.mxu0
        %v8510 = vadd.f32 0.0, %v8509
        %8511 = vdwg.mxu0
        %v8512 = vadd.f32 %v8363, %v8465
        %v8513 = vadd.f32 %v8364, %v8468
        %v8514 = vadd.f32 %v8365, %v8471
        %v8515 = vadd.f32 %v8366, %v8474
        %v8516 = vadd.f32 %v8367, %v8477
        %v8517 = vadd.f32 %v8368, %v8480
        %v8518 = vadd.f32 %v8369, %v8483
        %v8519 = vadd.f32 %v8370, %v8486
        %v8520 = vadd.f32 %v8371, %v8489
        %v8521 = vadd.f32 %v8372, %v8492
        %v8522 = vadd.f32 %v8373, %v8495
        %v8523 = vadd.f32 %v8374, %v8498
        %v8524 = vadd.f32 %v8375, %v8501
        %v8525 = vadd.f32 %v8376, %v8504
        %v8526 = vadd.f32 %v8377, %v8507
        %v8527 = vadd.f32 %v8378, %v8510
        %v8528 = vld [vmem:[%s8080 + $0x9] sm:$0xff]
        %v8529 = vld [vmem:[%s8080 + $0x21] sm:$0xff]
        %v8530 = vld [vmem:[%s8080 + $0x39] sm:$0xff]
        %v8531 = vld [vmem:[%s8080 + $0x51] sm:$0xff]
        %v8532 = vld [vmem:[%s8080 + $0x69] sm:$0xff]
        %v8533 = vld [vmem:[%s8080 + $0x81] sm:$0xff]
        %v8534 = vld [vmem:[%s8080 + $0x99] sm:$0xff]
        %v8535 = vld [vmem:[%s8080 + $0xb1] sm:$0xff]
        %v8536 = vld [vmem:[%s8080 + $0x129] sm:$0xff]
        %v8537 = vld [vmem:[%s8080 + $0x141] sm:$0xff]
        %v8538 = vld [vmem:[%s8080 + $0x159] sm:$0xff]
        %v8539 = vld [vmem:[%s8080 + $0x171] sm:$0xff]
        %v8540 = vld [vmem:[%s8080 + $0x189] sm:$0xff]
        %v8541 = vld [vmem:[%s8080 + $0x1a1] sm:$0xff]
        %v8542 = vld [vmem:[%s8080 + $0x1b9] sm:$0xff]
        %v8543 = vld [vmem:[%s8080 + $0x1d1] sm:$0xff]
        %s8544 = scalar_lea.vmem %s6, 192
        %v8545 = vld [vmem:[%s8544] sm:$0xff]
        %v8546 = vld [vmem:[%s8544 + $0x8] sm:$0xff]
        %v8547 = vld [vmem:[%s8544 + $0x10] sm:$0xff]
        %v8549 = vsel %vm7276, %v8528, 0
        %v8552 = vsel %vm7276, %v8529, 0
        %v8555 = vsel %vm7276, %v8530, 0
        %v8558 = vsel %vm7276, %v8531, 0
        %v8561 = vsel %vm7276, %v8532, 0
        %v8564 = vsel %vm7276, %v8533, 0
        %v8567 = vsel %vm7276, %v8534, 0
        %v8570 = vsel %vm7276, %v8535, 0
        %v8573 = vsel %vm7276, %v8536, 0
        %v8576 = vsel %vm7276, %v8537, 0
        %v8579 = vsel %vm7276, %v8538, 0
        %v8582 = vsel %vm7276, %v8539, 0
        %v8585 = vsel %vm7276, %v8540, 0
        %v8588 = vsel %vm7276, %v8541, 0
        %v8591 = vsel %vm7276, %v8542, 0
        %v8594 = vsel %vm7276, %v8543, 0
        %8596 = vmatpush.msra.mxu0 0.0
        %8597 = vmatpush.msra.mxu0 0.0
        %8598 = vmatpush.msra.mxu0 0.0
        %8599 = vmatpush.msra.mxu0 0.0
        %8600 = vmatpush.msra.mxu0 0.0
        %8601 = vmatpush.msra.mxu0 0.0
        %8602 = vmatpush.msra.mxu0 0.0
        %8603 = vmatpush.msra.mxu0 0.0
        %8604 = vmatpush.msra.mxu0 0.0
        %8605 = vmatpush.msra.mxu0 0.0
        %8606 = vmatpush.msra.mxu0 0.0
        %8607 = vmatpush.msra.mxu0 0.0
        %8608 = vmatpush.msra.mxu0 0.0
        %8609 = vmatpush.msra.mxu0 %v8547
        %8610 = vmatpush.msra.mxu0 %v8546
        %8611 = vmatpush.msra.mxu0 %v8545
        %8612 = vmatmul.f32.gmra.mxu0 %v8549
        %v8613 = vpop.f32.mrf.mxu0
        %v8614 = vadd.f32 0.0, %v8613
        %8615 = vmatmul.f32.gmra.mxu0 %v8552
        %v8616 = vpop.f32.mrf.mxu0
        %v8617 = vadd.f32 0.0, %v8616
        %8618 = vmatmul.f32.gmra.mxu0 %v8555
        %v8619 = vpop.f32.mrf.mxu0
        %v8620 = vadd.f32 0.0, %v8619
        %8621 = vmatmul.f32.gmra.mxu0 %v8558
        %v8622 = vpop.f32.mrf.mxu0
        %v8623 = vadd.f32 0.0, %v8622
        %8624 = vmatmul.f32.gmra.mxu0 %v8561
        %v8625 = vpop.f32.mrf.mxu0
        %v8626 = vadd.f32 0.0, %v8625
        %8627 = vmatmul.f32.gmra.mxu0 %v8564
        %v8628 = vpop.f32.mrf.mxu0
        %v8629 = vadd.f32 0.0, %v8628
        %8630 = vmatmul.f32.gmra.mxu0 %v8567
        %v8631 = vpop.f32.mrf.mxu0
        %v8632 = vadd.f32 0.0, %v8631
        %8633 = vmatmul.f32.gmra.mxu0 %v8570
        %v8634 = vpop.f32.mrf.mxu0
        %v8635 = vadd.f32 0.0, %v8634
        %8636 = vmatmul.f32.gmra.mxu0 %v8573
        %v8637 = vpop.f32.mrf.mxu0
        %v8638 = vadd.f32 0.0, %v8637
        %8639 = vmatmul.f32.gmra.mxu0 %v8576
        %v8640 = vpop.f32.mrf.mxu0
        %v8641 = vadd.f32 0.0, %v8640
        %8642 = vmatmul.f32.gmra.mxu0 %v8579
        %v8643 = vpop.f32.mrf.mxu0
        %v8644 = vadd.f32 0.0, %v8643
        %8645 = vmatmul.f32.gmra.mxu0 %v8582
        %v8646 = vpop.f32.mrf.mxu0
        %v8647 = vadd.f32 0.0, %v8646
        %8648 = vmatmul.f32.gmra.mxu0 %v8585
        %v8649 = vpop.f32.mrf.mxu0
        %v8650 = vadd.f32 0.0, %v8649
        %8651 = vmatmul.f32.gmra.mxu0 %v8588
        %v8652 = vpop.f32.mrf.mxu0
        %v8653 = vadd.f32 0.0, %v8652
        %8654 = vmatmul.f32.gmra.mxu0 %v8591
        %v8655 = vpop.f32.mrf.mxu0
        %v8656 = vadd.f32 0.0, %v8655
        %8657 = vmatmul.f32.gmra.mxu0 %v8594
        %v8658 = vpop.f32.mrf.mxu0
        %v8659 = vadd.f32 0.0, %v8658
        %8660 = vdwg.mxu0
        %v8661 = vadd.f32 %v8512, %v8614
        %v8662 = vadd.f32 %v8513, %v8617
        %v8663 = vadd.f32 %v8514, %v8620
        %v8664 = vadd.f32 %v8515, %v8623
        %v8665 = vadd.f32 %v8516, %v8626
        %v8666 = vadd.f32 %v8517, %v8629
        %v8667 = vadd.f32 %v8518, %v8632
        %v8668 = vadd.f32 %v8519, %v8635
        %v8669 = vadd.f32 %v8520, %v8638
        %v8670 = vadd.f32 %v8521, %v8641
        %v8671 = vadd.f32 %v8522, %v8644
        %v8672 = vadd.f32 %v8523, %v8647
        %v8673 = vadd.f32 %v8524, %v8650
        %v8674 = vadd.f32 %v8525, %v8653
        %v8675 = vadd.f32 %v8526, %v8656
        %v8676 = vadd.f32 %v8527, %v8659
        %v8677 = vld [vmem:[%s8080 + $0xa] sm:$0xff]
        %v8678 = vld [vmem:[%s8080 + $0x22] sm:$0xff]
        %v8679 = vld [vmem:[%s8080 + $0x3a] sm:$0xff]
        %v8680 = vld [vmem:[%s8080 + $0x52] sm:$0xff]
        %v8681 = vld [vmem:[%s8080 + $0x6a] sm:$0xff]
        %v8682 = vld [vmem:[%s8080 + $0x82] sm:$0xff]
        %v8683 = vld [vmem:[%s8080 + $0x9a] sm:$0xff]
        %v8684 = vld [vmem:[%s8080 + $0xb2] sm:$0xff]
        %v8685 = vld [vmem:[%s8080 + $0x12a] sm:$0xff]
        %v8686 = vld [vmem:[%s8080 + $0x142] sm:$0xff]
        %v8687 = vld [vmem:[%s8080 + $0x15a] sm:$0xff]
        %v8688 = vld [vmem:[%s8080 + $0x172] sm:$0xff]
        %v8689 = vld [vmem:[%s8080 + $0x18a] sm:$0xff]
        %v8690 = vld [vmem:[%s8080 + $0x1a2] sm:$0xff]
        %v8691 = vld [vmem:[%s8080 + $0x1ba] sm:$0xff]
        %v8692 = vld [vmem:[%s8080 + $0x1d2] sm:$0xff]
        %s8693 = scalar_lea.vmem %s6, 216
        %v8694 = vld [vmem:[%s8693] sm:$0xff]
        %v8695 = vld [vmem:[%s8693 + $0x8] sm:$0xff]
        %v8696 = vld [vmem:[%s8693 + $0x10] sm:$0xff]
        %v8698 = vsel %vm7276, %v8677, 0
        %v8701 = vsel %vm7276, %v8678, 0
        %v8704 = vsel %vm7276, %v8679, 0
        %v8707 = vsel %vm7276, %v8680, 0
        %v8710 = vsel %vm7276, %v8681, 0
        %v8713 = vsel %vm7276, %v8682, 0
        %v8716 = vsel %vm7276, %v8683, 0
        %v8719 = vsel %vm7276, %v8684, 0
        %v8722 = vsel %vm7276, %v8685, 0
        %v8725 = vsel %vm7276, %v8686, 0
        %v8728 = vsel %vm7276, %v8687, 0
        %v8731 = vsel %vm7276, %v8688, 0
        %v8734 = vsel %vm7276, %v8689, 0
        %v8737 = vsel %vm7276, %v8690, 0
        %v8740 = vsel %vm7276, %v8691, 0
        %v8743 = vsel %vm7276, %v8692, 0
        %8745 = vmatpush.msra.mxu0 0.0
        %8746 = vmatpush.msra.mxu0 0.0
        %8747 = vmatpush.msra.mxu0 0.0
        %8748 = vmatpush.msra.mxu0 0.0
        %8749 = vmatpush.msra.mxu0 0.0
        %8750 = vmatpush.msra.mxu0 0.0
        %8751 = vmatpush.msra.mxu0 0.0
        %8752 = vmatpush.msra.mxu0 0.0
        %8753 = vmatpush.msra.mxu0 0.0
        %8754 = vmatpush.msra.mxu0 0.0
        %8755 = vmatpush.msra.mxu0 0.0
        %8756 = vmatpush.msra.mxu0 0.0
        %8757 = vmatpush.msra.mxu0 0.0
        %8758 = vmatpush.msra.mxu0 %v8696
        %8759 = vmatpush.msra.mxu0 %v8695
        %8760 = vmatpush.msra.mxu0 %v8694
        %8761 = vmatmul.f32.gmra.mxu0 %v8698
        %v8762 = vpop.f32.mrf.mxu0
        %v8763 = vadd.f32 0.0, %v8762
        %8764 = vmatmul.f32.gmra.mxu0 %v8701
        %v8765 = vpop.f32.mrf.mxu0
        %v8766 = vadd.f32 0.0, %v8765
        %8767 = vmatmul.f32.gmra.mxu0 %v8704
        %v8768 = vpop.f32.mrf.mxu0
        %v8769 = vadd.f32 0.0, %v8768
        %8770 = vmatmul.f32.gmra.mxu0 %v8707
        %v8771 = vpop.f32.mrf.mxu0
        %v8772 = vadd.f32 0.0, %v8771
        %8773 = vmatmul.f32.gmra.mxu0 %v8710
        %v8774 = vpop.f32.mrf.mxu0
        %v8775 = vadd.f32 0.0, %v8774
        %8776 = vmatmul.f32.gmra.mxu0 %v8713
        %v8777 = vpop.f32.mrf.mxu0
        %v8778 = vadd.f32 0.0, %v8777
        %8779 = vmatmul.f32.gmra.mxu0 %v8716
        %v8780 = vpop.f32.mrf.mxu0
        %v8781 = vadd.f32 0.0, %v8780
        %8782 = vmatmul.f32.gmra.mxu0 %v8719
        %v8783 = vpop.f32.mrf.mxu0
        %v8784 = vadd.f32 0.0, %v8783
        %8785 = vmatmul.f32.gmra.mxu0 %v8722
        %v8786 = vpop.f32.mrf.mxu0
        %v8787 = vadd.f32 0.0, %v8786
        %8788 = vmatmul.f32.gmra.mxu0 %v8725
        %v8789 = vpop.f32.mrf.mxu0
        %v8790 = vadd.f32 0.0, %v8789
        %8791 = vmatmul.f32.gmra.mxu0 %v8728
        %v8792 = vpop.f32.mrf.mxu0
        %v8793 = vadd.f32 0.0, %v8792
        %8794 = vmatmul.f32.gmra.mxu0 %v8731
        %v8795 = vpop.f32.mrf.mxu0
        %v8796 = vadd.f32 0.0, %v8795
        %8797 = vmatmul.f32.gmra.mxu0 %v8734
        %v8798 = vpop.f32.mrf.mxu0
        %v8799 = vadd.f32 0.0, %v8798
        %8800 = vmatmul.f32.gmra.mxu0 %v8737
        %v8801 = vpop.f32.mrf.mxu0
        %v8802 = vadd.f32 0.0, %v8801
        %8803 = vmatmul.f32.gmra.mxu0 %v8740
        %v8804 = vpop.f32.mrf.mxu0
        %v8805 = vadd.f32 0.0, %v8804
        %8806 = vmatmul.f32.gmra.mxu0 %v8743
        %v8807 = vpop.f32.mrf.mxu0
        %v8808 = vadd.f32 0.0, %v8807
        %8809 = vdwg.mxu0
        %v8810 = vadd.f32 %v8661, %v8763
        %v8811 = vadd.f32 %v8662, %v8766
        %v8812 = vadd.f32 %v8663, %v8769
        %v8813 = vadd.f32 %v8664, %v8772
        %v8814 = vadd.f32 %v8665, %v8775
        %v8815 = vadd.f32 %v8666, %v8778
        %v8816 = vadd.f32 %v8667, %v8781
        %v8817 = vadd.f32 %v8668, %v8784
        %v8818 = vadd.f32 %v8669, %v8787
        %v8819 = vadd.f32 %v8670, %v8790
        %v8820 = vadd.f32 %v8671, %v8793
        %v8821 = vadd.f32 %v8672, %v8796
        %v8822 = vadd.f32 %v8673, %v8799
        %v8823 = vadd.f32 %v8674, %v8802
        %v8824 = vadd.f32 %v8675, %v8805
        %v8825 = vadd.f32 %v8676, %v8808
        %v8826 = vld [vmem:[%s7303 + $0x6] sm:$0xff]
        %v8827 = vld [vmem:[%s7303 + $0x1e] sm:$0xff]
        %v8828 = vld [vmem:[%s7303 + $0x36] sm:$0xff]
        %v8829 = vld [vmem:[%s7303 + $0x4e] sm:$0xff]
        %v8830 = vld [vmem:[%s7303 + $0x66] sm:$0xff]
        %v8831 = vld [vmem:[%s7303 + $0x7e] sm:$0xff]
        %v8832 = vld [vmem:[%s7303 + $0x96] sm:$0xff]
        %v8833 = vld [vmem:[%s7303 + $0xae] sm:$0xff]
        %v8834 = vld [vmem:[%s7303 + $0x126] sm:$0xff]
        %v8835 = vld [vmem:[%s7303 + $0x13e] sm:$0xff]
        %v8836 = vld [vmem:[%s7303 + $0x156] sm:$0xff]
        %v8837 = vld [vmem:[%s7303 + $0x16e] sm:$0xff]
        %v8838 = vld [vmem:[%s7303 + $0x186] sm:$0xff]
        %v8839 = vld [vmem:[%s7303 + $0x19e] sm:$0xff]
        %v8840 = vld [vmem:[%s7303 + $0x1b6] sm:$0xff]
        %v8841 = vld [vmem:[%s7303 + $0x1ce] sm:$0xff]
        %s8842 = scalar_lea.vmem %s6, 240
        %v8843 = vld [vmem:[%s8842] sm:$0xff]
        %v8844 = vld [vmem:[%s8842 + $0x8] sm:$0xff]
        %v8845 = vld [vmem:[%s8842 + $0x10] sm:$0xff]
        %v8847 = vsel %vm7276, %v8826, 0
        %v8850 = vsel %vm7276, %v8827, 0
        %v8853 = vsel %vm7276, %v8828, 0
        %v8856 = vsel %vm7276, %v8829, 0
        %v8859 = vsel %vm7276, %v8830, 0
        %v8862 = vsel %vm7276, %v8831, 0
        %v8865 = vsel %vm7276, %v8832, 0
        %v8868 = vsel %vm7276, %v8833, 0
        %v8871 = vsel %vm7276, %v8834, 0
        %v8874 = vsel %vm7276, %v8835, 0
        %v8877 = vsel %vm7276, %v8836, 0
        %v8880 = vsel %vm7276, %v8837, 0
        %v8883 = vsel %vm7276, %v8838, 0
        %v8886 = vsel %vm7276, %v8839, 0
        %v8889 = vsel %vm7276, %v8840, 0
        %v8892 = vsel %vm7276, %v8841, 0
        %8894 = vmatpush.msra.mxu0 0.0
        %8895 = vmatpush.msra.mxu0 0.0
        %8896 = vmatpush.msra.mxu0 0.0
        %8897 = vmatpush.msra.mxu0 0.0
        %8898 = vmatpush.msra.mxu0 0.0
        %8899 = vmatpush.msra.mxu0 0.0
        %8900 = vmatpush.msra.mxu0 0.0
        %8901 = vmatpush.msra.mxu0 0.0
        %8902 = vmatpush.msra.mxu0 0.0
        %8903 = vmatpush.msra.mxu0 0.0
        %8904 = vmatpush.msra.mxu0 0.0
        %8905 = vmatpush.msra.mxu0 0.0
        %8906 = vmatpush.msra.mxu0 0.0
        %8907 = vmatpush.msra.mxu0 %v8845
        %8908 = vmatpush.msra.mxu0 %v8844
        %8909 = vmatpush.msra.mxu0 %v8843
        %8910 = vmatmul.f32.gmra.mxu0 %v8847
        %v8911 = vpop.f32.mrf.mxu0
        %v8912 = vadd.f32 0.0, %v8911
        %8913 = vmatmul.f32.gmra.mxu0 %v8850
        %v8914 = vpop.f32.mrf.mxu0
        %v8915 = vadd.f32 0.0, %v8914
        %8916 = vmatmul.f32.gmra.mxu0 %v8853
        %v8917 = vpop.f32.mrf.mxu0
        %v8918 = vadd.f32 0.0, %v8917
        %8919 = vmatmul.f32.gmra.mxu0 %v8856
        %v8920 = vpop.f32.mrf.mxu0
        %v8921 = vadd.f32 0.0, %v8920
        %8922 = vmatmul.f32.gmra.mxu0 %v8859
        %v8923 = vpop.f32.mrf.mxu0
        %v8924 = vadd.f32 0.0, %v8923
        %8925 = vmatmul.f32.gmra.mxu0 %v8862
        %v8926 = vpop.f32.mrf.mxu0
        %v8927 = vadd.f32 0.0, %v8926
        %8928 = vmatmul.f32.gmra.mxu0 %v8865
        %v8929 = vpop.f32.mrf.mxu0
        %v8930 = vadd.f32 0.0, %v8929
        %8931 = vmatmul.f32.gmra.mxu0 %v8868
        %v8932 = vpop.f32.mrf.mxu0
        %v8933 = vadd.f32 0.0, %v8932
        %8934 = vmatmul.f32.gmra.mxu0 %v8871
        %v8935 = vpop.f32.mrf.mxu0
        %v8936 = vadd.f32 0.0, %v8935
        %8937 = vmatmul.f32.gmra.mxu0 %v8874
        %v8938 = vpop.f32.mrf.mxu0
        %v8939 = vadd.f32 0.0, %v8938
        %8940 = vmatmul.f32.gmra.mxu0 %v8877
        %v8941 = vpop.f32.mrf.mxu0
        %v8942 = vadd.f32 0.0, %v8941
        %8943 = vmatmul.f32.gmra.mxu0 %v8880
        %v8944 = vpop.f32.mrf.mxu0
        %v8945 = vadd.f32 0.0, %v8944
        %8946 = vmatmul.f32.gmra.mxu0 %v8883
        %v8947 = vpop.f32.mrf.mxu0
        %v8948 = vadd.f32 0.0, %v8947
        %8949 = vmatmul.f32.gmra.mxu0 %v8886
        %v8950 = vpop.f32.mrf.mxu0
        %v8951 = vadd.f32 0.0, %v8950
        %8952 = vmatmul.f32.gmra.mxu0 %v8889
        %v8953 = vpop.f32.mrf.mxu0
        %v8954 = vadd.f32 0.0, %v8953
        %8955 = vmatmul.f32.gmra.mxu0 %v8892
        %v8956 = vpop.f32.mrf.mxu0
        %v8957 = vadd.f32 0.0, %v8956
        %8958 = vdwg.mxu0
        %v8959 = vadd.f32 %v8810, %v8912
        %v8960 = vadd.f32 %v8811, %v8915
        %v8961 = vadd.f32 %v8812, %v8918
        %v8962 = vadd.f32 %v8813, %v8921
        %v8963 = vadd.f32 %v8814, %v8924
        %v8964 = vadd.f32 %v8815, %v8927
        %v8965 = vadd.f32 %v8816, %v8930
        %v8966 = vadd.f32 %v8817, %v8933
        %v8967 = vadd.f32 %v8818, %v8936
        %v8968 = vadd.f32 %v8819, %v8939
        %v8969 = vadd.f32 %v8820, %v8942
        %v8970 = vadd.f32 %v8821, %v8945
        %v8971 = vadd.f32 %v8822, %v8948
        %v8972 = vadd.f32 %v8823, %v8951
        %v8973 = vadd.f32 %v8824, %v8954
        %v8974 = vadd.f32 %v8825, %v8957
        %v8975 = vld [vmem:[%s7303 + $0x7] sm:$0xff]
        %v8976 = vld [vmem:[%s7303 + $0x1f] sm:$0xff]
        %v8977 = vld [vmem:[%s7303 + $0x37] sm:$0xff]
        %v8978 = vld [vmem:[%s7303 + $0x4f] sm:$0xff]
        %v8979 = vld [vmem:[%s7303 + $0x67] sm:$0xff]
        %v8980 = vld [vmem:[%s7303 + $0x7f] sm:$0xff]
        %v8981 = vld [vmem:[%s7303 + $0x97] sm:$0xff]
        %v8982 = vld [vmem:[%s7303 + $0xaf] sm:$0xff]
        %v8983 = vld [vmem:[%s7303 + $0x127] sm:$0xff]
        %v8984 = vld [vmem:[%s7303 + $0x13f] sm:$0xff]
        %v8985 = vld [vmem:[%s7303 + $0x157] sm:$0xff]
        %v8986 = vld [vmem:[%s7303 + $0x16f] sm:$0xff]
        %v8987 = vld [vmem:[%s7303 + $0x187] sm:$0xff]
        %v8988 = vld [vmem:[%s7303 + $0x19f] sm:$0xff]
        %v8989 = vld [vmem:[%s7303 + $0x1b7] sm:$0xff]
        %v8990 = vld [vmem:[%s7303 + $0x1cf] sm:$0xff]
        %s8991 = scalar_lea.vmem %s6, 264
        %v8992 = vld [vmem:[%s8991] sm:$0xff]
        %v8993 = vld [vmem:[%s8991 + $0x8] sm:$0xff]
        %v8994 = vld [vmem:[%s8991 + $0x10] sm:$0xff]
        %v8996 = vsel %vm7276, %v8975, 0
        %v8999 = vsel %vm7276, %v8976, 0
        %v9002 = vsel %vm7276, %v8977, 0
        %v9005 = vsel %vm7276, %v8978, 0
        %v9008 = vsel %vm7276, %v8979, 0
        %v9011 = vsel %vm7276, %v8980, 0
        %v9014 = vsel %vm7276, %v8981, 0
        %v9017 = vsel %vm7276, %v8982, 0
        %v9020 = vsel %vm7276, %v8983, 0
        %v9023 = vsel %vm7276, %v8984, 0
        %v9026 = vsel %vm7276, %v8985, 0
        %v9029 = vsel %vm7276, %v8986, 0
        %v9032 = vsel %vm7276, %v8987, 0
        %v9035 = vsel %vm7276, %v8988, 0
        %v9038 = vsel %vm7276, %v8989, 0
        %v9041 = vsel %vm7276, %v8990, 0
        %9043 = vmatpush.msra.mxu0 0.0
        %9044 = vmatpush.msra.mxu0 0.0
        %9045 = vmatpush.msra.mxu0 0.0
        %9046 = vmatpush.msra.mxu0 0.0
        %9047 = vmatpush.msra.mxu0 0.0
        %9048 = vmatpush.msra.mxu0 0.0
        %9049 = vmatpush.msra.mxu0 0.0
        %9050 = vmatpush.msra.mxu0 0.0
        %9051 = vmatpush.msra.mxu0 0.0
        %9052 = vmatpush.msra.mxu0 0.0
        %9053 = vmatpush.msra.mxu0 0.0
        %9054 = vmatpush.msra.mxu0 0.0
        %9055 = vmatpush.msra.mxu0 0.0
        %9056 = vmatpush.msra.mxu0 %v8994
        %9057 = vmatpush.msra.mxu0 %v8993
        %9058 = vmatpush.msra.mxu0 %v8992
        %9059 = vmatmul.f32.gmra.mxu0 %v8996
        %v9060 = vpop.f32.mrf.mxu0
        %v9061 = vadd.f32 0.0, %v9060
        %9062 = vmatmul.f32.gmra.mxu0 %v8999
        %v9063 = vpop.f32.mrf.mxu0
        %v9064 = vadd.f32 0.0, %v9063
        %9065 = vmatmul.f32.gmra.mxu0 %v9002
        %v9066 = vpop.f32.mrf.mxu0
        %v9067 = vadd.f32 0.0, %v9066
        %9068 = vmatmul.f32.gmra.mxu0 %v9005
        %v9069 = vpop.f32.mrf.mxu0
        %v9070 = vadd.f32 0.0, %v9069
        %9071 = vmatmul.f32.gmra.mxu0 %v9008
        %v9072 = vpop.f32.mrf.mxu0
        %v9073 = vadd.f32 0.0, %v9072
        %9074 = vmatmul.f32.gmra.mxu0 %v9011
        %v9075 = vpop.f32.mrf.mxu0
        %v9076 = vadd.f32 0.0, %v9075
        %9077 = vmatmul.f32.gmra.mxu0 %v9014
        %v9078 = vpop.f32.mrf.mxu0
        %v9079 = vadd.f32 0.0, %v9078
        %9080 = vmatmul.f32.gmra.mxu0 %v9017
        %v9081 = vpop.f32.mrf.mxu0
        %v9082 = vadd.f32 0.0, %v9081
        %9083 = vmatmul.f32.gmra.mxu0 %v9020
        %v9084 = vpop.f32.mrf.mxu0
        %v9085 = vadd.f32 0.0, %v9084
        %9086 = vmatmul.f32.gmra.mxu0 %v9023
        %v9087 = vpop.f32.mrf.mxu0
        %v9088 = vadd.f32 0.0, %v9087
        %9089 = vmatmul.f32.gmra.mxu0 %v9026
        %v9090 = vpop.f32.mrf.mxu0
        %v9091 = vadd.f32 0.0, %v9090
        %9092 = vmatmul.f32.gmra.mxu0 %v9029
        %v9093 = vpop.f32.mrf.mxu0
        %v9094 = vadd.f32 0.0, %v9093
        %9095 = vmatmul.f32.gmra.mxu0 %v9032
        %v9096 = vpop.f32.mrf.mxu0
        %v9097 = vadd.f32 0.0, %v9096
        %9098 = vmatmul.f32.gmra.mxu0 %v9035
        %v9099 = vpop.f32.mrf.mxu0
        %v9100 = vadd.f32 0.0, %v9099
        %9101 = vmatmul.f32.gmra.mxu0 %v9038
        %v9102 = vpop.f32.mrf.mxu0
        %v9103 = vadd.f32 0.0, %v9102
        %9104 = vmatmul.f32.gmra.mxu0 %v9041
        %v9105 = vpop.f32.mrf.mxu0
        %v9106 = vadd.f32 0.0, %v9105
        %9107 = vdwg.mxu0
        %v9108 = vadd.f32 %v8959, %v9061
        %v9109 = vadd.f32 %v8960, %v9064
        %v9110 = vadd.f32 %v8961, %v9067
        %v9111 = vadd.f32 %v8962, %v9070
        %v9112 = vadd.f32 %v8963, %v9073
        %v9113 = vadd.f32 %v8964, %v9076
        %v9114 = vadd.f32 %v8965, %v9079
        %v9115 = vadd.f32 %v8966, %v9082
        %v9116 = vadd.f32 %v8967, %v9085
        %v9117 = vadd.f32 %v8968, %v9088
        %v9118 = vadd.f32 %v8969, %v9091
        %v9119 = vadd.f32 %v8970, %v9094
        %v9120 = vadd.f32 %v8971, %v9097
        %v9121 = vadd.f32 %v8972, %v9100
        %v9122 = vadd.f32 %v8973, %v9103
        %v9123 = vadd.f32 %v8974, %v9106
        %v9124 = vld [vmem:[%s7303 + $0x8] sm:$0xff]
        %v9125 = vld [vmem:[%s7303 + $0x20] sm:$0xff]
        %v9126 = vld [vmem:[%s7303 + $0x38] sm:$0xff]
        %v9127 = vld [vmem:[%s7303 + $0x50] sm:$0xff]
        %v9128 = vld [vmem:[%s7303 + $0x68] sm:$0xff]
        %v9129 = vld [vmem:[%s7303 + $0x80] sm:$0xff]
        %v9130 = vld [vmem:[%s7303 + $0x98] sm:$0xff]
        %v9131 = vld [vmem:[%s7303 + $0xb0] sm:$0xff]
        %v9132 = vld [vmem:[%s7303 + $0x128] sm:$0xff]
        %v9133 = vld [vmem:[%s7303 + $0x140] sm:$0xff]
        %v9134 = vld [vmem:[%s7303 + $0x158] sm:$0xff]
        %v9135 = vld [vmem:[%s7303 + $0x170] sm:$0xff]
        %v9136 = vld [vmem:[%s7303 + $0x188] sm:$0xff]
        %v9137 = vld [vmem:[%s7303 + $0x1a0] sm:$0xff]
        %v9138 = vld [vmem:[%s7303 + $0x1b8] sm:$0xff]
        %v9139 = vld [vmem:[%s7303 + $0x1d0] sm:$0xff]
        %s9140 = scalar_lea.vmem %s6, 288
        %v9141 = vld [vmem:[%s9140] sm:$0xff]
        %v9142 = vld [vmem:[%s9140 + $0x8] sm:$0xff]
        %v9143 = vld [vmem:[%s9140 + $0x10] sm:$0xff]
        %v9145 = vsel %vm7276, %v9124, 0
        %v9148 = vsel %vm7276, %v9125, 0
        %v9151 = vsel %vm7276, %v9126, 0
        %v9154 = vsel %vm7276, %v9127, 0
        %v9157 = vsel %vm7276, %v9128, 0
        %v9160 = vsel %vm7276, %v9129, 0
        %v9163 = vsel %vm7276, %v9130, 0
        %v9166 = vsel %vm7276, %v9131, 0
        %v9169 = vsel %vm7276, %v9132, 0
        %v9172 = vsel %vm7276, %v9133, 0
        %v9175 = vsel %vm7276, %v9134, 0
        %v9178 = vsel %vm7276, %v9135, 0
        %v9181 = vsel %vm7276, %v9136, 0
        %v9184 = vsel %vm7276, %v9137, 0
        %v9187 = vsel %vm7276, %v9138, 0
        %v9190 = vsel %vm7276, %v9139, 0
        %9192 = vmatpush.msra.mxu0 0.0
        %9193 = vmatpush.msra.mxu0 0.0
        %9194 = vmatpush.msra.mxu0 0.0
        %9195 = vmatpush.msra.mxu0 0.0
        %9196 = vmatpush.msra.mxu0 0.0
        %9197 = vmatpush.msra.mxu0 0.0
        %9198 = vmatpush.msra.mxu0 0.0
        %9199 = vmatpush.msra.mxu0 0.0
        %9200 = vmatpush.msra.mxu0 0.0
        %9201 = vmatpush.msra.mxu0 0.0
        %9202 = vmatpush.msra.mxu0 0.0
        %9203 = vmatpush.msra.mxu0 0.0
        %9204 = vmatpush.msra.mxu0 0.0
        %9205 = vmatpush.msra.mxu0 %v9143
        %9206 = vmatpush.msra.mxu0 %v9142
        %9207 = vmatpush.msra.mxu0 %v9141
        %9208 = vmatmul.f32.gmra.mxu0 %v9145
        %v9209 = vpop.f32.mrf.mxu0
        %v9210 = vadd.f32 0.0, %v9209
        %9211 = vmatmul.f32.gmra.mxu0 %v9148
        %v9212 = vpop.f32.mrf.mxu0
        %v9213 = vadd.f32 0.0, %v9212
        %9214 = vmatmul.f32.gmra.mxu0 %v9151
        %v9215 = vpop.f32.mrf.mxu0
        %v9216 = vadd.f32 0.0, %v9215
        %9217 = vmatmul.f32.gmra.mxu0 %v9154
        %v9218 = vpop.f32.mrf.mxu0
        %v9219 = vadd.f32 0.0, %v9218
        %9220 = vmatmul.f32.gmra.mxu0 %v9157
        %v9221 = vpop.f32.mrf.mxu0
        %v9222 = vadd.f32 0.0, %v9221
        %9223 = vmatmul.f32.gmra.mxu0 %v9160
        %v9224 = vpop.f32.mrf.mxu0
        %v9225 = vadd.f32 0.0, %v9224
        %9226 = vmatmul.f32.gmra.mxu0 %v9163
        %v9227 = vpop.f32.mrf.mxu0
        %v9228 = vadd.f32 0.0, %v9227
        %9229 = vmatmul.f32.gmra.mxu0 %v9166
        %v9230 = vpop.f32.mrf.mxu0
        %v9231 = vadd.f32 0.0, %v9230
        %9232 = vmatmul.f32.gmra.mxu0 %v9169
        %v9233 = vpop.f32.mrf.mxu0
        %v9234 = vadd.f32 0.0, %v9233
        %9235 = vmatmul.f32.gmra.mxu0 %v9172
        %v9236 = vpop.f32.mrf.mxu0
        %v9237 = vadd.f32 0.0, %v9236
        %9238 = vmatmul.f32.gmra.mxu0 %v9175
        %v9239 = vpop.f32.mrf.mxu0
        %v9240 = vadd.f32 0.0, %v9239
        %9241 = vmatmul.f32.gmra.mxu0 %v9178
        %v9242 = vpop.f32.mrf.mxu0
        %v9243 = vadd.f32 0.0, %v9242
        %9244 = vmatmul.f32.gmra.mxu0 %v9181
        %v9245 = vpop.f32.mrf.mxu0
        %v9246 = vadd.f32 0.0, %v9245
        %9247 = vmatmul.f32.gmra.mxu0 %v9184
        %v9248 = vpop.f32.mrf.mxu0
        %v9249 = vadd.f32 0.0, %v9248
        %9250 = vmatmul.f32.gmra.mxu0 %v9187
        %v9251 = vpop.f32.mrf.mxu0
        %v9252 = vadd.f32 0.0, %v9251
        %9253 = vmatmul.f32.gmra.mxu0 %v9190
        %v9254 = vpop.f32.mrf.mxu0
        %v9255 = vadd.f32 0.0, %v9254
        %9256 = vdwg.mxu0
        %v9257 = vadd.f32 %v9108, %v9210
        %v9258 = vadd.f32 %v9109, %v9213
        %v9259 = vadd.f32 %v9110, %v9216
        %v9260 = vadd.f32 %v9111, %v9219
        %v9261 = vadd.f32 %v9112, %v9222
        %v9262 = vadd.f32 %v9113, %v9225
        %v9263 = vadd.f32 %v9114, %v9228
        %v9264 = vadd.f32 %v9115, %v9231
        %v9265 = vadd.f32 %v9116, %v9234
        %v9266 = vadd.f32 %v9117, %v9237
        %v9267 = vadd.f32 %v9118, %v9240
        %v9268 = vadd.f32 %v9119, %v9243
        %v9269 = vadd.f32 %v9120, %v9246
        %v9270 = vadd.f32 %v9121, %v9249
        %v9271 = vadd.f32 %v9122, %v9252
        %v9272 = vadd.f32 %v9123, %v9255
        %v9273 = vld [vmem:[%s7303 + $0x9] sm:$0xff]
        %v9274 = vld [vmem:[%s7303 + $0x21] sm:$0xff]
        %v9275 = vld [vmem:[%s7303 + $0x39] sm:$0xff]
        %v9276 = vld [vmem:[%s7303 + $0x51] sm:$0xff]
        %v9277 = vld [vmem:[%s7303 + $0x69] sm:$0xff]
        %v9278 = vld [vmem:[%s7303 + $0x81] sm:$0xff]
        %v9279 = vld [vmem:[%s7303 + $0x99] sm:$0xff]
        %v9280 = vld [vmem:[%s7303 + $0xb1] sm:$0xff]
        %v9281 = vld [vmem:[%s7303 + $0x129] sm:$0xff]
        %v9282 = vld [vmem:[%s7303 + $0x141] sm:$0xff]
        %v9283 = vld [vmem:[%s7303 + $0x159] sm:$0xff]
        %v9284 = vld [vmem:[%s7303 + $0x171] sm:$0xff]
        %v9285 = vld [vmem:[%s7303 + $0x189] sm:$0xff]
        %v9286 = vld [vmem:[%s7303 + $0x1a1] sm:$0xff]
        %v9287 = vld [vmem:[%s7303 + $0x1b9] sm:$0xff]
        %v9288 = vld [vmem:[%s7303 + $0x1d1] sm:$0xff]
        %s9289 = scalar_lea.vmem %s6, 312
        %v9290 = vld [vmem:[%s9289] sm:$0xff]
        %v9291 = vld [vmem:[%s9289 + $0x8] sm:$0xff]
        %v9292 = vld [vmem:[%s9289 + $0x10] sm:$0xff]
        %v9294 = vsel %vm7276, %v9273, 0
        %v9297 = vsel %vm7276, %v9274, 0
        %v9300 = vsel %vm7276, %v9275, 0
        %v9303 = vsel %vm7276, %v9276, 0
        %v9306 = vsel %vm7276, %v9277, 0
        %v9309 = vsel %vm7276, %v9278, 0
        %v9312 = vsel %vm7276, %v9279, 0
        %v9315 = vsel %vm7276, %v9280, 0
        %v9318 = vsel %vm7276, %v9281, 0
        %v9321 = vsel %vm7276, %v9282, 0
        %v9324 = vsel %vm7276, %v9283, 0
        %v9327 = vsel %vm7276, %v9284, 0
        %v9330 = vsel %vm7276, %v9285, 0
        %v9333 = vsel %vm7276, %v9286, 0
        %v9336 = vsel %vm7276, %v9287, 0
        %v9339 = vsel %vm7276, %v9288, 0
        %9341 = vmatpush.msra.mxu0 0.0
        %9342 = vmatpush.msra.mxu0 0.0
        %9343 = vmatpush.msra.mxu0 0.0
        %9344 = vmatpush.msra.mxu0 0.0
        %9345 = vmatpush.msra.mxu0 0.0
        %9346 = vmatpush.msra.mxu0 0.0
        %9347 = vmatpush.msra.mxu0 0.0
        %9348 = vmatpush.msra.mxu0 0.0
        %9349 = vmatpush.msra.mxu0 0.0
        %9350 = vmatpush.msra.mxu0 0.0
        %9351 = vmatpush.msra.mxu0 0.0
        %9352 = vmatpush.msra.mxu0 0.0
        %9353 = vmatpush.msra.mxu0 0.0
        %9354 = vmatpush.msra.mxu0 %v9292
        %9355 = vmatpush.msra.mxu0 %v9291
        %9356 = vmatpush.msra.mxu0 %v9290
        %9357 = vmatmul.f32.gmra.mxu0 %v9294
        %v9358 = vpop.f32.mrf.mxu0
        %v9359 = vadd.f32 0.0, %v9358
        %9360 = vmatmul.f32.gmra.mxu0 %v9297
        %v9361 = vpop.f32.mrf.mxu0
        %v9362 = vadd.f32 0.0, %v9361
        %9363 = vmatmul.f32.gmra.mxu0 %v9300
        %v9364 = vpop.f32.mrf.mxu0
        %v9365 = vadd.f32 0.0, %v9364
        %9366 = vmatmul.f32.gmra.mxu0 %v9303
        %v9367 = vpop.f32.mrf.mxu0
        %v9368 = vadd.f32 0.0, %v9367
        %9369 = vmatmul.f32.gmra.mxu0 %v9306
        %v9370 = vpop.f32.mrf.mxu0
        %v9371 = vadd.f32 0.0, %v9370
        %9372 = vmatmul.f32.gmra.mxu0 %v9309
        %v9373 = vpop.f32.mrf.mxu0
        %v9374 = vadd.f32 0.0, %v9373
        %9375 = vmatmul.f32.gmra.mxu0 %v9312
        %v9376 = vpop.f32.mrf.mxu0
        %v9377 = vadd.f32 0.0, %v9376
        %9378 = vmatmul.f32.gmra.mxu0 %v9315
        %v9379 = vpop.f32.mrf.mxu0
        %v9380 = vadd.f32 0.0, %v9379
        %9381 = vmatmul.f32.gmra.mxu0 %v9318
        %v9382 = vpop.f32.mrf.mxu0
        %v9383 = vadd.f32 0.0, %v9382
        %9384 = vmatmul.f32.gmra.mxu0 %v9321
        %v9385 = vpop.f32.mrf.mxu0
        %v9386 = vadd.f32 0.0, %v9385
        %9387 = vmatmul.f32.gmra.mxu0 %v9324
        %v9388 = vpop.f32.mrf.mxu0
        %v9389 = vadd.f32 0.0, %v9388
        %9390 = vmatmul.f32.gmra.mxu0 %v9327
        %v9391 = vpop.f32.mrf.mxu0
        %v9392 = vadd.f32 0.0, %v9391
        %9393 = vmatmul.f32.gmra.mxu0 %v9330
        %v9394 = vpop.f32.mrf.mxu0
        %v9395 = vadd.f32 0.0, %v9394
        %9396 = vmatmul.f32.gmra.mxu0 %v9333
        %v9397 = vpop.f32.mrf.mxu0
        %v9398 = vadd.f32 0.0, %v9397
        %9399 = vmatmul.f32.gmra.mxu0 %v9336
        %v9400 = vpop.f32.mrf.mxu0
        %v9401 = vadd.f32 0.0, %v9400
        %9402 = vmatmul.f32.gmra.mxu0 %v9339
        %v9403 = vpop.f32.mrf.mxu0
        %v9404 = vadd.f32 0.0, %v9403
        %9405 = vdwg.mxu0
        %v9406 = vadd.f32 %v9257, %v9359
        %v9407 = vadd.f32 %v9258, %v9362
        %v9408 = vadd.f32 %v9259, %v9365
        %v9409 = vadd.f32 %v9260, %v9368
        %v9410 = vadd.f32 %v9261, %v9371
        %v9411 = vadd.f32 %v9262, %v9374
        %v9412 = vadd.f32 %v9263, %v9377
        %v9413 = vadd.f32 %v9264, %v9380
        %v9414 = vadd.f32 %v9265, %v9383
        %v9415 = vadd.f32 %v9266, %v9386
        %v9416 = vadd.f32 %v9267, %v9389
        %v9417 = vadd.f32 %v9268, %v9392
        %v9418 = vadd.f32 %v9269, %v9395
        %v9419 = vadd.f32 %v9270, %v9398
        %v9420 = vadd.f32 %v9271, %v9401
        %v9421 = vadd.f32 %v9272, %v9404
        %v9422 = vld [vmem:[%s7303 + $0xa] sm:$0xff]
        %v9423 = vld [vmem:[%s7303 + $0x22] sm:$0xff]
        %v9424 = vld [vmem:[%s7303 + $0x3a] sm:$0xff]
        %v9425 = vld [vmem:[%s7303 + $0x52] sm:$0xff]
        %v9426 = vld [vmem:[%s7303 + $0x6a] sm:$0xff]
        %v9427 = vld [vmem:[%s7303 + $0x82] sm:$0xff]
        %v9428 = vld [vmem:[%s7303 + $0x9a] sm:$0xff]
        %v9429 = vld [vmem:[%s7303 + $0xb2] sm:$0xff]
        %v9430 = vld [vmem:[%s7303 + $0x12a] sm:$0xff]
        %v9431 = vld [vmem:[%s7303 + $0x142] sm:$0xff]
        %v9432 = vld [vmem:[%s7303 + $0x15a] sm:$0xff]
        %v9433 = vld [vmem:[%s7303 + $0x172] sm:$0xff]
        %v9434 = vld [vmem:[%s7303 + $0x18a] sm:$0xff]
        %v9435 = vld [vmem:[%s7303 + $0x1a2] sm:$0xff]
        %v9436 = vld [vmem:[%s7303 + $0x1ba] sm:$0xff]
        %v9437 = vld [vmem:[%s7303 + $0x1d2] sm:$0xff]
        %s9438 = scalar_lea.vmem %s6, 336
        %v9439 = vld [vmem:[%s9438] sm:$0xff]
        %v9440 = vld [vmem:[%s9438 + $0x8] sm:$0xff]
        %v9441 = vld [vmem:[%s9438 + $0x10] sm:$0xff]
        %v9443 = vsel %vm7276, %v9422, 0
        %v9446 = vsel %vm7276, %v9423, 0
        %v9449 = vsel %vm7276, %v9424, 0
        %v9452 = vsel %vm7276, %v9425, 0
        %v9455 = vsel %vm7276, %v9426, 0
        %v9458 = vsel %vm7276, %v9427, 0
        %v9461 = vsel %vm7276, %v9428, 0
        %v9464 = vsel %vm7276, %v9429, 0
        %v9467 = vsel %vm7276, %v9430, 0
        %v9470 = vsel %vm7276, %v9431, 0
        %v9473 = vsel %vm7276, %v9432, 0
        %v9476 = vsel %vm7276, %v9433, 0
        %v9479 = vsel %vm7276, %v9434, 0
        %v9482 = vsel %vm7276, %v9435, 0
        %v9485 = vsel %vm7276, %v9436, 0
        %v9488 = vsel %vm7276, %v9437, 0
        %9490 = vmatpush.msra.mxu0 0.0
        %9491 = vmatpush.msra.mxu0 0.0
        %9492 = vmatpush.msra.mxu0 0.0
        %9493 = vmatpush.msra.mxu0 0.0
        %9494 = vmatpush.msra.mxu0 0.0
        %9495 = vmatpush.msra.mxu0 0.0
        %9496 = vmatpush.msra.mxu0 0.0
        %9497 = vmatpush.msra.mxu0 0.0
        %9498 = vmatpush.msra.mxu0 0.0
        %9499 = vmatpush.msra.mxu0 0.0
        %9500 = vmatpush.msra.mxu0 0.0
        %9501 = vmatpush.msra.mxu0 0.0
        %9502 = vmatpush.msra.mxu0 0.0
        %9503 = vmatpush.msra.mxu0 %v9441
        %9504 = vmatpush.msra.mxu0 %v9440
        %9505 = vmatpush.msra.mxu0 %v9439
        %9506 = vmatmul.f32.gmra.mxu0 %v9443
        %v9507 = vpop.f32.mrf.mxu0
        %v9508 = vadd.f32 0.0, %v9507
        %9509 = vmatmul.f32.gmra.mxu0 %v9446
        %v9510 = vpop.f32.mrf.mxu0
        %v9511 = vadd.f32 0.0, %v9510
        %9512 = vmatmul.f32.gmra.mxu0 %v9449
        %v9513 = vpop.f32.mrf.mxu0
        %v9514 = vadd.f32 0.0, %v9513
        %9515 = vmatmul.f32.gmra.mxu0 %v9452
        %v9516 = vpop.f32.mrf.mxu0
        %v9517 = vadd.f32 0.0, %v9516
        %9518 = vmatmul.f32.gmra.mxu0 %v9455
        %v9519 = vpop.f32.mrf.mxu0
        %v9520 = vadd.f32 0.0, %v9519
        %9521 = vmatmul.f32.gmra.mxu0 %v9458
        %v9522 = vpop.f32.mrf.mxu0
        %v9523 = vadd.f32 0.0, %v9522
        %9524 = vmatmul.f32.gmra.mxu0 %v9461
        %v9525 = vpop.f32.mrf.mxu0
        %v9526 = vadd.f32 0.0, %v9525
        %9527 = vmatmul.f32.gmra.mxu0 %v9464
        %v9528 = vpop.f32.mrf.mxu0
        %v9529 = vadd.f32 0.0, %v9528
        %9530 = vmatmul.f32.gmra.mxu0 %v9467
        %v9531 = vpop.f32.mrf.mxu0
        %v9532 = vadd.f32 0.0, %v9531
        %9533 = vmatmul.f32.gmra.mxu0 %v9470
        %v9534 = vpop.f32.mrf.mxu0
        %v9535 = vadd.f32 0.0, %v9534
        %9536 = vmatmul.f32.gmra.mxu0 %v9473
        %v9537 = vpop.f32.mrf.mxu0
        %v9538 = vadd.f32 0.0, %v9537
        %9539 = vmatmul.f32.gmra.mxu0 %v9476
        %v9540 = vpop.f32.mrf.mxu0
        %v9541 = vadd.f32 0.0, %v9540
        %9542 = vmatmul.f32.gmra.mxu0 %v9479
        %v9543 = vpop.f32.mrf.mxu0
        %v9544 = vadd.f32 0.0, %v9543
        %9545 = vmatmul.f32.gmra.mxu0 %v9482
        %v9546 = vpop.f32.mrf.mxu0
        %v9547 = vadd.f32 0.0, %v9546
        %9548 = vmatmul.f32.gmra.mxu0 %v9485
        %v9549 = vpop.f32.mrf.mxu0
        %v9550 = vadd.f32 0.0, %v9549
        %9551 = vmatmul.f32.gmra.mxu0 %v9488
        %v9552 = vpop.f32.mrf.mxu0
        %v9553 = vadd.f32 0.0, %v9552
        %9554 = vdwg.mxu0
        %v9555 = vadd.f32 %v9406, %v9508
        %v9556 = vadd.f32 %v9407, %v9511
        %v9557 = vadd.f32 %v9408, %v9514
        %v9558 = vadd.f32 %v9409, %v9517
        %v9559 = vadd.f32 %v9410, %v9520
        %v9560 = vadd.f32 %v9411, %v9523
        %v9561 = vadd.f32 %v9412, %v9526
        %v9562 = vadd.f32 %v9413, %v9529
        %v9563 = vadd.f32 %v9414, %v9532
        %v9564 = vadd.f32 %v9415, %v9535
        %v9565 = vadd.f32 %v9416, %v9538
        %v9566 = vadd.f32 %v9417, %v9541
        %v9567 = vadd.f32 %v9418, %v9544
        %v9568 = vadd.f32 %v9419, %v9547
        %v9569 = vadd.f32 %v9420, %v9550
        %v9570 = vadd.f32 %v9421, %v9553
        %s9571 = scalar_lea.vmem [#allocation2], 72
        %v9572 = vld [vmem:[%s9571 + $0x6] sm:$0xff]
        %v9573 = vld [vmem:[%s9571 + $0x1e] sm:$0xff]
        %v9574 = vld [vmem:[%s9571 + $0x36] sm:$0xff]
        %v9575 = vld [vmem:[%s9571 + $0x4e] sm:$0xff]
        %v9576 = vld [vmem:[%s9571 + $0x66] sm:$0xff]
        %v9577 = vld [vmem:[%s9571 + $0x7e] sm:$0xff]
        %v9578 = vld [vmem:[%s9571 + $0x96] sm:$0xff]
        %v9579 = vld [vmem:[%s9571 + $0xae] sm:$0xff]
        %v9580 = vld [vmem:[%s9571 + $0x126] sm:$0xff]
        %v9581 = vld [vmem:[%s9571 + $0x13e] sm:$0xff]
        %v9582 = vld [vmem:[%s9571 + $0x156] sm:$0xff]
        %v9583 = vld [vmem:[%s9571 + $0x16e] sm:$0xff]
        %v9584 = vld [vmem:[%s9571 + $0x186] sm:$0xff]
        %v9585 = vld [vmem:[%s9571 + $0x19e] sm:$0xff]
        %v9586 = vld [vmem:[%s9571 + $0x1b6] sm:$0xff]
        %v9587 = vld [vmem:[%s9571 + $0x1ce] sm:$0xff]
        %s9588 = scalar_lea.vmem %s6, 360
        %v9589 = vld [vmem:[%s9588] sm:$0xff]
        %v9590 = vld [vmem:[%s9588 + $0x8] sm:$0xff]
        %v9591 = vld [vmem:[%s9588 + $0x10] sm:$0xff]
        %v9593 = vsel %vm7276, %v9572, 0
        %v9596 = vsel %vm7276, %v9573, 0
        %v9599 = vsel %vm7276, %v9574, 0
        %v9602 = vsel %vm7276, %v9575, 0
        %v9605 = vsel %vm7276, %v9576, 0
        %v9608 = vsel %vm7276, %v9577, 0
        %v9611 = vsel %vm7276, %v9578, 0
        %v9614 = vsel %vm7276, %v9579, 0
        %v9617 = vsel %vm7276, %v9580, 0
        %v9620 = vsel %vm7276, %v9581, 0
        %v9623 = vsel %vm7276, %v9582, 0
        %v9626 = vsel %vm7276, %v9583, 0
        %v9629 = vsel %vm7276, %v9584, 0
        %v9632 = vsel %vm7276, %v9585, 0
        %v9635 = vsel %vm7276, %v9586, 0
        %v9638 = vsel %vm7276, %v9587, 0
        %9640 = vmatpush.msra.mxu0 0.0
        %9641 = vmatpush.msra.mxu0 0.0
        %9642 = vmatpush.msra.mxu0 0.0
        %9643 = vmatpush.msra.mxu0 0.0
        %9644 = vmatpush.msra.mxu0 0.0
        %9645 = vmatpush.msra.mxu0 0.0
        %9646 = vmatpush.msra.mxu0 0.0
        %9647 = vmatpush.msra.mxu0 0.0
        %9648 = vmatpush.msra.mxu0 0.0
        %9649 = vmatpush.msra.mxu0 0.0
        %9650 = vmatpush.msra.mxu0 0.0
        %9651 = vmatpush.msra.mxu0 0.0
        %9652 = vmatpush.msra.mxu0 0.0
        %9653 = vmatpush.msra.mxu0 %v9591
        %9654 = vmatpush.msra.mxu0 %v9590
        %9655 = vmatpush.msra.mxu0 %v9589
        %9656 = vmatmul.f32.gmra.mxu0 %v9593
        %v9657 = vpop.f32.mrf.mxu0
        %v9658 = vadd.f32 0.0, %v9657
        %9659 = vmatmul.f32.gmra.mxu0 %v9596
        %v9660 = vpop.f32.mrf.mxu0
        %v9661 = vadd.f32 0.0, %v9660
        %9662 = vmatmul.f32.gmra.mxu0 %v9599
        %v9663 = vpop.f32.mrf.mxu0
        %v9664 = vadd.f32 0.0, %v9663
        %9665 = vmatmul.f32.gmra.mxu0 %v9602
        %v9666 = vpop.f32.mrf.mxu0
        %v9667 = vadd.f32 0.0, %v9666
        %9668 = vmatmul.f32.gmra.mxu0 %v9605
        %v9669 = vpop.f32.mrf.mxu0
        %v9670 = vadd.f32 0.0, %v9669
        %9671 = vmatmul.f32.gmra.mxu0 %v9608
        %v9672 = vpop.f32.mrf.mxu0
        %v9673 = vadd.f32 0.0, %v9672
        %9674 = vmatmul.f32.gmra.mxu0 %v9611
        %v9675 = vpop.f32.mrf.mxu0
        %v9676 = vadd.f32 0.0, %v9675
        %9677 = vmatmul.f32.gmra.mxu0 %v9614
        %v9678 = vpop.f32.mrf.mxu0
        %v9679 = vadd.f32 0.0, %v9678
        %9680 = vmatmul.f32.gmra.mxu0 %v9617
        %v9681 = vpop.f32.mrf.mxu0
        %v9682 = vadd.f32 0.0, %v9681
        %9683 = vmatmul.f32.gmra.mxu0 %v9620
        %v9684 = vpop.f32.mrf.mxu0
        %v9685 = vadd.f32 0.0, %v9684
        %9686 = vmatmul.f32.gmra.mxu0 %v9623
        %v9687 = vpop.f32.mrf.mxu0
        %v9688 = vadd.f32 0.0, %v9687
        %9689 = vmatmul.f32.gmra.mxu0 %v9626
        %v9690 = vpop.f32.mrf.mxu0
        %v9691 = vadd.f32 0.0, %v9690
        %9692 = vmatmul.f32.gmra.mxu0 %v9629
        %v9693 = vpop.f32.mrf.mxu0
        %v9694 = vadd.f32 0.0, %v9693
        %9695 = vmatmul.f32.gmra.mxu0 %v9632
        %v9696 = vpop.f32.mrf.mxu0
        %v9697 = vadd.f32 0.0, %v9696
        %9698 = vmatmul.f32.gmra.mxu0 %v9635
        %v9699 = vpop.f32.mrf.mxu0
        %v9700 = vadd.f32 0.0, %v9699
        %9701 = vmatmul.f32.gmra.mxu0 %v9638
        %v9702 = vpop.f32.mrf.mxu0
        %v9703 = vadd.f32 0.0, %v9702
        %9704 = vdwg.mxu0
        %v9705 = vadd.f32 %v9555, %v9658
        %v9706 = vadd.f32 %v9556, %v9661
        %v9707 = vadd.f32 %v9557, %v9664
        %v9708 = vadd.f32 %v9558, %v9667
        %v9709 = vadd.f32 %v9559, %v9670
        %v9710 = vadd.f32 %v9560, %v9673
        %v9711 = vadd.f32 %v9561, %v9676
        %v9712 = vadd.f32 %v9562, %v9679
        %v9713 = vadd.f32 %v9563, %v9682
        %v9714 = vadd.f32 %v9564, %v9685
        %v9715 = vadd.f32 %v9565, %v9688
        %v9716 = vadd.f32 %v9566, %v9691
        %v9717 = vadd.f32 %v9567, %v9694
        %v9718 = vadd.f32 %v9568, %v9697
        %v9719 = vadd.f32 %v9569, %v9700
        %v9720 = vadd.f32 %v9570, %v9703
        %v9721 = vld [vmem:[%s9571 + $0x7] sm:$0xff]
        %v9722 = vld [vmem:[%s9571 + $0x1f] sm:$0xff]
        %v9723 = vld [vmem:[%s9571 + $0x37] sm:$0xff]
        %v9724 = vld [vmem:[%s9571 + $0x4f] sm:$0xff]
        %v9725 = vld [vmem:[%s9571 + $0x67] sm:$0xff]
        %v9726 = vld [vmem:[%s9571 + $0x7f] sm:$0xff]
        %v9727 = vld [vmem:[%s9571 + $0x97] sm:$0xff]
        %v9728 = vld [vmem:[%s9571 + $0xaf] sm:$0xff]
        %v9729 = vld [vmem:[%s9571 + $0x127] sm:$0xff]
        %v9730 = vld [vmem:[%s9571 + $0x13f] sm:$0xff]
        %v9731 = vld [vmem:[%s9571 + $0x157] sm:$0xff]
        %v9732 = vld [vmem:[%s9571 + $0x16f] sm:$0xff]
        %v9733 = vld [vmem:[%s9571 + $0x187] sm:$0xff]
        %v9734 = vld [vmem:[%s9571 + $0x19f] sm:$0xff]
        %v9735 = vld [vmem:[%s9571 + $0x1b7] sm:$0xff]
        %v9736 = vld [vmem:[%s9571 + $0x1cf] sm:$0xff]
        %s9737 = scalar_lea.vmem %s6, 384
        %v9738 = vld [vmem:[%s9737] sm:$0xff]
        %v9739 = vld [vmem:[%s9737 + $0x8] sm:$0xff]
        %v9740 = vld [vmem:[%s9737 + $0x10] sm:$0xff]
        %v9742 = vsel %vm7276, %v9721, 0
        %v9745 = vsel %vm7276, %v9722, 0
        %v9748 = vsel %vm7276, %v9723, 0
        %v9751 = vsel %vm7276, %v9724, 0
        %v9754 = vsel %vm7276, %v9725, 0
        %v9757 = vsel %vm7276, %v9726, 0
        %v9760 = vsel %vm7276, %v9727, 0
        %v9763 = vsel %vm7276, %v9728, 0
        %v9766 = vsel %vm7276, %v9729, 0
        %v9769 = vsel %vm7276, %v9730, 0
        %v9772 = vsel %vm7276, %v9731, 0
        %v9775 = vsel %vm7276, %v9732, 0
        %v9778 = vsel %vm7276, %v9733, 0
        %v9781 = vsel %vm7276, %v9734, 0
        %v9784 = vsel %vm7276, %v9735, 0
        %v9787 = vsel %vm7276, %v9736, 0
        %9789 = vmatpush.msra.mxu0 0.0
        %9790 = vmatpush.msra.mxu0 0.0
        %9791 = vmatpush.msra.mxu0 0.0
        %9792 = vmatpush.msra.mxu0 0.0
        %9793 = vmatpush.msra.mxu0 0.0
        %9794 = vmatpush.msra.mxu0 0.0
        %9795 = vmatpush.msra.mxu0 0.0
        %9796 = vmatpush.msra.mxu0 0.0
        %9797 = vmatpush.msra.mxu0 0.0
        %9798 = vmatpush.msra.mxu0 0.0
        %9799 = vmatpush.msra.mxu0 0.0
        %9800 = vmatpush.msra.mxu0 0.0
        %9801 = vmatpush.msra.mxu0 0.0
        %9802 = vmatpush.msra.mxu0 %v9740
        %9803 = vmatpush.msra.mxu0 %v9739
        %9804 = vmatpush.msra.mxu0 %v9738
        %9805 = vmatmul.f32.gmra.mxu0 %v9742
        %v9806 = vpop.f32.mrf.mxu0
        %v9807 = vadd.f32 0.0, %v9806
        %9808 = vmatmul.f32.gmra.mxu0 %v9745
        %v9809 = vpop.f32.mrf.mxu0
        %v9810 = vadd.f32 0.0, %v9809
        %9811 = vmatmul.f32.gmra.mxu0 %v9748
        %v9812 = vpop.f32.mrf.mxu0
        %v9813 = vadd.f32 0.0, %v9812
        %9814 = vmatmul.f32.gmra.mxu0 %v9751
        %v9815 = vpop.f32.mrf.mxu0
        %v9816 = vadd.f32 0.0, %v9815
        %9817 = vmatmul.f32.gmra.mxu0 %v9754
        %v9818 = vpop.f32.mrf.mxu0
        %v9819 = vadd.f32 0.0, %v9818
        %9820 = vmatmul.f32.gmra.mxu0 %v9757
        %v9821 = vpop.f32.mrf.mxu0
        %v9822 = vadd.f32 0.0, %v9821
        %9823 = vmatmul.f32.gmra.mxu0 %v9760
        %v9824 = vpop.f32.mrf.mxu0
        %v9825 = vadd.f32 0.0, %v9824
        %9826 = vmatmul.f32.gmra.mxu0 %v9763
        %v9827 = vpop.f32.mrf.mxu0
        %v9828 = vadd.f32 0.0, %v9827
        %9829 = vmatmul.f32.gmra.mxu0 %v9766
        %v9830 = vpop.f32.mrf.mxu0
        %v9831 = vadd.f32 0.0, %v9830
        %9832 = vmatmul.f32.gmra.mxu0 %v9769
        %v9833 = vpop.f32.mrf.mxu0
        %v9834 = vadd.f32 0.0, %v9833
        %9835 = vmatmul.f32.gmra.mxu0 %v9772
        %v9836 = vpop.f32.mrf.mxu0
        %v9837 = vadd.f32 0.0, %v9836
        %9838 = vmatmul.f32.gmra.mxu0 %v9775
        %v9839 = vpop.f32.mrf.mxu0
        %v9840 = vadd.f32 0.0, %v9839
        %9841 = vmatmul.f32.gmra.mxu0 %v9778
        %v9842 = vpop.f32.mrf.mxu0
        %v9843 = vadd.f32 0.0, %v9842
        %9844 = vmatmul.f32.gmra.mxu0 %v9781
        %v9845 = vpop.f32.mrf.mxu0
        %v9846 = vadd.f32 0.0, %v9845
        %9847 = vmatmul.f32.gmra.mxu0 %v9784
        %v9848 = vpop.f32.mrf.mxu0
        %v9849 = vadd.f32 0.0, %v9848
        %9850 = vmatmul.f32.gmra.mxu0 %v9787
        %v9851 = vpop.f32.mrf.mxu0
        %v9852 = vadd.f32 0.0, %v9851
        %9853 = vdwg.mxu0
        %v9854 = vadd.f32 %v9705, %v9807
        %v9855 = vadd.f32 %v9706, %v9810
        %v9856 = vadd.f32 %v9707, %v9813
        %v9857 = vadd.f32 %v9708, %v9816
        %v9858 = vadd.f32 %v9709, %v9819
        %v9859 = vadd.f32 %v9710, %v9822
        %v9860 = vadd.f32 %v9711, %v9825
        %v9861 = vadd.f32 %v9712, %v9828
        %v9862 = vadd.f32 %v9713, %v9831
        %v9863 = vadd.f32 %v9714, %v9834
        %v9864 = vadd.f32 %v9715, %v9837
        %v9865 = vadd.f32 %v9716, %v9840
        %v9866 = vadd.f32 %v9717, %v9843
        %v9867 = vadd.f32 %v9718, %v9846
        %v9868 = vadd.f32 %v9719, %v9849
        %v9869 = vadd.f32 %v9720, %v9852
        %v9870 = vld [vmem:[%s9571 + $0x8] sm:$0xff]
        %v9871 = vld [vmem:[%s9571 + $0x20] sm:$0xff]
        %v9872 = vld [vmem:[%s9571 + $0x38] sm:$0xff]
        %v9873 = vld [vmem:[%s9571 + $0x50] sm:$0xff]
        %v9874 = vld [vmem:[%s9571 + $0x68] sm:$0xff]
        %v9875 = vld [vmem:[%s9571 + $0x80] sm:$0xff]
        %v9876 = vld [vmem:[%s9571 + $0x98] sm:$0xff]
        %v9877 = vld [vmem:[%s9571 + $0xb0] sm:$0xff]
        %v9878 = vld [vmem:[%s9571 + $0x128] sm:$0xff]
        %v9879 = vld [vmem:[%s9571 + $0x140] sm:$0xff]
        %v9880 = vld [vmem:[%s9571 + $0x158] sm:$0xff]
        %v9881 = vld [vmem:[%s9571 + $0x170] sm:$0xff]
        %v9882 = vld [vmem:[%s9571 + $0x188] sm:$0xff]
        %v9883 = vld [vmem:[%s9571 + $0x1a0] sm:$0xff]
        %v9884 = vld [vmem:[%s9571 + $0x1b8] sm:$0xff]
        %v9885 = vld [vmem:[%s9571 + $0x1d0] sm:$0xff]
        %s9886 = scalar_lea.vmem %s6, 408
        %v9887 = vld [vmem:[%s9886] sm:$0xff]
        %v9888 = vld [vmem:[%s9886 + $0x8] sm:$0xff]
        %v9889 = vld [vmem:[%s9886 + $0x10] sm:$0xff]
        %v9891 = vsel %vm7276, %v9870, 0
        %v9894 = vsel %vm7276, %v9871, 0
        %v9897 = vsel %vm7276, %v9872, 0
        %v9900 = vsel %vm7276, %v9873, 0
        %v9903 = vsel %vm7276, %v9874, 0
        %v9906 = vsel %vm7276, %v9875, 0
        %v9909 = vsel %vm7276, %v9876, 0
        %v9912 = vsel %vm7276, %v9877, 0
        %v9915 = vsel %vm7276, %v9878, 0
        %v9918 = vsel %vm7276, %v9879, 0
        %v9921 = vsel %vm7276, %v9880, 0
        %v9924 = vsel %vm7276, %v9881, 0
        %v9927 = vsel %vm7276, %v9882, 0
        %v9930 = vsel %vm7276, %v9883, 0
        %v9933 = vsel %vm7276, %v9884, 0
        %v9936 = vsel %vm7276, %v9885, 0
        %9938 = vmatpush.msra.mxu0 0.0
        %9939 = vmatpush.msra.mxu0 0.0
        %9940 = vmatpush.msra.mxu0 0.0
        %9941 = vmatpush.msra.mxu0 0.0
        %9942 = vmatpush.msra.mxu0 0.0
        %9943 = vmatpush.msra.mxu0 0.0
        %9944 = vmatpush.msra.mxu0 0.0
        %9945 = vmatpush.msra.mxu0 0.0
        %9946 = vmatpush.msra.mxu0 0.0
        %9947 = vmatpush.msra.mxu0 0.0
        %9948 = vmatpush.msra.mxu0 0.0
        %9949 = vmatpush.msra.mxu0 0.0
        %9950 = vmatpush.msra.mxu0 0.0
        %9951 = vmatpush.msra.mxu0 %v9889
        %9952 = vmatpush.msra.mxu0 %v9888
        %9953 = vmatpush.msra.mxu0 %v9887
        %9954 = vmatmul.f32.gmra.mxu0 %v9891
        %v9955 = vpop.f32.mrf.mxu0
        %v9956 = vadd.f32 0.0, %v9955
        %9957 = vmatmul.f32.gmra.mxu0 %v9894
        %v9958 = vpop.f32.mrf.mxu0
        %v9959 = vadd.f32 0.0, %v9958
        %9960 = vmatmul.f32.gmra.mxu0 %v9897
        %v9961 = vpop.f32.mrf.mxu0
        %v9962 = vadd.f32 0.0, %v9961
        %9963 = vmatmul.f32.gmra.mxu0 %v9900
        %v9964 = vpop.f32.mrf.mxu0
        %v9965 = vadd.f32 0.0, %v9964
        %9966 = vmatmul.f32.gmra.mxu0 %v9903
        %v9967 = vpop.f32.mrf.mxu0
        %v9968 = vadd.f32 0.0, %v9967
        %9969 = vmatmul.f32.gmra.mxu0 %v9906
        %v9970 = vpop.f32.mrf.mxu0
        %v9971 = vadd.f32 0.0, %v9970
        %9972 = vmatmul.f32.gmra.mxu0 %v9909
        %v9973 = vpop.f32.mrf.mxu0
        %v9974 = vadd.f32 0.0, %v9973
        %9975 = vmatmul.f32.gmra.mxu0 %v9912
        %v9976 = vpop.f32.mrf.mxu0
        %v9977 = vadd.f32 0.0, %v9976
        %9978 = vmatmul.f32.gmra.mxu0 %v9915
        %v9979 = vpop.f32.mrf.mxu0
        %v9980 = vadd.f32 0.0, %v9979
        %9981 = vmatmul.f32.gmra.mxu0 %v9918
        %v9982 = vpop.f32.mrf.mxu0
        %v9983 = vadd.f32 0.0, %v9982
        %9984 = vmatmul.f32.gmra.mxu0 %v9921
        %v9985 = vpop.f32.mrf.mxu0
        %v9986 = vadd.f32 0.0, %v9985
        %9987 = vmatmul.f32.gmra.mxu0 %v9924
        %v9988 = vpop.f32.mrf.mxu0
        %v9989 = vadd.f32 0.0, %v9988
        %9990 = vmatmul.f32.gmra.mxu0 %v9927
        %v9991 = vpop.f32.mrf.mxu0
        %v9992 = vadd.f32 0.0, %v9991
        %9993 = vmatmul.f32.gmra.mxu0 %v9930
        %v9994 = vpop.f32.mrf.mxu0
        %v9995 = vadd.f32 0.0, %v9994
        %9996 = vmatmul.f32.gmra.mxu0 %v9933
        %v9997 = vpop.f32.mrf.mxu0
        %v9998 = vadd.f32 0.0, %v9997
        %9999 = vmatmul.f32.gmra.mxu0 %v9936
        %v10000 = vpop.f32.mrf.mxu0
        %v10001 = vadd.f32 0.0, %v10000
        %10002 = vdwg.mxu0
        %v10003 = vadd.f32 %v9854, %v9956
        %v10004 = vadd.f32 %v9855, %v9959
        %v10005 = vadd.f32 %v9856, %v9962
        %v10006 = vadd.f32 %v9857, %v9965
        %v10007 = vadd.f32 %v9858, %v9968
        %v10008 = vadd.f32 %v9859, %v9971
        %v10009 = vadd.f32 %v9860, %v9974
        %v10010 = vadd.f32 %v9861, %v9977
        %v10011 = vadd.f32 %v9862, %v9980
        %v10012 = vadd.f32 %v9863, %v9983
        %v10013 = vadd.f32 %v9864, %v9986
        %v10014 = vadd.f32 %v9865, %v9989
        %v10015 = vadd.f32 %v9866, %v9992
        %v10016 = vadd.f32 %v9867, %v9995
        %v10017 = vadd.f32 %v9868, %v9998
        %v10018 = vadd.f32 %v9869, %v10001
        %v10019 = vld [vmem:[%s9571 + $0x9] sm:$0xff]
        %v10020 = vld [vmem:[%s9571 + $0x21] sm:$0xff]
        %v10021 = vld [vmem:[%s9571 + $0x39] sm:$0xff]
        %v10022 = vld [vmem:[%s9571 + $0x51] sm:$0xff]
        %v10023 = vld [vmem:[%s9571 + $0x69] sm:$0xff]
        %v10024 = vld [vmem:[%s9571 + $0x81] sm:$0xff]
        %v10025 = vld [vmem:[%s9571 + $0x99] sm:$0xff]
        %v10026 = vld [vmem:[%s9571 + $0xb1] sm:$0xff]
        %v10027 = vld [vmem:[%s9571 + $0x129] sm:$0xff]
        %v10028 = vld [vmem:[%s9571 + $0x141] sm:$0xff]
        %v10029 = vld [vmem:[%s9571 + $0x159] sm:$0xff]
        %v10030 = vld [vmem:[%s9571 + $0x171] sm:$0xff]
        %v10031 = vld [vmem:[%s9571 + $0x189] sm:$0xff]
        %v10032 = vld [vmem:[%s9571 + $0x1a1] sm:$0xff]
        %v10033 = vld [vmem:[%s9571 + $0x1b9] sm:$0xff]
        %v10034 = vld [vmem:[%s9571 + $0x1d1] sm:$0xff]
        %s10035 = scalar_lea.vmem %s6, 432
        %v10036 = vld [vmem:[%s10035] sm:$0xff]
        %v10037 = vld [vmem:[%s10035 + $0x8] sm:$0xff]
        %v10038 = vld [vmem:[%s10035 + $0x10] sm:$0xff]
        %v10040 = vsel %vm7276, %v10019, 0
        %v10043 = vsel %vm7276, %v10020, 0
        %v10046 = vsel %vm7276, %v10021, 0
        %v10049 = vsel %vm7276, %v10022, 0
        %v10052 = vsel %vm7276, %v10023, 0
        %v10055 = vsel %vm7276, %v10024, 0
        %v10058 = vsel %vm7276, %v10025, 0
        %v10061 = vsel %vm7276, %v10026, 0
        %v10064 = vsel %vm7276, %v10027, 0
        %v10067 = vsel %vm7276, %v10028, 0
        %v10070 = vsel %vm7276, %v10029, 0
        %v10073 = vsel %vm7276, %v10030, 0
        %v10076 = vsel %vm7276, %v10031, 0
        %v10079 = vsel %vm7276, %v10032, 0
        %v10082 = vsel %vm7276, %v10033, 0
        %v10085 = vsel %vm7276, %v10034, 0
        %10087 = vmatpush.msra.mxu0 0.0
        %10088 = vmatpush.msra.mxu0 0.0
        %10089 = vmatpush.msra.mxu0 0.0
        %10090 = vmatpush.msra.mxu0 0.0
        %10091 = vmatpush.msra.mxu0 0.0
        %10092 = vmatpush.msra.mxu0 0.0
        %10093 = vmatpush.msra.mxu0 0.0
        %10094 = vmatpush.msra.mxu0 0.0
        %10095 = vmatpush.msra.mxu0 0.0
        %10096 = vmatpush.msra.mxu0 0.0
        %10097 = vmatpush.msra.mxu0 0.0
        %10098 = vmatpush.msra.mxu0 0.0
        %10099 = vmatpush.msra.mxu0 0.0
        %10100 = vmatpush.msra.mxu0 %v10038
        %10101 = vmatpush.msra.mxu0 %v10037
        %10102 = vmatpush.msra.mxu0 %v10036
        %10103 = vmatmul.f32.gmra.mxu0 %v10040
        %v10104 = vpop.f32.mrf.mxu0
        %v10105 = vadd.f32 0.0, %v10104
        %10106 = vmatmul.f32.gmra.mxu0 %v10043
        %v10107 = vpop.f32.mrf.mxu0
        %v10108 = vadd.f32 0.0, %v10107
        %10109 = vmatmul.f32.gmra.mxu0 %v10046
        %v10110 = vpop.f32.mrf.mxu0
        %v10111 = vadd.f32 0.0, %v10110
        %10112 = vmatmul.f32.gmra.mxu0 %v10049
        %v10113 = vpop.f32.mrf.mxu0
        %v10114 = vadd.f32 0.0, %v10113
        %10115 = vmatmul.f32.gmra.mxu0 %v10052
        %v10116 = vpop.f32.mrf.mxu0
        %v10117 = vadd.f32 0.0, %v10116
        %10118 = vmatmul.f32.gmra.mxu0 %v10055
        %v10119 = vpop.f32.mrf.mxu0
        %v10120 = vadd.f32 0.0, %v10119
        %10121 = vmatmul.f32.gmra.mxu0 %v10058
        %v10122 = vpop.f32.mrf.mxu0
        %v10123 = vadd.f32 0.0, %v10122
        %10124 = vmatmul.f32.gmra.mxu0 %v10061
        %v10125 = vpop.f32.mrf.mxu0
        %v10126 = vadd.f32 0.0, %v10125
        %10127 = vmatmul.f32.gmra.mxu0 %v10064
        %v10128 = vpop.f32.mrf.mxu0
        %v10129 = vadd.f32 0.0, %v10128
        %10130 = vmatmul.f32.gmra.mxu0 %v10067
        %v10131 = vpop.f32.mrf.mxu0
        %v10132 = vadd.f32 0.0, %v10131
        %10133 = vmatmul.f32.gmra.mxu0 %v10070
        %v10134 = vpop.f32.mrf.mxu0
        %v10135 = vadd.f32 0.0, %v10134
        %10136 = vmatmul.f32.gmra.mxu0 %v10073
        %v10137 = vpop.f32.mrf.mxu0
        %v10138 = vadd.f32 0.0, %v10137
        %10139 = vmatmul.f32.gmra.mxu0 %v10076
        %v10140 = vpop.f32.mrf.mxu0
        %v10141 = vadd.f32 0.0, %v10140
        %10142 = vmatmul.f32.gmra.mxu0 %v10079
        %v10143 = vpop.f32.mrf.mxu0
        %v10144 = vadd.f32 0.0, %v10143
        %10145 = vmatmul.f32.gmra.mxu0 %v10082
        %v10146 = vpop.f32.mrf.mxu0
        %v10147 = vadd.f32 0.0, %v10146
        %10148 = vmatmul.f32.gmra.mxu0 %v10085
        %v10149 = vpop.f32.mrf.mxu0
        %v10150 = vadd.f32 0.0, %v10149
        %10151 = vdwg.mxu0
        %v10152 = vadd.f32 %v10003, %v10105
        %v10153 = vadd.f32 %v10004, %v10108
        %v10154 = vadd.f32 %v10005, %v10111
        %v10155 = vadd.f32 %v10006, %v10114
        %v10156 = vadd.f32 %v10007, %v10117
        %v10157 = vadd.f32 %v10008, %v10120
        %v10158 = vadd.f32 %v10009, %v10123
        %v10159 = vadd.f32 %v10010, %v10126
        %v10160 = vadd.f32 %v10011, %v10129
        %v10161 = vadd.f32 %v10012, %v10132
        %v10162 = vadd.f32 %v10013, %v10135
        %v10163 = vadd.f32 %v10014, %v10138
        %v10164 = vadd.f32 %v10015, %v10141
        %v10165 = vadd.f32 %v10016, %v10144
        %v10166 = vadd.f32 %v10017, %v10147
        %v10167 = vadd.f32 %v10018, %v10150
        %v10168 = vld [vmem:[%s9571 + $0xa] sm:$0xff]
        %v10169 = vld [vmem:[%s9571 + $0x22] sm:$0xff]
        %v10170 = vld [vmem:[%s9571 + $0x3a] sm:$0xff]
        %v10171 = vld [vmem:[%s9571 + $0x52] sm:$0xff]
        %v10172 = vld [vmem:[%s9571 + $0x6a] sm:$0xff]
        %v10173 = vld [vmem:[%s9571 + $0x82] sm:$0xff]
        %v10174 = vld [vmem:[%s9571 + $0x9a] sm:$0xff]
        %v10175 = vld [vmem:[%s9571 + $0xb2] sm:$0xff]
        %v10176 = vld [vmem:[%s9571 + $0x12a] sm:$0xff]
        %v10177 = vld [vmem:[%s9571 + $0x142] sm:$0xff]
        %v10178 = vld [vmem:[%s9571 + $0x15a] sm:$0xff]
        %v10179 = vld [vmem:[%s9571 + $0x172] sm:$0xff]
        %v10180 = vld [vmem:[%s9571 + $0x18a] sm:$0xff]
        %v10181 = vld [vmem:[%s9571 + $0x1a2] sm:$0xff]
        %v10182 = vld [vmem:[%s9571 + $0x1ba] sm:$0xff]
        %v10183 = vld [vmem:[%s9571 + $0x1d2] sm:$0xff]
        %s10184 = scalar_lea.vmem %s6, 456
        %v10185 = vld [vmem:[%s10184] sm:$0xff]
        %v10186 = vld [vmem:[%s10184 + $0x8] sm:$0xff]
        %v10187 = vld [vmem:[%s10184 + $0x10] sm:$0xff]
        %v10189 = vsel %vm7276, %v10168, 0
        %v10192 = vsel %vm7276, %v10169, 0
        %v10195 = vsel %vm7276, %v10170, 0
        %v10198 = vsel %vm7276, %v10171, 0
        %v10201 = vsel %vm7276, %v10172, 0
        %v10204 = vsel %vm7276, %v10173, 0
        %v10207 = vsel %vm7276, %v10174, 0
        %v10210 = vsel %vm7276, %v10175, 0
        %v10213 = vsel %vm7276, %v10176, 0
        %v10216 = vsel %vm7276, %v10177, 0
        %v10219 = vsel %vm7276, %v10178, 0
        %v10222 = vsel %vm7276, %v10179, 0
        %v10225 = vsel %vm7276, %v10180, 0
        %v10228 = vsel %vm7276, %v10181, 0
        %v10231 = vsel %vm7276, %v10182, 0
        %v10234 = vsel %vm7276, %v10183, 0
        %10236 = vmatpush.msra.mxu0 0.0
        %10237 = vmatpush.msra.mxu0 0.0
        %10238 = vmatpush.msra.mxu0 0.0
        %10239 = vmatpush.msra.mxu0 0.0
        %10240 = vmatpush.msra.mxu0 0.0
        %10241 = vmatpush.msra.mxu0 0.0
        %10242 = vmatpush.msra.mxu0 0.0
        %10243 = vmatpush.msra.mxu0 0.0
        %10244 = vmatpush.msra.mxu0 0.0
        %10245 = vmatpush.msra.mxu0 0.0
        %10246 = vmatpush.msra.mxu0 0.0
        %10247 = vmatpush.msra.mxu0 0.0
        %10248 = vmatpush.msra.mxu0 0.0
        %10249 = vmatpush.msra.mxu0 %v10187
        %10250 = vmatpush.msra.mxu0 %v10186
        %10251 = vmatpush.msra.mxu0 %v10185
        %10252 = vmatmul.f32.gmra.mxu0 %v10189
        %v10253 = vpop.f32.mrf.mxu0
        %v10254 = vadd.f32 0.0, %v10253
        %10255 = vmatmul.f32.gmra.mxu0 %v10192
        %v10256 = vpop.f32.mrf.mxu0
        %v10257 = vadd.f32 0.0, %v10256
        %10258 = vmatmul.f32.gmra.mxu0 %v10195
        %v10259 = vpop.f32.mrf.mxu0
        %v10260 = vadd.f32 0.0, %v10259
        %10261 = vmatmul.f32.gmra.mxu0 %v10198
        %v10262 = vpop.f32.mrf.mxu0
        %v10263 = vadd.f32 0.0, %v10262
        %10264 = vmatmul.f32.gmra.mxu0 %v10201
        %v10265 = vpop.f32.mrf.mxu0
        %v10266 = vadd.f32 0.0, %v10265
        %10267 = vmatmul.f32.gmra.mxu0 %v10204
        %v10268 = vpop.f32.mrf.mxu0
        %v10269 = vadd.f32 0.0, %v10268
        %10270 = vmatmul.f32.gmra.mxu0 %v10207
        %v10271 = vpop.f32.mrf.mxu0
        %v10272 = vadd.f32 0.0, %v10271
        %10273 = vmatmul.f32.gmra.mxu0 %v10210
        %v10274 = vpop.f32.mrf.mxu0
        %v10275 = vadd.f32 0.0, %v10274
        %10276 = vmatmul.f32.gmra.mxu0 %v10213
        %v10277 = vpop.f32.mrf.mxu0
        %v10278 = vadd.f32 0.0, %v10277
        %10279 = vmatmul.f32.gmra.mxu0 %v10216
        %v10280 = vpop.f32.mrf.mxu0
        %v10281 = vadd.f32 0.0, %v10280
        %10282 = vmatmul.f32.gmra.mxu0 %v10219
        %v10283 = vpop.f32.mrf.mxu0
        %v10284 = vadd.f32 0.0, %v10283
        %10285 = vmatmul.f32.gmra.mxu0 %v10222
        %v10286 = vpop.f32.mrf.mxu0
        %v10287 = vadd.f32 0.0, %v10286
        %10288 = vmatmul.f32.gmra.mxu0 %v10225
        %v10289 = vpop.f32.mrf.mxu0
        %v10290 = vadd.f32 0.0, %v10289
        %10291 = vmatmul.f32.gmra.mxu0 %v10228
        %v10292 = vpop.f32.mrf.mxu0
        %v10293 = vadd.f32 0.0, %v10292
        %10294 = vmatmul.f32.gmra.mxu0 %v10231
        %v10295 = vpop.f32.mrf.mxu0
        %v10296 = vadd.f32 0.0, %v10295
        %10297 = vmatmul.f32.gmra.mxu0 %v10234
        %v10298 = vpop.f32.mrf.mxu0
        %v10299 = vadd.f32 0.0, %v10298
        %10300 = vdwg.mxu0
        %v10301 = vadd.f32 %v10152, %v10254
        %v10302 = vadd.f32 %v10153, %v10257
        %v10303 = vadd.f32 %v10154, %v10260
        %v10304 = vadd.f32 %v10155, %v10263
        %v10305 = vadd.f32 %v10156, %v10266
        %v10306 = vadd.f32 %v10157, %v10269
        %v10307 = vadd.f32 %v10158, %v10272
        %v10308 = vadd.f32 %v10159, %v10275
        %v10309 = vadd.f32 %v10160, %v10278
        %v10310 = vadd.f32 %v10161, %v10281
        %v10311 = vadd.f32 %v10162, %v10284
        %v10312 = vadd.f32 %v10163, %v10287
        %v10313 = vadd.f32 %v10164, %v10290
        %v10314 = vadd.f32 %v10165, %v10293
        %v10315 = vadd.f32 %v10166, %v10296
        %v10316 = vadd.f32 %v10167, %v10299
        %s10317 = scalar_lea.vmem [#allocation2], 96
        %v10318 = vld [vmem:[%s10317 + $0x6] sm:$0xff]
        %v10319 = vld [vmem:[%s10317 + $0x1e] sm:$0xff]
        %v10320 = vld [vmem:[%s10317 + $0x36] sm:$0xff]
        %v10321 = vld [vmem:[%s10317 + $0x4e] sm:$0xff]
        %v10322 = vld [vmem:[%s10317 + $0x66] sm:$0xff]
        %v10323 = vld [vmem:[%s10317 + $0x7e] sm:$0xff]
        %v10324 = vld [vmem:[%s10317 + $0x96] sm:$0xff]
        %v10325 = vld [vmem:[%s10317 + $0xae] sm:$0xff]
        %v10326 = vld [vmem:[%s10317 + $0x126] sm:$0xff]
        %v10327 = vld [vmem:[%s10317 + $0x13e] sm:$0xff]
        %v10328 = vld [vmem:[%s10317 + $0x156] sm:$0xff]
        %v10329 = vld [vmem:[%s10317 + $0x16e] sm:$0xff]
        %v10330 = vld [vmem:[%s10317 + $0x186] sm:$0xff]
        %v10331 = vld [vmem:[%s10317 + $0x19e] sm:$0xff]
        %v10332 = vld [vmem:[%s10317 + $0x1b6] sm:$0xff]
        %v10333 = vld [vmem:[%s10317 + $0x1ce] sm:$0xff]
        %s10334 = scalar_lea.vmem %s6, 480
        %v10335 = vld [vmem:[%s10334] sm:$0xff]
        %v10336 = vld [vmem:[%s10334 + $0x8] sm:$0xff]
        %v10337 = vld [vmem:[%s10334 + $0x10] sm:$0xff]
        %v10339 = vsel %vm7276, %v10318, 0
        %v10342 = vsel %vm7276, %v10319, 0
        %v10345 = vsel %vm7276, %v10320, 0
        %v10348 = vsel %vm7276, %v10321, 0
        %v10351 = vsel %vm7276, %v10322, 0
        %v10354 = vsel %vm7276, %v10323, 0
        %v10357 = vsel %vm7276, %v10324, 0
        %v10360 = vsel %vm7276, %v10325, 0
        %v10363 = vsel %vm7276, %v10326, 0
        %v10366 = vsel %vm7276, %v10327, 0
        %v10369 = vsel %vm7276, %v10328, 0
        %v10372 = vsel %vm7276, %v10329, 0
        %v10375 = vsel %vm7276, %v10330, 0
        %v10378 = vsel %vm7276, %v10331, 0
        %v10381 = vsel %vm7276, %v10332, 0
        %v10384 = vsel %vm7276, %v10333, 0
        %10386 = vmatpush.msra.mxu0 0.0
        %10387 = vmatpush.msra.mxu0 0.0
        %10388 = vmatpush.msra.mxu0 0.0
        %10389 = vmatpush.msra.mxu0 0.0
        %10390 = vmatpush.msra.mxu0 0.0
        %10391 = vmatpush.msra.mxu0 0.0
        %10392 = vmatpush.msra.mxu0 0.0
        %10393 = vmatpush.msra.mxu0 0.0
        %10394 = vmatpush.msra.mxu0 0.0
        %10395 = vmatpush.msra.mxu0 0.0
        %10396 = vmatpush.msra.mxu0 0.0
        %10397 = vmatpush.msra.mxu0 0.0
        %10398 = vmatpush.msra.mxu0 0.0
        %10399 = vmatpush.msra.mxu0 %v10337
        %10400 = vmatpush.msra.mxu0 %v10336
        %10401 = vmatpush.msra.mxu0 %v10335
        %10402 = vmatmul.f32.gmra.mxu0 %v10339
        %v10403 = vpop.f32.mrf.mxu0
        %v10404 = vadd.f32 0.0, %v10403
        %10405 = vmatmul.f32.gmra.mxu0 %v10342
        %v10406 = vpop.f32.mrf.mxu0
        %v10407 = vadd.f32 0.0, %v10406
        %10408 = vmatmul.f32.gmra.mxu0 %v10345
        %v10409 = vpop.f32.mrf.mxu0
        %v10410 = vadd.f32 0.0, %v10409
        %10411 = vmatmul.f32.gmra.mxu0 %v10348
        %v10412 = vpop.f32.mrf.mxu0
        %v10413 = vadd.f32 0.0, %v10412
        %10414 = vmatmul.f32.gmra.mxu0 %v10351
        %v10415 = vpop.f32.mrf.mxu0
        %v10416 = vadd.f32 0.0, %v10415
        %10417 = vmatmul.f32.gmra.mxu0 %v10354
        %v10418 = vpop.f32.mrf.mxu0
        %v10419 = vadd.f32 0.0, %v10418
        %10420 = vmatmul.f32.gmra.mxu0 %v10357
        %v10421 = vpop.f32.mrf.mxu0
        %v10422 = vadd.f32 0.0, %v10421
        %10423 = vmatmul.f32.gmra.mxu0 %v10360
        %v10424 = vpop.f32.mrf.mxu0
        %v10425 = vadd.f32 0.0, %v10424
        %10426 = vmatmul.f32.gmra.mxu0 %v10363
        %v10427 = vpop.f32.mrf.mxu0
        %v10428 = vadd.f32 0.0, %v10427
        %10429 = vmatmul.f32.gmra.mxu0 %v10366
        %v10430 = vpop.f32.mrf.mxu0
        %v10431 = vadd.f32 0.0, %v10430
        %10432 = vmatmul.f32.gmra.mxu0 %v10369
        %v10433 = vpop.f32.mrf.mxu0
        %v10434 = vadd.f32 0.0, %v10433
        %10435 = vmatmul.f32.gmra.mxu0 %v10372
        %v10436 = vpop.f32.mrf.mxu0
        %v10437 = vadd.f32 0.0, %v10436
        %10438 = vmatmul.f32.gmra.mxu0 %v10375
        %v10439 = vpop.f32.mrf.mxu0
        %v10440 = vadd.f32 0.0, %v10439
        %10441 = vmatmul.f32.gmra.mxu0 %v10378
        %v10442 = vpop.f32.mrf.mxu0
        %v10443 = vadd.f32 0.0, %v10442
        %10444 = vmatmul.f32.gmra.mxu0 %v10381
        %v10445 = vpop.f32.mrf.mxu0
        %v10446 = vadd.f32 0.0, %v10445
        %10447 = vmatmul.f32.gmra.mxu0 %v10384
        %v10448 = vpop.f32.mrf.mxu0
        %v10449 = vadd.f32 0.0, %v10448
        %10450 = vdwg.mxu0
        %v10451 = vadd.f32 %v10301, %v10404
        %v10452 = vadd.f32 %v10302, %v10407
        %v10453 = vadd.f32 %v10303, %v10410
        %v10454 = vadd.f32 %v10304, %v10413
        %v10455 = vadd.f32 %v10305, %v10416
        %v10456 = vadd.f32 %v10306, %v10419
        %v10457 = vadd.f32 %v10307, %v10422
        %v10458 = vadd.f32 %v10308, %v10425
        %v10459 = vadd.f32 %v10309, %v10428
        %v10460 = vadd.f32 %v10310, %v10431
        %v10461 = vadd.f32 %v10311, %v10434
        %v10462 = vadd.f32 %v10312, %v10437
        %v10463 = vadd.f32 %v10313, %v10440
        %v10464 = vadd.f32 %v10314, %v10443
        %v10465 = vadd.f32 %v10315, %v10446
        %v10466 = vadd.f32 %v10316, %v10449
        %v10467 = vld [vmem:[%s10317 + $0x7] sm:$0xff]
        %v10468 = vld [vmem:[%s10317 + $0x1f] sm:$0xff]
        %v10469 = vld [vmem:[%s10317 + $0x37] sm:$0xff]
        %v10470 = vld [vmem:[%s10317 + $0x4f] sm:$0xff]
        %v10471 = vld [vmem:[%s10317 + $0x67] sm:$0xff]
        %v10472 = vld [vmem:[%s10317 + $0x7f] sm:$0xff]
        %v10473 = vld [vmem:[%s10317 + $0x97] sm:$0xff]
        %v10474 = vld [vmem:[%s10317 + $0xaf] sm:$0xff]
        %v10475 = vld [vmem:[%s10317 + $0x127] sm:$0xff]
        %v10476 = vld [vmem:[%s10317 + $0x13f] sm:$0xff]
        %v10477 = vld [vmem:[%s10317 + $0x157] sm:$0xff]
        %v10478 = vld [vmem:[%s10317 + $0x16f] sm:$0xff]
        %v10479 = vld [vmem:[%s10317 + $0x187] sm:$0xff]
        %v10480 = vld [vmem:[%s10317 + $0x19f] sm:$0xff]
        %v10481 = vld [vmem:[%s10317 + $0x1b7] sm:$0xff]
        %v10482 = vld [vmem:[%s10317 + $0x1cf] sm:$0xff]
        %s10483 = scalar_lea.vmem %s6, 504
        %v10484 = vld [vmem:[%s10483] sm:$0xff]
        %v10485 = vld [vmem:[%s10483 + $0x8] sm:$0xff]
        %v10486 = vld [vmem:[%s10483 + $0x10] sm:$0xff]
        %v10488 = vsel %vm7276, %v10467, 0
        %v10491 = vsel %vm7276, %v10468, 0
        %v10494 = vsel %vm7276, %v10469, 0
        %v10497 = vsel %vm7276, %v10470, 0
        %v10500 = vsel %vm7276, %v10471, 0
        %v10503 = vsel %vm7276, %v10472, 0
        %v10506 = vsel %vm7276, %v10473, 0
        %v10509 = vsel %vm7276, %v10474, 0
        %v10512 = vsel %vm7276, %v10475, 0
        %v10515 = vsel %vm7276, %v10476, 0
        %v10518 = vsel %vm7276, %v10477, 0
        %v10521 = vsel %vm7276, %v10478, 0
        %v10524 = vsel %vm7276, %v10479, 0
        %v10527 = vsel %vm7276, %v10480, 0
        %v10530 = vsel %vm7276, %v10481, 0
        %v10533 = vsel %vm7276, %v10482, 0
        %10535 = vmatpush.msra.mxu0 0.0
        %10536 = vmatpush.msra.mxu0 0.0
        %10537 = vmatpush.msra.mxu0 0.0
        %10538 = vmatpush.msra.mxu0 0.0
        %10539 = vmatpush.msra.mxu0 0.0
        %10540 = vmatpush.msra.mxu0 0.0
        %10541 = vmatpush.msra.mxu0 0.0
        %10542 = vmatpush.msra.mxu0 0.0
        %10543 = vmatpush.msra.mxu0 0.0
        %10544 = vmatpush.msra.mxu0 0.0
        %10545 = vmatpush.msra.mxu0 0.0
        %10546 = vmatpush.msra.mxu0 0.0
        %10547 = vmatpush.msra.mxu0 0.0
        %10548 = vmatpush.msra.mxu0 %v10486
        %10549 = vmatpush.msra.mxu0 %v10485
        %10550 = vmatpush.msra.mxu0 %v10484
        %10551 = vmatmul.f32.gmra.mxu0 %v10488
        %v10552 = vpop.f32.mrf.mxu0
        %v10553 = vadd.f32 0.0, %v10552
        %10554 = vmatmul.f32.gmra.mxu0 %v10491
        %v10555 = vpop.f32.mrf.mxu0
        %v10556 = vadd.f32 0.0, %v10555
        %10557 = vmatmul.f32.gmra.mxu0 %v10494
        %v10558 = vpop.f32.mrf.mxu0
        %v10559 = vadd.f32 0.0, %v10558
        %10560 = vmatmul.f32.gmra.mxu0 %v10497
        %v10561 = vpop.f32.mrf.mxu0
        %v10562 = vadd.f32 0.0, %v10561
        %10563 = vmatmul.f32.gmra.mxu0 %v10500
        %v10564 = vpop.f32.mrf.mxu0
        %v10565 = vadd.f32 0.0, %v10564
        %10566 = vmatmul.f32.gmra.mxu0 %v10503
        %v10567 = vpop.f32.mrf.mxu0
        %v10568 = vadd.f32 0.0, %v10567
        %10569 = vmatmul.f32.gmra.mxu0 %v10506
        %v10570 = vpop.f32.mrf.mxu0
        %v10571 = vadd.f32 0.0, %v10570
        %10572 = vmatmul.f32.gmra.mxu0 %v10509
        %v10573 = vpop.f32.mrf.mxu0
        %v10574 = vadd.f32 0.0, %v10573
        %10575 = vmatmul.f32.gmra.mxu0 %v10512
        %v10576 = vpop.f32.mrf.mxu0
        %v10577 = vadd.f32 0.0, %v10576
        %10578 = vmatmul.f32.gmra.mxu0 %v10515
        %v10579 = vpop.f32.mrf.mxu0
        %v10580 = vadd.f32 0.0, %v10579
        %10581 = vmatmul.f32.gmra.mxu0 %v10518
        %v10582 = vpop.f32.mrf.mxu0
        %v10583 = vadd.f32 0.0, %v10582
        %10584 = vmatmul.f32.gmra.mxu0 %v10521
        %v10585 = vpop.f32.mrf.mxu0
        %v10586 = vadd.f32 0.0, %v10585
        %10587 = vmatmul.f32.gmra.mxu0 %v10524
        %v10588 = vpop.f32.mrf.mxu0
        %v10589 = vadd.f32 0.0, %v10588
        %10590 = vmatmul.f32.gmra.mxu0 %v10527
        %v10591 = vpop.f32.mrf.mxu0
        %v10592 = vadd.f32 0.0, %v10591
        %10593 = vmatmul.f32.gmra.mxu0 %v10530
        %v10594 = vpop.f32.mrf.mxu0
        %v10595 = vadd.f32 0.0, %v10594
        %10596 = vmatmul.f32.gmra.mxu0 %v10533
        %v10597 = vpop.f32.mrf.mxu0
        %v10598 = vadd.f32 0.0, %v10597
        %10599 = vdwg.mxu0
        %v10600 = vadd.f32 %v10451, %v10553
        %v10601 = vadd.f32 %v10452, %v10556
        %v10602 = vadd.f32 %v10453, %v10559
        %v10603 = vadd.f32 %v10454, %v10562
        %v10604 = vadd.f32 %v10455, %v10565
        %v10605 = vadd.f32 %v10456, %v10568
        %v10606 = vadd.f32 %v10457, %v10571
        %v10607 = vadd.f32 %v10458, %v10574
        %v10608 = vadd.f32 %v10459, %v10577
        %v10609 = vadd.f32 %v10460, %v10580
        %v10610 = vadd.f32 %v10461, %v10583
        %v10611 = vadd.f32 %v10462, %v10586
        %v10612 = vadd.f32 %v10463, %v10589
        %v10613 = vadd.f32 %v10464, %v10592
        %v10614 = vadd.f32 %v10465, %v10595
        %v10615 = vadd.f32 %v10466, %v10598
        %v10616 = vld [vmem:[%s10317 + $0x8] sm:$0xff]
        %v10617 = vld [vmem:[%s10317 + $0x20] sm:$0xff]
        %v10618 = vld [vmem:[%s10317 + $0x38] sm:$0xff]
        %v10619 = vld [vmem:[%s10317 + $0x50] sm:$0xff]
        %v10620 = vld [vmem:[%s10317 + $0x68] sm:$0xff]
        %v10621 = vld [vmem:[%s10317 + $0x80] sm:$0xff]
        %v10622 = vld [vmem:[%s10317 + $0x98] sm:$0xff]
        %v10623 = vld [vmem:[%s10317 + $0xb0] sm:$0xff]
        %v10624 = vld [vmem:[%s10317 + $0x128] sm:$0xff]
        %v10625 = vld [vmem:[%s10317 + $0x140] sm:$0xff]
        %v10626 = vld [vmem:[%s10317 + $0x158] sm:$0xff]
        %v10627 = vld [vmem:[%s10317 + $0x170] sm:$0xff]
        %v10628 = vld [vmem:[%s10317 + $0x188] sm:$0xff]
        %v10629 = vld [vmem:[%s10317 + $0x1a0] sm:$0xff]
        %v10630 = vld [vmem:[%s10317 + $0x1b8] sm:$0xff]
        %v10631 = vld [vmem:[%s10317 + $0x1d0] sm:$0xff]
        %s10632 = scalar_lea.vmem %s6, 528
        %v10633 = vld [vmem:[%s10632] sm:$0xff]
        %v10634 = vld [vmem:[%s10632 + $0x8] sm:$0xff]
        %v10635 = vld [vmem:[%s10632 + $0x10] sm:$0xff]
        %v10637 = vsel %vm7276, %v10616, 0
        %v10640 = vsel %vm7276, %v10617, 0
        %v10643 = vsel %vm7276, %v10618, 0
        %v10646 = vsel %vm7276, %v10619, 0
        %v10649 = vsel %vm7276, %v10620, 0
        %v10652 = vsel %vm7276, %v10621, 0
        %v10655 = vsel %vm7276, %v10622, 0
        %v10658 = vsel %vm7276, %v10623, 0
        %v10661 = vsel %vm7276, %v10624, 0
        %v10664 = vsel %vm7276, %v10625, 0
        %v10667 = vsel %vm7276, %v10626, 0
        %v10670 = vsel %vm7276, %v10627, 0
        %v10673 = vsel %vm7276, %v10628, 0
        %v10676 = vsel %vm7276, %v10629, 0
        %v10679 = vsel %vm7276, %v10630, 0
        %v10682 = vsel %vm7276, %v10631, 0
        %10684 = vmatpush.msra.mxu0 0.0
        %10685 = vmatpush.msra.mxu0 0.0
        %10686 = vmatpush.msra.mxu0 0.0
        %10687 = vmatpush.msra.mxu0 0.0
        %10688 = vmatpush.msra.mxu0 0.0
        %10689 = vmatpush.msra.mxu0 0.0
        %10690 = vmatpush.msra.mxu0 0.0
        %10691 = vmatpush.msra.mxu0 0.0
        %10692 = vmatpush.msra.mxu0 0.0
        %10693 = vmatpush.msra.mxu0 0.0
        %10694 = vmatpush.msra.mxu0 0.0
        %10695 = vmatpush.msra.mxu0 0.0
        %10696 = vmatpush.msra.mxu0 0.0
        %10697 = vmatpush.msra.mxu0 %v10635
        %10698 = vmatpush.msra.mxu0 %v10634
        %10699 = vmatpush.msra.mxu0 %v10633
        %10700 = vmatmul.f32.gmra.mxu0 %v10637
        %v10701 = vpop.f32.mrf.mxu0
        %v10702 = vadd.f32 0.0, %v10701
        %10703 = vmatmul.f32.gmra.mxu0 %v10640
        %v10704 = vpop.f32.mrf.mxu0
        %v10705 = vadd.f32 0.0, %v10704
        %10706 = vmatmul.f32.gmra.mxu0 %v10643
        %v10707 = vpop.f32.mrf.mxu0
        %v10708 = vadd.f32 0.0, %v10707
        %10709 = vmatmul.f32.gmra.mxu0 %v10646
        %v10710 = vpop.f32.mrf.mxu0
        %v10711 = vadd.f32 0.0, %v10710
        %10712 = vmatmul.f32.gmra.mxu0 %v10649
        %v10713 = vpop.f32.mrf.mxu0
        %v10714 = vadd.f32 0.0, %v10713
        %10715 = vmatmul.f32.gmra.mxu0 %v10652
        %v10716 = vpop.f32.mrf.mxu0
        %v10717 = vadd.f32 0.0, %v10716
        %10718 = vmatmul.f32.gmra.mxu0 %v10655
        %v10719 = vpop.f32.mrf.mxu0
        %v10720 = vadd.f32 0.0, %v10719
        %10721 = vmatmul.f32.gmra.mxu0 %v10658
        %v10722 = vpop.f32.mrf.mxu0
        %v10723 = vadd.f32 0.0, %v10722
        %10724 = vmatmul.f32.gmra.mxu0 %v10661
        %v10725 = vpop.f32.mrf.mxu0
        %v10726 = vadd.f32 0.0, %v10725
        %10727 = vmatmul.f32.gmra.mxu0 %v10664
        %v10728 = vpop.f32.mrf.mxu0
        %v10729 = vadd.f32 0.0, %v10728
        %10730 = vmatmul.f32.gmra.mxu0 %v10667
        %v10731 = vpop.f32.mrf.mxu0
        %v10732 = vadd.f32 0.0, %v10731
        %10733 = vmatmul.f32.gmra.mxu0 %v10670
        %v10734 = vpop.f32.mrf.mxu0
        %v10735 = vadd.f32 0.0, %v10734
        %10736 = vmatmul.f32.gmra.mxu0 %v10673
        %v10737 = vpop.f32.mrf.mxu0
        %v10738 = vadd.f32 0.0, %v10737
        %10739 = vmatmul.f32.gmra.mxu0 %v10676
        %v10740 = vpop.f32.mrf.mxu0
        %v10741 = vadd.f32 0.0, %v10740
        %10742 = vmatmul.f32.gmra.mxu0 %v10679
        %v10743 = vpop.f32.mrf.mxu0
        %v10744 = vadd.f32 0.0, %v10743
        %10745 = vmatmul.f32.gmra.mxu0 %v10682
        %v10746 = vpop.f32.mrf.mxu0
        %v10747 = vadd.f32 0.0, %v10746
        %10748 = vdwg.mxu0
        %v10749 = vadd.f32 %v10600, %v10702
        %v10750 = vadd.f32 %v10601, %v10705
        %v10751 = vadd.f32 %v10602, %v10708
        %v10752 = vadd.f32 %v10603, %v10711
        %v10753 = vadd.f32 %v10604, %v10714
        %v10754 = vadd.f32 %v10605, %v10717
        %v10755 = vadd.f32 %v10606, %v10720
        %v10756 = vadd.f32 %v10607, %v10723
        %v10757 = vadd.f32 %v10608, %v10726
        %v10758 = vadd.f32 %v10609, %v10729
        %v10759 = vadd.f32 %v10610, %v10732
        %v10760 = vadd.f32 %v10611, %v10735
        %v10761 = vadd.f32 %v10612, %v10738
        %v10762 = vadd.f32 %v10613, %v10741
        %v10763 = vadd.f32 %v10614, %v10744
        %v10764 = vadd.f32 %v10615, %v10747
        %v10765 = vld [vmem:[%s10317 + $0x9] sm:$0xff]
        %v10766 = vld [vmem:[%s10317 + $0x21] sm:$0xff]
        %v10767 = vld [vmem:[%s10317 + $0x39] sm:$0xff]
        %v10768 = vld [vmem:[%s10317 + $0x51] sm:$0xff]
        %v10769 = vld [vmem:[%s10317 + $0x69] sm:$0xff]
        %v10770 = vld [vmem:[%s10317 + $0x81] sm:$0xff]
        %v10771 = vld [vmem:[%s10317 + $0x99] sm:$0xff]
        %v10772 = vld [vmem:[%s10317 + $0xb1] sm:$0xff]
        %v10773 = vld [vmem:[%s10317 + $0x129] sm:$0xff]
        %v10774 = vld [vmem:[%s10317 + $0x141] sm:$0xff]
        %v10775 = vld [vmem:[%s10317 + $0x159] sm:$0xff]
        %v10776 = vld [vmem:[%s10317 + $0x171] sm:$0xff]
        %v10777 = vld [vmem:[%s10317 + $0x189] sm:$0xff]
        %v10778 = vld [vmem:[%s10317 + $0x1a1] sm:$0xff]
        %v10779 = vld [vmem:[%s10317 + $0x1b9] sm:$0xff]
        %v10780 = vld [vmem:[%s10317 + $0x1d1] sm:$0xff]
        %s10781 = scalar_lea.vmem %s6, 552
        %v10782 = vld [vmem:[%s10781] sm:$0xff]
        %v10783 = vld [vmem:[%s10781 + $0x8] sm:$0xff]
        %v10784 = vld [vmem:[%s10781 + $0x10] sm:$0xff]
        %v10786 = vsel %vm7276, %v10765, 0
        %v10789 = vsel %vm7276, %v10766, 0
        %v10792 = vsel %vm7276, %v10767, 0
        %v10795 = vsel %vm7276, %v10768, 0
        %v10798 = vsel %vm7276, %v10769, 0
        %v10801 = vsel %vm7276, %v10770, 0
        %v10804 = vsel %vm7276, %v10771, 0
        %v10807 = vsel %vm7276, %v10772, 0
        %v10810 = vsel %vm7276, %v10773, 0
        %v10813 = vsel %vm7276, %v10774, 0
        %v10816 = vsel %vm7276, %v10775, 0
        %v10819 = vsel %vm7276, %v10776, 0
        %v10822 = vsel %vm7276, %v10777, 0
        %v10825 = vsel %vm7276, %v10778, 0
        %v10828 = vsel %vm7276, %v10779, 0
        %v10831 = vsel %vm7276, %v10780, 0
        %10833 = vmatpush.msra.mxu0 0.0
        %10834 = vmatpush.msra.mxu0 0.0
        %10835 = vmatpush.msra.mxu0 0.0
        %10836 = vmatpush.msra.mxu0 0.0
        %10837 = vmatpush.msra.mxu0 0.0
        %10838 = vmatpush.msra.mxu0 0.0
        %10839 = vmatpush.msra.mxu0 0.0
        %10840 = vmatpush.msra.mxu0 0.0
        %10841 = vmatpush.msra.mxu0 0.0
        %10842 = vmatpush.msra.mxu0 0.0
        %10843 = vmatpush.msra.mxu0 0.0
        %10844 = vmatpush.msra.mxu0 0.0
        %10845 = vmatpush.msra.mxu0 0.0
        %10846 = vmatpush.msra.mxu0 %v10784
        %10847 = vmatpush.msra.mxu0 %v10783
        %10848 = vmatpush.msra.mxu0 %v10782
        %10849 = vmatmul.f32.gmra.mxu0 %v10786
        %v10850 = vpop.f32.mrf.mxu0
        %v10851 = vadd.f32 0.0, %v10850
        %10852 = vmatmul.f32.gmra.mxu0 %v10789
        %v10853 = vpop.f32.mrf.mxu0
        %v10854 = vadd.f32 0.0, %v10853
        %10855 = vmatmul.f32.gmra.mxu0 %v10792
        %v10856 = vpop.f32.mrf.mxu0
        %v10857 = vadd.f32 0.0, %v10856
        %10858 = vmatmul.f32.gmra.mxu0 %v10795
        %v10859 = vpop.f32.mrf.mxu0
        %v10860 = vadd.f32 0.0, %v10859
        %10861 = vmatmul.f32.gmra.mxu0 %v10798
        %v10862 = vpop.f32.mrf.mxu0
        %v10863 = vadd.f32 0.0, %v10862
        %10864 = vmatmul.f32.gmra.mxu0 %v10801
        %v10865 = vpop.f32.mrf.mxu0
        %v10866 = vadd.f32 0.0, %v10865
        %10867 = vmatmul.f32.gmra.mxu0 %v10804
        %v10868 = vpop.f32.mrf.mxu0
        %v10869 = vadd.f32 0.0, %v10868
        %10870 = vmatmul.f32.gmra.mxu0 %v10807
        %v10871 = vpop.f32.mrf.mxu0
        %v10872 = vadd.f32 0.0, %v10871
        %10873 = vmatmul.f32.gmra.mxu0 %v10810
        %v10874 = vpop.f32.mrf.mxu0
        %v10875 = vadd.f32 0.0, %v10874
        %10876 = vmatmul.f32.gmra.mxu0 %v10813
        %v10877 = vpop.f32.mrf.mxu0
        %v10878 = vadd.f32 0.0, %v10877
        %10879 = vmatmul.f32.gmra.mxu0 %v10816
        %v10880 = vpop.f32.mrf.mxu0
        %v10881 = vadd.f32 0.0, %v10880
        %10882 = vmatmul.f32.gmra.mxu0 %v10819
        %v10883 = vpop.f32.mrf.mxu0
        %v10884 = vadd.f32 0.0, %v10883
        %10885 = vmatmul.f32.gmra.mxu0 %v10822
        %v10886 = vpop.f32.mrf.mxu0
        %v10887 = vadd.f32 0.0, %v10886
        %10888 = vmatmul.f32.gmra.mxu0 %v10825
        %v10889 = vpop.f32.mrf.mxu0
        %v10890 = vadd.f32 0.0, %v10889
        %10891 = vmatmul.f32.gmra.mxu0 %v10828
        %v10892 = vpop.f32.mrf.mxu0
        %v10893 = vadd.f32 0.0, %v10892
        %10894 = vmatmul.f32.gmra.mxu0 %v10831
        %v10895 = vpop.f32.mrf.mxu0
        %v10896 = vadd.f32 0.0, %v10895
        %10897 = vdwg.mxu0
        %v10898 = vadd.f32 %v10749, %v10851
        %v10899 = vadd.f32 %v10750, %v10854
        %v10900 = vadd.f32 %v10751, %v10857
        %v10901 = vadd.f32 %v10752, %v10860
        %v10902 = vadd.f32 %v10753, %v10863
        %v10903 = vadd.f32 %v10754, %v10866
        %v10904 = vadd.f32 %v10755, %v10869
        %v10905 = vadd.f32 %v10756, %v10872
        %v10906 = vadd.f32 %v10757, %v10875
        %v10907 = vadd.f32 %v10758, %v10878
        %v10908 = vadd.f32 %v10759, %v10881
        %v10909 = vadd.f32 %v10760, %v10884
        %v10910 = vadd.f32 %v10761, %v10887
        %v10911 = vadd.f32 %v10762, %v10890
        %v10912 = vadd.f32 %v10763, %v10893
        %v10913 = vadd.f32 %v10764, %v10896
        %v10914 = vld [vmem:[%s10317 + $0xa] sm:$0xff]
        %v10915 = vld [vmem:[%s10317 + $0x22] sm:$0xff]
        %v10916 = vld [vmem:[%s10317 + $0x3a] sm:$0xff]
        %v10917 = vld [vmem:[%s10317 + $0x52] sm:$0xff]
        %v10918 = vld [vmem:[%s10317 + $0x6a] sm:$0xff]
        %v10919 = vld [vmem:[%s10317 + $0x82] sm:$0xff]
        %v10920 = vld [vmem:[%s10317 + $0x9a] sm:$0xff]
        %v10921 = vld [vmem:[%s10317 + $0xb2] sm:$0xff]
        %v10922 = vld [vmem:[%s10317 + $0x12a] sm:$0xff]
        %v10923 = vld [vmem:[%s10317 + $0x142] sm:$0xff]
        %v10924 = vld [vmem:[%s10317 + $0x15a] sm:$0xff]
        %v10925 = vld [vmem:[%s10317 + $0x172] sm:$0xff]
        %v10926 = vld [vmem:[%s10317 + $0x18a] sm:$0xff]
        %v10927 = vld [vmem:[%s10317 + $0x1a2] sm:$0xff]
        %v10928 = vld [vmem:[%s10317 + $0x1ba] sm:$0xff]
        %v10929 = vld [vmem:[%s10317 + $0x1d2] sm:$0xff]
        %s10930 = scalar_lea.vmem %s6, 576
        %v10931 = vld [vmem:[%s10930] sm:$0xff]
        %v10932 = vld [vmem:[%s10930 + $0x8] sm:$0xff]
        %v10933 = vld [vmem:[%s10930 + $0x10] sm:$0xff]
        %v10935 = vsel %vm7276, %v10914, 0
        %v10938 = vsel %vm7276, %v10915, 0
        %v10941 = vsel %vm7276, %v10916, 0
        %v10944 = vsel %vm7276, %v10917, 0
        %v10947 = vsel %vm7276, %v10918, 0
        %v10950 = vsel %vm7276, %v10919, 0
        %v10953 = vsel %vm7276, %v10920, 0
        %v10956 = vsel %vm7276, %v10921, 0
        %v10959 = vsel %vm7276, %v10922, 0
        %v10962 = vsel %vm7276, %v10923, 0
        %v10965 = vsel %vm7276, %v10924, 0
        %v10968 = vsel %vm7276, %v10925, 0
        %v10971 = vsel %vm7276, %v10926, 0
        %v10974 = vsel %vm7276, %v10927, 0
        %v10977 = vsel %vm7276, %v10928, 0
        %v10980 = vsel %vm7276, %v10929, 0
        %10982 = vmatpush.msra.mxu0 0.0
        %10983 = vmatpush.msra.mxu0 0.0
        %10984 = vmatpush.msra.mxu0 0.0
        %10985 = vmatpush.msra.mxu0 0.0
        %10986 = vmatpush.msra.mxu0 0.0
        %10987 = vmatpush.msra.mxu0 0.0
        %10988 = vmatpush.msra.mxu0 0.0
        %10989 = vmatpush.msra.mxu0 0.0
        %10990 = vmatpush.msra.mxu0 0.0
        %10991 = vmatpush.msra.mxu0 0.0
        %10992 = vmatpush.msra.mxu0 0.0
        %10993 = vmatpush.msra.mxu0 0.0
        %10994 = vmatpush.msra.mxu0 0.0
        %10995 = vmatpush.msra.mxu0 %v10933
        %10996 = vmatpush.msra.mxu0 %v10932
        %10997 = vmatpush.msra.mxu0 %v10931
        %10998 = vmatmul.f32.gmra.mxu0 %v10935
        %v10999 = vpop.f32.mrf.mxu0
        %v11000 = vadd.f32 0.0, %v10999
        %11001 = vmatmul.f32.gmra.mxu0 %v10938
        %v11002 = vpop.f32.mrf.mxu0
        %v11003 = vadd.f32 0.0, %v11002
        %11004 = vmatmul.f32.gmra.mxu0 %v10941
        %v11005 = vpop.f32.mrf.mxu0
        %v11006 = vadd.f32 0.0, %v11005
        %11007 = vmatmul.f32.gmra.mxu0 %v10944
        %v11008 = vpop.f32.mrf.mxu0
        %v11009 = vadd.f32 0.0, %v11008
        %11010 = vmatmul.f32.gmra.mxu0 %v10947
        %v11011 = vpop.f32.mrf.mxu0
        %v11012 = vadd.f32 0.0, %v11011
        %11013 = vmatmul.f32.gmra.mxu0 %v10950
        %v11014 = vpop.f32.mrf.mxu0
        %v11015 = vadd.f32 0.0, %v11014
        %11016 = vmatmul.f32.gmra.mxu0 %v10953
        %v11017 = vpop.f32.mrf.mxu0
        %v11018 = vadd.f32 0.0, %v11017
        %11019 = vmatmul.f32.gmra.mxu0 %v10956
        %v11020 = vpop.f32.mrf.mxu0
        %v11021 = vadd.f32 0.0, %v11020
        %11022 = vmatmul.f32.gmra.mxu0 %v10959
        %v11023 = vpop.f32.mrf.mxu0
        %v11024 = vadd.f32 0.0, %v11023
        %11025 = vmatmul.f32.gmra.mxu0 %v10962
        %v11026 = vpop.f32.mrf.mxu0
        %v11027 = vadd.f32 0.0, %v11026
        %11028 = vmatmul.f32.gmra.mxu0 %v10965
        %v11029 = vpop.f32.mrf.mxu0
        %v11030 = vadd.f32 0.0, %v11029
        %11031 = vmatmul.f32.gmra.mxu0 %v10968
        %v11032 = vpop.f32.mrf.mxu0
        %v11033 = vadd.f32 0.0, %v11032
        %11034 = vmatmul.f32.gmra.mxu0 %v10971
        %v11035 = vpop.f32.mrf.mxu0
        %v11036 = vadd.f32 0.0, %v11035
        %11037 = vmatmul.f32.gmra.mxu0 %v10974
        %v11038 = vpop.f32.mrf.mxu0
        %v11039 = vadd.f32 0.0, %v11038
        %11040 = vmatmul.f32.gmra.mxu0 %v10977
        %v11041 = vpop.f32.mrf.mxu0
        %v11042 = vadd.f32 0.0, %v11041
        %11043 = vmatmul.f32.gmra.mxu0 %v10980
        %v11044 = vpop.f32.mrf.mxu0
        %v11045 = vadd.f32 0.0, %v11044
        %11046 = vdwg.mxu0
        %v11047 = vadd.f32 %v10898, %v11000
        %v11048 = vadd.f32 %v10899, %v11003
        %v11049 = vadd.f32 %v10900, %v11006
        %v11050 = vadd.f32 %v10901, %v11009
        %v11051 = vadd.f32 %v10902, %v11012
        %v11052 = vadd.f32 %v10903, %v11015
        %v11053 = vadd.f32 %v10904, %v11018
        %v11054 = vadd.f32 %v10905, %v11021
        %v11055 = vadd.f32 %v10906, %v11024
        %v11056 = vadd.f32 %v10907, %v11027
        %v11057 = vadd.f32 %v10908, %v11030
        %v11058 = vadd.f32 %v10909, %v11033
        %v11059 = vadd.f32 %v10910, %v11036
        %v11060 = vadd.f32 %v10911, %v11039
        %v11061 = vadd.f32 %v10912, %v11042
        %v11062 = vadd.f32 %v10913, %v11045
        %v11063 = vld [vmem:[%s7] sm:$0x1]
        %v11065 = vperm.slane %v11063, 0
        %v11067 = vadd.f32 %v11047, %v11065
        %v11068 = vadd.f32 %v11048, %v11065
        %v11069 = vadd.f32 %v11049, %v11065
        %v11070 = vadd.f32 %v11050, %v11065
        %v11071 = vadd.f32 %v11051, %v11065
        %v11072 = vadd.f32 %v11052, %v11065
        %v11073 = vadd.f32 %v11053, %v11065
        %v11074 = vadd.f32 %v11054, %v11065
        %v11075 = vadd.f32 %v11055, %v11065
        %v11076 = vadd.f32 %v11056, %v11065
        %v11077 = vadd.f32 %v11057, %v11065
        %v11078 = vadd.f32 %v11058, %v11065
        %v11079 = vadd.f32 %v11059, %v11065
        %v11080 = vadd.f32 %v11060, %v11065
        %v11081 = vadd.f32 %v11061, %v11065
        %v11082 = vadd.f32 %v11062, %v11065
        %v11083 = vld [vmem:[%s3116] sm:$0xf]
        %v11084 = vld [vmem:[%s3116 + $0x4] sm:$0x1]
        %v11085 = vld [vmem:[%s3116 + $0x8] sm:$0xf]
        %v11086 = vld [vmem:[%s3116 + $0xc] sm:$0x1]
        %v11087 = vld [vmem:[%s3116 + $0x10] sm:$0xf]
        %v11088 = vld [vmem:[%s3116 + $0x14] sm:$0x1]
        %v11089 = vld [vmem:[%s3116 + $0x18] sm:$0xf]
        %v11090 = vld [vmem:[%s3116 + $0x1c] sm:$0x1]
        %v11091 = vld [vmem:[%s3116 + $0x20] sm:$0xf]
        %v11092 = vld [vmem:[%s3116 + $0x24] sm:$0x1]
        %v11093 = vld [vmem:[%s3116 + $0x28] sm:$0xf]
        %v11094 = vld [vmem:[%s3116 + $0x2c] sm:$0x1]
        %v11095 = vld [vmem:[%s3116 + $0x30] sm:$0xf]
        %v11096 = vld [vmem:[%s3116 + $0x34] sm:$0x1]
        %v11097 = vld [vmem:[%s3116 + $0x38] sm:$0xf]
        %v11098 = vld [vmem:[%s3116 + $0x3c] sm:$0x1]
        %v11099 = vld [vmem:[%s3116 + $0x50] sm:$0xf]
        %v11100 = vld [vmem:[%s3116 + $0x54] sm:$0x1]
        %v11101 = vld [vmem:[%s3116 + $0x58] sm:$0xf]
        %v11102 = vld [vmem:[%s3116 + $0x5c] sm:$0x1]
        %v11103 = vld [vmem:[%s3116 + $0x60] sm:$0xf]
        %v11104 = vld [vmem:[%s3116 + $0x64] sm:$0x1]
        %v11105 = vld [vmem:[%s3116 + $0x68] sm:$0xf]
        %v11106 = vld [vmem:[%s3116 + $0x6c] sm:$0x1]
        %v11107 = vld [vmem:[%s3116 + $0x70] sm:$0xf]
        %v11108 = vld [vmem:[%s3116 + $0x74] sm:$0x1]
        %v11109 = vld [vmem:[%s3116 + $0x78] sm:$0xf]
        %v11110 = vld [vmem:[%s3116 + $0x7c] sm:$0x1]
        %v11111 = vld [vmem:[%s3116 + $0x80] sm:$0xf]
        %v11112 = vld [vmem:[%s3116 + $0x84] sm:$0x1]
        %v11113 = vld [vmem:[%s3116 + $0x88] sm:$0xf]
        %v11114 = vld [vmem:[%s3116 + $0x8c] sm:$0x1]
        %v11116 = vshrl.u32 %v11083, 16
        %v11118 = vrot.slane %v11116, 4
        %v11119 = vshll.u32 %v11083, 16
        %v11121 = vrot.slane %v11119, 5
        %v11122 = vor.u32 %v11118, %v11121
        %v11123 = vrot.slane %v11122, 4
        %v11125 = vshll.u32 %v11084, 16
        %v11127 = vrot.slane %v11125, 5
        %v11128 = vsel %vm728, %v11123, %v11127
        %v11130 = vshrl.u32 %v11085, 16
        %v11132 = vrot.slane %v11130, 4
        %v11133 = vshll.u32 %v11085, 16
        %v11135 = vrot.slane %v11133, 5
        %v11136 = vor.u32 %v11132, %v11135
        %v11137 = vrot.slane %v11136, 4
        %v11139 = vshll.u32 %v11086, 16
        %v11141 = vrot.slane %v11139, 5
        %v11142 = vsel %vm728, %v11137, %v11141
        %v11144 = vshrl.u32 %v11087, 16
        %v11146 = vrot.slane %v11144, 4
        %v11147 = vshll.u32 %v11087, 16
        %v11149 = vrot.slane %v11147, 5
        %v11150 = vor.u32 %v11146, %v11149
        %v11151 = vrot.slane %v11150, 4
        %v11153 = vshll.u32 %v11088, 16
        %v11155 = vrot.slane %v11153, 5
        %v11156 = vsel %vm728, %v11151, %v11155
        %v11158 = vshrl.u32 %v11089, 16
        %v11160 = vrot.slane %v11158, 4
        %v11161 = vshll.u32 %v11089, 16
        %v11163 = vrot.slane %v11161, 5
        %v11164 = vor.u32 %v11160, %v11163
        %v11165 = vrot.slane %v11164, 4
        %v11167 = vshll.u32 %v11090, 16
        %v11169 = vrot.slane %v11167, 5
        %v11170 = vsel %vm728, %v11165, %v11169
        %v11172 = vshrl.u32 %v11091, 16
        %v11174 = vrot.slane %v11172, 4
        %v11175 = vshll.u32 %v11091, 16
        %v11177 = vrot.slane %v11175, 5
        %v11178 = vor.u32 %v11174, %v11177
        %v11179 = vrot.slane %v11178, 4
        %v11181 = vshll.u32 %v11092, 16
        %v11183 = vrot.slane %v11181, 5
        %v11184 = vsel %vm728, %v11179, %v11183
        %v11186 = vshrl.u32 %v11093, 16
        %v11188 = vrot.slane %v11186, 4
        %v11189 = vshll.u32 %v11093, 16
        %v11191 = vrot.slane %v11189, 5
        %v11192 = vor.u32 %v11188, %v11191
        %v11193 = vrot.slane %v11192, 4
        %v11195 = vshll.u32 %v11094, 16
        %v11197 = vrot.slane %v11195, 5
        %v11198 = vsel %vm728, %v11193, %v11197
        %v11200 = vshrl.u32 %v11095, 16
        %v11202 = vrot.slane %v11200, 4
        %v11203 = vshll.u32 %v11095, 16
        %v11205 = vrot.slane %v11203, 5
        %v11206 = vor.u32 %v11202, %v11205
        %v11207 = vrot.slane %v11206, 4
        %v11209 = vshll.u32 %v11096, 16
        %v11211 = vrot.slane %v11209, 5
        %v11212 = vsel %vm728, %v11207, %v11211
        %v11214 = vshrl.u32 %v11097, 16
        %v11216 = vrot.slane %v11214, 4
        %v11217 = vshll.u32 %v11097, 16
        %v11219 = vrot.slane %v11217, 5
        %v11220 = vor.u32 %v11216, %v11219
        %v11221 = vrot.slane %v11220, 4
        %v11223 = vshll.u32 %v11098, 16
        %v11225 = vrot.slane %v11223, 5
        %v11226 = vsel %vm728, %v11221, %v11225
        %v11228 = vshrl.u32 %v11099, 16
        %v11230 = vrot.slane %v11228, 4
        %v11231 = vshll.u32 %v11099, 16
        %v11233 = vrot.slane %v11231, 5
        %v11234 = vor.u32 %v11230, %v11233
        %v11235 = vrot.slane %v11234, 4
        %v11237 = vshll.u32 %v11100, 16
        %v11239 = vrot.slane %v11237, 5
        %v11240 = vsel %vm728, %v11235, %v11239
        %v11242 = vshrl.u32 %v11101, 16
        %v11244 = vrot.slane %v11242, 4
        %v11245 = vshll.u32 %v11101, 16
        %v11247 = vrot.slane %v11245, 5
        %v11248 = vor.u32 %v11244, %v11247
        %v11249 = vrot.slane %v11248, 4
        %v11251 = vshll.u32 %v11102, 16
        %v11253 = vrot.slane %v11251, 5
        %v11254 = vsel %vm728, %v11249, %v11253
        %v11256 = vshrl.u32 %v11103, 16
        %v11258 = vrot.slane %v11256, 4
        %v11259 = vshll.u32 %v11103, 16
        %v11261 = vrot.slane %v11259, 5
        %v11262 = vor.u32 %v11258, %v11261
        %v11263 = vrot.slane %v11262, 4
        %v11265 = vshll.u32 %v11104, 16
        %v11267 = vrot.slane %v11265, 5
        %v11268 = vsel %vm728, %v11263, %v11267
        %v11270 = vshrl.u32 %v11105, 16
        %v11272 = vrot.slane %v11270, 4
        %v11273 = vshll.u32 %v11105, 16
        %v11275 = vrot.slane %v11273, 5
        %v11276 = vor.u32 %v11272, %v11275
        %v11277 = vrot.slane %v11276, 4
        %v11279 = vshll.u32 %v11106, 16
        %v11281 = vrot.slane %v11279, 5
        %v11282 = vsel %vm728, %v11277, %v11281
        %v11284 = vshrl.u32 %v11107, 16
        %v11286 = vrot.slane %v11284, 4
        %v11287 = vshll.u32 %v11107, 16
        %v11289 = vrot.slane %v11287, 5
        %v11290 = vor.u32 %v11286, %v11289
        %v11291 = vrot.slane %v11290, 4
        %v11293 = vshll.u32 %v11108, 16
        %v11295 = vrot.slane %v11293, 5
        %v11296 = vsel %vm728, %v11291, %v11295
        %v11298 = vshrl.u32 %v11109, 16
        %v11300 = vrot.slane %v11298, 4
        %v11301 = vshll.u32 %v11109, 16
        %v11303 = vrot.slane %v11301, 5
        %v11304 = vor.u32 %v11300, %v11303
        %v11305 = vrot.slane %v11304, 4
        %v11307 = vshll.u32 %v11110, 16
        %v11309 = vrot.slane %v11307, 5
        %v11310 = vsel %vm728, %v11305, %v11309
        %v11312 = vshrl.u32 %v11111, 16
        %v11314 = vrot.slane %v11312, 4
        %v11315 = vshll.u32 %v11111, 16
        %v11317 = vrot.slane %v11315, 5
        %v11318 = vor.u32 %v11314, %v11317
        %v11319 = vrot.slane %v11318, 4
        %v11321 = vshll.u32 %v11112, 16
        %v11323 = vrot.slane %v11321, 5
        %v11324 = vsel %vm728, %v11319, %v11323
        %v11326 = vshrl.u32 %v11113, 16
        %v11328 = vrot.slane %v11326, 4
        %v11329 = vshll.u32 %v11113, 16
        %v11331 = vrot.slane %v11329, 5
        %v11332 = vor.u32 %v11328, %v11331
        %v11333 = vrot.slane %v11332, 4
        %v11335 = vshll.u32 %v11114, 16
        %v11337 = vrot.slane %v11335, 5
        %v11338 = vsel %vm728, %v11333, %v11337
        %v11355 = vld [vmem:[%s3287] sm:$0xf]
        %v11356 = vld [vmem:[%s3287 + $0x4] sm:$0x1]
        %v11357 = vld [vmem:[%s3287 + $0x8] sm:$0xf]
        %v11358 = vld [vmem:[%s3287 + $0xc] sm:$0x1]
        %v11359 = vld [vmem:[%s3287 + $0x10] sm:$0xf]
        %v11360 = vld [vmem:[%s3287 + $0x14] sm:$0x1]
        %v11361 = vld [vmem:[%s3287 + $0x18] sm:$0xf]
        %v11362 = vld [vmem:[%s3287 + $0x1c] sm:$0x1]
        %v11363 = vld [vmem:[%s3287 + $0x20] sm:$0xf]
        %v11364 = vld [vmem:[%s3287 + $0x24] sm:$0x1]
        %v11365 = vld [vmem:[%s3287 + $0x28] sm:$0xf]
        %v11366 = vld [vmem:[%s3287 + $0x2c] sm:$0x1]
        %v11367 = vld [vmem:[%s3287 + $0x30] sm:$0xf]
        %v11368 = vld [vmem:[%s3287 + $0x34] sm:$0x1]
        %v11369 = vld [vmem:[%s3287 + $0x38] sm:$0xf]
        %v11370 = vld [vmem:[%s3287 + $0x3c] sm:$0x1]
        %v11371 = vld [vmem:[%s3287 + $0x50] sm:$0xf]
        %v11372 = vld [vmem:[%s3287 + $0x54] sm:$0x1]
        %v11373 = vld [vmem:[%s3287 + $0x58] sm:$0xf]
        %v11374 = vld [vmem:[%s3287 + $0x5c] sm:$0x1]
        %v11375 = vld [vmem:[%s3287 + $0x60] sm:$0xf]
        %v11376 = vld [vmem:[%s3287 + $0x64] sm:$0x1]
        %v11377 = vld [vmem:[%s3287 + $0x68] sm:$0xf]
        %v11378 = vld [vmem:[%s3287 + $0x6c] sm:$0x1]
        %v11379 = vld [vmem:[%s3287 + $0x70] sm:$0xf]
        %v11380 = vld [vmem:[%s3287 + $0x74] sm:$0x1]
        %v11381 = vld [vmem:[%s3287 + $0x78] sm:$0xf]
        %v11382 = vld [vmem:[%s3287 + $0x7c] sm:$0x1]
        %v11383 = vld [vmem:[%s3287 + $0x80] sm:$0xf]
        %v11384 = vld [vmem:[%s3287 + $0x84] sm:$0x1]
        %v11385 = vld [vmem:[%s3287 + $0x88] sm:$0xf]
        %v11386 = vld [vmem:[%s3287 + $0x8c] sm:$0x1]
        %v11388 = vshrl.u32 %v11355, 16
        %v11390 = vrot.slane %v11388, 4
        %v11391 = vshll.u32 %v11355, 16
        %v11393 = vrot.slane %v11391, 5
        %v11394 = vor.u32 %v11390, %v11393
        %v11395 = vrot.slane %v11394, 4
        %v11397 = vshll.u32 %v11356, 16
        %v11399 = vrot.slane %v11397, 5
        %v11400 = vsel %vm728, %v11395, %v11399
        %v11402 = vshrl.u32 %v11357, 16
        %v11404 = vrot.slane %v11402, 4
        %v11405 = vshll.u32 %v11357, 16
        %v11407 = vrot.slane %v11405, 5
        %v11408 = vor.u32 %v11404, %v11407
        %v11409 = vrot.slane %v11408, 4
        %v11411 = vshll.u32 %v11358, 16
        %v11413 = vrot.slane %v11411, 5
        %v11414 = vsel %vm728, %v11409, %v11413
        %v11416 = vshrl.u32 %v11359, 16
        %v11418 = vrot.slane %v11416, 4
        %v11419 = vshll.u32 %v11359, 16
        %v11421 = vrot.slane %v11419, 5
        %v11422 = vor.u32 %v11418, %v11421
        %v11423 = vrot.slane %v11422, 4
        %v11425 = vshll.u32 %v11360, 16
        %v11427 = vrot.slane %v11425, 5
        %v11428 = vsel %vm728, %v11423, %v11427
        %v11430 = vshrl.u32 %v11361, 16
        %v11432 = vrot.slane %v11430, 4
        %v11433 = vshll.u32 %v11361, 16
        %v11435 = vrot.slane %v11433, 5
        %v11436 = vor.u32 %v11432, %v11435
        %v11437 = vrot.slane %v11436, 4
        %v11439 = vshll.u32 %v11362, 16
        %v11441 = vrot.slane %v11439, 5
        %v11442 = vsel %vm728, %v11437, %v11441
        %v11444 = vshrl.u32 %v11363, 16
        %v11446 = vrot.slane %v11444, 4
        %v11447 = vshll.u32 %v11363, 16
        %v11449 = vrot.slane %v11447, 5
        %v11450 = vor.u32 %v11446, %v11449
        %v11451 = vrot.slane %v11450, 4
        %v11453 = vshll.u32 %v11364, 16
        %v11455 = vrot.slane %v11453, 5
        %v11456 = vsel %vm728, %v11451, %v11455
        %v11458 = vshrl.u32 %v11365, 16
        %v11460 = vrot.slane %v11458, 4
        %v11461 = vshll.u32 %v11365, 16
        %v11463 = vrot.slane %v11461, 5
        %v11464 = vor.u32 %v11460, %v11463
        %v11465 = vrot.slane %v11464, 4
        %v11467 = vshll.u32 %v11366, 16
        %v11469 = vrot.slane %v11467, 5
        %v11470 = vsel %vm728, %v11465, %v11469
        %v11472 = vshrl.u32 %v11367, 16
        %v11474 = vrot.slane %v11472, 4
        %v11475 = vshll.u32 %v11367, 16
        %v11477 = vrot.slane %v11475, 5
        %v11478 = vor.u32 %v11474, %v11477
        %v11479 = vrot.slane %v11478, 4
        %v11481 = vshll.u32 %v11368, 16
        %v11483 = vrot.slane %v11481, 5
        %v11484 = vsel %vm728, %v11479, %v11483
        %v11486 = vshrl.u32 %v11369, 16
        %v11488 = vrot.slane %v11486, 4
        %v11489 = vshll.u32 %v11369, 16
        %v11491 = vrot.slane %v11489, 5
        %v11492 = vor.u32 %v11488, %v11491
        %v11493 = vrot.slane %v11492, 4
        %v11495 = vshll.u32 %v11370, 16
        %v11497 = vrot.slane %v11495, 5
        %v11498 = vsel %vm728, %v11493, %v11497
        %v11500 = vshrl.u32 %v11371, 16
        %v11502 = vrot.slane %v11500, 4
        %v11503 = vshll.u32 %v11371, 16
        %v11505 = vrot.slane %v11503, 5
        %v11506 = vor.u32 %v11502, %v11505
        %v11507 = vrot.slane %v11506, 4
        %v11509 = vshll.u32 %v11372, 16
        %v11511 = vrot.slane %v11509, 5
        %v11512 = vsel %vm728, %v11507, %v11511
        %v11514 = vshrl.u32 %v11373, 16
        %v11516 = vrot.slane %v11514, 4
        %v11517 = vshll.u32 %v11373, 16
        %v11519 = vrot.slane %v11517, 5
        %v11520 = vor.u32 %v11516, %v11519
        %v11521 = vrot.slane %v11520, 4
        %v11523 = vshll.u32 %v11374, 16
        %v11525 = vrot.slane %v11523, 5
        %v11526 = vsel %vm728, %v11521, %v11525
        %v11528 = vshrl.u32 %v11375, 16
        %v11530 = vrot.slane %v11528, 4
        %v11531 = vshll.u32 %v11375, 16
        %v11533 = vrot.slane %v11531, 5
        %v11534 = vor.u32 %v11530, %v11533
        %v11535 = vrot.slane %v11534, 4
        %v11537 = vshll.u32 %v11376, 16
        %v11539 = vrot.slane %v11537, 5
        %v11540 = vsel %vm728, %v11535, %v11539
        %v11542 = vshrl.u32 %v11377, 16
        %v11544 = vrot.slane %v11542, 4
        %v11545 = vshll.u32 %v11377, 16
        %v11547 = vrot.slane %v11545, 5
        %v11548 = vor.u32 %v11544, %v11547
        %v11549 = vrot.slane %v11548, 4
        %v11551 = vshll.u32 %v11378, 16
        %v11553 = vrot.slane %v11551, 5
        %v11554 = vsel %vm728, %v11549, %v11553
        %v11556 = vshrl.u32 %v11379, 16
        %v11558 = vrot.slane %v11556, 4
        %v11559 = vshll.u32 %v11379, 16
        %v11561 = vrot.slane %v11559, 5
        %v11562 = vor.u32 %v11558, %v11561
        %v11563 = vrot.slane %v11562, 4
        %v11565 = vshll.u32 %v11380, 16
        %v11567 = vrot.slane %v11565, 5
        %v11568 = vsel %vm728, %v11563, %v11567
        %v11570 = vshrl.u32 %v11381, 16
        %v11572 = vrot.slane %v11570, 4
        %v11573 = vshll.u32 %v11381, 16
        %v11575 = vrot.slane %v11573, 5
        %v11576 = vor.u32 %v11572, %v11575
        %v11577 = vrot.slane %v11576, 4
        %v11579 = vshll.u32 %v11382, 16
        %v11581 = vrot.slane %v11579, 5
        %v11582 = vsel %vm728, %v11577, %v11581
        %v11584 = vshrl.u32 %v11383, 16
        %v11586 = vrot.slane %v11584, 4
        %v11587 = vshll.u32 %v11383, 16
        %v11589 = vrot.slane %v11587, 5
        %v11590 = vor.u32 %v11586, %v11589
        %v11591 = vrot.slane %v11590, 4
        %v11593 = vshll.u32 %v11384, 16
        %v11595 = vrot.slane %v11593, 5
        %v11596 = vsel %vm728, %v11591, %v11595
        %v11598 = vshrl.u32 %v11385, 16
        %v11600 = vrot.slane %v11598, 4
        %v11601 = vshll.u32 %v11385, 16
        %v11603 = vrot.slane %v11601, 5
        %v11604 = vor.u32 %v11600, %v11603
        %v11605 = vrot.slane %v11604, 4
        %v11607 = vshll.u32 %v11386, 16
        %v11609 = vrot.slane %v11607, 5
        %v11610 = vsel %vm728, %v11605, %v11609
        %v11627 = vunpack.c.l.bf16 %v11128
        %v11628 = vunpack.c.l.bf16 %v11142
        %v11629 = vunpack.c.l.bf16 %v11156
        %v11630 = vunpack.c.l.bf16 %v11170
        %v11631 = vunpack.c.l.bf16 %v11184
        %v11632 = vunpack.c.l.bf16 %v11198
        %v11633 = vunpack.c.l.bf16 %v11212
        %v11634 = vunpack.c.l.bf16 %v11226
        %v11635 = vunpack.c.l.bf16 %v11240
        %v11636 = vunpack.c.l.bf16 %v11254
        %v11637 = vunpack.c.l.bf16 %v11268
        %v11638 = vunpack.c.l.bf16 %v11282
        %v11639 = vunpack.c.l.bf16 %v11296
        %v11640 = vunpack.c.l.bf16 %v11310
        %v11641 = vunpack.c.l.bf16 %v11324
        %v11642 = vunpack.c.l.bf16 %v11338
        %v11643 = vunpack.c.l.bf16 %v11400
        %v11644 = vunpack.c.l.bf16 %v11414
        %v11645 = vunpack.c.l.bf16 %v11428
        %v11646 = vunpack.c.l.bf16 %v11442
        %v11647 = vunpack.c.l.bf16 %v11456
        %v11648 = vunpack.c.l.bf16 %v11470
        %v11649 = vunpack.c.l.bf16 %v11484
        %v11650 = vunpack.c.l.bf16 %v11498
        %v11651 = vunpack.c.l.bf16 %v11512
        %v11652 = vunpack.c.l.bf16 %v11526
        %v11653 = vunpack.c.l.bf16 %v11540
        %v11654 = vunpack.c.l.bf16 %v11554
        %v11655 = vunpack.c.l.bf16 %v11568
        %v11656 = vunpack.c.l.bf16 %v11582
        %v11657 = vunpack.c.l.bf16 %v11596
        %v11658 = vunpack.c.l.bf16 %v11610
        %v11659 = vmax.f32 %v11627, %v11643
        %v11660 = vmax.f32 %v11628, %v11644
        %v11661 = vmax.f32 %v11629, %v11645
        %v11662 = vmax.f32 %v11630, %v11646
        %v11663 = vmax.f32 %v11631, %v11647
        %v11664 = vmax.f32 %v11632, %v11648
        %v11665 = vmax.f32 %v11633, %v11649
        %v11666 = vmax.f32 %v11634, %v11650
        %v11667 = vmax.f32 %v11635, %v11651
        %v11668 = vmax.f32 %v11636, %v11652
        %v11669 = vmax.f32 %v11637, %v11653
        %v11670 = vmax.f32 %v11638, %v11654
        %v11671 = vmax.f32 %v11639, %v11655
        %v11672 = vmax.f32 %v11640, %v11656
        %v11673 = vmax.f32 %v11641, %v11657
        %v11674 = vmax.f32 %v11642, %v11658
        %v11675 = vpack.c.bf16 %v11659, %v11659
        %v11676 = vpack.c.bf16 %v11660, %v11660
        %v11677 = vpack.c.bf16 %v11661, %v11661
        %v11678 = vpack.c.bf16 %v11662, %v11662
        %v11679 = vpack.c.bf16 %v11663, %v11663
        %v11680 = vpack.c.bf16 %v11664, %v11664
        %v11681 = vpack.c.bf16 %v11665, %v11665
        %v11682 = vpack.c.bf16 %v11666, %v11666
        %v11683 = vpack.c.bf16 %v11667, %v11667
        %v11684 = vpack.c.bf16 %v11668, %v11668
        %v11685 = vpack.c.bf16 %v11669, %v11669
        %v11686 = vpack.c.bf16 %v11670, %v11670
        %v11687 = vpack.c.bf16 %v11671, %v11671
        %v11688 = vpack.c.bf16 %v11672, %v11672
        %v11689 = vpack.c.bf16 %v11673, %v11673
        %v11690 = vpack.c.bf16 %v11674, %v11674
        %v11691 = vld [vmem:[%s4496] sm:$0xf]
        %v11692 = vld [vmem:[%s4496 + $0x4] sm:$0x1]
        %v11693 = vld [vmem:[%s4496 + $0x8] sm:$0xf]
        %v11694 = vld [vmem:[%s4496 + $0xc] sm:$0x1]
        %v11695 = vld [vmem:[%s4496 + $0x10] sm:$0xf]
        %v11696 = vld [vmem:[%s4496 + $0x14] sm:$0x1]
        %v11697 = vld [vmem:[%s4496 + $0x18] sm:$0xf]
        %v11698 = vld [vmem:[%s4496 + $0x1c] sm:$0x1]
        %v11699 = vld [vmem:[%s4496 + $0x20] sm:$0xf]
        %v11700 = vld [vmem:[%s4496 + $0x24] sm:$0x1]
        %v11701 = vld [vmem:[%s4496 + $0x28] sm:$0xf]
        %v11702 = vld [vmem:[%s4496 + $0x2c] sm:$0x1]
        %v11703 = vld [vmem:[%s4496 + $0x30] sm:$0xf]
        %v11704 = vld [vmem:[%s4496 + $0x34] sm:$0x1]
        %v11705 = vld [vmem:[%s4496 + $0x38] sm:$0xf]
        %v11706 = vld [vmem:[%s4496 + $0x3c] sm:$0x1]
        %v11707 = vld [vmem:[%s4496 + $0x50] sm:$0xf]
        %v11708 = vld [vmem:[%s4496 + $0x54] sm:$0x1]
        %v11709 = vld [vmem:[%s4496 + $0x58] sm:$0xf]
        %v11710 = vld [vmem:[%s4496 + $0x5c] sm:$0x1]
        %v11711 = vld [vmem:[%s4496 + $0x60] sm:$0xf]
        %v11712 = vld [vmem:[%s4496 + $0x64] sm:$0x1]
        %v11713 = vld [vmem:[%s4496 + $0x68] sm:$0xf]
        %v11714 = vld [vmem:[%s4496 + $0x6c] sm:$0x1]
        %v11715 = vld [vmem:[%s4496 + $0x70] sm:$0xf]
        %v11716 = vld [vmem:[%s4496 + $0x74] sm:$0x1]
        %v11717 = vld [vmem:[%s4496 + $0x78] sm:$0xf]
        %v11718 = vld [vmem:[%s4496 + $0x7c] sm:$0x1]
        %v11719 = vld [vmem:[%s4496 + $0x80] sm:$0xf]
        %v11720 = vld [vmem:[%s4496 + $0x84] sm:$0x1]
        %v11721 = vld [vmem:[%s4496 + $0x88] sm:$0xf]
        %v11722 = vld [vmem:[%s4496 + $0x8c] sm:$0x1]
        %v11724 = vshrl.u32 %v11691, 16
        %v11726 = vrot.slane %v11724, 4
        %v11727 = vshll.u32 %v11691, 16
        %v11729 = vrot.slane %v11727, 5
        %v11730 = vor.u32 %v11726, %v11729
        %v11731 = vrot.slane %v11730, 4
        %v11733 = vshll.u32 %v11692, 16
        %v11735 = vrot.slane %v11733, 5
        %v11736 = vsel %vm728, %v11731, %v11735
        %v11738 = vshrl.u32 %v11693, 16
        %v11740 = vrot.slane %v11738, 4
        %v11741 = vshll.u32 %v11693, 16
        %v11743 = vrot.slane %v11741, 5
        %v11744 = vor.u32 %v11740, %v11743
        %v11745 = vrot.slane %v11744, 4
        %v11747 = vshll.u32 %v11694, 16
        %v11749 = vrot.slane %v11747, 5
        %v11750 = vsel %vm728, %v11745, %v11749
        %v11752 = vshrl.u32 %v11695, 16
        %v11754 = vrot.slane %v11752, 4
        %v11755 = vshll.u32 %v11695, 16
        %v11757 = vrot.slane %v11755, 5
        %v11758 = vor.u32 %v11754, %v11757
        %v11759 = vrot.slane %v11758, 4
        %v11761 = vshll.u32 %v11696, 16
        %v11763 = vrot.slane %v11761, 5
        %v11764 = vsel %vm728, %v11759, %v11763
        %v11766 = vshrl.u32 %v11697, 16
        %v11768 = vrot.slane %v11766, 4
        %v11769 = vshll.u32 %v11697, 16
        %v11771 = vrot.slane %v11769, 5
        %v11772 = vor.u32 %v11768, %v11771
        %v11773 = vrot.slane %v11772, 4
        %v11775 = vshll.u32 %v11698, 16
        %v11777 = vrot.slane %v11775, 5
        %v11778 = vsel %vm728, %v11773, %v11777
        %v11780 = vshrl.u32 %v11699, 16
        %v11782 = vrot.slane %v11780, 4
        %v11783 = vshll.u32 %v11699, 16
        %v11785 = vrot.slane %v11783, 5
        %v11786 = vor.u32 %v11782, %v11785
        %v11787 = vrot.slane %v11786, 4
        %v11789 = vshll.u32 %v11700, 16
        %v11791 = vrot.slane %v11789, 5
        %v11792 = vsel %vm728, %v11787, %v11791
        %v11794 = vshrl.u32 %v11701, 16
        %v11796 = vrot.slane %v11794, 4
        %v11797 = vshll.u32 %v11701, 16
        %v11799 = vrot.slane %v11797, 5
        %v11800 = vor.u32 %v11796, %v11799
        %v11801 = vrot.slane %v11800, 4
        %v11803 = vshll.u32 %v11702, 16
        %v11805 = vrot.slane %v11803, 5
        %v11806 = vsel %vm728, %v11801, %v11805
        %v11808 = vshrl.u32 %v11703, 16
        %v11810 = vrot.slane %v11808, 4
        %v11811 = vshll.u32 %v11703, 16
        %v11813 = vrot.slane %v11811, 5
        %v11814 = vor.u32 %v11810, %v11813
        %v11815 = vrot.slane %v11814, 4
        %v11817 = vshll.u32 %v11704, 16
        %v11819 = vrot.slane %v11817, 5
        %v11820 = vsel %vm728, %v11815, %v11819
        %v11822 = vshrl.u32 %v11705, 16
        %v11824 = vrot.slane %v11822, 4
        %v11825 = vshll.u32 %v11705, 16
        %v11827 = vrot.slane %v11825, 5
        %v11828 = vor.u32 %v11824, %v11827
        %v11829 = vrot.slane %v11828, 4
        %v11831 = vshll.u32 %v11706, 16
        %v11833 = vrot.slane %v11831, 5
        %v11834 = vsel %vm728, %v11829, %v11833
        %v11836 = vshrl.u32 %v11707, 16
        %v11838 = vrot.slane %v11836, 4
        %v11839 = vshll.u32 %v11707, 16
        %v11841 = vrot.slane %v11839, 5
        %v11842 = vor.u32 %v11838, %v11841
        %v11843 = vrot.slane %v11842, 4
        %v11845 = vshll.u32 %v11708, 16
        %v11847 = vrot.slane %v11845, 5
        %v11848 = vsel %vm728, %v11843, %v11847
        %v11850 = vshrl.u32 %v11709, 16
        %v11852 = vrot.slane %v11850, 4
        %v11853 = vshll.u32 %v11709, 16
        %v11855 = vrot.slane %v11853, 5
        %v11856 = vor.u32 %v11852, %v11855
        %v11857 = vrot.slane %v11856, 4
        %v11859 = vshll.u32 %v11710, 16
        %v11861 = vrot.slane %v11859, 5
        %v11862 = vsel %vm728, %v11857, %v11861
        %v11864 = vshrl.u32 %v11711, 16
        %v11866 = vrot.slane %v11864, 4
        %v11867 = vshll.u32 %v11711, 16
        %v11869 = vrot.slane %v11867, 5
        %v11870 = vor.u32 %v11866, %v11869
        %v11871 = vrot.slane %v11870, 4
        %v11873 = vshll.u32 %v11712, 16
        %v11875 = vrot.slane %v11873, 5
        %v11876 = vsel %vm728, %v11871, %v11875
        %v11878 = vshrl.u32 %v11713, 16
        %v11880 = vrot.slane %v11878, 4
        %v11881 = vshll.u32 %v11713, 16
        %v11883 = vrot.slane %v11881, 5
        %v11884 = vor.u32 %v11880, %v11883
        %v11885 = vrot.slane %v11884, 4
        %v11887 = vshll.u32 %v11714, 16
        %v11889 = vrot.slane %v11887, 5
        %v11890 = vsel %vm728, %v11885, %v11889
        %v11892 = vshrl.u32 %v11715, 16
        %v11894 = vrot.slane %v11892, 4
        %v11895 = vshll.u32 %v11715, 16
        %v11897 = vrot.slane %v11895, 5
        %v11898 = vor.u32 %v11894, %v11897
        %v11899 = vrot.slane %v11898, 4
        %v11901 = vshll.u32 %v11716, 16
        %v11903 = vrot.slane %v11901, 5
        %v11904 = vsel %vm728, %v11899, %v11903
        %v11906 = vshrl.u32 %v11717, 16
        %v11908 = vrot.slane %v11906, 4
        %v11909 = vshll.u32 %v11717, 16
        %v11911 = vrot.slane %v11909, 5
        %v11912 = vor.u32 %v11908, %v11911
        %v11913 = vrot.slane %v11912, 4
        %v11915 = vshll.u32 %v11718, 16
        %v11917 = vrot.slane %v11915, 5
        %v11918 = vsel %vm728, %v11913, %v11917
        %v11920 = vshrl.u32 %v11719, 16
        %v11922 = vrot.slane %v11920, 4
        %v11923 = vshll.u32 %v11719, 16
        %v11925 = vrot.slane %v11923, 5
        %v11926 = vor.u32 %v11922, %v11925
        %v11927 = vrot.slane %v11926, 4
        %v11929 = vshll.u32 %v11720, 16
        %v11931 = vrot.slane %v11929, 5
        %v11932 = vsel %vm728, %v11927, %v11931
        %v11934 = vshrl.u32 %v11721, 16
        %v11936 = vrot.slane %v11934, 4
        %v11937 = vshll.u32 %v11721, 16
        %v11939 = vrot.slane %v11937, 5
        %v11940 = vor.u32 %v11936, %v11939
        %v11941 = vrot.slane %v11940, 4
        %v11943 = vshll.u32 %v11722, 16
        %v11945 = vrot.slane %v11943, 5
        %v11946 = vsel %vm728, %v11941, %v11945
        %v11963 = vunpack.c.l.bf16 %v11675
        %v11964 = vunpack.c.l.bf16 %v11676
        %v11965 = vunpack.c.l.bf16 %v11677
        %v11966 = vunpack.c.l.bf16 %v11678
        %v11967 = vunpack.c.l.bf16 %v11679
        %v11968 = vunpack.c.l.bf16 %v11680
        %v11969 = vunpack.c.l.bf16 %v11681
        %v11970 = vunpack.c.l.bf16 %v11682
        %v11971 = vunpack.c.l.bf16 %v11683
        %v11972 = vunpack.c.l.bf16 %v11684
        %v11973 = vunpack.c.l.bf16 %v11685
        %v11974 = vunpack.c.l.bf16 %v11686
        %v11975 = vunpack.c.l.bf16 %v11687
        %v11976 = vunpack.c.l.bf16 %v11688
        %v11977 = vunpack.c.l.bf16 %v11689
        %v11978 = vunpack.c.l.bf16 %v11690
        %v11979 = vunpack.c.l.bf16 %v11736
        %v11980 = vunpack.c.l.bf16 %v11750
        %v11981 = vunpack.c.l.bf16 %v11764
        %v11982 = vunpack.c.l.bf16 %v11778
        %v11983 = vunpack.c.l.bf16 %v11792
        %v11984 = vunpack.c.l.bf16 %v11806
        %v11985 = vunpack.c.l.bf16 %v11820
        %v11986 = vunpack.c.l.bf16 %v11834
        %v11987 = vunpack.c.l.bf16 %v11848
        %v11988 = vunpack.c.l.bf16 %v11862
        %v11989 = vunpack.c.l.bf16 %v11876
        %v11990 = vunpack.c.l.bf16 %v11890
        %v11991 = vunpack.c.l.bf16 %v11904
        %v11992 = vunpack.c.l.bf16 %v11918
        %v11993 = vunpack.c.l.bf16 %v11932
        %v11994 = vunpack.c.l.bf16 %v11946
        %v11995 = vmax.f32 %v11963, %v11979
        %v11996 = vmax.f32 %v11964, %v11980
        %v11997 = vmax.f32 %v11965, %v11981
        %v11998 = vmax.f32 %v11966, %v11982
        %v11999 = vmax.f32 %v11967, %v11983
        %v12000 = vmax.f32 %v11968, %v11984
        %v12001 = vmax.f32 %v11969, %v11985
        %v12002 = vmax.f32 %v11970, %v11986
        %v12003 = vmax.f32 %v11971, %v11987
        %v12004 = vmax.f32 %v11972, %v11988
        %v12005 = vmax.f32 %v11973, %v11989
        %v12006 = vmax.f32 %v11974, %v11990
        %v12007 = vmax.f32 %v11975, %v11991
        %v12008 = vmax.f32 %v11976, %v11992
        %v12009 = vmax.f32 %v11977, %v11993
        %v12010 = vmax.f32 %v11978, %v11994
        %v12011 = vpack.c.bf16 %v11995, %v11995
        %v12012 = vpack.c.bf16 %v11996, %v11996
        %v12013 = vpack.c.bf16 %v11997, %v11997
        %v12014 = vpack.c.bf16 %v11998, %v11998
        %v12015 = vpack.c.bf16 %v11999, %v11999
        %v12016 = vpack.c.bf16 %v12000, %v12000
        %v12017 = vpack.c.bf16 %v12001, %v12001
        %v12018 = vpack.c.bf16 %v12002, %v12002
        %v12019 = vpack.c.bf16 %v12003, %v12003
        %v12020 = vpack.c.bf16 %v12004, %v12004
        %v12021 = vpack.c.bf16 %v12005, %v12005
        %v12022 = vpack.c.bf16 %v12006, %v12006
        %v12023 = vpack.c.bf16 %v12007, %v12007
        %v12024 = vpack.c.bf16 %v12008, %v12008
        %v12025 = vpack.c.bf16 %v12009, %v12009
        %v12026 = vpack.c.bf16 %v12010, %v12010
        %v12027 = vld [vmem:[%s4667] sm:$0xf]
        %v12028 = vld [vmem:[%s4667 + $0x4] sm:$0x1]
        %v12029 = vld [vmem:[%s4667 + $0x8] sm:$0xf]
        %v12030 = vld [vmem:[%s4667 + $0xc] sm:$0x1]
        %v12031 = vld [vmem:[%s4667 + $0x10] sm:$0xf]
        %v12032 = vld [vmem:[%s4667 + $0x14] sm:$0x1]
        %v12033 = vld [vmem:[%s4667 + $0x18] sm:$0xf]
        %v12034 = vld [vmem:[%s4667 + $0x1c] sm:$0x1]
        %v12035 = vld [vmem:[%s4667 + $0x20] sm:$0xf]
        %v12036 = vld [vmem:[%s4667 + $0x24] sm:$0x1]
        %v12037 = vld [vmem:[%s4667 + $0x28] sm:$0xf]
        %v12038 = vld [vmem:[%s4667 + $0x2c] sm:$0x1]
        %v12039 = vld [vmem:[%s4667 + $0x30] sm:$0xf]
        %v12040 = vld [vmem:[%s4667 + $0x34] sm:$0x1]
        %v12041 = vld [vmem:[%s4667 + $0x38] sm:$0xf]
        %v12042 = vld [vmem:[%s4667 + $0x3c] sm:$0x1]
        %v12043 = vld [vmem:[%s4667 + $0x50] sm:$0xf]
        %v12044 = vld [vmem:[%s4667 + $0x54] sm:$0x1]
        %v12045 = vld [vmem:[%s4667 + $0x58] sm:$0xf]
        %v12046 = vld [vmem:[%s4667 + $0x5c] sm:$0x1]
        %v12047 = vld [vmem:[%s4667 + $0x60] sm:$0xf]
        %v12048 = vld [vmem:[%s4667 + $0x64] sm:$0x1]
        %v12049 = vld [vmem:[%s4667 + $0x68] sm:$0xf]
        %v12050 = vld [vmem:[%s4667 + $0x6c] sm:$0x1]
        %v12051 = vld [vmem:[%s4667 + $0x70] sm:$0xf]
        %v12052 = vld [vmem:[%s4667 + $0x74] sm:$0x1]
        %v12053 = vld [vmem:[%s4667 + $0x78] sm:$0xf]
        %v12054 = vld [vmem:[%s4667 + $0x7c] sm:$0x1]
        %v12055 = vld [vmem:[%s4667 + $0x80] sm:$0xf]
        %v12056 = vld [vmem:[%s4667 + $0x84] sm:$0x1]
        %v12057 = vld [vmem:[%s4667 + $0x88] sm:$0xf]
        %v12058 = vld [vmem:[%s4667 + $0x8c] sm:$0x1]
        %v12060 = vshrl.u32 %v12027, 16
        %v12062 = vrot.slane %v12060, 4
        %v12063 = vshll.u32 %v12027, 16
        %v12065 = vrot.slane %v12063, 5
        %v12066 = vor.u32 %v12062, %v12065
        %v12067 = vrot.slane %v12066, 4
        %v12069 = vshll.u32 %v12028, 16
        %v12071 = vrot.slane %v12069, 5
        %v12072 = vsel %vm728, %v12067, %v12071
        %v12074 = vshrl.u32 %v12029, 16
        %v12076 = vrot.slane %v12074, 4
        %v12077 = vshll.u32 %v12029, 16
        %v12079 = vrot.slane %v12077, 5
        %v12080 = vor.u32 %v12076, %v12079
        %v12081 = vrot.slane %v12080, 4
        %v12083 = vshll.u32 %v12030, 16
        %v12085 = vrot.slane %v12083, 5
        %v12086 = vsel %vm728, %v12081, %v12085
        %v12088 = vshrl.u32 %v12031, 16
        %v12090 = vrot.slane %v12088, 4
        %v12091 = vshll.u32 %v12031, 16
        %v12093 = vrot.slane %v12091, 5
        %v12094 = vor.u32 %v12090, %v12093
        %v12095 = vrot.slane %v12094, 4
        %v12097 = vshll.u32 %v12032, 16
        %v12099 = vrot.slane %v12097, 5
        %v12100 = vsel %vm728, %v12095, %v12099
        %v12102 = vshrl.u32 %v12033, 16
        %v12104 = vrot.slane %v12102, 4
        %v12105 = vshll.u32 %v12033, 16
        %v12107 = vrot.slane %v12105, 5
        %v12108 = vor.u32 %v12104, %v12107
        %v12109 = vrot.slane %v12108, 4
        %v12111 = vshll.u32 %v12034, 16
        %v12113 = vrot.slane %v12111, 5
        %v12114 = vsel %vm728, %v12109, %v12113
        %v12116 = vshrl.u32 %v12035, 16
        %v12118 = vrot.slane %v12116, 4
        %v12119 = vshll.u32 %v12035, 16
        %v12121 = vrot.slane %v12119, 5
        %v12122 = vor.u32 %v12118, %v12121
        %v12123 = vrot.slane %v12122, 4
        %v12125 = vshll.u32 %v12036, 16
        %v12127 = vrot.slane %v12125, 5
        %v12128 = vsel %vm728, %v12123, %v12127
        %v12130 = vshrl.u32 %v12037, 16
        %v12132 = vrot.slane %v12130, 4
        %v12133 = vshll.u32 %v12037, 16
        %v12135 = vrot.slane %v12133, 5
        %v12136 = vor.u32 %v12132, %v12135
        %v12137 = vrot.slane %v12136, 4
        %v12139 = vshll.u32 %v12038, 16
        %v12141 = vrot.slane %v12139, 5
        %v12142 = vsel %vm728, %v12137, %v12141
        %v12144 = vshrl.u32 %v12039, 16
        %v12146 = vrot.slane %v12144, 4
        %v12147 = vshll.u32 %v12039, 16
        %v12149 = vrot.slane %v12147, 5
        %v12150 = vor.u32 %v12146, %v12149
        %v12151 = vrot.slane %v12150, 4
        %v12153 = vshll.u32 %v12040, 16
        %v12155 = vrot.slane %v12153, 5
        %v12156 = vsel %vm728, %v12151, %v12155
        %v12158 = vshrl.u32 %v12041, 16
        %v12160 = vrot.slane %v12158, 4
        %v12161 = vshll.u32 %v12041, 16
        %v12163 = vrot.slane %v12161, 5
        %v12164 = vor.u32 %v12160, %v12163
        %v12165 = vrot.slane %v12164, 4
        %v12167 = vshll.u32 %v12042, 16
        %v12169 = vrot.slane %v12167, 5
        %v12170 = vsel %vm728, %v12165, %v12169
        %v12172 = vshrl.u32 %v12043, 16
        %v12174 = vrot.slane %v12172, 4
        %v12175 = vshll.u32 %v12043, 16
        %v12177 = vrot.slane %v12175, 5
        %v12178 = vor.u32 %v12174, %v12177
        %v12179 = vrot.slane %v12178, 4
        %v12181 = vshll.u32 %v12044, 16
        %v12183 = vrot.slane %v12181, 5
        %v12184 = vsel %vm728, %v12179, %v12183
        %v12186 = vshrl.u32 %v12045, 16
        %v12188 = vrot.slane %v12186, 4
        %v12189 = vshll.u32 %v12045, 16
        %v12191 = vrot.slane %v12189, 5
        %v12192 = vor.u32 %v12188, %v12191
        %v12193 = vrot.slane %v12192, 4
        %v12195 = vshll.u32 %v12046, 16
        %v12197 = vrot.slane %v12195, 5
        %v12198 = vsel %vm728, %v12193, %v12197
        %v12200 = vshrl.u32 %v12047, 16
        %v12202 = vrot.slane %v12200, 4
        %v12203 = vshll.u32 %v12047, 16
        %v12205 = vrot.slane %v12203, 5
        %v12206 = vor.u32 %v12202, %v12205
        %v12207 = vrot.slane %v12206, 4
        %v12209 = vshll.u32 %v12048, 16
        %v12211 = vrot.slane %v12209, 5
        %v12212 = vsel %vm728, %v12207, %v12211
        %v12214 = vshrl.u32 %v12049, 16
        %v12216 = vrot.slane %v12214, 4
        %v12217 = vshll.u32 %v12049, 16
        %v12219 = vrot.slane %v12217, 5
        %v12220 = vor.u32 %v12216, %v12219
        %v12221 = vrot.slane %v12220, 4
        %v12223 = vshll.u32 %v12050, 16
        %v12225 = vrot.slane %v12223, 5
        %v12226 = vsel %vm728, %v12221, %v12225
        %v12228 = vshrl.u32 %v12051, 16
        %v12230 = vrot.slane %v12228, 4
        %v12231 = vshll.u32 %v12051, 16
        %v12233 = vrot.slane %v12231, 5
        %v12234 = vor.u32 %v12230, %v12233
        %v12235 = vrot.slane %v12234, 4
        %v12237 = vshll.u32 %v12052, 16
        %v12239 = vrot.slane %v12237, 5
        %v12240 = vsel %vm728, %v12235, %v12239
        %v12242 = vshrl.u32 %v12053, 16
        %v12244 = vrot.slane %v12242, 4
        %v12245 = vshll.u32 %v12053, 16
        %v12247 = vrot.slane %v12245, 5
        %v12248 = vor.u32 %v12244, %v12247
        %v12249 = vrot.slane %v12248, 4
        %v12251 = vshll.u32 %v12054, 16
        %v12253 = vrot.slane %v12251, 5
        %v12254 = vsel %vm728, %v12249, %v12253
        %v12256 = vshrl.u32 %v12055, 16
        %v12258 = vrot.slane %v12256, 4
        %v12259 = vshll.u32 %v12055, 16
        %v12261 = vrot.slane %v12259, 5
        %v12262 = vor.u32 %v12258, %v12261
        %v12263 = vrot.slane %v12262, 4
        %v12265 = vshll.u32 %v12056, 16
        %v12267 = vrot.slane %v12265, 5
        %v12268 = vsel %vm728, %v12263, %v12267
        %v12270 = vshrl.u32 %v12057, 16
        %v12272 = vrot.slane %v12270, 4
        %v12273 = vshll.u32 %v12057, 16
        %v12275 = vrot.slane %v12273, 5
        %v12276 = vor.u32 %v12272, %v12275
        %v12277 = vrot.slane %v12276, 4
        %v12279 = vshll.u32 %v12058, 16
        %v12281 = vrot.slane %v12279, 5
        %v12282 = vsel %vm728, %v12277, %v12281
        %v12299 = vunpack.c.l.bf16 %v12011
        %v12300 = vunpack.c.l.bf16 %v12012
        %v12301 = vunpack.c.l.bf16 %v12013
        %v12302 = vunpack.c.l.bf16 %v12014
        %v12303 = vunpack.c.l.bf16 %v12015
        %v12304 = vunpack.c.l.bf16 %v12016
        %v12305 = vunpack.c.l.bf16 %v12017
        %v12306 = vunpack.c.l.bf16 %v12018
        %v12307 = vunpack.c.l.bf16 %v12019
        %v12308 = vunpack.c.l.bf16 %v12020
        %v12309 = vunpack.c.l.bf16 %v12021
        %v12310 = vunpack.c.l.bf16 %v12022
        %v12311 = vunpack.c.l.bf16 %v12023
        %v12312 = vunpack.c.l.bf16 %v12024
        %v12313 = vunpack.c.l.bf16 %v12025
        %v12314 = vunpack.c.l.bf16 %v12026
        %v12315 = vunpack.c.l.bf16 %v12072
        %v12316 = vunpack.c.l.bf16 %v12086
        %v12317 = vunpack.c.l.bf16 %v12100
        %v12318 = vunpack.c.l.bf16 %v12114
        %v12319 = vunpack.c.l.bf16 %v12128
        %v12320 = vunpack.c.l.bf16 %v12142
        %v12321 = vunpack.c.l.bf16 %v12156
        %v12322 = vunpack.c.l.bf16 %v12170
        %v12323 = vunpack.c.l.bf16 %v12184
        %v12324 = vunpack.c.l.bf16 %v12198
        %v12325 = vunpack.c.l.bf16 %v12212
        %v12326 = vunpack.c.l.bf16 %v12226
        %v12327 = vunpack.c.l.bf16 %v12240
        %v12328 = vunpack.c.l.bf16 %v12254
        %v12329 = vunpack.c.l.bf16 %v12268
        %v12330 = vunpack.c.l.bf16 %v12282
        %v12331 = vmax.f32 %v12299, %v12315
        %v12332 = vmax.f32 %v12300, %v12316
        %v12333 = vmax.f32 %v12301, %v12317
        %v12334 = vmax.f32 %v12302, %v12318
        %v12335 = vmax.f32 %v12303, %v12319
        %v12336 = vmax.f32 %v12304, %v12320
        %v12337 = vmax.f32 %v12305, %v12321
        %v12338 = vmax.f32 %v12306, %v12322
        %v12339 = vmax.f32 %v12307, %v12323
        %v12340 = vmax.f32 %v12308, %v12324
        %v12341 = vmax.f32 %v12309, %v12325
        %v12342 = vmax.f32 %v12310, %v12326
        %v12343 = vmax.f32 %v12311, %v12327
        %v12344 = vmax.f32 %v12312, %v12328
        %v12345 = vmax.f32 %v12313, %v12329
        %v12346 = vmax.f32 %v12314, %v12330
        %v12347 = vpack.c.bf16 %v12331, %v12331
        %v12348 = vpack.c.bf16 %v12332, %v12332
        %v12349 = vpack.c.bf16 %v12333, %v12333
        %v12350 = vpack.c.bf16 %v12334, %v12334
        %v12351 = vpack.c.bf16 %v12335, %v12335
        %v12352 = vpack.c.bf16 %v12336, %v12336
        %v12353 = vpack.c.bf16 %v12337, %v12337
        %v12354 = vpack.c.bf16 %v12338, %v12338
        %v12355 = vpack.c.bf16 %v12339, %v12339
        %v12356 = vpack.c.bf16 %v12340, %v12340
        %v12357 = vpack.c.bf16 %v12341, %v12341
        %v12358 = vpack.c.bf16 %v12342, %v12342
        %v12359 = vpack.c.bf16 %v12343, %v12343
        %v12360 = vpack.c.bf16 %v12344, %v12344
        %v12361 = vpack.c.bf16 %v12345, %v12345
        %v12362 = vpack.c.bf16 %v12346, %v12346
        %v12363 = vunpack.c.l.bf16 %v12347
        %v12364 = vunpack.c.l.bf16 %v12348
        %v12365 = vunpack.c.l.bf16 %v12349
        %v12366 = vunpack.c.l.bf16 %v12350
        %v12367 = vunpack.c.l.bf16 %v12351
        %v12368 = vunpack.c.l.bf16 %v12352
        %v12369 = vunpack.c.l.bf16 %v12353
        %v12370 = vunpack.c.l.bf16 %v12354
        %v12371 = vunpack.c.l.bf16 %v12355
        %v12372 = vunpack.c.l.bf16 %v12356
        %v12373 = vunpack.c.l.bf16 %v12357
        %v12374 = vunpack.c.l.bf16 %v12358
        %v12375 = vunpack.c.l.bf16 %v12359
        %v12376 = vunpack.c.l.bf16 %v12360
        %v12377 = vunpack.c.l.bf16 %v12361
        %v12378 = vunpack.c.l.bf16 %v12362
        %v12379 = vadd.f32 %v11067, %v12363
        %v12380 = vadd.f32 %v11068, %v12364
        %v12381 = vadd.f32 %v11069, %v12365
        %v12382 = vadd.f32 %v11070, %v12366
        %v12383 = vadd.f32 %v11071, %v12367
        %v12384 = vadd.f32 %v11072, %v12368
        %v12385 = vadd.f32 %v11073, %v12369
        %v12386 = vadd.f32 %v11074, %v12370
        %v12387 = vadd.f32 %v11075, %v12371
        %v12388 = vadd.f32 %v11076, %v12372
        %v12389 = vadd.f32 %v11077, %v12373
        %v12390 = vadd.f32 %v11078, %v12374
        %v12391 = vadd.f32 %v11079, %v12375
        %v12392 = vadd.f32 %v11080, %v12376
        %v12393 = vadd.f32 %v11081, %v12377
        %v12394 = vadd.f32 %v11082, %v12378
        %v12395 = vmax.f32 %v12379, 0.0
        %v12396 = vmax.f32 %v12380, 0.0
        %v12397 = vmax.f32 %v12381, 0.0
        %v12398 = vmax.f32 %v12382, 0.0
        %v12399 = vmax.f32 %v12383, 0.0
        %v12400 = vmax.f32 %v12384, 0.0
        %v12401 = vmax.f32 %v12385, 0.0
        %v12402 = vmax.f32 %v12386, 0.0
        %v12403 = vmax.f32 %v12387, 0.0
        %v12404 = vmax.f32 %v12388, 0.0
        %v12405 = vmax.f32 %v12389, 0.0
        %v12406 = vmax.f32 %v12390, 0.0
        %v12407 = vmax.f32 %v12391, 0.0
        %v12408 = vmax.f32 %v12392, 0.0
        %v12409 = vmax.f32 %v12393, 0.0
        %v12410 = vmax.f32 %v12394, 0.0
        %12411 = vst.msk [vmem:[%s355] sm:$0xff] %vm489, %v12395
        %12412 = vst.msk [vmem:[%s355 + $0x8] sm:$0xff] %vm489, %v12396
        %12413 = vst.msk [vmem:[%s355 + $0x10] sm:$0xff] %vm489, %v12397
        %12414 = vst.msk [vmem:[%s355 + $0x18] sm:$0xff] %vm489, %v12398
        %12415 = vst.msk [vmem:[%s355 + $0x20] sm:$0xff] %vm489, %v12399
        %12416 = vst.msk [vmem:[%s355 + $0x28] sm:$0xff] %vm489, %v12400
        %12417 = vst.msk [vmem:[%s355 + $0x30] sm:$0xff] %vm489, %v12401
        %12418 = vst.msk [vmem:[%s355 + $0x38] sm:$0xff] %vm489, %v12402
        %12419 = vst.msk [vmem:[%s355 + $0x40] sm:$0xff] %vm489, %v12403
        %12420 = vst.msk [vmem:[%s355 + $0x48] sm:$0xff] %vm489, %v12404
        %12421 = vst.msk [vmem:[%s355 + $0x50] sm:$0xff] %vm489, %v12405
        %12422 = vst.msk [vmem:[%s355 + $0x58] sm:$0xff] %vm489, %v12406
        %12423 = vst.msk [vmem:[%s355 + $0x60] sm:$0xff] %vm489, %v12407
        %12424 = vst.msk [vmem:[%s355 + $0x68] sm:$0xff] %vm489, %v12408
        %12425 = vst.msk [vmem:[%s355 + $0x70] sm:$0xff] %vm489, %v12409
        %12426 = vst.msk [vmem:[%s355 + $0x78] sm:$0xff] %vm489, %v12410
        %s12427 = sand.u32 %s218, 1
        %s12428 = scalar_lea.sflag [#allocation4], %s12427
        %s12429 = sand.u32 %s218, 1
        %s12430 = smul.addr %s12429, 128
        %s12431 = scalar_lea.vmem [#allocation3], %s12430
        // Predicated region
        $region53: #{blaze_block_forward.1} parent=51 // pred_check
          %p12432 = pneg %p228
        $region54: #{blaze_block_forward.1} parent=51 // pred_check_branch
          %12434 = sbr.rel (%p12432) target = $region56
        $region55: #{blaze_block_forward.1} parent=51 // pred_region
          %s12435 = smul.u32 2, %s22
          %12437 = vsyncadd %s12428, 0
          %s12438 = smul.addr %s12435, 8
          %s12439 = smul.addr %s12438, 8
          %s12440 = scalar_lea.hbm %s8, %s12439
          %s12441 = sshll.u32 %s12431, 4
          %s12442 = int_to_ptr.vmem [resolvable:$true] %s12441
          %s12443 = sshll.u32 %s12440, 4
          %s12444 = int_to_ptr.hbm [resolvable:$true] %s12443
          %12449 = dma.vmem_to_hbm [thread:$0]  %s12442, 2048, %s12444, %s12428, 128, 128, 8
        $region56: #{blaze_block_forward.1} parent=51 // pred_fallthru
          _
      $region52: #{blaze_block_forward.1} parent=5 // pred_fallthru
        _
      %p12450 = scmp.le.s32.totalorder 2, %s17
      // Predicated region
      $region57: #{blaze_block_forward.1} parent=5 // pred_check
        %p12451 = pneg %p12450
      $region58: #{blaze_block_forward.1} parent=5 // pred_check_branch
        %12453 = sbr.rel (%p12451) target = $region60
      $region59: #{blaze_block_forward.1} parent=5 // pred_region
        %s12454 = ssub.s32 %s17, 2
        // Predicated region
        $region61: #{blaze_block_forward.1} parent=59 // pred_check
          %p12455 = pneg %p234
        $region62: #{blaze_block_forward.1} parent=59 // pred_check_branch
          %12457 = sbr.rel (%p12455) target = $region64
        $region63: #{blaze_block_forward.1} parent=59 // pred_region
          %s12458 = sand.u32 %s219, 1
          %s12459 = scalar_lea.sflag [#allocation4], %s12458
          %s12460 = sand.u32 %s219, 1
          %s12461 = smul.addr %s12460, 128
          %s12462 = scalar_lea.vmem [#allocation3], %s12461
          %12464 = dma.done %s12459, 2048
        $region64: #{blaze_block_forward.1} parent=59 // pred_fallthru
          _
      $region60: #{blaze_block_forward.1} parent=5 // pred_fallthru
        _
    $region6: #{blaze_block_forward.1} parent=1 // loop_footer
      %s21 = sadd.s32 1, %s17
    $region7: #{blaze_block_forward.1} parent=1 // loop_footer_branch
      %16 = sbr.rel target = $region3
    $region8: #{blaze_block_forward.1} parent=1 // loop_exit
      _
    %12465 = vsyncpa [#allocation4], 1
    %s12466 = scalar_lea.sflag [#allocation4], 1
    %12467 = vsyncpa %s12466, 1

</llo_original>
